<compile_context>
chip_gen: v7x
topology: tpu7x:2x2x1
jax: 0.10.0
libtpu: 0.0.40
codegen_flags: <defaults>
</compile_context>

<pallas_src>
import functools
import math

import jax
import jax.numpy as jnp
from jax.experimental import pallas as pl
from jax.experimental.pallas import tpu as pltpu


# ----------------------------- in-kernel helpers -----------------------------

def _mm(x, w, md):
    """x: (M, K) f32 activation, w: (K, N) weight already in matmul dtype `md`."""
    return jax.lax.dot_general(
        x.astype(md), w,
        dimension_numbers=(((1,), (0,)), ((), ())),
        preferred_element_type=jnp.float32)


def _wslice(ref, off, rows):
    # static, 8-row-aligned slice of a packed weight slab -> (rows, N) value in md
    return ref[off:off + rows, :]


def _brow(ref, row):
    # static 1-row slice of a packed bias / LayerNorm slab -> (1, N) f32
    return ref[row:row + 1, :]


def _layernorm(x, g, b, eps=1e-5):
    # torch LayerNorm: biased variance, eps=1e-5, f32 math
    mu = jnp.mean(x, axis=-1, keepdims=True)
    xc = x - mu
    var = jnp.mean(xc * xc, axis=-1, keepdims=True)
    return xc * jax.lax.rsqrt(var + eps) * g + b


def _softmax_rows(s, approx):
    s = s - jnp.max(s, axis=-1, keepdims=True)
    e = jnp.exp(s)
    d = jnp.sum(e, axis=-1, keepdims=True)
    if approx:
        return e * pl.reciprocal(d, approx=True)   # EUP slot; VALU stays free
    return e / d                                   # exact path for f32 parity


def _mha(q_tok, kv_tok, blk, refs, *, num_heads, S, Bt, md, approx, self_attn):
    E = q_tok.shape[1]
    Dh = E // num_heads
    w_in = _wslice(refs["w_qkv"], blk["in_off"], E)     # (E, 3E) md, Q cols pre-scaled
    b_in = _brow(refs["b_qkv"], blk["in_b"])            # (1, 3E) f32, Q part pre-scaled
    if self_attn:                                       # one fused (rows,E)@(E,3E)
        qkv = _mm(q_tok, w_in, md) + b_in
        q, k, v = qkv[:, :E], qkv[:, E:2 * E], qkv[:, 2 * E:]
    else:                                               # Q from tgt, fused KV from memory
        q = _mm(q_tok, w_in[:, :E], md) + b_in[:, :E]
        kv = _mm(kv_tok, w_in[:, E:], md) + b_in[:, E:]
        k, v = kv[:, :E], kv[:, E:]
    qm, km, vm = q.astype(md), k.astype(md), v.astype(md)   # cast once, not per head

    outs = []
    for bt in range(Bt):                                # per-batch attention (static unroll)
        r = slice(bt * S, (bt + 1) * S)
        heads = []
        for h in range(num_heads):                      # heads = adjacent lane slices
            c = slice(h * Dh, (h + 1) * Dh)
            s = jax.lax.dot_general(qm[r, c], km[r, c],
                                    dimension_numbers=(((1,), (1,)), ((), ())),
                                    preferred_element_type=jnp.float32)
            p = _softmax_rows(s, approx)
            heads.append(jax.lax.dot_general(p.astype(md), vm[r, c],
                                             dimension_numbers=(((1,), (0,)), ((), ())),
                                             preferred_element_type=jnp.float32))
        outs.append(jnp.concatenate(heads, axis=1))     # (S, E): heads into lane slices
    o = jnp.concatenate(outs, axis=0)                   # (Bt*S, E)
    # single fused output projection (head concat folded into ONE matmul)
    w_out = _wslice(refs["w_e"], blk["out_off"], E)     # (E, E) md
    return _mm(o, w_out, md) + _brow(refs["b_e"], blk["out_b"])


def _ffn(x, blk, refs, md):
    E = x.shape[1]
    h = _mm(x, _wslice(refs["w_ffn"], blk["lin1_off"], E), md) + _brow(refs["b_ffn"], blk["lin1_b"])
    h = jnp.maximum(h, 0.0)
    return _mm(h, _wslice(refs["w_e"], blk["lin2_off"], 4 * E), md) + _brow(refs["b_e"], blk["lin2_b"])


def _ln(x, ln, refs):
    return _layernorm(x, _brow(refs["b_e"], ln["g"]), _brow(refs["b_e"], ln["b"]))


def _encoder_layer(x, lp, refs, **kw):
    a = _mha(x, x, lp["attn"], refs, self_attn=True, **kw)
    x = _ln(x + a, lp["ln1"], refs)
    f = _ffn(x, lp["ffn"], refs, kw["md"])
    return _ln(x + f, lp["ln2"], refs)


def _decoder_layer(x, mem, lp, refs, **kw):
    a = _mha(x, x, lp["self"], refs, self_attn=True, **kw)
    x = _ln(x + a, lp["ln1"], refs)
    c = _mha(x, mem, lp["cross"], refs, self_attn=False, **kw)
    x = _ln(x + c, lp["ln2"], refs)
    f = _ffn(x, lp["ffn"], refs, kw["md"])
    return _ln(x + f, lp["ln3"], refs)


# ------------------------------ fused kernel ------------------------------

def _transformer_kernel(x_ref, w_e, w_qkv, w_ffn, b_e, b_qkv, b_ffn, o_ref, *,
                        plan, num_heads, S, Bt, md, approx):
    refs = {"w_e": w_e, "w_qkv": w_qkv, "w_ffn": w_ffn,
            "b_e": b_e, "b_qkv": b_qkv, "b_ffn": b_ffn}
    kw = dict(num_heads=num_heads, S=S, Bt=Bt, md=md, approx=approx)

    x = x_ref[...]                                                   # (Bt*S, input_dim) f32
    tok = _mm(x, _wslice(w_e, plan["embed_off"], plan["embed_rows"]), md) \
        + _brow(b_e, plan["embed_b"])                                # (Bt*S, E)

    mem = tok
    for lp in plan["enc_layers"]:
        mem = _encoder_layer(mem, lp, refs, **kw)
    mem = _ln(mem, plan["enc_norm"], refs)                           # final encoder norm

    out = tok
    for lp in plan["dec_layers"]:
        out = _decoder_layer(out, mem, lp, refs, **kw)
    out = _ln(out, plan["dec_norm"], refs)                           # final decoder norm

    o_ref[...] = out.astype(o_ref.dtype)


# --------------------------- host-side param packing ---------------------------

def pack_params(params, num_heads, matmul_dtype=jnp.bfloat16):
    """Pack torch-layout params into 6 contiguous slabs + a static plan of row offsets.

    Weights: transposed to (K, N), pre-cast to `matmul_dtype`, row-concatenated (8-row
    aligned) into one slab per lane width (E / 3E / 4E).  Biases & LayerNorm params stay
    f32, row-stacked per width.  The 1/sqrt(Dh) attention scale is folded into the Q block
    of in_proj (free at runtime).  Use matmul_dtype=jnp.float32 for exact f32 parity.
    """
    md = matmul_dtype
    E = params["embed_w"].shape[0]
    scale = 1.0 / math.sqrt(E // num_heads)

    w_parts = {"e": [], "qkv": [], "ffn": []}
    b_parts = {"e": [], "qkv": [], "ffn": []}

    def add_w(role, mat_t):
        lst = w_parts[role]
        off = sum(m.shape[0] for m in lst)
        rows, width = mat_t.shape
        pad = (-rows) % 8                       # keep every weight's row offset 8-aligned
        if pad:
            mat_t = jnp.concatenate([mat_t, jnp.zeros((pad, width), mat_t.dtype)], axis=0)
        lst.append(mat_t.astype(md))
        return off, rows

    def add_b(role, vec):
        lst = b_parts[role]
        idx = len(lst)
        lst.append(vec.reshape(1, -1).astype(jnp.float32))
        return idx

    def pack_attn(ap):
        w_in = ap["in_proj_w"].T                                   # (E, 3E)
        w_in = w_in.at[:, :E].multiply(scale)                      # fold attn scale into Q
        b_in = ap["in_proj_b"].at[:E].multiply(scale)
        in_off, _ = add_w("qkv", w_in)
        out_off, _ = add_w("e", ap["out_proj_w"].T)                # (E, E)
        return {"in_off": in_off, "in_b": add_b("qkv", b_in),
                "out_off": out_off, "out_b": add_b("e", ap["out_proj_b"])}

    def pack_ffn(lp):
        lin1_off, _ = add_w("ffn", lp["lin1_w"].T)                 # (E, 4E)
        lin2_off, _ = add_w("e", lp["lin2_w"].T)                   # (4E, E)
        return {"lin1_off": lin1_off, "lin1_b": add_b("ffn", lp["lin1_b"]),
                "lin2_off": lin2_off, "lin2_b": add_b("e", lp["lin2_b"])}

    def pack_ln(g, b):
        return {"g": add_b("e", g), "b": add_b("e", b)}

    embed_off, embed_rows = add_w("e", params["embed_w"].T)        # (input_dim, E)
    embed_b = add_b("e", params["embed_b"])

    enc_layers = []
    for lp in params["enc_layers"]:
        enc_layers.append({"attn": pack_attn(lp["self_attn"]),
                           "ffn": pack_ffn(lp),
                           "ln1": pack_ln(lp["norm1_g"], lp["norm1_b"]),
                           "ln2": pack_ln(lp["norm2_g"], lp["norm2_b"])})
    dec_layers = []
    for lp in params["dec_layers"]:
        dec_layers.append({"self": pack_attn(lp["self_attn"]),
                           "cross": pack_attn(lp["cross_attn"]),
                           "ffn": pack_ffn(lp),
                           "ln1": pack_ln(lp["norm1_g"], lp["norm1_b"]),
                           "ln2": pack_ln(lp["norm2_g"], lp["norm2_b"]),
                           "ln3": pack_ln(lp["norm3_g"], lp["norm3_b"])})

    plan = {"embed_off": embed_off, "embed_rows": embed_rows, "embed_b": embed_b,
            "enc_layers": enc_layers, "dec_layers": dec_layers,
            "enc_norm": pack_ln(params["enc_norm_g"], params["enc_norm_b"]),
            "dec_norm": pack_ln(params["dec_norm_g"], params["dec_norm_b"]),
            "embed_dim": E}

    slabs = {"w_e": jnp.concatenate(w_parts["e"], axis=0),
             "w_qkv": jnp.concatenate(w_parts["qkv"], axis=0),
             "w_ffn": jnp.concatenate(w_parts["ffn"], axis=0),
             "b_e": jnp.concatenate(b_parts["e"], axis=0),
             "b_qkv": jnp.concatenate(b_parts["qkv"], axis=0),
             "b_ffn": jnp.concatenate(b_parts["ffn"], axis=0)}
    return slabs, plan


# ------------------------------- forward wrapper -------------------------------

def simple_transformer_forward(x, slabs, *, plan, num_heads, batch_tile=None):
    B, S, input_dim = x.shape
    E = plan["embed_dim"]
    Bt = B if batch_tile is None else batch_tile          # v7x: use Bt=B//2 for 2 TC grid steps
    assert B % Bt == 0
    md = slabs["w_e"].dtype                               # matmul dtype fixed at pack time
    approx = md != jnp.float32                            # exact division on the f32-parity path

    x2d = x.reshape(B * S, input_dim).astype(jnp.float32)

    slab_order = ("w_e", "w_qkv", "w_ffn", "b_e", "b_qkv", "b_ffn")
    in_specs = [pl.BlockSpec((Bt * S, input_dim), lambda i: (i, 0))]
    in_specs += [pl.BlockSpec(slabs[n].shape, lambda i: (0, 0)) for n in slab_order]

    out2d = pl.pallas_call(
        functools.partial(_transformer_kernel, plan=plan, num_heads=num_heads,
                          S=S, Bt=Bt, md=md, approx=approx),
        grid=(B // Bt,),
        in_specs=in_specs,
        out_specs=pl.BlockSpec((Bt * S, E), lambda i: (i, 0)),
        out_shape=jax.ShapeDtypeStruct((B * S, E), x.dtype),
        compiler_params=pltpu.CompilerParams(
            dimension_semantics=("parallel",),
            vmem_limit_bytes=32 * 1024 * 1024),           # explicit guardrail (v7x: 64 MiB phys)
    )(x2d, *(slabs[n] for n in slab_order))

    # == .permute(1,0,2).contiguous().view(B, -1): rows are batch-major so this reshape is free.
    return out2d.reshape(B, S * E)


# ------------------------------- parameters -------------------------------

def init_params(key, input_dim, embed_dim, num_layers):
    ff = embed_dim * 4
    keys = iter(jax.random.split(key, 4096))

    def w(shape, scale=0.05):
        return jax.random.normal(next(keys), shape, dtype=jnp.float32) * scale

    def attn_p():
        return {"in_proj_w": w((3 * embed_dim, embed_dim)),
                "in_proj_b": jnp.zeros((3 * embed_dim,), jnp.float32),
                "out_proj_w": w((embed_dim, embed_dim)),
                "out_proj_b": jnp.zeros((embed_dim,), jnp.float32)}

    def ln():
        return jnp.ones((embed_dim,), jnp.float32), jnp.zeros((embed_dim,), jnp.float32)

    def enc_layer():
        g1, b1 = ln(); g2, b2 = ln()
        return {"self_attn": attn_p(),
                "lin1_w": w((ff, embed_dim)), "lin1_b": jnp.zeros((ff,), jnp.float32),
                "lin2_w": w((embed_dim, ff)), "lin2_b": jnp.zeros((embed_dim,), jnp.float32),
                "norm1_g": g1, "norm1_b": b1, "norm2_g": g2, "norm2_b": b2}

    def dec_layer():
        g1, b1 = ln(); g2, b2 = ln(); g3, b3 = ln()
        return {"self_attn": attn_p(), "cross_attn": attn_p(),
                "lin1_w": w((ff, embed_dim)), "lin1_b": jnp.zeros((ff,), jnp.float32),
                "lin2_w": w((embed_dim, ff)), "lin2_b": jnp.zeros((embed_dim,), jnp.float32),
                "norm1_g": g1, "norm1_b": b1, "norm2_g": g2, "norm2_b": b2,
                "norm3_g": g3, "norm3_b": b3}

    eg, eb = ln()
    dg, db = ln()
    return {"embed_w": w((embed_dim, input_dim)),
            "embed_b": jnp.zeros((embed_dim,), jnp.float32),
            "enc_layers": [enc_layer() for _ in range(num_layers)],
            "dec_layers": [dec_layer() for _ in range(num_layers)],
            "enc_norm_g": eg, "enc_norm_b": eb,
            "dec_norm_g": dg, "dec_norm_b": db}


# ---------------------------------- main ----------------------------------

if __name__ == "__main__":
    # SimpleTransformer(input_dim=16, embed_dim=32, num_heads=4, num_layers=2, dropout=0.0)
    INPUT_DIM, EMBED_DIM, NUM_HEADS, NUM_LAYERS = 16, 32, 4, 2
    BATCH, SEQ = 2, 8
    # TODO(synk): dropout is a no-op here (eval semantics); training-mode RNG dropout not implemented.

    key = jax.random.PRNGKey(0)
    k_x, k_p = jax.random.split(key)
    x = jax.random.normal(k_x, (BATCH, SEQ, INPUT_DIM), dtype=jnp.float32)
    params = init_params(k_p, INPUT_DIM, EMBED_DIM, NUM_LAYERS)

    # one-time host-side packing: transpose / pre-cast / 8-aligned concat into 6 slabs
    slabs, plan = pack_params(params, num_heads=NUM_HEADS, matmul_dtype=jnp.bfloat16)

    fwd = jax.jit(functools.partial(simple_transformer_forward,
                                    plan=plan, num_heads=NUM_HEADS))
    out = fwd(x, slabs)
    jax.block_until_ready(out)
    assert out.shape == (BATCH, SEQ * EMBED_DIM), out.shape
    print("KERNEL_OK")
</pallas_src>

<mosaic_0001>
module attributes {stable_mosaic.version = 11 : i64} {
  func.func @_transformer_kernel(%arg0: i32, %arg1: memref<16x16xf32, #tpu.memory_space<vmem>>, %arg2: memref<720x32xbf16, #tpu.memory_space<vmem>>, %arg3: memref<192x96xbf16, #tpu.memory_space<vmem>>, %arg4: memref<128x128xbf16, #tpu.memory_space<vmem>>, %arg5: memref<35x32xf32, #tpu.memory_space<vmem>>, %arg6: memref<6x96xf32, #tpu.memory_space<vmem>>, %arg7: memref<4x128xf32, #tpu.memory_space<vmem>>, %arg8: memref<16x32xf32, #tpu.memory_space<vmem>>) attributes {dimension_semantics = [#tpu.dimension_semantics<parallel>], iteration_bounds = array<i64: 1>, scalar_prefetch = 0 : i64, scratch_operands = 0 : i64, tpu.core_type = #tpu.core_type<tc>, window_params = [{transform_indices = @transform_0, window_bounds = array<i64: 16, 16>}, {pipeline_mode = #tpu.pipeline_mode<synchronous>, transform_indices = @transform_1, window_bounds = array<i64: 720, 32>}, {pipeline_mode = #tpu.pipeline_mode<synchronous>, transform_indices = @transform_2, window_bounds = array<i64: 192, 96>}, {pipeline_mode = #tpu.pipeline_mode<synchronous>, transform_indices = @transform_3, window_bounds = array<i64: 128, 128>}, {pipeline_mode = #tpu.pipeline_mode<synchronous>, transform_indices = @transform_4, window_bounds = array<i64: 35, 32>}, {pipeline_mode = #tpu.pipeline_mode<synchronous>, transform_indices = @transform_5, window_bounds = array<i64: 6, 96>}, {pipeline_mode = #tpu.pipeline_mode<synchronous>, transform_indices = @transform_6, window_bounds = array<i64: 4, 128>}, {transform_indices = @transform_7, window_bounds = array<i64: 16, 32>}]} {
    %c0 = arith.constant 0 : index
    %c0_0 = arith.constant 0 : index
    %0 = vector.load %arg1[%c0, %c0_0] : memref<16x16xf32, #tpu.memory_space<vmem>>, vector<16x16xf32>
    %c0_1 = arith.constant 0 : index
    %c0_2 = arith.constant 0 : index
    %1 = vector.load %arg2[%c0_1, %c0_2] : memref<720x32xbf16, #tpu.memory_space<vmem>>, vector<16x32xbf16>
    %2 = arith.truncf %0 : vector<16x16xf32> to vector<16x16xbf16>
    %cst = arith.constant dense<0.000000e+00> : vector<16x32xf32>
    %3 = tpu.matmul %2, %1, %cst {dimension_numbers = #tpu.dot_dimension_numbers<[1], [0], [0], [1], [0, 0, 1, 1], [], []>} : vector<16x16xbf16>, vector<16x32xbf16>, vector<16x32xf32> -> vector<16x32xf32>
    %c0_3 = arith.constant 0 : index
    %c0_4 = arith.constant 0 : index
    %4 = vector.load %arg5[%c0_3, %c0_4] : memref<35x32xf32, #tpu.memory_space<vmem>>, vector<1x32xf32>
    %5 = vector.broadcast %4 : vector<1x32xf32> to vector<16x32xf32>
    %6 = arith.addf %3, %5 : vector<16x32xf32>
    %c0_5 = arith.constant 0 : index
    %c0_6 = arith.constant 0 : index
    %7 = vector.load %arg3[%c0_5, %c0_6] : memref<192x96xbf16, #tpu.memory_space<vmem>>, vector<32x96xbf16>
    %c0_7 = arith.constant 0 : index
    %c0_8 = arith.constant 0 : index
    %8 = vector.load %arg6[%c0_7, %c0_8] : memref<6x96xf32, #tpu.memory_space<vmem>>, vector<1x96xf32>
    %9 = arith.truncf %6 : vector<16x32xf32> to vector<16x32xbf16>
    %cst_9 = arith.constant dense<0.000000e+00> : vector<16x96xf32>
    %10 = tpu.matmul %9, %7, %cst_9 {dimension_numbers = #tpu.dot_dimension_numbers<[1], [0], [0], [1], [0, 0, 1, 1], [], []>} : vector<16x32xbf16>, vector<32x96xbf16>, vector<16x96xf32> -> vector<16x96xf32>
    %11 = vector.broadcast %8 : vector<1x96xf32> to vector<16x96xf32>
    %12 = arith.addf %10, %11 : vector<16x96xf32>
    %13 = vector.extract_strided_slice %12 {offsets = [0, 0], sizes = [16, 32], strides = [1, 1]} : vector<16x96xf32> to vector<16x32xf32>
    %14 = vector.extract_strided_slice %12 {offsets = [0, 32], sizes = [16, 32], strides = [1, 1]} : vector<16x96xf32> to vector<16x32xf32>
    %15 = vector.extract_strided_slice %12 {offsets = [0, 64], sizes = [16, 32], strides = [1, 1]} : vector<16x96xf32> to vector<16x32xf32>
    %16 = arith.truncf %13 : vector<16x32xf32> to vector<16x32xbf16>
    %17 = arith.truncf %14 : vector<16x32xf32> to vector<16x32xbf16>
    %18 = arith.truncf %15 : vector<16x32xf32> to vector<16x32xbf16>
    %19 = vector.extract_strided_slice %16 {offsets = [0, 0], sizes = [8, 8], strides = [1, 1]} : vector<16x32xbf16> to vector<8x8xbf16>
    %20 = vector.extract_strided_slice %17 {offsets = [0, 0], sizes = [8, 8], strides = [1, 1]} : vector<16x32xbf16> to vector<8x8xbf16>
    %cst_10 = arith.constant dense<0.000000e+00> : vector<8x8xf32>
    %21 = tpu.matmul %19, %20, %cst_10 {dimension_numbers = #tpu.dot_dimension_numbers<[1], [1], [0], [0], [0, 0, 1, 0], [], []>} : vector<8x8xbf16>, vector<8x8xbf16>, vector<8x8xf32> -> vector<8x8xf32>
    %cst_11 = arith.constant dense<0xFF800000> : vector<8xf32>
    %22 = vector.multi_reduction <maximumf>, %21, %cst_11 [1] : vector<8x8xf32> to vector<8xf32>
    %23 = vector.shape_cast %22 : vector<8xf32> to vector<8x1xf32>
    %24 = vector.broadcast %23 : vector<8x1xf32> to vector<8x8xf32>
    %25 = arith.subf %21, %24 : vector<8x8xf32>
    %26 = math.exp %25 : vector<8x8xf32>
    %cst_12 = arith.constant dense<0.000000e+00> : vector<8xf32>
    %27 = vector.multi_reduction <add>, %26, %cst_12 [1] : vector<8x8xf32> to vector<8xf32>
    %28 = vector.shape_cast %27 : vector<8xf32> to vector<8x1xf32>
    %29 = tpu.reciprocal %28 {approx = true} : vector<8x1xf32> -> vector<8x1xf32>
    %30 = vector.broadcast %29 : vector<8x1xf32> to vector<8x8xf32>
    %31 = arith.mulf %26, %30 : vector<8x8xf32>
    %32 = arith.truncf %31 : vector<8x8xf32> to vector<8x8xbf16>
    %33 = vector.extract_strided_slice %18 {offsets = [0, 0], sizes = [8, 8], strides = [1, 1]} : vector<16x32xbf16> to vector<8x8xbf16>
    %cst_13 = arith.constant dense<0.000000e+00> : vector<8x8xf32>
    %34 = tpu.matmul %32, %33, %cst_13 {dimension_numbers = #tpu.dot_dimension_numbers<[1], [0], [0], [1], [0, 0, 1, 1], [], []>} : vector<8x8xbf16>, vector<8x8xbf16>, vector<8x8xf32> -> vector<8x8xf32>
    %35 = vector.extract_strided_slice %16 {offsets = [0, 8], sizes = [8, 8], strides = [1, 1]} : vector<16x32xbf16> to vector<8x8xbf16>
    %36 = vector.extract_strided_slice %17 {offsets = [0, 8], sizes = [8, 8], strides = [1, 1]} : vector<16x32xbf16> to vector<8x8xbf16>
    %cst_14 = arith.constant dense<0.000000e+00> : vector<8x8xf32>
    %37 = tpu.matmul %35, %36, %cst_14 {dimension_numbers = #tpu.dot_dimension_numbers<[1], [1], [0], [0], [0, 0, 1, 0], [], []>} : vector<8x8xbf16>, vector<8x8xbf16>, vector<8x8xf32> -> vector<8x8xf32>
    %cst_15 = arith.constant dense<0xFF800000> : vector<8xf32>
    %38 = vector.multi_reduction <maximumf>, %37, %cst_15 [1] : vector<8x8xf32> to vector<8xf32>
    %39 = vector.shape_cast %38 : vector<8xf32> to vector<8x1xf32>
    %40 = vector.broadcast %39 : vector<8x1xf32> to vector<8x8xf32>
    %41 = arith.subf %37, %40 : vector<8x8xf32>
    %42 = math.exp %41 : vector<8x8xf32>
    %cst_16 = arith.constant dense<0.000000e+00> : vector<8xf32>
    %43 = vector.multi_reduction <add>, %42, %cst_16 [1] : vector<8x8xf32> to vector<8xf32>
    %44 = vector.shape_cast %43 : vector<8xf32> to vector<8x1xf32>
    %45 = tpu.reciprocal %44 {approx = true} : vector<8x1xf32> -> vector<8x1xf32>
    %46 = vector.broadcast %45 : vector<8x1xf32> to vector<8x8xf32>
    %47 = arith.mulf %42, %46 : vector<8x8xf32>
    %48 = arith.truncf %47 : vector<8x8xf32> to vector<8x8xbf16>
    %49 = vector.extract_strided_slice %18 {offsets = [0, 8], sizes = [8, 8], strides = [1, 1]} : vector<16x32xbf16> to vector<8x8xbf16>
    %cst_17 = arith.constant dense<0.000000e+00> : vector<8x8xf32>
    %50 = tpu.matmul %48, %49, %cst_17 {dimension_numbers = #tpu.dot_dimension_numbers<[1], [0], [0], [1], [0, 0, 1, 1], [], []>} : vector<8x8xbf16>, vector<8x8xbf16>, vector<8x8xf32> -> vector<8x8xf32>
    %51 = vector.extract_strided_slice %16 {offsets = [0, 16], sizes = [8, 8], strides = [1, 1]} : vector<16x32xbf16> to vector<8x8xbf16>
    %52 = vector.extract_strided_slice %17 {offsets = [0, 16], sizes = [8, 8], strides = [1, 1]} : vector<16x32xbf16> to vector<8x8xbf16>
    %cst_18 = arith.constant dense<0.000000e+00> : vector<8x8xf32>
    %53 = tpu.matmul %51, %52, %cst_18 {dimension_numbers = #tpu.dot_dimension_numbers<[1], [1], [0], [0], [0, 0, 1, 0], [], []>} : vector<8x8xbf16>, vector<8x8xbf16>, vector<8x8xf32> -> vector<8x8xf32>
    %cst_19 = arith.constant dense<0xFF800000> : vector<8xf32>
    %54 = vector.multi_reduction <maximumf>, %53, %cst_19 [1] : vector<8x8xf32> to vector<8xf32>
    %55 = vector.shape_cast %54 : vector<8xf32> to vector<8x1xf32>
    %56 = vector.broadcast %55 : vector<8x1xf32> to vector<8x8xf32>
    %57 = arith.subf %53, %56 : vector<8x8xf32>
    %58 = math.exp %57 : vector<8x8xf32>
    %cst_20 = arith.constant dense<0.000000e+00> : vector<8xf32>
    %59 = vector.multi_reduction <add>, %58, %cst_20 [1] : vector<8x8xf32> to vector<8xf32>
    %60 = vector.shape_cast %59 : vector<8xf32> to vector<8x1xf32>
    %61 = tpu.reciprocal %60 {approx = true} : vector<8x1xf32> -> vector<8x1xf32>
    %62 = vector.broadcast %61 : vector<8x1xf32> to vector<8x8xf32>
    %63 = arith.mulf %58, %62 : vector<8x8xf32>
    %64 = arith.truncf %63 : vector<8x8xf32> to vector<8x8xbf16>
    %65 = vector.extract_strided_slice %18 {offsets = [0, 16], sizes = [8, 8], strides = [1, 1]} : vector<16x32xbf16> to vector<8x8xbf16>
    %cst_21 = arith.constant dense<0.000000e+00> : vector<8x8xf32>
    %66 = tpu.matmul %64, %65, %cst_21 {dimension_numbers = #tpu.dot_dimension_numbers<[1], [0], [0], [1], [0, 0, 1, 1], [], []>} : vector<8x8xbf16>, vector<8x8xbf16>, vector<8x8xf32> -> vector<8x8xf32>
    %67 = vector.extract_strided_slice %16 {offsets = [0, 24], sizes = [8, 8], strides = [1, 1]} : vector<16x32xbf16> to vector<8x8xbf16>
    %68 = vector.extract_strided_slice %17 {offsets = [0, 24], sizes = [8, 8], strides = [1, 1]} : vector<16x32xbf16> to vector<8x8xbf16>
    %cst_22 = arith.constant dense<0.000000e+00> : vector<8x8xf32>
    %69 = tpu.matmul %67, %68, %cst_22 {dimension_numbers = #tpu.dot_dimension_numbers<[1], [1], [0], [0], [0, 0, 1, 0], [], []>} : vector<8x8xbf16>, vector<8x8xbf16>, vector<8x8xf32> -> vector<8x8xf32>
    %cst_23 = arith.constant dense<0xFF800000> : vector<8xf32>
    %70 = vector.multi_reduction <maximumf>, %69, %cst_23 [1] : vector<8x8xf32> to vector<8xf32>
    %71 = vector.shape_cast %70 : vector<8xf32> to vector<8x1xf32>
    %72 = vector.broadcast %71 : vector<8x1xf32> to vector<8x8xf32>
    %73 = arith.subf %69, %72 : vector<8x8xf32>
    %74 = math.exp %73 : vector<8x8xf32>
    %cst_24 = arith.constant dense<0.000000e+00> : vector<8xf32>
    %75 = vector.multi_reduction <add>, %74, %cst_24 [1] : vector<8x8xf32> to vector<8xf32>
    %76 = vector.shape_cast %75 : vector<8xf32> to vector<8x1xf32>
    %77 = tpu.reciprocal %76 {approx = true} : vector<8x1xf32> -> vector<8x1xf32>
    %78 = vector.broadcast %77 : vector<8x1xf32> to vector<8x8xf32>
    %79 = arith.mulf %74, %78 : vector<8x8xf32>
    %80 = arith.truncf %79 : vector<8x8xf32> to vector<8x8xbf16>
    %81 = vector.extract_strided_slice %18 {offsets = [0, 24], sizes = [8, 8], strides = [1, 1]} : vector<16x32xbf16> to vector<8x8xbf16>
    %cst_25 = arith.constant dense<0.000000e+00> : vector<8x8xf32>
    %82 = tpu.matmul %80, %81, %cst_25 {dimension_numbers = #tpu.dot_dimension_numbers<[1], [0], [0], [1], [0, 0, 1, 1], [], []>} : vector<8x8xbf16>, vector<8x8xbf16>, vector<8x8xf32> -> vector<8x8xf32>
    %83 = tpu.concatenate %34, %50, %66, %82 in 1 : vector<8x8xf32>, vector<8x8xf32>, vector<8x8xf32>, vector<8x8xf32> -> vector<8x32xf32>
    %84 = vector.extract_strided_slice %16 {offsets = [8, 0], sizes = [8, 8], strides = [1, 1]} : vector<16x32xbf16> to vector<8x8xbf16>
    %85 = vector.extract_strided_slice %17 {offsets = [8, 0], sizes = [8, 8], strides = [1, 1]} : vector<16x32xbf16> to vector<8x8xbf16>
    %cst_26 = arith.constant dense<0.000000e+00> : vector<8x8xf32>
    %86 = tpu.matmul %84, %85, %cst_26 {dimension_numbers = #tpu.dot_dimension_numbers<[1], [1], [0], [0], [0, 0, 1, 0], [], []>} : vector<8x8xbf16>, vector<8x8xbf16>, vector<8x8xf32> -> vector<8x8xf32>
    %cst_27 = arith.constant dense<0xFF800000> : vector<8xf32>
    %87 = vector.multi_reduction <maximumf>, %86, %cst_27 [1] : vector<8x8xf32> to vector<8xf32>
    %88 = vector.shape_cast %87 : vector<8xf32> to vector<8x1xf32>
    %89 = vector.broadcast %88 : vector<8x1xf32> to vector<8x8xf32>
    %90 = arith.subf %86, %89 : vector<8x8xf32>
    %91 = math.exp %90 : vector<8x8xf32>
    %cst_28 = arith.constant dense<0.000000e+00> : vector<8xf32>
    %92 = vector.multi_reduction <add>, %91, %cst_28 [1] : vector<8x8xf32> to vector<8xf32>
    %93 = vector.shape_cast %92 : vector<8xf32> to vector<8x1xf32>
    %94 = tpu.reciprocal %93 {approx = true} : vector<8x1xf32> -> vector<8x1xf32>
    %95 = vector.broadcast %94 : vector<8x1xf32> to vector<8x8xf32>
    %96 = arith.mulf %91, %95 : vector<8x8xf32>
    %97 = arith.truncf %96 : vector<8x8xf32> to vector<8x8xbf16>
    %98 = vector.extract_strided_slice %18 {offsets = [8, 0], sizes = [8, 8], strides = [1, 1]} : vector<16x32xbf16> to vector<8x8xbf16>
    %cst_29 = arith.constant dense<0.000000e+00> : vector<8x8xf32>
    %99 = tpu.matmul %97, %98, %cst_29 {dimension_numbers = #tpu.dot_dimension_numbers<[1], [0], [0], [1], [0, 0, 1, 1], [], []>} : vector<8x8xbf16>, vector<8x8xbf16>, vector<8x8xf32> -> vector<8x8xf32>
    %100 = vector.extract_strided_slice %16 {offsets = [8, 8], sizes = [8, 8], strides = [1, 1]} : vector<16x32xbf16> to vector<8x8xbf16>
    %101 = vector.extract_strided_slice %17 {offsets = [8, 8], sizes = [8, 8], strides = [1, 1]} : vector<16x32xbf16> to vector<8x8xbf16>
    %cst_30 = arith.constant dense<0.000000e+00> : vector<8x8xf32>
    %102 = tpu.matmul %100, %101, %cst_30 {dimension_numbers = #tpu.dot_dimension_numbers<[1], [1], [0], [0], [0, 0, 1, 0], [], []>} : vector<8x8xbf16>, vector<8x8xbf16>, vector<8x8xf32> -> vector<8x8xf32>
    %cst_31 = arith.constant dense<0xFF800000> : vector<8xf32>
    %103 = vector.multi_reduction <maximumf>, %102, %cst_31 [1] : vector<8x8xf32> to vector<8xf32>
    %104 = vector.shape_cast %103 : vector<8xf32> to vector<8x1xf32>
    %105 = vector.broadcast %104 : vector<8x1xf32> to vector<8x8xf32>
    %106 = arith.subf %102, %105 : vector<8x8xf32>
    %107 = math.exp %106 : vector<8x8xf32>
    %cst_32 = arith.constant dense<0.000000e+00> : vector<8xf32>
    %108 = vector.multi_reduction <add>, %107, %cst_32 [1] : vector<8x8xf32> to vector<8xf32>
    %109 = vector.shape_cast %108 : vector<8xf32> to vector<8x1xf32>
    %110 = tpu.reciprocal %109 {approx = true} : vector<8x1xf32> -> vector<8x1xf32>
    %111 = vector.broadcast %110 : vector<8x1xf32> to vector<8x8xf32>
    %112 = arith.mulf %107, %111 : vector<8x8xf32>
    %113 = arith.truncf %112 : vector<8x8xf32> to vector<8x8xbf16>
    %114 = vector.extract_strided_slice %18 {offsets = [8, 8], sizes = [8, 8], strides = [1, 1]} : vector<16x32xbf16> to vector<8x8xbf16>
    %cst_33 = arith.constant dense<0.000000e+00> : vector<8x8xf32>
    %115 = tpu.matmul %113, %114, %cst_33 {dimension_numbers = #tpu.dot_dimension_numbers<[1], [0], [0], [1], [0, 0, 1, 1], [], []>} : vector<8x8xbf16>, vector<8x8xbf16>, vector<8x8xf32> -> vector<8x8xf32>
    %116 = vector.extract_strided_slice %16 {offsets = [8, 16], sizes = [8, 8], strides = [1, 1]} : vector<16x32xbf16> to vector<8x8xbf16>
    %117 = vector.extract_strided_slice %17 {offsets = [8, 16], sizes = [8, 8], strides = [1, 1]} : vector<16x32xbf16> to vector<8x8xbf16>
    %cst_34 = arith.constant dense<0.000000e+00> : vector<8x8xf32>
    %118 = tpu.matmul %116, %117, %cst_34 {dimension_numbers = #tpu.dot_dimension_numbers<[1], [1], [0], [0], [0, 0, 1, 0], [], []>} : vector<8x8xbf16>, vector<8x8xbf16>, vector<8x8xf32> -> vector<8x8xf32>
    %cst_35 = arith.constant dense<0xFF800000> : vector<8xf32>
    %119 = vector.multi_reduction <maximumf>, %118, %cst_35 [1] : vector<8x8xf32> to vector<8xf32>
    %120 = vector.shape_cast %119 : vector<8xf32> to vector<8x1xf32>
    %121 = vector.broadcast %120 : vector<8x1xf32> to vector<8x8xf32>
    %122 = arith.subf %118, %121 : vector<8x8xf32>
    %123 = math.exp %122 : vector<8x8xf32>
    %cst_36 = arith.constant dense<0.000000e+00> : vector<8xf32>
    %124 = vector.multi_reduction <add>, %123, %cst_36 [1] : vector<8x8xf32> to vector<8xf32>
    %125 = vector.shape_cast %124 : vector<8xf32> to vector<8x1xf32>
    %126 = tpu.reciprocal %125 {approx = true} : vector<8x1xf32> -> vector<8x1xf32>
    %127 = vector.broadcast %126 : vector<8x1xf32> to vector<8x8xf32>
    %128 = arith.mulf %123, %127 : vector<8x8xf32>
    %129 = arith.truncf %128 : vector<8x8xf32> to vector<8x8xbf16>
    %130 = vector.extract_strided_slice %18 {offsets = [8, 16], sizes = [8, 8], strides = [1, 1]} : vector<16x32xbf16> to vector<8x8xbf16>
    %cst_37 = arith.constant dense<0.000000e+00> : vector<8x8xf32>
    %131 = tpu.matmul %129, %130, %cst_37 {dimension_numbers = #tpu.dot_dimension_numbers<[1], [0], [0], [1], [0, 0, 1, 1], [], []>} : vector<8x8xbf16>, vector<8x8xbf16>, vector<8x8xf32> -> vector<8x8xf32>
    %132 = vector.extract_strided_slice %16 {offsets = [8, 24], sizes = [8, 8], strides = [1, 1]} : vector<16x32xbf16> to vector<8x8xbf16>
    %133 = vector.extract_strided_slice %17 {offsets = [8, 24], sizes = [8, 8], strides = [1, 1]} : vector<16x32xbf16> to vector<8x8xbf16>
    %cst_38 = arith.constant dense<0.000000e+00> : vector<8x8xf32>
    %134 = tpu.matmul %132, %133, %cst_38 {dimension_numbers = #tpu.dot_dimension_numbers<[1], [1], [0], [0], [0, 0, 1, 0], [], []>} : vector<8x8xbf16>, vector<8x8xbf16>, vector<8x8xf32> -> vector<8x8xf32>
    %cst_39 = arith.constant dense<0xFF800000> : vector<8xf32>
    %135 = vector.multi_reduction <maximumf>, %134, %cst_39 [1] : vector<8x8xf32> to vector<8xf32>
    %136 = vector.shape_cast %135 : vector<8xf32> to vector<8x1xf32>
    %137 = vector.broadcast %136 : vector<8x1xf32> to vector<8x8xf32>
    %138 = arith.subf %134, %137 : vector<8x8xf32>
    %139 = math.exp %138 : vector<8x8xf32>
    %cst_40 = arith.constant dense<0.000000e+00> : vector<8xf32>
    %140 = vector.multi_reduction <add>, %139, %cst_40 [1] : vector<8x8xf32> to vector<8xf32>
    %141 = vector.shape_cast %140 : vector<8xf32> to vector<8x1xf32>
    %142 = tpu.reciprocal %141 {approx = true} : vector<8x1xf32> -> vector<8x1xf32>
    %143 = vector.broadcast %142 : vector<8x1xf32> to vector<8x8xf32>
    %144 = arith.mulf %139, %143 : vector<8x8xf32>
    %145 = arith.truncf %144 : vector<8x8xf32> to vector<8x8xbf16>
    %146 = vector.extract_strided_slice %18 {offsets = [8, 24], sizes = [8, 8], strides = [1, 1]} : vector<16x32xbf16> to vector<8x8xbf16>
    %cst_41 = arith.constant dense<0.000000e+00> : vector<8x8xf32>
    %147 = tpu.matmul %145, %146, %cst_41 {dimension_numbers = #tpu.dot_dimension_numbers<[1], [0], [0], [1], [0, 0, 1, 1], [], []>} : vector<8x8xbf16>, vector<8x8xbf16>, vector<8x8xf32> -> vector<8x8xf32>
    %148 = tpu.concatenate %99, %115, %131, %147 in 1 : vector<8x8xf32>, vector<8x8xf32>, vector<8x8xf32>, vector<8x8xf32> -> vector<8x32xf32>
    %149 = tpu.concatenate %83, %148 in 0 : vector<8x32xf32>, vector<8x32xf32> -> vector<16x32xf32>
    %c16 = arith.constant 16 : index
    %c0_42 = arith.constant 0 : index
    %150 = vector.load %arg2[%c16, %c0_42] : memref<720x32xbf16, #tpu.memory_space<vmem>>, vector<32x32xbf16>
    %151 = arith.truncf %149 : vector<16x32xf32> to vector<16x32xbf16>
    %cst_43 = arith.constant dense<0.000000e+00> : vector<16x32xf32>
    %152 = tpu.matmul %151, %150, %cst_43 {dimension_numbers = #tpu.dot_dimension_numbers<[1], [0], [0], [1], [0, 0, 1, 1], [], []>} : vector<16x32xbf16>, vector<32x32xbf16>, vector<16x32xf32> -> vector<16x32xf32>
    %c1 = arith.constant 1 : index
    %c0_44 = arith.constant 0 : index
    %153 = vector.load %arg5[%c1, %c0_44] : memref<35x32xf32, #tpu.memory_space<vmem>>, vector<1x32xf32>
    %154 = vector.broadcast %153 : vector<1x32xf32> to vector<16x32xf32>
    %155 = arith.addf %152, %154 : vector<16x32xf32>
    %156 = arith.addf %6, %155 : vector<16x32xf32>
    %c3 = arith.constant 3 : index
    %c0_45 = arith.constant 0 : index
    %157 = vector.load %arg5[%c3, %c0_45] : memref<35x32xf32, #tpu.memory_space<vmem>>, vector<1x32xf32>
    %c4 = arith.constant 4 : index
    %c0_46 = arith.constant 0 : index
    %158 = vector.load %arg5[%c4, %c0_46] : memref<35x32xf32, #tpu.memory_space<vmem>>, vector<1x32xf32>
    %cst_47 = arith.constant dense<0.000000e+00> : vector<16xf32>
    %159 = vector.multi_reduction <add>, %156, %cst_47 [1] : vector<16x32xf32> to vector<16xf32>
    %160 = vector.shape_cast %159 : vector<16xf32> to vector<16x1xf32>
    %cst_48 = arith.constant 3.200000e+01 : f32
    %161 = vector.broadcast %cst_48 : f32 to vector<16x1xf32>
    %162 = arith.divf %160, %161 : vector<16x1xf32>
    %163 = vector.broadcast %162 : vector<16x1xf32> to vector<16x32xf32>
    %164 = arith.subf %156, %163 : vector<16x32xf32>
    %165 = arith.mulf %164, %164 : vector<16x32xf32>
    %cst_49 = arith.constant dense<0.000000e+00> : vector<16xf32>
    %166 = vector.multi_reduction <add>, %165, %cst_49 [1] : vector<16x32xf32> to vector<16xf32>
    %167 = vector.shape_cast %166 : vector<16xf32> to vector<16x1xf32>
    %cst_50 = arith.constant 3.200000e+01 : f32
    %168 = vector.broadcast %cst_50 : f32 to vector<16x1xf32>
    %169 = arith.divf %167, %168 : vector<16x1xf32>
    %cst_51 = arith.constant 9.99999974E-6 : f32
    %170 = vector.broadcast %cst_51 : f32 to vector<16x1xf32>
    %171 = arith.addf %169, %170 : vector<16x1xf32>
    %172 = math.rsqrt %171 : vector<16x1xf32>
    %173 = vector.broadcast %172 : vector<16x1xf32> to vector<16x32xf32>
    %174 = arith.mulf %164, %173 : vector<16x32xf32>
    %175 = vector.broadcast %157 : vector<1x32xf32> to vector<16x32xf32>
    %176 = arith.mulf %174, %175 : vector<16x32xf32>
    %177 = vector.broadcast %158 : vector<1x32xf32> to vector<16x32xf32>
    %178 = arith.addf %176, %177 : vector<16x32xf32>
    %c0_52 = arith.constant 0 : index
    %c0_53 = arith.constant 0 : index
    %179 = vector.load %arg4[%c0_52, %c0_53] : memref<128x128xbf16, #tpu.memory_space<vmem>>, vector<32x128xbf16>
    %180 = arith.truncf %178 : vector<16x32xf32> to vector<16x32xbf16>
    %cst_54 = arith.constant dense<0.000000e+00> : vector<16x128xf32>
    %181 = tpu.matmul %180, %179, %cst_54 {dimension_numbers = #tpu.dot_dimension_numbers<[1], [0], [0], [1], [0, 0, 1, 1], [], []>} : vector<16x32xbf16>, vector<32x128xbf16>, vector<16x128xf32> -> vector<16x128xf32>
    %c0_55 = arith.constant 0 : index
    %c0_56 = arith.constant 0 : index
    %182 = vector.load %arg7[%c0_55, %c0_56] : memref<4x128xf32, #tpu.memory_space<vmem>>, vector<1x128xf32>
    %183 = vector.broadcast %182 : vector<1x128xf32> to vector<16x128xf32>
    %184 = arith.addf %181, %183 : vector<16x128xf32>
    %cst_57 = arith.constant 0.000000e+00 : f32
    %185 = vector.broadcast %cst_57 : f32 to vector<16x128xf32>
    %186 = arith.maximumf %184, %185 : vector<16x128xf32>
    %c48 = arith.constant 48 : index
    %c0_58 = arith.constant 0 : index
    %187 = vector.load %arg2[%c48, %c0_58] : memref<720x32xbf16, #tpu.memory_space<vmem>>, vector<128x32xbf16>
    %188 = arith.truncf %186 : vector<16x128xf32> to vector<16x128xbf16>
    %cst_59 = arith.constant dense<0.000000e+00> : vector<16x32xf32>
    %189 = tpu.matmul %188, %187, %cst_59 {dimension_numbers = #tpu.dot_dimension_numbers<[1], [0], [0], [1], [0, 0, 1, 1], [], []>} : vector<16x128xbf16>, vector<128x32xbf16>, vector<16x32xf32> -> vector<16x32xf32>
    %c2 = arith.constant 2 : index
    %c0_60 = arith.constant 0 : index
    %190 = vector.load %arg5[%c2, %c0_60] : memref<35x32xf32, #tpu.memory_space<vmem>>, vector<1x32xf32>
    %191 = vector.broadcast %190 : vector<1x32xf32> to vector<16x32xf32>
    %192 = arith.addf %189, %191 : vector<16x32xf32>
    %193 = arith.addf %178, %192 : vector<16x32xf32>
    %c5 = arith.constant 5 : index
    %c0_61 = arith.constant 0 : index
    %194 = vector.load %arg5[%c5, %c0_61] : memref<35x32xf32, #tpu.memory_space<vmem>>, vector<1x32xf32>
    %c6 = arith.constant 6 : index
    %c0_62 = arith.constant 0 : index
    %195 = vector.load %arg5[%c6, %c0_62] : memref<35x32xf32, #tpu.memory_space<vmem>>, vector<1x32xf32>
    %cst_63 = arith.constant dense<0.000000e+00> : vector<16xf32>
    %196 = vector.multi_reduction <add>, %193, %cst_63 [1] : vector<16x32xf32> to vector<16xf32>
    %197 = vector.shape_cast %196 : vector<16xf32> to vector<16x1xf32>
    %cst_64 = arith.constant 3.200000e+01 : f32
    %198 = vector.broadcast %cst_64 : f32 to vector<16x1xf32>
    %199 = arith.divf %197, %198 : vector<16x1xf32>
    %200 = vector.broadcast %199 : vector<16x1xf32> to vector<16x32xf32>
    %201 = arith.subf %193, %200 : vector<16x32xf32>
    %202 = arith.mulf %201, %201 : vector<16x32xf32>
    %cst_65 = arith.constant dense<0.000000e+00> : vector<16xf32>
    %203 = vector.multi_reduction <add>, %202, %cst_65 [1] : vector<16x32xf32> to vector<16xf32>
    %204 = vector.shape_cast %203 : vector<16xf32> to vector<16x1xf32>
    %cst_66 = arith.constant 3.200000e+01 : f32
    %205 = vector.broadcast %cst_66 : f32 to vector<16x1xf32>
    %206 = arith.divf %204, %205 : vector<16x1xf32>
    %cst_67 = arith.constant 9.99999974E-6 : f32
    %207 = vector.broadcast %cst_67 : f32 to vector<16x1xf32>
    %208 = arith.addf %206, %207 : vector<16x1xf32>
    %209 = math.rsqrt %208 : vector<16x1xf32>
    %210 = vector.broadcast %209 : vector<16x1xf32> to vector<16x32xf32>
    %211 = arith.mulf %201, %210 : vector<16x32xf32>
    %212 = vector.broadcast %194 : vector<1x32xf32> to vector<16x32xf32>
    %213 = arith.mulf %211, %212 : vector<16x32xf32>
    %214 = vector.broadcast %195 : vector<1x32xf32> to vector<16x32xf32>
    %215 = arith.addf %213, %214 : vector<16x32xf32>
    %c32 = arith.constant 32 : index
    %c0_68 = arith.constant 0 : index
    %216 = vector.load %arg3[%c32, %c0_68] : memref<192x96xbf16, #tpu.memory_space<vmem>>, vector<32x96xbf16>
    %c1_69 = arith.constant 1 : index
    %c0_70 = arith.constant 0 : index
    %217 = vector.load %arg6[%c1_69, %c0_70] : memref<6x96xf32, #tpu.memory_space<vmem>>, vector<1x96xf32>
    %218 = arith.truncf %215 : vector<16x32xf32> to vector<16x32xbf16>
    %cst_71 = arith.constant dense<0.000000e+00> : vector<16x96xf32>
    %219 = tpu.matmul %218, %216, %cst_71 {dimension_numbers = #tpu.dot_dimension_numbers<[1], [0], [0], [1], [0, 0, 1, 1], [], []>} : vector<16x32xbf16>, vector<32x96xbf16>, vector<16x96xf32> -> vector<16x96xf32>
    %220 = vector.broadcast %217 : vector<1x96xf32> to vector<16x96xf32>
    %221 = arith.addf %219, %220 : vector<16x96xf32>
    %222 = vector.extract_strided_slice %221 {offsets = [0, 0], sizes = [16, 32], strides = [1, 1]} : vector<16x96xf32> to vector<16x32xf32>
    %223 = vector.extract_strided_slice %221 {offsets = [0, 32], sizes = [16, 32], strides = [1, 1]} : vector<16x96xf32> to vector<16x32xf32>
    %224 = vector.extract_strided_slice %221 {offsets = [0, 64], sizes = [16, 32], strides = [1, 1]} : vector<16x96xf32> to vector<16x32xf32>
    %225 = arith.truncf %222 : vector<16x32xf32> to vector<16x32xbf16>
    %226 = arith.truncf %223 : vector<16x32xf32> to vector<16x32xbf16>
    %227 = arith.truncf %224 : vector<16x32xf32> to vector<16x32xbf16>
    %228 = vector.extract_strided_slice %225 {offsets = [0, 0], sizes = [8, 8], strides = [1, 1]} : vector<16x32xbf16> to vector<8x8xbf16>
    %229 = vector.extract_strided_slice %226 {offsets = [0, 0], sizes = [8, 8], strides = [1, 1]} : vector<16x32xbf16> to vector<8x8xbf16>
    %cst_72 = arith.constant dense<0.000000e+00> : vector<8x8xf32>
    %230 = tpu.matmul %228, %229, %cst_72 {dimension_numbers = #tpu.dot_dimension_numbers<[1], [1], [0], [0], [0, 0, 1, 0], [], []>} : vector<8x8xbf16>, vector<8x8xbf16>, vector<8x8xf32> -> vector<8x8xf32>
    %cst_73 = arith.constant dense<0xFF800000> : vector<8xf32>
    %231 = vector.multi_reduction <maximumf>, %230, %cst_73 [1] : vector<8x8xf32> to vector<8xf32>
    %232 = vector.shape_cast %231 : vector<8xf32> to vector<8x1xf32>
    %233 = vector.broadcast %232 : vector<8x1xf32> to vector<8x8xf32>
    %234 = arith.subf %230, %233 : vector<8x8xf32>
    %235 = math.exp %234 : vector<8x8xf32>
    %cst_74 = arith.constant dense<0.000000e+00> : vector<8xf32>
    %236 = vector.multi_reduction <add>, %235, %cst_74 [1] : vector<8x8xf32> to vector<8xf32>
    %237 = vector.shape_cast %236 : vector<8xf32> to vector<8x1xf32>
    %238 = tpu.reciprocal %237 {approx = true} : vector<8x1xf32> -> vector<8x1xf32>
    %239 = vector.broadcast %238 : vector<8x1xf32> to vector<8x8xf32>
    %240 = arith.mulf %235, %239 : vector<8x8xf32>
    %241 = arith.truncf %240 : vector<8x8xf32> to vector<8x8xbf16>
    %242 = vector.extract_strided_slice %227 {offsets = [0, 0], sizes = [8, 8], strides = [1, 1]} : vector<16x32xbf16> to vector<8x8xbf16>
    %cst_75 = arith.constant dense<0.000000e+00> : vector<8x8xf32>
    %243 = tpu.matmul %241, %242, %cst_75 {dimension_numbers = #tpu.dot_dimension_numbers<[1], [0], [0], [1], [0, 0, 1, 1], [], []>} : vector<8x8xbf16>, vector<8x8xbf16>, vector<8x8xf32> -> vector<8x8xf32>
    %244 = vector.extract_strided_slice %225 {offsets = [0, 8], sizes = [8, 8], strides = [1, 1]} : vector<16x32xbf16> to vector<8x8xbf16>
    %245 = vector.extract_strided_slice %226 {offsets = [0, 8], sizes = [8, 8], strides = [1, 1]} : vector<16x32xbf16> to vector<8x8xbf16>
    %cst_76 = arith.constant dense<0.000000e+00> : vector<8x8xf32>
    %246 = tpu.matmul %244, %245, %cst_76 {dimension_numbers = #tpu.dot_dimension_numbers<[1], [1], [0], [0], [0, 0, 1, 0], [], []>} : vector<8x8xbf16>, vector<8x8xbf16>, vector<8x8xf32> -> vector<8x8xf32>
    %cst_77 = arith.constant dense<0xFF800000> : vector<8xf32>
    %247 = vector.multi_reduction <maximumf>, %246, %cst_77 [1] : vector<8x8xf32> to vector<8xf32>
    %248 = vector.shape_cast %247 : vector<8xf32> to vector<8x1xf32>
    %249 = vector.broadcast %248 : vector<8x1xf32> to vector<8x8xf32>
    %250 = arith.subf %246, %249 : vector<8x8xf32>
    %251 = math.exp %250 : vector<8x8xf32>
    %cst_78 = arith.constant dense<0.000000e+00> : vector<8xf32>
    %252 = vector.multi_reduction <add>, %251, %cst_78 [1] : vector<8x8xf32> to vector<8xf32>
    %253 = vector.shape_cast %252 : vector<8xf32> to vector<8x1xf32>
    %254 = tpu.reciprocal %253 {approx = true} : vector<8x1xf32> -> vector<8x1xf32>
    %255 = vector.broadcast %254 : vector<8x1xf32> to vector<8x8xf32>
    %256 = arith.mulf %251, %255 : vector<8x8xf32>
    %257 = arith.truncf %256 : vector<8x8xf32> to vector<8x8xbf16>
    %258 = vector.extract_strided_slice %227 {offsets = [0, 8], sizes = [8, 8], strides = [1, 1]} : vector<16x32xbf16> to vector<8x8xbf16>
    %cst_79 = arith.constant dense<0.000000e+00> : vector<8x8xf32>
    %259 = tpu.matmul %257, %258, %cst_79 {dimension_numbers = #tpu.dot_dimension_numbers<[1], [0], [0], [1], [0, 0, 1, 1], [], []>} : vector<8x8xbf16>, vector<8x8xbf16>, vector<8x8xf32> -> vector<8x8xf32>
    %260 = vector.extract_strided_slice %225 {offsets = [0, 16], sizes = [8, 8], strides = [1, 1]} : vector<16x32xbf16> to vector<8x8xbf16>
    %261 = vector.extract_strided_slice %226 {offsets = [0, 16], sizes = [8, 8], strides = [1, 1]} : vector<16x32xbf16> to vector<8x8xbf16>
    %cst_80 = arith.constant dense<0.000000e+00> : vector<8x8xf32>
    %262 = tpu.matmul %260, %261, %cst_80 {dimension_numbers = #tpu.dot_dimension_numbers<[1], [1], [0], [0], [0, 0, 1, 0], [], []>} : vector<8x8xbf16>, vector<8x8xbf16>, vector<8x8xf32> -> vector<8x8xf32>
    %cst_81 = arith.constant dense<0xFF800000> : vector<8xf32>
    %263 = vector.multi_reduction <maximumf>, %262, %cst_81 [1] : vector<8x8xf32> to vector<8xf32>
    %264 = vector.shape_cast %263 : vector<8xf32> to vector<8x1xf32>
    %265 = vector.broadcast %264 : vector<8x1xf32> to vector<8x8xf32>
    %266 = arith.subf %262, %265 : vector<8x8xf32>
    %267 = math.exp %266 : vector<8x8xf32>
    %cst_82 = arith.constant dense<0.000000e+00> : vector<8xf32>
    %268 = vector.multi_reduction <add>, %267, %cst_82 [1] : vector<8x8xf32> to vector<8xf32>
    %269 = vector.shape_cast %268 : vector<8xf32> to vector<8x1xf32>
    %270 = tpu.reciprocal %269 {approx = true} : vector<8x1xf32> -> vector<8x1xf32>
    %271 = vector.broadcast %270 : vector<8x1xf32> to vector<8x8xf32>
    %272 = arith.mulf %267, %271 : vector<8x8xf32>
    %273 = arith.truncf %272 : vector<8x8xf32> to vector<8x8xbf16>
    %274 = vector.extract_strided_slice %227 {offsets = [0, 16], sizes = [8, 8], strides = [1, 1]} : vector<16x32xbf16> to vector<8x8xbf16>
    %cst_83 = arith.constant dense<0.000000e+00> : vector<8x8xf32>
    %275 = tpu.matmul %273, %274, %cst_83 {dimension_numbers = #tpu.dot_dimension_numbers<[1], [0], [0], [1], [0, 0, 1, 1], [], []>} : vector<8x8xbf16>, vector<8x8xbf16>, vector<8x8xf32> -> vector<8x8xf32>
    %276 = vector.extract_strided_slice %225 {offsets = [0, 24], sizes = [8, 8], strides = [1, 1]} : vector<16x32xbf16> to vector<8x8xbf16>
    %277 = vector.extract_strided_slice %226 {offsets = [0, 24], sizes = [8, 8], strides = [1, 1]} : vector<16x32xbf16> to vector<8x8xbf16>
    %cst_84 = arith.constant dense<0.000000e+00> : vector<8x8xf32>
    %278 = tpu.matmul %276, %277, %cst_84 {dimension_numbers = #tpu.dot_dimension_numbers<[1], [1], [0], [0], [0, 0, 1, 0], [], []>} : vector<8x8xbf16>, vector<8x8xbf16>, vector<8x8xf32> -> vector<8x8xf32>
    %cst_85 = arith.constant dense<0xFF800000> : vector<8xf32>
    %279 = vector.multi_reduction <maximumf>, %278, %cst_85 [1] : vector<8x8xf32> to vector<8xf32>
    %280 = vector.shape_cast %279 : vector<8xf32> to vector<8x1xf32>
    %281 = vector.broadcast %280 : vector<8x1xf32> to vector<8x8xf32>
    %282 = arith.subf %278, %281 : vector<8x8xf32>
    %283 = math.exp %282 : vector<8x8xf32>
    %cst_86 = arith.constant dense<0.000000e+00> : vector<8xf32>
    %284 = vector.multi_reduction <add>, %283, %cst_86 [1] : vector<8x8xf32> to vector<8xf32>
    %285 = vector.shape_cast %284 : vector<8xf32> to vector<8x1xf32>
    %286 = tpu.reciprocal %285 {approx = true} : vector<8x1xf32> -> vector<8x1xf32>
    %287 = vector.broadcast %286 : vector<8x1xf32> to vector<8x8xf32>
    %288 = arith.mulf %283, %287 : vector<8x8xf32>
    %289 = arith.truncf %288 : vector<8x8xf32> to vector<8x8xbf16>
    %290 = vector.extract_strided_slice %227 {offsets = [0, 24], sizes = [8, 8], strides = [1, 1]} : vector<16x32xbf16> to vector<8x8xbf16>
    %cst_87 = arith.constant dense<0.000000e+00> : vector<8x8xf32>
    %291 = tpu.matmul %289, %290, %cst_87 {dimension_numbers = #tpu.dot_dimension_numbers<[1], [0], [0], [1], [0, 0, 1, 1], [], []>} : vector<8x8xbf16>, vector<8x8xbf16>, vector<8x8xf32> -> vector<8x8xf32>
    %292 = tpu.concatenate %243, %259, %275, %291 in 1 : vector<8x8xf32>, vector<8x8xf32>, vector<8x8xf32>, vector<8x8xf32> -> vector<8x32xf32>
    %293 = vector.extract_strided_slice %225 {offsets = [8, 0], sizes = [8, 8], strides = [1, 1]} : vector<16x32xbf16> to vector<8x8xbf16>
    %294 = vector.extract_strided_slice %226 {offsets = [8, 0], sizes = [8, 8], strides = [1, 1]} : vector<16x32xbf16> to vector<8x8xbf16>
    %cst_88 = arith.constant dense<0.000000e+00> : vector<8x8xf32>
    %295 = tpu.matmul %293, %294, %cst_88 {dimension_numbers = #tpu.dot_dimension_numbers<[1], [1], [0], [0], [0, 0, 1, 0], [], []>} : vector<8x8xbf16>, vector<8x8xbf16>, vector<8x8xf32> -> vector<8x8xf32>
    %cst_89 = arith.constant dense<0xFF800000> : vector<8xf32>
    %296 = vector.multi_reduction <maximumf>, %295, %cst_89 [1] : vector<8x8xf32> to vector<8xf32>
    %297 = vector.shape_cast %296 : vector<8xf32> to vector<8x1xf32>
    %298 = vector.broadcast %297 : vector<8x1xf32> to vector<8x8xf32>
    %299 = arith.subf %295, %298 : vector<8x8xf32>
    %300 = math.exp %299 : vector<8x8xf32>
    %cst_90 = arith.constant dense<0.000000e+00> : vector<8xf32>
    %301 = vector.multi_reduction <add>, %300, %cst_90 [1] : vector<8x8xf32> to vector<8xf32>
    %302 = vector.shape_cast %301 : vector<8xf32> to vector<8x1xf32>
    %303 = tpu.reciprocal %302 {approx = true} : vector<8x1xf32> -> vector<8x1xf32>
    %304 = vector.broadcast %303 : vector<8x1xf32> to vector<8x8xf32>
    %305 = arith.mulf %300, %304 : vector<8x8xf32>
    %306 = arith.truncf %305 : vector<8x8xf32> to vector<8x8xbf16>
    %307 = vector.extract_strided_slice %227 {offsets = [8, 0], sizes = [8, 8], strides = [1, 1]} : vector<16x32xbf16> to vector<8x8xbf16>
    %cst_91 = arith.constant dense<0.000000e+00> : vector<8x8xf32>
    %308 = tpu.matmul %306, %307, %cst_91 {dimension_numbers = #tpu.dot_dimension_numbers<[1], [0], [0], [1], [0, 0, 1, 1], [], []>} : vector<8x8xbf16>, vector<8x8xbf16>, vector<8x8xf32> -> vector<8x8xf32>
    %309 = vector.extract_strided_slice %225 {offsets = [8, 8], sizes = [8, 8], strides = [1, 1]} : vector<16x32xbf16> to vector<8x8xbf16>
    %310 = vector.extract_strided_slice %226 {offsets = [8, 8], sizes = [8, 8], strides = [1, 1]} : vector<16x32xbf16> to vector<8x8xbf16>
    %cst_92 = arith.constant dense<0.000000e+00> : vector<8x8xf32>
    %311 = tpu.matmul %309, %310, %cst_92 {dimension_numbers = #tpu.dot_dimension_numbers<[1], [1], [0], [0], [0, 0, 1, 0], [], []>} : vector<8x8xbf16>, vector<8x8xbf16>, vector<8x8xf32> -> vector<8x8xf32>
    %cst_93 = arith.constant dense<0xFF800000> : vector<8xf32>
    %312 = vector.multi_reduction <maximumf>, %311, %cst_93 [1] : vector<8x8xf32> to vector<8xf32>
    %313 = vector.shape_cast %312 : vector<8xf32> to vector<8x1xf32>
    %314 = vector.broadcast %313 : vector<8x1xf32> to vector<8x8xf32>
    %315 = arith.subf %311, %314 : vector<8x8xf32>
    %316 = math.exp %315 : vector<8x8xf32>
    %cst_94 = arith.constant dense<0.000000e+00> : vector<8xf32>
    %317 = vector.multi_reduction <add>, %316, %cst_94 [1] : vector<8x8xf32> to vector<8xf32>
    %318 = vector.shape_cast %317 : vector<8xf32> to vector<8x1xf32>
    %319 = tpu.reciprocal %318 {approx = true} : vector<8x1xf32> -> vector<8x1xf32>
    %320 = vector.broadcast %319 : vector<8x1xf32> to vector<8x8xf32>
    %321 = arith.mulf %316, %320 : vector<8x8xf32>
    %322 = arith.truncf %321 : vector<8x8xf32> to vector<8x8xbf16>
    %323 = vector.extract_strided_slice %227 {offsets = [8, 8], sizes = [8, 8], strides = [1, 1]} : vector<16x32xbf16> to vector<8x8xbf16>
    %cst_95 = arith.constant dense<0.000000e+00> : vector<8x8xf32>
    %324 = tpu.matmul %322, %323, %cst_95 {dimension_numbers = #tpu.dot_dimension_numbers<[1], [0], [0], [1], [0, 0, 1, 1], [], []>} : vector<8x8xbf16>, vector<8x8xbf16>, vector<8x8xf32> -> vector<8x8xf32>
    %325 = vector.extract_strided_slice %225 {offsets = [8, 16], sizes = [8, 8], strides = [1, 1]} : vector<16x32xbf16> to vector<8x8xbf16>
    %326 = vector.extract_strided_slice %226 {offsets = [8, 16], sizes = [8, 8], strides = [1, 1]} : vector<16x32xbf16> to vector<8x8xbf16>
    %cst_96 = arith.constant dense<0.000000e+00> : vector<8x8xf32>
    %327 = tpu.matmul %325, %326, %cst_96 {dimension_numbers = #tpu.dot_dimension_numbers<[1], [1], [0], [0], [0, 0, 1, 0], [], []>} : vector<8x8xbf16>, vector<8x8xbf16>, vector<8x8xf32> -> vector<8x8xf32>
    %cst_97 = arith.constant dense<0xFF800000> : vector<8xf32>
    %328 = vector.multi_reduction <maximumf>, %327, %cst_97 [1] : vector<8x8xf32> to vector<8xf32>
    %329 = vector.shape_cast %328 : vector<8xf32> to vector<8x1xf32>
    %330 = vector.broadcast %329 : vector<8x1xf32> to vector<8x8xf32>
    %331 = arith.subf %327, %330 : vector<8x8xf32>
    %332 = math.exp %331 : vector<8x8xf32>
    %cst_98 = arith.constant dense<0.000000e+00> : vector<8xf32>
    %333 = vector.multi_reduction <add>, %332, %cst_98 [1] : vector<8x8xf32> to vector<8xf32>
    %334 = vector.shape_cast %333 : vector<8xf32> to vector<8x1xf32>
    %335 = tpu.reciprocal %334 {approx = true} : vector<8x1xf32> -> vector<8x1xf32>
    %336 = vector.broadcast %335 : vector<8x1xf32> to vector<8x8xf32>
    %337 = arith.mulf %332, %336 : vector<8x8xf32>
    %338 = arith.truncf %337 : vector<8x8xf32> to vector<8x8xbf16>
    %339 = vector.extract_strided_slice %227 {offsets = [8, 16], sizes = [8, 8], strides = [1, 1]} : vector<16x32xbf16> to vector<8x8xbf16>
    %cst_99 = arith.constant dense<0.000000e+00> : vector<8x8xf32>
    %340 = tpu.matmul %338, %339, %cst_99 {dimension_numbers = #tpu.dot_dimension_numbers<[1], [0], [0], [1], [0, 0, 1, 1], [], []>} : vector<8x8xbf16>, vector<8x8xbf16>, vector<8x8xf32> -> vector<8x8xf32>
    %341 = vector.extract_strided_slice %225 {offsets = [8, 24], sizes = [8, 8], strides = [1, 1]} : vector<16x32xbf16> to vector<8x8xbf16>
    %342 = vector.extract_strided_slice %226 {offsets = [8, 24], sizes = [8, 8], strides = [1, 1]} : vector<16x32xbf16> to vector<8x8xbf16>
    %cst_100 = arith.constant dense<0.000000e+00> : vector<8x8xf32>
    %343 = tpu.matmul %341, %342, %cst_100 {dimension_numbers = #tpu.dot_dimension_numbers<[1], [1], [0], [0], [0, 0, 1, 0], [], []>} : vector<8x8xbf16>, vector<8x8xbf16>, vector<8x8xf32> -> vector<8x8xf32>
    %cst_101 = arith.constant dense<0xFF800000> : vector<8xf32>
    %344 = vector.multi_reduction <maximumf>, %343, %cst_101 [1] : vector<8x8xf32> to vector<8xf32>
    %345 = vector.shape_cast %344 : vector<8xf32> to vector<8x1xf32>
    %346 = vector.broadcast %345 : vector<8x1xf32> to vector<8x8xf32>
    %347 = arith.subf %343, %346 : vector<8x8xf32>
    %348 = math.exp %347 : vector<8x8xf32>
    %cst_102 = arith.constant dense<0.000000e+00> : vector<8xf32>
    %349 = vector.multi_reduction <add>, %348, %cst_102 [1] : vector<8x8xf32> to vector<8xf32>
    %350 = vector.shape_cast %349 : vector<8xf32> to vector<8x1xf32>
    %351 = tpu.reciprocal %350 {approx = true} : vector<8x1xf32> -> vector<8x1xf32>
    %352 = vector.broadcast %351 : vector<8x1xf32> to vector<8x8xf32>
    %353 = arith.mulf %348, %352 : vector<8x8xf32>
    %354 = arith.truncf %353 : vector<8x8xf32> to vector<8x8xbf16>
    %355 = vector.extract_strided_slice %227 {offsets = [8, 24], sizes = [8, 8], strides = [1, 1]} : vector<16x32xbf16> to vector<8x8xbf16>
    %cst_103 = arith.constant dense<0.000000e+00> : vector<8x8xf32>
    %356 = tpu.matmul %354, %355, %cst_103 {dimension_numbers = #tpu.dot_dimension_numbers<[1], [0], [0], [1], [0, 0, 1, 1], [], []>} : vector<8x8xbf16>, vector<8x8xbf16>, vector<8x8xf32> -> vector<8x8xf32>
    %357 = tpu.concatenate %308, %324, %340, %356 in 1 : vector<8x8xf32>, vector<8x8xf32>, vector<8x8xf32>, vector<8x8xf32> -> vector<8x32xf32>
    %358 = tpu.concatenate %292, %357 in 0 : vector<8x32xf32>, vector<8x32xf32> -> vector<16x32xf32>
    %c176 = arith.constant 176 : index
    %c0_104 = arith.constant 0 : index
    %359 = vector.load %arg2[%c176, %c0_104] : memref<720x32xbf16, #tpu.memory_space<vmem>>, vector<32x32xbf16>
    %360 = arith.truncf %358 : vector<16x32xf32> to vector<16x32xbf16>
    %cst_105 = arith.constant dense<0.000000e+00> : vector<16x32xf32>
    %361 = tpu.matmul %360, %359, %cst_105 {dimension_numbers = #tpu.dot_dimension_numbers<[1], [0], [0], [1], [0, 0, 1, 1], [], []>} : vector<16x32xbf16>, vector<32x32xbf16>, vector<16x32xf32> -> vector<16x32xf32>
    %c7 = arith.constant 7 : index
    %c0_106 = arith.constant 0 : index
    %362 = vector.load %arg5[%c7, %c0_106] : memref<35x32xf32, #tpu.memory_space<vmem>>, vector<1x32xf32>
    %363 = vector.broadcast %362 : vector<1x32xf32> to vector<16x32xf32>
    %364 = arith.addf %361, %363 : vector<16x32xf32>
    %365 = arith.addf %215, %364 : vector<16x32xf32>
    %c9 = arith.constant 9 : index
    %c0_107 = arith.constant 0 : index
    %366 = vector.load %arg5[%c9, %c0_107] : memref<35x32xf32, #tpu.memory_space<vmem>>, vector<1x32xf32>
    %c10 = arith.constant 10 : index
    %c0_108 = arith.constant 0 : index
    %367 = vector.load %arg5[%c10, %c0_108] : memref<35x32xf32, #tpu.memory_space<vmem>>, vector<1x32xf32>
    %cst_109 = arith.constant dense<0.000000e+00> : vector<16xf32>
    %368 = vector.multi_reduction <add>, %365, %cst_109 [1] : vector<16x32xf32> to vector<16xf32>
    %369 = vector.shape_cast %368 : vector<16xf32> to vector<16x1xf32>
    %cst_110 = arith.constant 3.200000e+01 : f32
    %370 = vector.broadcast %cst_110 : f32 to vector<16x1xf32>
    %371 = arith.divf %369, %370 : vector<16x1xf32>
    %372 = vector.broadcast %371 : vector<16x1xf32> to vector<16x32xf32>
    %373 = arith.subf %365, %372 : vector<16x32xf32>
    %374 = arith.mulf %373, %373 : vector<16x32xf32>
    %cst_111 = arith.constant dense<0.000000e+00> : vector<16xf32>
    %375 = vector.multi_reduction <add>, %374, %cst_111 [1] : vector<16x32xf32> to vector<16xf32>
    %376 = vector.shape_cast %375 : vector<16xf32> to vector<16x1xf32>
    %cst_112 = arith.constant 3.200000e+01 : f32
    %377 = vector.broadcast %cst_112 : f32 to vector<16x1xf32>
    %378 = arith.divf %376, %377 : vector<16x1xf32>
    %cst_113 = arith.constant 9.99999974E-6 : f32
    %379 = vector.broadcast %cst_113 : f32 to vector<16x1xf32>
    %380 = arith.addf %378, %379 : vector<16x1xf32>
    %381 = math.rsqrt %380 : vector<16x1xf32>
    %382 = vector.broadcast %381 : vector<16x1xf32> to vector<16x32xf32>
    %383 = arith.mulf %373, %382 : vector<16x32xf32>
    %384 = vector.broadcast %366 : vector<1x32xf32> to vector<16x32xf32>
    %385 = arith.mulf %383, %384 : vector<16x32xf32>
    %386 = vector.broadcast %367 : vector<1x32xf32> to vector<16x32xf32>
    %387 = arith.addf %385, %386 : vector<16x32xf32>
    %c32_114 = arith.constant 32 : index
    %c0_115 = arith.constant 0 : index
    %388 = vector.load %arg4[%c32_114, %c0_115] : memref<128x128xbf16, #tpu.memory_space<vmem>>, vector<32x128xbf16>
    %389 = arith.truncf %387 : vector<16x32xf32> to vector<16x32xbf16>
    %cst_116 = arith.constant dense<0.000000e+00> : vector<16x128xf32>
    %390 = tpu.matmul %389, %388, %cst_116 {dimension_numbers = #tpu.dot_dimension_numbers<[1], [0], [0], [1], [0, 0, 1, 1], [], []>} : vector<16x32xbf16>, vector<32x128xbf16>, vector<16x128xf32> -> vector<16x128xf32>
    %c1_117 = arith.constant 1 : index
    %c0_118 = arith.constant 0 : index
    %391 = vector.load %arg7[%c1_117, %c0_118] : memref<4x128xf32, #tpu.memory_space<vmem>>, vector<1x128xf32>
    %392 = vector.broadcast %391 : vector<1x128xf32> to vector<16x128xf32>
    %393 = arith.addf %390, %392 : vector<16x128xf32>
    %cst_119 = arith.constant 0.000000e+00 : f32
    %394 = vector.broadcast %cst_119 : f32 to vector<16x128xf32>
    %395 = arith.maximumf %393, %394 : vector<16x128xf32>
    %c208 = arith.constant 208 : index
    %c0_120 = arith.constant 0 : index
    %396 = vector.load %arg2[%c208, %c0_120] : memref<720x32xbf16, #tpu.memory_space<vmem>>, vector<128x32xbf16>
    %397 = arith.truncf %395 : vector<16x128xf32> to vector<16x128xbf16>
    %cst_121 = arith.constant dense<0.000000e+00> : vector<16x32xf32>
    %398 = tpu.matmul %397, %396, %cst_121 {dimension_numbers = #tpu.dot_dimension_numbers<[1], [0], [0], [1], [0, 0, 1, 1], [], []>} : vector<16x128xbf16>, vector<128x32xbf16>, vector<16x32xf32> -> vector<16x32xf32>
    %c8 = arith.constant 8 : index
    %c0_122 = arith.constant 0 : index
    %399 = vector.load %arg5[%c8, %c0_122] : memref<35x32xf32, #tpu.memory_space<vmem>>, vector<1x32xf32>
    %400 = vector.broadcast %399 : vector<1x32xf32> to vector<16x32xf32>
    %401 = arith.addf %398, %400 : vector<16x32xf32>
    %402 = arith.addf %387, %401 : vector<16x32xf32>
    %c11 = arith.constant 11 : index
    %c0_123 = arith.constant 0 : index
    %403 = vector.load %arg5[%c11, %c0_123] : memref<35x32xf32, #tpu.memory_space<vmem>>, vector<1x32xf32>
    %c12 = arith.constant 12 : index
    %c0_124 = arith.constant 0 : index
    %404 = vector.load %arg5[%c12, %c0_124] : memref<35x32xf32, #tpu.memory_space<vmem>>, vector<1x32xf32>
    %cst_125 = arith.constant dense<0.000000e+00> : vector<16xf32>
    %405 = vector.multi_reduction <add>, %402, %cst_125 [1] : vector<16x32xf32> to vector<16xf32>
    %406 = vector.shape_cast %405 : vector<16xf32> to vector<16x1xf32>
    %cst_126 = arith.constant 3.200000e+01 : f32
    %407 = vector.broadcast %cst_126 : f32 to vector<16x1xf32>
    %408 = arith.divf %406, %407 : vector<16x1xf32>
    %409 = vector.broadcast %408 : vector<16x1xf32> to vector<16x32xf32>
    %410 = arith.subf %402, %409 : vector<16x32xf32>
    %411 = arith.mulf %410, %410 : vector<16x32xf32>
    %cst_127 = arith.constant dense<0.000000e+00> : vector<16xf32>
    %412 = vector.multi_reduction <add>, %411, %cst_127 [1] : vector<16x32xf32> to vector<16xf32>
    %413 = vector.shape_cast %412 : vector<16xf32> to vector<16x1xf32>
    %cst_128 = arith.constant 3.200000e+01 : f32
    %414 = vector.broadcast %cst_128 : f32 to vector<16x1xf32>
    %415 = arith.divf %413, %414 : vector<16x1xf32>
    %cst_129 = arith.constant 9.99999974E-6 : f32
    %416 = vector.broadcast %cst_129 : f32 to vector<16x1xf32>
    %417 = arith.addf %415, %416 : vector<16x1xf32>
    %418 = math.rsqrt %417 : vector<16x1xf32>
    %419 = vector.broadcast %418 : vector<16x1xf32> to vector<16x32xf32>
    %420 = arith.mulf %410, %419 : vector<16x32xf32>
    %421 = vector.broadcast %403 : vector<1x32xf32> to vector<16x32xf32>
    %422 = arith.mulf %420, %421 : vector<16x32xf32>
    %423 = vector.broadcast %404 : vector<1x32xf32> to vector<16x32xf32>
    %424 = arith.addf %422, %423 : vector<16x32xf32>
    %c31 = arith.constant 31 : index
    %c0_130 = arith.constant 0 : index
    %425 = vector.load %arg5[%c31, %c0_130] : memref<35x32xf32, #tpu.memory_space<vmem>>, vector<1x32xf32>
    %c32_131 = arith.constant 32 : index
    %c0_132 = arith.constant 0 : index
    %426 = vector.load %arg5[%c32_131, %c0_132] : memref<35x32xf32, #tpu.memory_space<vmem>>, vector<1x32xf32>
    %cst_133 = arith.constant dense<0.000000e+00> : vector<16xf32>
    %427 = vector.multi_reduction <add>, %424, %cst_133 [1] : vector<16x32xf32> to vector<16xf32>
    %428 = vector.shape_cast %427 : vector<16xf32> to vector<16x1xf32>
    %cst_134 = arith.constant 3.200000e+01 : f32
    %429 = vector.broadcast %cst_134 : f32 to vector<16x1xf32>
    %430 = arith.divf %428, %429 : vector<16x1xf32>
    %431 = vector.broadcast %430 : vector<16x1xf32> to vector<16x32xf32>
    %432 = arith.subf %424, %431 : vector<16x32xf32>
    %433 = arith.mulf %432, %432 : vector<16x32xf32>
    %cst_135 = arith.constant dense<0.000000e+00> : vector<16xf32>
    %434 = vector.multi_reduction <add>, %433, %cst_135 [1] : vector<16x32xf32> to vector<16xf32>
    %435 = vector.shape_cast %434 : vector<16xf32> to vector<16x1xf32>
    %cst_136 = arith.constant 3.200000e+01 : f32
    %436 = vector.broadcast %cst_136 : f32 to vector<16x1xf32>
    %437 = arith.divf %435, %436 : vector<16x1xf32>
    %cst_137 = arith.constant 9.99999974E-6 : f32
    %438 = vector.broadcast %cst_137 : f32 to vector<16x1xf32>
    %439 = arith.addf %437, %438 : vector<16x1xf32>
    %440 = math.rsqrt %439 : vector<16x1xf32>
    %441 = vector.broadcast %440 : vector<16x1xf32> to vector<16x32xf32>
    %442 = arith.mulf %432, %441 : vector<16x32xf32>
    %443 = vector.broadcast %425 : vector<1x32xf32> to vector<16x32xf32>
    %444 = arith.mulf %442, %443 : vector<16x32xf32>
    %445 = vector.broadcast %426 : vector<1x32xf32> to vector<16x32xf32>
    %446 = arith.addf %444, %445 : vector<16x32xf32>
    %c64 = arith.constant 64 : index
    %c0_138 = arith.constant 0 : index
    %447 = vector.load %arg3[%c64, %c0_138] : memref<192x96xbf16, #tpu.memory_space<vmem>>, vector<32x96xbf16>
    %c2_139 = arith.constant 2 : index
    %c0_140 = arith.constant 0 : index
    %448 = vector.load %arg6[%c2_139, %c0_140] : memref<6x96xf32, #tpu.memory_space<vmem>>, vector<1x96xf32>
    %449 = arith.truncf %6 : vector<16x32xf32> to vector<16x32xbf16>
    %cst_141 = arith.constant dense<0.000000e+00> : vector<16x96xf32>
    %450 = tpu.matmul %449, %447, %cst_141 {dimension_numbers = #tpu.dot_dimension_numbers<[1], [0], [0], [1], [0, 0, 1, 1], [], []>} : vector<16x32xbf16>, vector<32x96xbf16>, vector<16x96xf32> -> vector<16x96xf32>
    %451 = vector.broadcast %448 : vector<1x96xf32> to vector<16x96xf32>
    %452 = arith.addf %450, %451 : vector<16x96xf32>
    %453 = vector.extract_strided_slice %452 {offsets = [0, 0], sizes = [16, 32], strides = [1, 1]} : vector<16x96xf32> to vector<16x32xf32>
    %454 = vector.extract_strided_slice %452 {offsets = [0, 32], sizes = [16, 32], strides = [1, 1]} : vector<16x96xf32> to vector<16x32xf32>
    %455 = vector.extract_strided_slice %452 {offsets = [0, 64], sizes = [16, 32], strides = [1, 1]} : vector<16x96xf32> to vector<16x32xf32>
    %456 = arith.truncf %453 : vector<16x32xf32> to vector<16x32xbf16>
    %457 = arith.truncf %454 : vector<16x32xf32> to vector<16x32xbf16>
    %458 = arith.truncf %455 : vector<16x32xf32> to vector<16x32xbf16>
    %459 = vector.extract_strided_slice %456 {offsets = [0, 0], sizes = [8, 8], strides = [1, 1]} : vector<16x32xbf16> to vector<8x8xbf16>
    %460 = vector.extract_strided_slice %457 {offsets = [0, 0], sizes = [8, 8], strides = [1, 1]} : vector<16x32xbf16> to vector<8x8xbf16>
    %cst_142 = arith.constant dense<0.000000e+00> : vector<8x8xf32>
    %461 = tpu.matmul %459, %460, %cst_142 {dimension_numbers = #tpu.dot_dimension_numbers<[1], [1], [0], [0], [0, 0, 1, 0], [], []>} : vector<8x8xbf16>, vector<8x8xbf16>, vector<8x8xf32> -> vector<8x8xf32>
    %cst_143 = arith.constant dense<0xFF800000> : vector<8xf32>
    %462 = vector.multi_reduction <maximumf>, %461, %cst_143 [1] : vector<8x8xf32> to vector<8xf32>
    %463 = vector.shape_cast %462 : vector<8xf32> to vector<8x1xf32>
    %464 = vector.broadcast %463 : vector<8x1xf32> to vector<8x8xf32>
    %465 = arith.subf %461, %464 : vector<8x8xf32>
    %466 = math.exp %465 : vector<8x8xf32>
    %cst_144 = arith.constant dense<0.000000e+00> : vector<8xf32>
    %467 = vector.multi_reduction <add>, %466, %cst_144 [1] : vector<8x8xf32> to vector<8xf32>
    %468 = vector.shape_cast %467 : vector<8xf32> to vector<8x1xf32>
    %469 = tpu.reciprocal %468 {approx = true} : vector<8x1xf32> -> vector<8x1xf32>
    %470 = vector.broadcast %469 : vector<8x1xf32> to vector<8x8xf32>
    %471 = arith.mulf %466, %470 : vector<8x8xf32>
    %472 = arith.truncf %471 : vector<8x8xf32> to vector<8x8xbf16>
    %473 = vector.extract_strided_slice %458 {offsets = [0, 0], sizes = [8, 8], strides = [1, 1]} : vector<16x32xbf16> to vector<8x8xbf16>
    %cst_145 = arith.constant dense<0.000000e+00> : vector<8x8xf32>
    %474 = tpu.matmul %472, %473, %cst_145 {dimension_numbers = #tpu.dot_dimension_numbers<[1], [0], [0], [1], [0, 0, 1, 1], [], []>} : vector<8x8xbf16>, vector<8x8xbf16>, vector<8x8xf32> -> vector<8x8xf32>
    %475 = vector.extract_strided_slice %456 {offsets = [0, 8], sizes = [8, 8], strides = [1, 1]} : vector<16x32xbf16> to vector<8x8xbf16>
    %476 = vector.extract_strided_slice %457 {offsets = [0, 8], sizes = [8, 8], strides = [1, 1]} : vector<16x32xbf16> to vector<8x8xbf16>
    %cst_146 = arith.constant dense<0.000000e+00> : vector<8x8xf32>
    %477 = tpu.matmul %475, %476, %cst_146 {dimension_numbers = #tpu.dot_dimension_numbers<[1], [1], [0], [0], [0, 0, 1, 0], [], []>} : vector<8x8xbf16>, vector<8x8xbf16>, vector<8x8xf32> -> vector<8x8xf32>
    %cst_147 = arith.constant dense<0xFF800000> : vector<8xf32>
    %478 = vector.multi_reduction <maximumf>, %477, %cst_147 [1] : vector<8x8xf32> to vector<8xf32>
    %479 = vector.shape_cast %478 : vector<8xf32> to vector<8x1xf32>
    %480 = vector.broadcast %479 : vector<8x1xf32> to vector<8x8xf32>
    %481 = arith.subf %477, %480 : vector<8x8xf32>
    %482 = math.exp %481 : vector<8x8xf32>
    %cst_148 = arith.constant dense<0.000000e+00> : vector<8xf32>
    %483 = vector.multi_reduction <add>, %482, %cst_148 [1] : vector<8x8xf32> to vector<8xf32>
    %484 = vector.shape_cast %483 : vector<8xf32> to vector<8x1xf32>
    %485 = tpu.reciprocal %484 {approx = true} : vector<8x1xf32> -> vector<8x1xf32>
    %486 = vector.broadcast %485 : vector<8x1xf32> to vector<8x8xf32>
    %487 = arith.mulf %482, %486 : vector<8x8xf32>
    %488 = arith.truncf %487 : vector<8x8xf32> to vector<8x8xbf16>
    %489 = vector.extract_strided_slice %458 {offsets = [0, 8], sizes = [8, 8], strides = [1, 1]} : vector<16x32xbf16> to vector<8x8xbf16>
    %cst_149 = arith.constant dense<0.000000e+00> : vector<8x8xf32>
    %490 = tpu.matmul %488, %489, %cst_149 {dimension_numbers = #tpu.dot_dimension_numbers<[1], [0], [0], [1], [0, 0, 1, 1], [], []>} : vector<8x8xbf16>, vector<8x8xbf16>, vector<8x8xf32> -> vector<8x8xf32>
    %491 = vector.extract_strided_slice %456 {offsets = [0, 16], sizes = [8, 8], strides = [1, 1]} : vector<16x32xbf16> to vector<8x8xbf16>
    %492 = vector.extract_strided_slice %457 {offsets = [0, 16], sizes = [8, 8], strides = [1, 1]} : vector<16x32xbf16> to vector<8x8xbf16>
    %cst_150 = arith.constant dense<0.000000e+00> : vector<8x8xf32>
    %493 = tpu.matmul %491, %492, %cst_150 {dimension_numbers = #tpu.dot_dimension_numbers<[1], [1], [0], [0], [0, 0, 1, 0], [], []>} : vector<8x8xbf16>, vector<8x8xbf16>, vector<8x8xf32> -> vector<8x8xf32>
    %cst_151 = arith.constant dense<0xFF800000> : vector<8xf32>
    %494 = vector.multi_reduction <maximumf>, %493, %cst_151 [1] : vector<8x8xf32> to vector<8xf32>
    %495 = vector.shape_cast %494 : vector<8xf32> to vector<8x1xf32>
    %496 = vector.broadcast %495 : vector<8x1xf32> to vector<8x8xf32>
    %497 = arith.subf %493, %496 : vector<8x8xf32>
    %498 = math.exp %497 : vector<8x8xf32>
    %cst_152 = arith.constant dense<0.000000e+00> : vector<8xf32>
    %499 = vector.multi_reduction <add>, %498, %cst_152 [1] : vector<8x8xf32> to vector<8xf32>
    %500 = vector.shape_cast %499 : vector<8xf32> to vector<8x1xf32>
    %501 = tpu.reciprocal %500 {approx = true} : vector<8x1xf32> -> vector<8x1xf32>
    %502 = vector.broadcast %501 : vector<8x1xf32> to vector<8x8xf32>
    %503 = arith.mulf %498, %502 : vector<8x8xf32>
    %504 = arith.truncf %503 : vector<8x8xf32> to vector<8x8xbf16>
    %505 = vector.extract_strided_slice %458 {offsets = [0, 16], sizes = [8, 8], strides = [1, 1]} : vector<16x32xbf16> to vector<8x8xbf16>
    %cst_153 = arith.constant dense<0.000000e+00> : vector<8x8xf32>
    %506 = tpu.matmul %504, %505, %cst_153 {dimension_numbers = #tpu.dot_dimension_numbers<[1], [0], [0], [1], [0, 0, 1, 1], [], []>} : vector<8x8xbf16>, vector<8x8xbf16>, vector<8x8xf32> -> vector<8x8xf32>
    %507 = vector.extract_strided_slice %456 {offsets = [0, 24], sizes = [8, 8], strides = [1, 1]} : vector<16x32xbf16> to vector<8x8xbf16>
    %508 = vector.extract_strided_slice %457 {offsets = [0, 24], sizes = [8, 8], strides = [1, 1]} : vector<16x32xbf16> to vector<8x8xbf16>
    %cst_154 = arith.constant dense<0.000000e+00> : vector<8x8xf32>
    %509 = tpu.matmul %507, %508, %cst_154 {dimension_numbers = #tpu.dot_dimension_numbers<[1], [1], [0], [0], [0, 0, 1, 0], [], []>} : vector<8x8xbf16>, vector<8x8xbf16>, vector<8x8xf32> -> vector<8x8xf32>
    %cst_155 = arith.constant dense<0xFF800000> : vector<8xf32>
    %510 = vector.multi_reduction <maximumf>, %509, %cst_155 [1] : vector<8x8xf32> to vector<8xf32>
    %511 = vector.shape_cast %510 : vector<8xf32> to vector<8x1xf32>
    %512 = vector.broadcast %511 : vector<8x1xf32> to vector<8x8xf32>
    %513 = arith.subf %509, %512 : vector<8x8xf32>
    %514 = math.exp %513 : vector<8x8xf32>
    %cst_156 = arith.constant dense<0.000000e+00> : vector<8xf32>
    %515 = vector.multi_reduction <add>, %514, %cst_156 [1] : vector<8x8xf32> to vector<8xf32>
    %516 = vector.shape_cast %515 : vector<8xf32> to vector<8x1xf32>
    %517 = tpu.reciprocal %516 {approx = true} : vector<8x1xf32> -> vector<8x1xf32>
    %518 = vector.broadcast %517 : vector<8x1xf32> to vector<8x8xf32>
    %519 = arith.mulf %514, %518 : vector<8x8xf32>
    %520 = arith.truncf %519 : vector<8x8xf32> to vector<8x8xbf16>
    %521 = vector.extract_strided_slice %458 {offsets = [0, 24], sizes = [8, 8], strides = [1, 1]} : vector<16x32xbf16> to vector<8x8xbf16>
    %cst_157 = arith.constant dense<0.000000e+00> : vector<8x8xf32>
    %522 = tpu.matmul %520, %521, %cst_157 {dimension_numbers = #tpu.dot_dimension_numbers<[1], [0], [0], [1], [0, 0, 1, 1], [], []>} : vector<8x8xbf16>, vector<8x8xbf16>, vector<8x8xf32> -> vector<8x8xf32>
    %523 = tpu.concatenate %474, %490, %506, %522 in 1 : vector<8x8xf32>, vector<8x8xf32>, vector<8x8xf32>, vector<8x8xf32> -> vector<8x32xf32>
    %524 = vector.extract_strided_slice %456 {offsets = [8, 0], sizes = [8, 8], strides = [1, 1]} : vector<16x32xbf16> to vector<8x8xbf16>
    %525 = vector.extract_strided_slice %457 {offsets = [8, 0], sizes = [8, 8], strides = [1, 1]} : vector<16x32xbf16> to vector<8x8xbf16>
    %cst_158 = arith.constant dense<0.000000e+00> : vector<8x8xf32>
    %526 = tpu.matmul %524, %525, %cst_158 {dimension_numbers = #tpu.dot_dimension_numbers<[1], [1], [0], [0], [0, 0, 1, 0], [], []>} : vector<8x8xbf16>, vector<8x8xbf16>, vector<8x8xf32> -> vector<8x8xf32>
    %cst_159 = arith.constant dense<0xFF800000> : vector<8xf32>
    %527 = vector.multi_reduction <maximumf>, %526, %cst_159 [1] : vector<8x8xf32> to vector<8xf32>
    %528 = vector.shape_cast %527 : vector<8xf32> to vector<8x1xf32>
    %529 = vector.broadcast %528 : vector<8x1xf32> to vector<8x8xf32>
    %530 = arith.subf %526, %529 : vector<8x8xf32>
    %531 = math.exp %530 : vector<8x8xf32>
    %cst_160 = arith.constant dense<0.000000e+00> : vector<8xf32>
    %532 = vector.multi_reduction <add>, %531, %cst_160 [1] : vector<8x8xf32> to vector<8xf32>
    %533 = vector.shape_cast %532 : vector<8xf32> to vector<8x1xf32>
    %534 = tpu.reciprocal %533 {approx = true} : vector<8x1xf32> -> vector<8x1xf32>
    %535 = vector.broadcast %534 : vector<8x1xf32> to vector<8x8xf32>
    %536 = arith.mulf %531, %535 : vector<8x8xf32>
    %537 = arith.truncf %536 : vector<8x8xf32> to vector<8x8xbf16>
    %538 = vector.extract_strided_slice %458 {offsets = [8, 0], sizes = [8, 8], strides = [1, 1]} : vector<16x32xbf16> to vector<8x8xbf16>
    %cst_161 = arith.constant dense<0.000000e+00> : vector<8x8xf32>
    %539 = tpu.matmul %537, %538, %cst_161 {dimension_numbers = #tpu.dot_dimension_numbers<[1], [0], [0], [1], [0, 0, 1, 1], [], []>} : vector<8x8xbf16>, vector<8x8xbf16>, vector<8x8xf32> -> vector<8x8xf32>
    %540 = vector.extract_strided_slice %456 {offsets = [8, 8], sizes = [8, 8], strides = [1, 1]} : vector<16x32xbf16> to vector<8x8xbf16>
    %541 = vector.extract_strided_slice %457 {offsets = [8, 8], sizes = [8, 8], strides = [1, 1]} : vector<16x32xbf16> to vector<8x8xbf16>
    %cst_162 = arith.constant dense<0.000000e+00> : vector<8x8xf32>
    %542 = tpu.matmul %540, %541, %cst_162 {dimension_numbers = #tpu.dot_dimension_numbers<[1], [1], [0], [0], [0, 0, 1, 0], [], []>} : vector<8x8xbf16>, vector<8x8xbf16>, vector<8x8xf32> -> vector<8x8xf32>
    %cst_163 = arith.constant dense<0xFF800000> : vector<8xf32>
    %543 = vector.multi_reduction <maximumf>, %542, %cst_163 [1] : vector<8x8xf32> to vector<8xf32>
    %544 = vector.shape_cast %543 : vector<8xf32> to vector<8x1xf32>
    %545 = vector.broadcast %544 : vector<8x1xf32> to vector<8x8xf32>
    %546 = arith.subf %542, %545 : vector<8x8xf32>
    %547 = math.exp %546 : vector<8x8xf32>
    %cst_164 = arith.constant dense<0.000000e+00> : vector<8xf32>
    %548 = vector.multi_reduction <add>, %547, %cst_164 [1] : vector<8x8xf32> to vector<8xf32>
    %549 = vector.shape_cast %548 : vector<8xf32> to vector<8x1xf32>
    %550 = tpu.reciprocal %549 {approx = true} : vector<8x1xf32> -> vector<8x1xf32>
    %551 = vector.broadcast %550 : vector<8x1xf32> to vector<8x8xf32>
    %552 = arith.mulf %547, %551 : vector<8x8xf32>
    %553 = arith.truncf %552 : vector<8x8xf32> to vector<8x8xbf16>
    %554 = vector.extract_strided_slice %458 {offsets = [8, 8], sizes = [8, 8], strides = [1, 1]} : vector<16x32xbf16> to vector<8x8xbf16>
    %cst_165 = arith.constant dense<0.000000e+00> : vector<8x8xf32>
    %555 = tpu.matmul %553, %554, %cst_165 {dimension_numbers = #tpu.dot_dimension_numbers<[1], [0], [0], [1], [0, 0, 1, 1], [], []>} : vector<8x8xbf16>, vector<8x8xbf16>, vector<8x8xf32> -> vector<8x8xf32>
    %556 = vector.extract_strided_slice %456 {offsets = [8, 16], sizes = [8, 8], strides = [1, 1]} : vector<16x32xbf16> to vector<8x8xbf16>
    %557 = vector.extract_strided_slice %457 {offsets = [8, 16], sizes = [8, 8], strides = [1, 1]} : vector<16x32xbf16> to vector<8x8xbf16>
    %cst_166 = arith.constant dense<0.000000e+00> : vector<8x8xf32>
    %558 = tpu.matmul %556, %557, %cst_166 {dimension_numbers = #tpu.dot_dimension_numbers<[1], [1], [0], [0], [0, 0, 1, 0], [], []>} : vector<8x8xbf16>, vector<8x8xbf16>, vector<8x8xf32> -> vector<8x8xf32>
    %cst_167 = arith.constant dense<0xFF800000> : vector<8xf32>
    %559 = vector.multi_reduction <maximumf>, %558, %cst_167 [1] : vector<8x8xf32> to vector<8xf32>
    %560 = vector.shape_cast %559 : vector<8xf32> to vector<8x1xf32>
    %561 = vector.broadcast %560 : vector<8x1xf32> to vector<8x8xf32>
    %562 = arith.subf %558, %561 : vector<8x8xf32>
    %563 = math.exp %562 : vector<8x8xf32>
    %cst_168 = arith.constant dense<0.000000e+00> : vector<8xf32>
    %564 = vector.multi_reduction <add>, %563, %cst_168 [1] : vector<8x8xf32> to vector<8xf32>
    %565 = vector.shape_cast %564 : vector<8xf32> to vector<8x1xf32>
    %566 = tpu.reciprocal %565 {approx = true} : vector<8x1xf32> -> vector<8x1xf32>
    %567 = vector.broadcast %566 : vector<8x1xf32> to vector<8x8xf32>
    %568 = arith.mulf %563, %567 : vector<8x8xf32>
    %569 = arith.truncf %568 : vector<8x8xf32> to vector<8x8xbf16>
    %570 = vector.extract_strided_slice %458 {offsets = [8, 16], sizes = [8, 8], strides = [1, 1]} : vector<16x32xbf16> to vector<8x8xbf16>
    %cst_169 = arith.constant dense<0.000000e+00> : vector<8x8xf32>
    %571 = tpu.matmul %569, %570, %cst_169 {dimension_numbers = #tpu.dot_dimension_numbers<[1], [0], [0], [1], [0, 0, 1, 1], [], []>} : vector<8x8xbf16>, vector<8x8xbf16>, vector<8x8xf32> -> vector<8x8xf32>
    %572 = vector.extract_strided_slice %456 {offsets = [8, 24], sizes = [8, 8], strides = [1, 1]} : vector<16x32xbf16> to vector<8x8xbf16>
    %573 = vector.extract_strided_slice %457 {offsets = [8, 24], sizes = [8, 8], strides = [1, 1]} : vector<16x32xbf16> to vector<8x8xbf16>
    %cst_170 = arith.constant dense<0.000000e+00> : vector<8x8xf32>
    %574 = tpu.matmul %572, %573, %cst_170 {dimension_numbers = #tpu.dot_dimension_numbers<[1], [1], [0], [0], [0, 0, 1, 0], [], []>} : vector<8x8xbf16>, vector<8x8xbf16>, vector<8x8xf32> -> vector<8x8xf32>
    %cst_171 = arith.constant dense<0xFF800000> : vector<8xf32>
    %575 = vector.multi_reduction <maximumf>, %574, %cst_171 [1] : vector<8x8xf32> to vector<8xf32>
    %576 = vector.shape_cast %575 : vector<8xf32> to vector<8x1xf32>
    %577 = vector.broadcast %576 : vector<8x1xf32> to vector<8x8xf32>
    %578 = arith.subf %574, %577 : vector<8x8xf32>
    %579 = math.exp %578 : vector<8x8xf32>
    %cst_172 = arith.constant dense<0.000000e+00> : vector<8xf32>
    %580 = vector.multi_reduction <add>, %579, %cst_172 [1] : vector<8x8xf32> to vector<8xf32>
    %581 = vector.shape_cast %580 : vector<8xf32> to vector<8x1xf32>
    %582 = tpu.reciprocal %581 {approx = true} : vector<8x1xf32> -> vector<8x1xf32>
    %583 = vector.broadcast %582 : vector<8x1xf32> to vector<8x8xf32>
    %584 = arith.mulf %579, %583 : vector<8x8xf32>
    %585 = arith.truncf %584 : vector<8x8xf32> to vector<8x8xbf16>
    %586 = vector.extract_strided_slice %458 {offsets = [8, 24], sizes = [8, 8], strides = [1, 1]} : vector<16x32xbf16> to vector<8x8xbf16>
    %cst_173 = arith.constant dense<0.000000e+00> : vector<8x8xf32>
    %587 = tpu.matmul %585, %586, %cst_173 {dimension_numbers = #tpu.dot_dimension_numbers<[1], [0], [0], [1], [0, 0, 1, 1], [], []>} : vector<8x8xbf16>, vector<8x8xbf16>, vector<8x8xf32> -> vector<8x8xf32>
    %588 = tpu.concatenate %539, %555, %571, %587 in 1 : vector<8x8xf32>, vector<8x8xf32>, vector<8x8xf32>, vector<8x8xf32> -> vector<8x32xf32>
    %589 = tpu.concatenate %523, %588 in 0 : vector<8x32xf32>, vector<8x32xf32> -> vector<16x32xf32>
    %c336 = arith.constant 336 : index
    %c0_174 = arith.constant 0 : index
    %590 = vector.load %arg2[%c336, %c0_174] : memref<720x32xbf16, #tpu.memory_space<vmem>>, vector<32x32xbf16>
    %591 = arith.truncf %589 : vector<16x32xf32> to vector<16x32xbf16>
    %cst_175 = arith.constant dense<0.000000e+00> : vector<16x32xf32>
    %592 = tpu.matmul %591, %590, %cst_175 {dimension_numbers = #tpu.dot_dimension_numbers<[1], [0], [0], [1], [0, 0, 1, 1], [], []>} : vector<16x32xbf16>, vector<32x32xbf16>, vector<16x32xf32> -> vector<16x32xf32>
    %c13 = arith.constant 13 : index
    %c0_176 = arith.constant 0 : index
    %593 = vector.load %arg5[%c13, %c0_176] : memref<35x32xf32, #tpu.memory_space<vmem>>, vector<1x32xf32>
    %594 = vector.broadcast %593 : vector<1x32xf32> to vector<16x32xf32>
    %595 = arith.addf %592, %594 : vector<16x32xf32>
    %596 = arith.addf %6, %595 : vector<16x32xf32>
    %c16_177 = arith.constant 16 : index
    %c0_178 = arith.constant 0 : index
    %597 = vector.load %arg5[%c16_177, %c0_178] : memref<35x32xf32, #tpu.memory_space<vmem>>, vector<1x32xf32>
    %c17 = arith.constant 17 : index
    %c0_179 = arith.constant 0 : index
    %598 = vector.load %arg5[%c17, %c0_179] : memref<35x32xf32, #tpu.memory_space<vmem>>, vector<1x32xf32>
    %cst_180 = arith.constant dense<0.000000e+00> : vector<16xf32>
    %599 = vector.multi_reduction <add>, %596, %cst_180 [1] : vector<16x32xf32> to vector<16xf32>
    %600 = vector.shape_cast %599 : vector<16xf32> to vector<16x1xf32>
    %cst_181 = arith.constant 3.200000e+01 : f32
    %601 = vector.broadcast %cst_181 : f32 to vector<16x1xf32>
    %602 = arith.divf %600, %601 : vector<16x1xf32>
    %603 = vector.broadcast %602 : vector<16x1xf32> to vector<16x32xf32>
    %604 = arith.subf %596, %603 : vector<16x32xf32>
    %605 = arith.mulf %604, %604 : vector<16x32xf32>
    %cst_182 = arith.constant dense<0.000000e+00> : vector<16xf32>
    %606 = vector.multi_reduction <add>, %605, %cst_182 [1] : vector<16x32xf32> to vector<16xf32>
    %607 = vector.shape_cast %606 : vector<16xf32> to vector<16x1xf32>
    %cst_183 = arith.constant 3.200000e+01 : f32
    %608 = vector.broadcast %cst_183 : f32 to vector<16x1xf32>
    %609 = arith.divf %607, %608 : vector<16x1xf32>
    %cst_184 = arith.constant 9.99999974E-6 : f32
    %610 = vector.broadcast %cst_184 : f32 to vector<16x1xf32>
    %611 = arith.addf %609, %610 : vector<16x1xf32>
    %612 = math.rsqrt %611 : vector<16x1xf32>
    %613 = vector.broadcast %612 : vector<16x1xf32> to vector<16x32xf32>
    %614 = arith.mulf %604, %613 : vector<16x32xf32>
    %615 = vector.broadcast %597 : vector<1x32xf32> to vector<16x32xf32>
    %616 = arith.mulf %614, %615 : vector<16x32xf32>
    %617 = vector.broadcast %598 : vector<1x32xf32> to vector<16x32xf32>
    %618 = arith.addf %616, %617 : vector<16x32xf32>
    %c96 = arith.constant 96 : index
    %c0_185 = arith.constant 0 : index
    %619 = vector.load %arg3[%c96, %c0_185] : memref<192x96xbf16, #tpu.memory_space<vmem>>, vector<32x96xbf16>
    %c3_186 = arith.constant 3 : index
    %c0_187 = arith.constant 0 : index
    %620 = vector.load %arg6[%c3_186, %c0_187] : memref<6x96xf32, #tpu.memory_space<vmem>>, vector<1x96xf32>
    %621 = vector.extract_strided_slice %619 {offsets = [0, 0], sizes = [32, 32], strides = [1, 1]} : vector<32x96xbf16> to vector<32x32xbf16>
    %622 = arith.truncf %618 : vector<16x32xf32> to vector<16x32xbf16>
    %cst_188 = arith.constant dense<0.000000e+00> : vector<16x32xf32>
    %623 = tpu.matmul %622, %621, %cst_188 {dimension_numbers = #tpu.dot_dimension_numbers<[1], [0], [0], [1], [0, 0, 1, 1], [], []>} : vector<16x32xbf16>, vector<32x32xbf16>, vector<16x32xf32> -> vector<16x32xf32>
    %624 = vector.extract_strided_slice %620 {offsets = [0, 0], sizes = [1, 32], strides = [1, 1]} : vector<1x96xf32> to vector<1x32xf32>
    %625 = vector.broadcast %624 : vector<1x32xf32> to vector<16x32xf32>
    %626 = arith.addf %623, %625 : vector<16x32xf32>
    %627 = vector.extract_strided_slice %619 {offsets = [0, 32], sizes = [32, 64], strides = [1, 1]} : vector<32x96xbf16> to vector<32x64xbf16>
    %628 = arith.truncf %446 : vector<16x32xf32> to vector<16x32xbf16>
    %cst_189 = arith.constant dense<0.000000e+00> : vector<16x64xf32>
    %629 = tpu.matmul %628, %627, %cst_189 {dimension_numbers = #tpu.dot_dimension_numbers<[1], [0], [0], [1], [0, 0, 1, 1], [], []>} : vector<16x32xbf16>, vector<32x64xbf16>, vector<16x64xf32> -> vector<16x64xf32>
    %630 = vector.extract_strided_slice %620 {offsets = [0, 32], sizes = [1, 64], strides = [1, 1]} : vector<1x96xf32> to vector<1x64xf32>
    %631 = vector.broadcast %630 : vector<1x64xf32> to vector<16x64xf32>
    %632 = arith.addf %629, %631 : vector<16x64xf32>
    %633 = vector.extract_strided_slice %632 {offsets = [0, 0], sizes = [16, 32], strides = [1, 1]} : vector<16x64xf32> to vector<16x32xf32>
    %634 = vector.extract_strided_slice %632 {offsets = [0, 32], sizes = [16, 32], strides = [1, 1]} : vector<16x64xf32> to vector<16x32xf32>
    %635 = arith.truncf %626 : vector<16x32xf32> to vector<16x32xbf16>
    %636 = arith.truncf %633 : vector<16x32xf32> to vector<16x32xbf16>
    %637 = arith.truncf %634 : vector<16x32xf32> to vector<16x32xbf16>
    %638 = vector.extract_strided_slice %635 {offsets = [0, 0], sizes = [8, 8], strides = [1, 1]} : vector<16x32xbf16> to vector<8x8xbf16>
    %639 = vector.extract_strided_slice %636 {offsets = [0, 0], sizes = [8, 8], strides = [1, 1]} : vector<16x32xbf16> to vector<8x8xbf16>
    %cst_190 = arith.constant dense<0.000000e+00> : vector<8x8xf32>
    %640 = tpu.matmul %638, %639, %cst_190 {dimension_numbers = #tpu.dot_dimension_numbers<[1], [1], [0], [0], [0, 0, 1, 0], [], []>} : vector<8x8xbf16>, vector<8x8xbf16>, vector<8x8xf32> -> vector<8x8xf32>
    %cst_191 = arith.constant dense<0xFF800000> : vector<8xf32>
    %641 = vector.multi_reduction <maximumf>, %640, %cst_191 [1] : vector<8x8xf32> to vector<8xf32>
    %642 = vector.shape_cast %641 : vector<8xf32> to vector<8x1xf32>
    %643 = vector.broadcast %642 : vector<8x1xf32> to vector<8x8xf32>
    %644 = arith.subf %640, %643 : vector<8x8xf32>
    %645 = math.exp %644 : vector<8x8xf32>
    %cst_192 = arith.constant dense<0.000000e+00> : vector<8xf32>
    %646 = vector.multi_reduction <add>, %645, %cst_192 [1] : vector<8x8xf32> to vector<8xf32>
    %647 = vector.shape_cast %646 : vector<8xf32> to vector<8x1xf32>
    %648 = tpu.reciprocal %647 {approx = true} : vector<8x1xf32> -> vector<8x1xf32>
    %649 = vector.broadcast %648 : vector<8x1xf32> to vector<8x8xf32>
    %650 = arith.mulf %645, %649 : vector<8x8xf32>
    %651 = arith.truncf %650 : vector<8x8xf32> to vector<8x8xbf16>
    %652 = vector.extract_strided_slice %637 {offsets = [0, 0], sizes = [8, 8], strides = [1, 1]} : vector<16x32xbf16> to vector<8x8xbf16>
    %cst_193 = arith.constant dense<0.000000e+00> : vector<8x8xf32>
    %653 = tpu.matmul %651, %652, %cst_193 {dimension_numbers = #tpu.dot_dimension_numbers<[1], [0], [0], [1], [0, 0, 1, 1], [], []>} : vector<8x8xbf16>, vector<8x8xbf16>, vector<8x8xf32> -> vector<8x8xf32>
    %654 = vector.extract_strided_slice %635 {offsets = [0, 8], sizes = [8, 8], strides = [1, 1]} : vector<16x32xbf16> to vector<8x8xbf16>
    %655 = vector.extract_strided_slice %636 {offsets = [0, 8], sizes = [8, 8], strides = [1, 1]} : vector<16x32xbf16> to vector<8x8xbf16>
    %cst_194 = arith.constant dense<0.000000e+00> : vector<8x8xf32>
    %656 = tpu.matmul %654, %655, %cst_194 {dimension_numbers = #tpu.dot_dimension_numbers<[1], [1], [0], [0], [0, 0, 1, 0], [], []>} : vector<8x8xbf16>, vector<8x8xbf16>, vector<8x8xf32> -> vector<8x8xf32>
    %cst_195 = arith.constant dense<0xFF800000> : vector<8xf32>
    %657 = vector.multi_reduction <maximumf>, %656, %cst_195 [1] : vector<8x8xf32> to vector<8xf32>
    %658 = vector.shape_cast %657 : vector<8xf32> to vector<8x1xf32>
    %659 = vector.broadcast %658 : vector<8x1xf32> to vector<8x8xf32>
    %660 = arith.subf %656, %659 : vector<8x8xf32>
    %661 = math.exp %660 : vector<8x8xf32>
    %cst_196 = arith.constant dense<0.000000e+00> : vector<8xf32>
    %662 = vector.multi_reduction <add>, %661, %cst_196 [1] : vector<8x8xf32> to vector<8xf32>
    %663 = vector.shape_cast %662 : vector<8xf32> to vector<8x1xf32>
    %664 = tpu.reciprocal %663 {approx = true} : vector<8x1xf32> -> vector<8x1xf32>
    %665 = vector.broadcast %664 : vector<8x1xf32> to vector<8x8xf32>
    %666 = arith.mulf %661, %665 : vector<8x8xf32>
    %667 = arith.truncf %666 : vector<8x8xf32> to vector<8x8xbf16>
    %668 = vector.extract_strided_slice %637 {offsets = [0, 8], sizes = [8, 8], strides = [1, 1]} : vector<16x32xbf16> to vector<8x8xbf16>
    %cst_197 = arith.constant dense<0.000000e+00> : vector<8x8xf32>
    %669 = tpu.matmul %667, %668, %cst_197 {dimension_numbers = #tpu.dot_dimension_numbers<[1], [0], [0], [1], [0, 0, 1, 1], [], []>} : vector<8x8xbf16>, vector<8x8xbf16>, vector<8x8xf32> -> vector<8x8xf32>
    %670 = vector.extract_strided_slice %635 {offsets = [0, 16], sizes = [8, 8], strides = [1, 1]} : vector<16x32xbf16> to vector<8x8xbf16>
    %671 = vector.extract_strided_slice %636 {offsets = [0, 16], sizes = [8, 8], strides = [1, 1]} : vector<16x32xbf16> to vector<8x8xbf16>
    %cst_198 = arith.constant dense<0.000000e+00> : vector<8x8xf32>
    %672 = tpu.matmul %670, %671, %cst_198 {dimension_numbers = #tpu.dot_dimension_numbers<[1], [1], [0], [0], [0, 0, 1, 0], [], []>} : vector<8x8xbf16>, vector<8x8xbf16>, vector<8x8xf32> -> vector<8x8xf32>
    %cst_199 = arith.constant dense<0xFF800000> : vector<8xf32>
    %673 = vector.multi_reduction <maximumf>, %672, %cst_199 [1] : vector<8x8xf32> to vector<8xf32>
    %674 = vector.shape_cast %673 : vector<8xf32> to vector<8x1xf32>
    %675 = vector.broadcast %674 : vector<8x1xf32> to vector<8x8xf32>
    %676 = arith.subf %672, %675 : vector<8x8xf32>
    %677 = math.exp %676 : vector<8x8xf32>
    %cst_200 = arith.constant dense<0.000000e+00> : vector<8xf32>
    %678 = vector.multi_reduction <add>, %677, %cst_200 [1] : vector<8x8xf32> to vector<8xf32>
    %679 = vector.shape_cast %678 : vector<8xf32> to vector<8x1xf32>
    %680 = tpu.reciprocal %679 {approx = true} : vector<8x1xf32> -> vector<8x1xf32>
    %681 = vector.broadcast %680 : vector<8x1xf32> to vector<8x8xf32>
    %682 = arith.mulf %677, %681 : vector<8x8xf32>
    %683 = arith.truncf %682 : vector<8x8xf32> to vector<8x8xbf16>
    %684 = vector.extract_strided_slice %637 {offsets = [0, 16], sizes = [8, 8], strides = [1, 1]} : vector<16x32xbf16> to vector<8x8xbf16>
    %cst_201 = arith.constant dense<0.000000e+00> : vector<8x8xf32>
    %685 = tpu.matmul %683, %684, %cst_201 {dimension_numbers = #tpu.dot_dimension_numbers<[1], [0], [0], [1], [0, 0, 1, 1], [], []>} : vector<8x8xbf16>, vector<8x8xbf16>, vector<8x8xf32> -> vector<8x8xf32>
    %686 = vector.extract_strided_slice %635 {offsets = [0, 24], sizes = [8, 8], strides = [1, 1]} : vector<16x32xbf16> to vector<8x8xbf16>
    %687 = vector.extract_strided_slice %636 {offsets = [0, 24], sizes = [8, 8], strides = [1, 1]} : vector<16x32xbf16> to vector<8x8xbf16>
    %cst_202 = arith.constant dense<0.000000e+00> : vector<8x8xf32>
    %688 = tpu.matmul %686, %687, %cst_202 {dimension_numbers = #tpu.dot_dimension_numbers<[1], [1], [0], [0], [0, 0, 1, 0], [], []>} : vector<8x8xbf16>, vector<8x8xbf16>, vector<8x8xf32> -> vector<8x8xf32>
    %cst_203 = arith.constant dense<0xFF800000> : vector<8xf32>
    %689 = vector.multi_reduction <maximumf>, %688, %cst_203 [1] : vector<8x8xf32> to vector<8xf32>
    %690 = vector.shape_cast %689 : vector<8xf32> to vector<8x1xf32>
    %691 = vector.broadcast %690 : vector<8x1xf32> to vector<8x8xf32>
    %692 = arith.subf %688, %691 : vector<8x8xf32>
    %693 = math.exp %692 : vector<8x8xf32>
    %cst_204 = arith.constant dense<0.000000e+00> : vector<8xf32>
    %694 = vector.multi_reduction <add>, %693, %cst_204 [1] : vector<8x8xf32> to vector<8xf32>
    %695 = vector.shape_cast %694 : vector<8xf32> to vector<8x1xf32>
    %696 = tpu.reciprocal %695 {approx = true} : vector<8x1xf32> -> vector<8x1xf32>
    %697 = vector.broadcast %696 : vector<8x1xf32> to vector<8x8xf32>
    %698 = arith.mulf %693, %697 : vector<8x8xf32>
    %699 = arith.truncf %698 : vector<8x8xf32> to vector<8x8xbf16>
    %700 = vector.extract_strided_slice %637 {offsets = [0, 24], sizes = [8, 8], strides = [1, 1]} : vector<16x32xbf16> to vector<8x8xbf16>
    %cst_205 = arith.constant dense<0.000000e+00> : vector<8x8xf32>
    %701 = tpu.matmul %699, %700, %cst_205 {dimension_numbers = #tpu.dot_dimension_numbers<[1], [0], [0], [1], [0, 0, 1, 1], [], []>} : vector<8x8xbf16>, vector<8x8xbf16>, vector<8x8xf32> -> vector<8x8xf32>
    %702 = tpu.concatenate %653, %669, %685, %701 in 1 : vector<8x8xf32>, vector<8x8xf32>, vector<8x8xf32>, vector<8x8xf32> -> vector<8x32xf32>
    %703 = vector.extract_strided_slice %635 {offsets = [8, 0], sizes = [8, 8], strides = [1, 1]} : vector<16x32xbf16> to vector<8x8xbf16>
    %704 = vector.extract_strided_slice %636 {offsets = [8, 0], sizes = [8, 8], strides = [1, 1]} : vector<16x32xbf16> to vector<8x8xbf16>
    %cst_206 = arith.constant dense<0.000000e+00> : vector<8x8xf32>
    %705 = tpu.matmul %703, %704, %cst_206 {dimension_numbers = #tpu.dot_dimension_numbers<[1], [1], [0], [0], [0, 0, 1, 0], [], []>} : vector<8x8xbf16>, vector<8x8xbf16>, vector<8x8xf32> -> vector<8x8xf32>
    %cst_207 = arith.constant dense<0xFF800000> : vector<8xf32>
    %706 = vector.multi_reduction <maximumf>, %705, %cst_207 [1] : vector<8x8xf32> to vector<8xf32>
    %707 = vector.shape_cast %706 : vector<8xf32> to vector<8x1xf32>
    %708 = vector.broadcast %707 : vector<8x1xf32> to vector<8x8xf32>
    %709 = arith.subf %705, %708 : vector<8x8xf32>
    %710 = math.exp %709 : vector<8x8xf32>
    %cst_208 = arith.constant dense<0.000000e+00> : vector<8xf32>
    %711 = vector.multi_reduction <add>, %710, %cst_208 [1] : vector<8x8xf32> to vector<8xf32>
    %712 = vector.shape_cast %711 : vector<8xf32> to vector<8x1xf32>
    %713 = tpu.reciprocal %712 {approx = true} : vector<8x1xf32> -> vector<8x1xf32>
    %714 = vector.broadcast %713 : vector<8x1xf32> to vector<8x8xf32>
    %715 = arith.mulf %710, %714 : vector<8x8xf32>
    %716 = arith.truncf %715 : vector<8x8xf32> to vector<8x8xbf16>
    %717 = vector.extract_strided_slice %637 {offsets = [8, 0], sizes = [8, 8], strides = [1, 1]} : vector<16x32xbf16> to vector<8x8xbf16>
    %cst_209 = arith.constant dense<0.000000e+00> : vector<8x8xf32>
    %718 = tpu.matmul %716, %717, %cst_209 {dimension_numbers = #tpu.dot_dimension_numbers<[1], [0], [0], [1], [0, 0, 1, 1], [], []>} : vector<8x8xbf16>, vector<8x8xbf16>, vector<8x8xf32> -> vector<8x8xf32>
    %719 = vector.extract_strided_slice %635 {offsets = [8, 8], sizes = [8, 8], strides = [1, 1]} : vector<16x32xbf16> to vector<8x8xbf16>
    %720 = vector.extract_strided_slice %636 {offsets = [8, 8], sizes = [8, 8], strides = [1, 1]} : vector<16x32xbf16> to vector<8x8xbf16>
    %cst_210 = arith.constant dense<0.000000e+00> : vector<8x8xf32>
    %721 = tpu.matmul %719, %720, %cst_210 {dimension_numbers = #tpu.dot_dimension_numbers<[1], [1], [0], [0], [0, 0, 1, 0], [], []>} : vector<8x8xbf16>, vector<8x8xbf16>, vector<8x8xf32> -> vector<8x8xf32>
    %cst_211 = arith.constant dense<0xFF800000> : vector<8xf32>
    %722 = vector.multi_reduction <maximumf>, %721, %cst_211 [1] : vector<8x8xf32> to vector<8xf32>
    %723 = vector.shape_cast %722 : vector<8xf32> to vector<8x1xf32>
    %724 = vector.broadcast %723 : vector<8x1xf32> to vector<8x8xf32>
    %725 = arith.subf %721, %724 : vector<8x8xf32>
    %726 = math.exp %725 : vector<8x8xf32>
    %cst_212 = arith.constant dense<0.000000e+00> : vector<8xf32>
    %727 = vector.multi_reduction <add>, %726, %cst_212 [1] : vector<8x8xf32> to vector<8xf32>
    %728 = vector.shape_cast %727 : vector<8xf32> to vector<8x1xf32>
    %729 = tpu.reciprocal %728 {approx = true} : vector<8x1xf32> -> vector<8x1xf32>
    %730 = vector.broadcast %729 : vector<8x1xf32> to vector<8x8xf32>
    %731 = arith.mulf %726, %730 : vector<8x8xf32>
    %732 = arith.truncf %731 : vector<8x8xf32> to vector<8x8xbf16>
    %733 = vector.extract_strided_slice %637 {offsets = [8, 8], sizes = [8, 8], strides = [1, 1]} : vector<16x32xbf16> to vector<8x8xbf16>
    %cst_213 = arith.constant dense<0.000000e+00> : vector<8x8xf32>
    %734 = tpu.matmul %732, %733, %cst_213 {dimension_numbers = #tpu.dot_dimension_numbers<[1], [0], [0], [1], [0, 0, 1, 1], [], []>} : vector<8x8xbf16>, vector<8x8xbf16>, vector<8x8xf32> -> vector<8x8xf32>
    %735 = vector.extract_strided_slice %635 {offsets = [8, 16], sizes = [8, 8], strides = [1, 1]} : vector<16x32xbf16> to vector<8x8xbf16>
    %736 = vector.extract_strided_slice %636 {offsets = [8, 16], sizes = [8, 8], strides = [1, 1]} : vector<16x32xbf16> to vector<8x8xbf16>
    %cst_214 = arith.constant dense<0.000000e+00> : vector<8x8xf32>
    %737 = tpu.matmul %735, %736, %cst_214 {dimension_numbers = #tpu.dot_dimension_numbers<[1], [1], [0], [0], [0, 0, 1, 0], [], []>} : vector<8x8xbf16>, vector<8x8xbf16>, vector<8x8xf32> -> vector<8x8xf32>
    %cst_215 = arith.constant dense<0xFF800000> : vector<8xf32>
    %738 = vector.multi_reduction <maximumf>, %737, %cst_215 [1] : vector<8x8xf32> to vector<8xf32>
    %739 = vector.shape_cast %738 : vector<8xf32> to vector<8x1xf32>
    %740 = vector.broadcast %739 : vector<8x1xf32> to vector<8x8xf32>
    %741 = arith.subf %737, %740 : vector<8x8xf32>
    %742 = math.exp %741 : vector<8x8xf32>
    %cst_216 = arith.constant dense<0.000000e+00> : vector<8xf32>
    %743 = vector.multi_reduction <add>, %742, %cst_216 [1] : vector<8x8xf32> to vector<8xf32>
    %744 = vector.shape_cast %743 : vector<8xf32> to vector<8x1xf32>
    %745 = tpu.reciprocal %744 {approx = true} : vector<8x1xf32> -> vector<8x1xf32>
    %746 = vector.broadcast %745 : vector<8x1xf32> to vector<8x8xf32>
    %747 = arith.mulf %742, %746 : vector<8x8xf32>
    %748 = arith.truncf %747 : vector<8x8xf32> to vector<8x8xbf16>
    %749 = vector.extract_strided_slice %637 {offsets = [8, 16], sizes = [8, 8], strides = [1, 1]} : vector<16x32xbf16> to vector<8x8xbf16>
    %cst_217 = arith.constant dense<0.000000e+00> : vector<8x8xf32>
    %750 = tpu.matmul %748, %749, %cst_217 {dimension_numbers = #tpu.dot_dimension_numbers<[1], [0], [0], [1], [0, 0, 1, 1], [], []>} : vector<8x8xbf16>, vector<8x8xbf16>, vector<8x8xf32> -> vector<8x8xf32>
    %751 = vector.extract_strided_slice %635 {offsets = [8, 24], sizes = [8, 8], strides = [1, 1]} : vector<16x32xbf16> to vector<8x8xbf16>
    %752 = vector.extract_strided_slice %636 {offsets = [8, 24], sizes = [8, 8], strides = [1, 1]} : vector<16x32xbf16> to vector<8x8xbf16>
    %cst_218 = arith.constant dense<0.000000e+00> : vector<8x8xf32>
    %753 = tpu.matmul %751, %752, %cst_218 {dimension_numbers = #tpu.dot_dimension_numbers<[1], [1], [0], [0], [0, 0, 1, 0], [], []>} : vector<8x8xbf16>, vector<8x8xbf16>, vector<8x8xf32> -> vector<8x8xf32>
    %cst_219 = arith.constant dense<0xFF800000> : vector<8xf32>
    %754 = vector.multi_reduction <maximumf>, %753, %cst_219 [1] : vector<8x8xf32> to vector<8xf32>
    %755 = vector.shape_cast %754 : vector<8xf32> to vector<8x1xf32>
    %756 = vector.broadcast %755 : vector<8x1xf32> to vector<8x8xf32>
    %757 = arith.subf %753, %756 : vector<8x8xf32>
    %758 = math.exp %757 : vector<8x8xf32>
    %cst_220 = arith.constant dense<0.000000e+00> : vector<8xf32>
    %759 = vector.multi_reduction <add>, %758, %cst_220 [1] : vector<8x8xf32> to vector<8xf32>
    %760 = vector.shape_cast %759 : vector<8xf32> to vector<8x1xf32>
    %761 = tpu.reciprocal %760 {approx = true} : vector<8x1xf32> -> vector<8x1xf32>
    %762 = vector.broadcast %761 : vector<8x1xf32> to vector<8x8xf32>
    %763 = arith.mulf %758, %762 : vector<8x8xf32>
    %764 = arith.truncf %763 : vector<8x8xf32> to vector<8x8xbf16>
    %765 = vector.extract_strided_slice %637 {offsets = [8, 24], sizes = [8, 8], strides = [1, 1]} : vector<16x32xbf16> to vector<8x8xbf16>
    %cst_221 = arith.constant dense<0.000000e+00> : vector<8x8xf32>
    %766 = tpu.matmul %764, %765, %cst_221 {dimension_numbers = #tpu.dot_dimension_numbers<[1], [0], [0], [1], [0, 0, 1, 1], [], []>} : vector<8x8xbf16>, vector<8x8xbf16>, vector<8x8xf32> -> vector<8x8xf32>
    %767 = tpu.concatenate %718, %734, %750, %766 in 1 : vector<8x8xf32>, vector<8x8xf32>, vector<8x8xf32>, vector<8x8xf32> -> vector<8x32xf32>
    %768 = tpu.concatenate %702, %767 in 0 : vector<8x32xf32>, vector<8x32xf32> -> vector<16x32xf32>
    %c368 = arith.constant 368 : index
    %c0_222 = arith.constant 0 : index
    %769 = vector.load %arg2[%c368, %c0_222] : memref<720x32xbf16, #tpu.memory_space<vmem>>, vector<32x32xbf16>
    %770 = arith.truncf %768 : vector<16x32xf32> to vector<16x32xbf16>
    %cst_223 = arith.constant dense<0.000000e+00> : vector<16x32xf32>
    %771 = tpu.matmul %770, %769, %cst_223 {dimension_numbers = #tpu.dot_dimension_numbers<[1], [0], [0], [1], [0, 0, 1, 1], [], []>} : vector<16x32xbf16>, vector<32x32xbf16>, vector<16x32xf32> -> vector<16x32xf32>
    %c14 = arith.constant 14 : index
    %c0_224 = arith.constant 0 : index
    %772 = vector.load %arg5[%c14, %c0_224] : memref<35x32xf32, #tpu.memory_space<vmem>>, vector<1x32xf32>
    %773 = vector.broadcast %772 : vector<1x32xf32> to vector<16x32xf32>
    %774 = arith.addf %771, %773 : vector<16x32xf32>
    %775 = arith.addf %618, %774 : vector<16x32xf32>
    %c18 = arith.constant 18 : index
    %c0_225 = arith.constant 0 : index
    %776 = vector.load %arg5[%c18, %c0_225] : memref<35x32xf32, #tpu.memory_space<vmem>>, vector<1x32xf32>
    %c19 = arith.constant 19 : index
    %c0_226 = arith.constant 0 : index
    %777 = vector.load %arg5[%c19, %c0_226] : memref<35x32xf32, #tpu.memory_space<vmem>>, vector<1x32xf32>
    %cst_227 = arith.constant dense<0.000000e+00> : vector<16xf32>
    %778 = vector.multi_reduction <add>, %775, %cst_227 [1] : vector<16x32xf32> to vector<16xf32>
    %779 = vector.shape_cast %778 : vector<16xf32> to vector<16x1xf32>
    %cst_228 = arith.constant 3.200000e+01 : f32
    %780 = vector.broadcast %cst_228 : f32 to vector<16x1xf32>
    %781 = arith.divf %779, %780 : vector<16x1xf32>
    %782 = vector.broadcast %781 : vector<16x1xf32> to vector<16x32xf32>
    %783 = arith.subf %775, %782 : vector<16x32xf32>
    %784 = arith.mulf %783, %783 : vector<16x32xf32>
    %cst_229 = arith.constant dense<0.000000e+00> : vector<16xf32>
    %785 = vector.multi_reduction <add>, %784, %cst_229 [1] : vector<16x32xf32> to vector<16xf32>
    %786 = vector.shape_cast %785 : vector<16xf32> to vector<16x1xf32>
    %cst_230 = arith.constant 3.200000e+01 : f32
    %787 = vector.broadcast %cst_230 : f32 to vector<16x1xf32>
    %788 = arith.divf %786, %787 : vector<16x1xf32>
    %cst_231 = arith.constant 9.99999974E-6 : f32
    %789 = vector.broadcast %cst_231 : f32 to vector<16x1xf32>
    %790 = arith.addf %788, %789 : vector<16x1xf32>
    %791 = math.rsqrt %790 : vector<16x1xf32>
    %792 = vector.broadcast %791 : vector<16x1xf32> to vector<16x32xf32>
    %793 = arith.mulf %783, %792 : vector<16x32xf32>
    %794 = vector.broadcast %776 : vector<1x32xf32> to vector<16x32xf32>
    %795 = arith.mulf %793, %794 : vector<16x32xf32>
    %796 = vector.broadcast %777 : vector<1x32xf32> to vector<16x32xf32>
    %797 = arith.addf %795, %796 : vector<16x32xf32>
    %c64_232 = arith.constant 64 : index
    %c0_233 = arith.constant 0 : index
    %798 = vector.load %arg4[%c64_232, %c0_233] : memref<128x128xbf16, #tpu.memory_space<vmem>>, vector<32x128xbf16>
    %799 = arith.truncf %797 : vector<16x32xf32> to vector<16x32xbf16>
    %cst_234 = arith.constant dense<0.000000e+00> : vector<16x128xf32>
    %800 = tpu.matmul %799, %798, %cst_234 {dimension_numbers = #tpu.dot_dimension_numbers<[1], [0], [0], [1], [0, 0, 1, 1], [], []>} : vector<16x32xbf16>, vector<32x128xbf16>, vector<16x128xf32> -> vector<16x128xf32>
    %c2_235 = arith.constant 2 : index
    %c0_236 = arith.constant 0 : index
    %801 = vector.load %arg7[%c2_235, %c0_236] : memref<4x128xf32, #tpu.memory_space<vmem>>, vector<1x128xf32>
    %802 = vector.broadcast %801 : vector<1x128xf32> to vector<16x128xf32>
    %803 = arith.addf %800, %802 : vector<16x128xf32>
    %cst_237 = arith.constant 0.000000e+00 : f32
    %804 = vector.broadcast %cst_237 : f32 to vector<16x128xf32>
    %805 = arith.maximumf %803, %804 : vector<16x128xf32>
    %c400 = arith.constant 400 : index
    %c0_238 = arith.constant 0 : index
    %806 = vector.load %arg2[%c400, %c0_238] : memref<720x32xbf16, #tpu.memory_space<vmem>>, vector<128x32xbf16>
    %807 = arith.truncf %805 : vector<16x128xf32> to vector<16x128xbf16>
    %cst_239 = arith.constant dense<0.000000e+00> : vector<16x32xf32>
    %808 = tpu.matmul %807, %806, %cst_239 {dimension_numbers = #tpu.dot_dimension_numbers<[1], [0], [0], [1], [0, 0, 1, 1], [], []>} : vector<16x128xbf16>, vector<128x32xbf16>, vector<16x32xf32> -> vector<16x32xf32>
    %c15 = arith.constant 15 : index
    %c0_240 = arith.constant 0 : index
    %809 = vector.load %arg5[%c15, %c0_240] : memref<35x32xf32, #tpu.memory_space<vmem>>, vector<1x32xf32>
    %810 = vector.broadcast %809 : vector<1x32xf32> to vector<16x32xf32>
    %811 = arith.addf %808, %810 : vector<16x32xf32>
    %812 = arith.addf %797, %811 : vector<16x32xf32>
    %c20 = arith.constant 20 : index
    %c0_241 = arith.constant 0 : index
    %813 = vector.load %arg5[%c20, %c0_241] : memref<35x32xf32, #tpu.memory_space<vmem>>, vector<1x32xf32>
    %c21 = arith.constant 21 : index
    %c0_242 = arith.constant 0 : index
    %814 = vector.load %arg5[%c21, %c0_242] : memref<35x32xf32, #tpu.memory_space<vmem>>, vector<1x32xf32>
    %cst_243 = arith.constant dense<0.000000e+00> : vector<16xf32>
    %815 = vector.multi_reduction <add>, %812, %cst_243 [1] : vector<16x32xf32> to vector<16xf32>
    %816 = vector.shape_cast %815 : vector<16xf32> to vector<16x1xf32>
    %cst_244 = arith.constant 3.200000e+01 : f32
    %817 = vector.broadcast %cst_244 : f32 to vector<16x1xf32>
    %818 = arith.divf %816, %817 : vector<16x1xf32>
    %819 = vector.broadcast %818 : vector<16x1xf32> to vector<16x32xf32>
    %820 = arith.subf %812, %819 : vector<16x32xf32>
    %821 = arith.mulf %820, %820 : vector<16x32xf32>
    %cst_245 = arith.constant dense<0.000000e+00> : vector<16xf32>
    %822 = vector.multi_reduction <add>, %821, %cst_245 [1] : vector<16x32xf32> to vector<16xf32>
    %823 = vector.shape_cast %822 : vector<16xf32> to vector<16x1xf32>
    %cst_246 = arith.constant 3.200000e+01 : f32
    %824 = vector.broadcast %cst_246 : f32 to vector<16x1xf32>
    %825 = arith.divf %823, %824 : vector<16x1xf32>
    %cst_247 = arith.constant 9.99999974E-6 : f32
    %826 = vector.broadcast %cst_247 : f32 to vector<16x1xf32>
    %827 = arith.addf %825, %826 : vector<16x1xf32>
    %828 = math.rsqrt %827 : vector<16x1xf32>
    %829 = vector.broadcast %828 : vector<16x1xf32> to vector<16x32xf32>
    %830 = arith.mulf %820, %829 : vector<16x32xf32>
    %831 = vector.broadcast %813 : vector<1x32xf32> to vector<16x32xf32>
    %832 = arith.mulf %830, %831 : vector<16x32xf32>
    %833 = vector.broadcast %814 : vector<1x32xf32> to vector<16x32xf32>
    %834 = arith.addf %832, %833 : vector<16x32xf32>
    %c128 = arith.constant 128 : index
    %c0_248 = arith.constant 0 : index
    %835 = vector.load %arg3[%c128, %c0_248] : memref<192x96xbf16, #tpu.memory_space<vmem>>, vector<32x96xbf16>
    %c4_249 = arith.constant 4 : index
    %c0_250 = arith.constant 0 : index
    %836 = vector.load %arg6[%c4_249, %c0_250] : memref<6x96xf32, #tpu.memory_space<vmem>>, vector<1x96xf32>
    %837 = arith.truncf %834 : vector<16x32xf32> to vector<16x32xbf16>
    %cst_251 = arith.constant dense<0.000000e+00> : vector<16x96xf32>
    %838 = tpu.matmul %837, %835, %cst_251 {dimension_numbers = #tpu.dot_dimension_numbers<[1], [0], [0], [1], [0, 0, 1, 1], [], []>} : vector<16x32xbf16>, vector<32x96xbf16>, vector<16x96xf32> -> vector<16x96xf32>
    %839 = vector.broadcast %836 : vector<1x96xf32> to vector<16x96xf32>
    %840 = arith.addf %838, %839 : vector<16x96xf32>
    %841 = vector.extract_strided_slice %840 {offsets = [0, 0], sizes = [16, 32], strides = [1, 1]} : vector<16x96xf32> to vector<16x32xf32>
    %842 = vector.extract_strided_slice %840 {offsets = [0, 32], sizes = [16, 32], strides = [1, 1]} : vector<16x96xf32> to vector<16x32xf32>
    %843 = vector.extract_strided_slice %840 {offsets = [0, 64], sizes = [16, 32], strides = [1, 1]} : vector<16x96xf32> to vector<16x32xf32>
    %844 = arith.truncf %841 : vector<16x32xf32> to vector<16x32xbf16>
    %845 = arith.truncf %842 : vector<16x32xf32> to vector<16x32xbf16>
    %846 = arith.truncf %843 : vector<16x32xf32> to vector<16x32xbf16>
    %847 = vector.extract_strided_slice %844 {offsets = [0, 0], sizes = [8, 8], strides = [1, 1]} : vector<16x32xbf16> to vector<8x8xbf16>
    %848 = vector.extract_strided_slice %845 {offsets = [0, 0], sizes = [8, 8], strides = [1, 1]} : vector<16x32xbf16> to vector<8x8xbf16>
    %cst_252 = arith.constant dense<0.000000e+00> : vector<8x8xf32>
    %849 = tpu.matmul %847, %848, %cst_252 {dimension_numbers = #tpu.dot_dimension_numbers<[1], [1], [0], [0], [0, 0, 1, 0], [], []>} : vector<8x8xbf16>, vector<8x8xbf16>, vector<8x8xf32> -> vector<8x8xf32>
    %cst_253 = arith.constant dense<0xFF800000> : vector<8xf32>
    %850 = vector.multi_reduction <maximumf>, %849, %cst_253 [1] : vector<8x8xf32> to vector<8xf32>
    %851 = vector.shape_cast %850 : vector<8xf32> to vector<8x1xf32>
    %852 = vector.broadcast %851 : vector<8x1xf32> to vector<8x8xf32>
    %853 = arith.subf %849, %852 : vector<8x8xf32>
    %854 = math.exp %853 : vector<8x8xf32>
    %cst_254 = arith.constant dense<0.000000e+00> : vector<8xf32>
    %855 = vector.multi_reduction <add>, %854, %cst_254 [1] : vector<8x8xf32> to vector<8xf32>
    %856 = vector.shape_cast %855 : vector<8xf32> to vector<8x1xf32>
    %857 = tpu.reciprocal %856 {approx = true} : vector<8x1xf32> -> vector<8x1xf32>
    %858 = vector.broadcast %857 : vector<8x1xf32> to vector<8x8xf32>
    %859 = arith.mulf %854, %858 : vector<8x8xf32>
    %860 = arith.truncf %859 : vector<8x8xf32> to vector<8x8xbf16>
    %861 = vector.extract_strided_slice %846 {offsets = [0, 0], sizes = [8, 8], strides = [1, 1]} : vector<16x32xbf16> to vector<8x8xbf16>
    %cst_255 = arith.constant dense<0.000000e+00> : vector<8x8xf32>
    %862 = tpu.matmul %860, %861, %cst_255 {dimension_numbers = #tpu.dot_dimension_numbers<[1], [0], [0], [1], [0, 0, 1, 1], [], []>} : vector<8x8xbf16>, vector<8x8xbf16>, vector<8x8xf32> -> vector<8x8xf32>
    %863 = vector.extract_strided_slice %844 {offsets = [0, 8], sizes = [8, 8], strides = [1, 1]} : vector<16x32xbf16> to vector<8x8xbf16>
    %864 = vector.extract_strided_slice %845 {offsets = [0, 8], sizes = [8, 8], strides = [1, 1]} : vector<16x32xbf16> to vector<8x8xbf16>
    %cst_256 = arith.constant dense<0.000000e+00> : vector<8x8xf32>
    %865 = tpu.matmul %863, %864, %cst_256 {dimension_numbers = #tpu.dot_dimension_numbers<[1], [1], [0], [0], [0, 0, 1, 0], [], []>} : vector<8x8xbf16>, vector<8x8xbf16>, vector<8x8xf32> -> vector<8x8xf32>
    %cst_257 = arith.constant dense<0xFF800000> : vector<8xf32>
    %866 = vector.multi_reduction <maximumf>, %865, %cst_257 [1] : vector<8x8xf32> to vector<8xf32>
    %867 = vector.shape_cast %866 : vector<8xf32> to vector<8x1xf32>
    %868 = vector.broadcast %867 : vector<8x1xf32> to vector<8x8xf32>
    %869 = arith.subf %865, %868 : vector<8x8xf32>
    %870 = math.exp %869 : vector<8x8xf32>
    %cst_258 = arith.constant dense<0.000000e+00> : vector<8xf32>
    %871 = vector.multi_reduction <add>, %870, %cst_258 [1] : vector<8x8xf32> to vector<8xf32>
    %872 = vector.shape_cast %871 : vector<8xf32> to vector<8x1xf32>
    %873 = tpu.reciprocal %872 {approx = true} : vector<8x1xf32> -> vector<8x1xf32>
    %874 = vector.broadcast %873 : vector<8x1xf32> to vector<8x8xf32>
    %875 = arith.mulf %870, %874 : vector<8x8xf32>
    %876 = arith.truncf %875 : vector<8x8xf32> to vector<8x8xbf16>
    %877 = vector.extract_strided_slice %846 {offsets = [0, 8], sizes = [8, 8], strides = [1, 1]} : vector<16x32xbf16> to vector<8x8xbf16>
    %cst_259 = arith.constant dense<0.000000e+00> : vector<8x8xf32>
    %878 = tpu.matmul %876, %877, %cst_259 {dimension_numbers = #tpu.dot_dimension_numbers<[1], [0], [0], [1], [0, 0, 1, 1], [], []>} : vector<8x8xbf16>, vector<8x8xbf16>, vector<8x8xf32> -> vector<8x8xf32>
    %879 = vector.extract_strided_slice %844 {offsets = [0, 16], sizes = [8, 8], strides = [1, 1]} : vector<16x32xbf16> to vector<8x8xbf16>
    %880 = vector.extract_strided_slice %845 {offsets = [0, 16], sizes = [8, 8], strides = [1, 1]} : vector<16x32xbf16> to vector<8x8xbf16>
    %cst_260 = arith.constant dense<0.000000e+00> : vector<8x8xf32>
    %881 = tpu.matmul %879, %880, %cst_260 {dimension_numbers = #tpu.dot_dimension_numbers<[1], [1], [0], [0], [0, 0, 1, 0], [], []>} : vector<8x8xbf16>, vector<8x8xbf16>, vector<8x8xf32> -> vector<8x8xf32>
    %cst_261 = arith.constant dense<0xFF800000> : vector<8xf32>
    %882 = vector.multi_reduction <maximumf>, %881, %cst_261 [1] : vector<8x8xf32> to vector<8xf32>
    %883 = vector.shape_cast %882 : vector<8xf32> to vector<8x1xf32>
    %884 = vector.broadcast %883 : vector<8x1xf32> to vector<8x8xf32>
    %885 = arith.subf %881, %884 : vector<8x8xf32>
    %886 = math.exp %885 : vector<8x8xf32>
    %cst_262 = arith.constant dense<0.000000e+00> : vector<8xf32>
    %887 = vector.multi_reduction <add>, %886, %cst_262 [1] : vector<8x8xf32> to vector<8xf32>
    %888 = vector.shape_cast %887 : vector<8xf32> to vector<8x1xf32>
    %889 = tpu.reciprocal %888 {approx = true} : vector<8x1xf32> -> vector<8x1xf32>
    %890 = vector.broadcast %889 : vector<8x1xf32> to vector<8x8xf32>
    %891 = arith.mulf %886, %890 : vector<8x8xf32>
    %892 = arith.truncf %891 : vector<8x8xf32> to vector<8x8xbf16>
    %893 = vector.extract_strided_slice %846 {offsets = [0, 16], sizes = [8, 8], strides = [1, 1]} : vector<16x32xbf16> to vector<8x8xbf16>
    %cst_263 = arith.constant dense<0.000000e+00> : vector<8x8xf32>
    %894 = tpu.matmul %892, %893, %cst_263 {dimension_numbers = #tpu.dot_dimension_numbers<[1], [0], [0], [1], [0, 0, 1, 1], [], []>} : vector<8x8xbf16>, vector<8x8xbf16>, vector<8x8xf32> -> vector<8x8xf32>
    %895 = vector.extract_strided_slice %844 {offsets = [0, 24], sizes = [8, 8], strides = [1, 1]} : vector<16x32xbf16> to vector<8x8xbf16>
    %896 = vector.extract_strided_slice %845 {offsets = [0, 24], sizes = [8, 8], strides = [1, 1]} : vector<16x32xbf16> to vector<8x8xbf16>
    %cst_264 = arith.constant dense<0.000000e+00> : vector<8x8xf32>
    %897 = tpu.matmul %895, %896, %cst_264 {dimension_numbers = #tpu.dot_dimension_numbers<[1], [1], [0], [0], [0, 0, 1, 0], [], []>} : vector<8x8xbf16>, vector<8x8xbf16>, vector<8x8xf32> -> vector<8x8xf32>
    %cst_265 = arith.constant dense<0xFF800000> : vector<8xf32>
    %898 = vector.multi_reduction <maximumf>, %897, %cst_265 [1] : vector<8x8xf32> to vector<8xf32>
    %899 = vector.shape_cast %898 : vector<8xf32> to vector<8x1xf32>
    %900 = vector.broadcast %899 : vector<8x1xf32> to vector<8x8xf32>
    %901 = arith.subf %897, %900 : vector<8x8xf32>
    %902 = math.exp %901 : vector<8x8xf32>
    %cst_266 = arith.constant dense<0.000000e+00> : vector<8xf32>
    %903 = vector.multi_reduction <add>, %902, %cst_266 [1] : vector<8x8xf32> to vector<8xf32>
    %904 = vector.shape_cast %903 : vector<8xf32> to vector<8x1xf32>
    %905 = tpu.reciprocal %904 {approx = true} : vector<8x1xf32> -> vector<8x1xf32>
    %906 = vector.broadcast %905 : vector<8x1xf32> to vector<8x8xf32>
    %907 = arith.mulf %902, %906 : vector<8x8xf32>
    %908 = arith.truncf %907 : vector<8x8xf32> to vector<8x8xbf16>
    %909 = vector.extract_strided_slice %846 {offsets = [0, 24], sizes = [8, 8], strides = [1, 1]} : vector<16x32xbf16> to vector<8x8xbf16>
    %cst_267 = arith.constant dense<0.000000e+00> : vector<8x8xf32>
    %910 = tpu.matmul %908, %909, %cst_267 {dimension_numbers = #tpu.dot_dimension_numbers<[1], [0], [0], [1], [0, 0, 1, 1], [], []>} : vector<8x8xbf16>, vector<8x8xbf16>, vector<8x8xf32> -> vector<8x8xf32>
    %911 = tpu.concatenate %862, %878, %894, %910 in 1 : vector<8x8xf32>, vector<8x8xf32>, vector<8x8xf32>, vector<8x8xf32> -> vector<8x32xf32>
    %912 = vector.extract_strided_slice %844 {offsets = [8, 0], sizes = [8, 8], strides = [1, 1]} : vector<16x32xbf16> to vector<8x8xbf16>
    %913 = vector.extract_strided_slice %845 {offsets = [8, 0], sizes = [8, 8], strides = [1, 1]} : vector<16x32xbf16> to vector<8x8xbf16>
    %cst_268 = arith.constant dense<0.000000e+00> : vector<8x8xf32>
    %914 = tpu.matmul %912, %913, %cst_268 {dimension_numbers = #tpu.dot_dimension_numbers<[1], [1], [0], [0], [0, 0, 1, 0], [], []>} : vector<8x8xbf16>, vector<8x8xbf16>, vector<8x8xf32> -> vector<8x8xf32>
    %cst_269 = arith.constant dense<0xFF800000> : vector<8xf32>
    %915 = vector.multi_reduction <maximumf>, %914, %cst_269 [1] : vector<8x8xf32> to vector<8xf32>
    %916 = vector.shape_cast %915 : vector<8xf32> to vector<8x1xf32>
    %917 = vector.broadcast %916 : vector<8x1xf32> to vector<8x8xf32>
    %918 = arith.subf %914, %917 : vector<8x8xf32>
    %919 = math.exp %918 : vector<8x8xf32>
    %cst_270 = arith.constant dense<0.000000e+00> : vector<8xf32>
    %920 = vector.multi_reduction <add>, %919, %cst_270 [1] : vector<8x8xf32> to vector<8xf32>
    %921 = vector.shape_cast %920 : vector<8xf32> to vector<8x1xf32>
    %922 = tpu.reciprocal %921 {approx = true} : vector<8x1xf32> -> vector<8x1xf32>
    %923 = vector.broadcast %922 : vector<8x1xf32> to vector<8x8xf32>
    %924 = arith.mulf %919, %923 : vector<8x8xf32>
    %925 = arith.truncf %924 : vector<8x8xf32> to vector<8x8xbf16>
    %926 = vector.extract_strided_slice %846 {offsets = [8, 0], sizes = [8, 8], strides = [1, 1]} : vector<16x32xbf16> to vector<8x8xbf16>
    %cst_271 = arith.constant dense<0.000000e+00> : vector<8x8xf32>
    %927 = tpu.matmul %925, %926, %cst_271 {dimension_numbers = #tpu.dot_dimension_numbers<[1], [0], [0], [1], [0, 0, 1, 1], [], []>} : vector<8x8xbf16>, vector<8x8xbf16>, vector<8x8xf32> -> vector<8x8xf32>
    %928 = vector.extract_strided_slice %844 {offsets = [8, 8], sizes = [8, 8], strides = [1, 1]} : vector<16x32xbf16> to vector<8x8xbf16>
    %929 = vector.extract_strided_slice %845 {offsets = [8, 8], sizes = [8, 8], strides = [1, 1]} : vector<16x32xbf16> to vector<8x8xbf16>
    %cst_272 = arith.constant dense<0.000000e+00> : vector<8x8xf32>
    %930 = tpu.matmul %928, %929, %cst_272 {dimension_numbers = #tpu.dot_dimension_numbers<[1], [1], [0], [0], [0, 0, 1, 0], [], []>} : vector<8x8xbf16>, vector<8x8xbf16>, vector<8x8xf32> -> vector<8x8xf32>
    %cst_273 = arith.constant dense<0xFF800000> : vector<8xf32>
    %931 = vector.multi_reduction <maximumf>, %930, %cst_273 [1] : vector<8x8xf32> to vector<8xf32>
    %932 = vector.shape_cast %931 : vector<8xf32> to vector<8x1xf32>
    %933 = vector.broadcast %932 : vector<8x1xf32> to vector<8x8xf32>
    %934 = arith.subf %930, %933 : vector<8x8xf32>
    %935 = math.exp %934 : vector<8x8xf32>
    %cst_274 = arith.constant dense<0.000000e+00> : vector<8xf32>
    %936 = vector.multi_reduction <add>, %935, %cst_274 [1] : vector<8x8xf32> to vector<8xf32>
    %937 = vector.shape_cast %936 : vector<8xf32> to vector<8x1xf32>
    %938 = tpu.reciprocal %937 {approx = true} : vector<8x1xf32> -> vector<8x1xf32>
    %939 = vector.broadcast %938 : vector<8x1xf32> to vector<8x8xf32>
    %940 = arith.mulf %935, %939 : vector<8x8xf32>
    %941 = arith.truncf %940 : vector<8x8xf32> to vector<8x8xbf16>
    %942 = vector.extract_strided_slice %846 {offsets = [8, 8], sizes = [8, 8], strides = [1, 1]} : vector<16x32xbf16> to vector<8x8xbf16>
    %cst_275 = arith.constant dense<0.000000e+00> : vector<8x8xf32>
    %943 = tpu.matmul %941, %942, %cst_275 {dimension_numbers = #tpu.dot_dimension_numbers<[1], [0], [0], [1], [0, 0, 1, 1], [], []>} : vector<8x8xbf16>, vector<8x8xbf16>, vector<8x8xf32> -> vector<8x8xf32>
    %944 = vector.extract_strided_slice %844 {offsets = [8, 16], sizes = [8, 8], strides = [1, 1]} : vector<16x32xbf16> to vector<8x8xbf16>
    %945 = vector.extract_strided_slice %845 {offsets = [8, 16], sizes = [8, 8], strides = [1, 1]} : vector<16x32xbf16> to vector<8x8xbf16>
    %cst_276 = arith.constant dense<0.000000e+00> : vector<8x8xf32>
    %946 = tpu.matmul %944, %945, %cst_276 {dimension_numbers = #tpu.dot_dimension_numbers<[1], [1], [0], [0], [0, 0, 1, 0], [], []>} : vector<8x8xbf16>, vector<8x8xbf16>, vector<8x8xf32> -> vector<8x8xf32>
    %cst_277 = arith.constant dense<0xFF800000> : vector<8xf32>
    %947 = vector.multi_reduction <maximumf>, %946, %cst_277 [1] : vector<8x8xf32> to vector<8xf32>
    %948 = vector.shape_cast %947 : vector<8xf32> to vector<8x1xf32>
    %949 = vector.broadcast %948 : vector<8x1xf32> to vector<8x8xf32>
    %950 = arith.subf %946, %949 : vector<8x8xf32>
    %951 = math.exp %950 : vector<8x8xf32>
    %cst_278 = arith.constant dense<0.000000e+00> : vector<8xf32>
    %952 = vector.multi_reduction <add>, %951, %cst_278 [1] : vector<8x8xf32> to vector<8xf32>
    %953 = vector.shape_cast %952 : vector<8xf32> to vector<8x1xf32>
    %954 = tpu.reciprocal %953 {approx = true} : vector<8x1xf32> -> vector<8x1xf32>
    %955 = vector.broadcast %954 : vector<8x1xf32> to vector<8x8xf32>
    %956 = arith.mulf %951, %955 : vector<8x8xf32>
    %957 = arith.truncf %956 : vector<8x8xf32> to vector<8x8xbf16>
    %958 = vector.extract_strided_slice %846 {offsets = [8, 16], sizes = [8, 8], strides = [1, 1]} : vector<16x32xbf16> to vector<8x8xbf16>
    %cst_279 = arith.constant dense<0.000000e+00> : vector<8x8xf32>
    %959 = tpu.matmul %957, %958, %cst_279 {dimension_numbers = #tpu.dot_dimension_numbers<[1], [0], [0], [1], [0, 0, 1, 1], [], []>} : vector<8x8xbf16>, vector<8x8xbf16>, vector<8x8xf32> -> vector<8x8xf32>
    %960 = vector.extract_strided_slice %844 {offsets = [8, 24], sizes = [8, 8], strides = [1, 1]} : vector<16x32xbf16> to vector<8x8xbf16>
    %961 = vector.extract_strided_slice %845 {offsets = [8, 24], sizes = [8, 8], strides = [1, 1]} : vector<16x32xbf16> to vector<8x8xbf16>
    %cst_280 = arith.constant dense<0.000000e+00> : vector<8x8xf32>
    %962 = tpu.matmul %960, %961, %cst_280 {dimension_numbers = #tpu.dot_dimension_numbers<[1], [1], [0], [0], [0, 0, 1, 0], [], []>} : vector<8x8xbf16>, vector<8x8xbf16>, vector<8x8xf32> -> vector<8x8xf32>
    %cst_281 = arith.constant dense<0xFF800000> : vector<8xf32>
    %963 = vector.multi_reduction <maximumf>, %962, %cst_281 [1] : vector<8x8xf32> to vector<8xf32>
    %964 = vector.shape_cast %963 : vector<8xf32> to vector<8x1xf32>
    %965 = vector.broadcast %964 : vector<8x1xf32> to vector<8x8xf32>
    %966 = arith.subf %962, %965 : vector<8x8xf32>
    %967 = math.exp %966 : vector<8x8xf32>
    %cst_282 = arith.constant dense<0.000000e+00> : vector<8xf32>
    %968 = vector.multi_reduction <add>, %967, %cst_282 [1] : vector<8x8xf32> to vector<8xf32>
    %969 = vector.shape_cast %968 : vector<8xf32> to vector<8x1xf32>
    %970 = tpu.reciprocal %969 {approx = true} : vector<8x1xf32> -> vector<8x1xf32>
    %971 = vector.broadcast %970 : vector<8x1xf32> to vector<8x8xf32>
    %972 = arith.mulf %967, %971 : vector<8x8xf32>
    %973 = arith.truncf %972 : vector<8x8xf32> to vector<8x8xbf16>
    %974 = vector.extract_strided_slice %846 {offsets = [8, 24], sizes = [8, 8], strides = [1, 1]} : vector<16x32xbf16> to vector<8x8xbf16>
    %cst_283 = arith.constant dense<0.000000e+00> : vector<8x8xf32>
    %975 = tpu.matmul %973, %974, %cst_283 {dimension_numbers = #tpu.dot_dimension_numbers<[1], [0], [0], [1], [0, 0, 1, 1], [], []>} : vector<8x8xbf16>, vector<8x8xbf16>, vector<8x8xf32> -> vector<8x8xf32>
    %976 = tpu.concatenate %927, %943, %959, %975 in 1 : vector<8x8xf32>, vector<8x8xf32>, vector<8x8xf32>, vector<8x8xf32> -> vector<8x32xf32>
    %977 = tpu.concatenate %911, %976 in 0 : vector<8x32xf32>, vector<8x32xf32> -> vector<16x32xf32>
    %c528 = arith.constant 528 : index
    %c0_284 = arith.constant 0 : index
    %978 = vector.load %arg2[%c528, %c0_284] : memref<720x32xbf16, #tpu.memory_space<vmem>>, vector<32x32xbf16>
    %979 = arith.truncf %977 : vector<16x32xf32> to vector<16x32xbf16>
    %cst_285 = arith.constant dense<0.000000e+00> : vector<16x32xf32>
    %980 = tpu.matmul %979, %978, %cst_285 {dimension_numbers = #tpu.dot_dimension_numbers<[1], [0], [0], [1], [0, 0, 1, 1], [], []>} : vector<16x32xbf16>, vector<32x32xbf16>, vector<16x32xf32> -> vector<16x32xf32>
    %c22 = arith.constant 22 : index
    %c0_286 = arith.constant 0 : index
    %981 = vector.load %arg5[%c22, %c0_286] : memref<35x32xf32, #tpu.memory_space<vmem>>, vector<1x32xf32>
    %982 = vector.broadcast %981 : vector<1x32xf32> to vector<16x32xf32>
    %983 = arith.addf %980, %982 : vector<16x32xf32>
    %984 = arith.addf %834, %983 : vector<16x32xf32>
    %c25 = arith.constant 25 : index
    %c0_287 = arith.constant 0 : index
    %985 = vector.load %arg5[%c25, %c0_287] : memref<35x32xf32, #tpu.memory_space<vmem>>, vector<1x32xf32>
    %c26 = arith.constant 26 : index
    %c0_288 = arith.constant 0 : index
    %986 = vector.load %arg5[%c26, %c0_288] : memref<35x32xf32, #tpu.memory_space<vmem>>, vector<1x32xf32>
    %cst_289 = arith.constant dense<0.000000e+00> : vector<16xf32>
    %987 = vector.multi_reduction <add>, %984, %cst_289 [1] : vector<16x32xf32> to vector<16xf32>
    %988 = vector.shape_cast %987 : vector<16xf32> to vector<16x1xf32>
    %cst_290 = arith.constant 3.200000e+01 : f32
    %989 = vector.broadcast %cst_290 : f32 to vector<16x1xf32>
    %990 = arith.divf %988, %989 : vector<16x1xf32>
    %991 = vector.broadcast %990 : vector<16x1xf32> to vector<16x32xf32>
    %992 = arith.subf %984, %991 : vector<16x32xf32>
    %993 = arith.mulf %992, %992 : vector<16x32xf32>
    %cst_291 = arith.constant dense<0.000000e+00> : vector<16xf32>
    %994 = vector.multi_reduction <add>, %993, %cst_291 [1] : vector<16x32xf32> to vector<16xf32>
    %995 = vector.shape_cast %994 : vector<16xf32> to vector<16x1xf32>
    %cst_292 = arith.constant 3.200000e+01 : f32
    %996 = vector.broadcast %cst_292 : f32 to vector<16x1xf32>
    %997 = arith.divf %995, %996 : vector<16x1xf32>
    %cst_293 = arith.constant 9.99999974E-6 : f32
    %998 = vector.broadcast %cst_293 : f32 to vector<16x1xf32>
    %999 = arith.addf %997, %998 : vector<16x1xf32>
    %1000 = math.rsqrt %999 : vector<16x1xf32>
    %1001 = vector.broadcast %1000 : vector<16x1xf32> to vector<16x32xf32>
    %1002 = arith.mulf %992, %1001 : vector<16x32xf32>
    %1003 = vector.broadcast %985 : vector<1x32xf32> to vector<16x32xf32>
    %1004 = arith.mulf %1002, %1003 : vector<16x32xf32>
    %1005 = vector.broadcast %986 : vector<1x32xf32> to vector<16x32xf32>
    %1006 = arith.addf %1004, %1005 : vector<16x32xf32>
    %c160 = arith.constant 160 : index
    %c0_294 = arith.constant 0 : index
    %1007 = vector.load %arg3[%c160, %c0_294] : memref<192x96xbf16, #tpu.memory_space<vmem>>, vector<32x96xbf16>
    %c5_295 = arith.constant 5 : index
    %c0_296 = arith.constant 0 : index
    %1008 = vector.load %arg6[%c5_295, %c0_296] : memref<6x96xf32, #tpu.memory_space<vmem>>, vector<1x96xf32>
    %1009 = vector.extract_strided_slice %1007 {offsets = [0, 0], sizes = [32, 32], strides = [1, 1]} : vector<32x96xbf16> to vector<32x32xbf16>
    %1010 = arith.truncf %1006 : vector<16x32xf32> to vector<16x32xbf16>
    %cst_297 = arith.constant dense<0.000000e+00> : vector<16x32xf32>
    %1011 = tpu.matmul %1010, %1009, %cst_297 {dimension_numbers = #tpu.dot_dimension_numbers<[1], [0], [0], [1], [0, 0, 1, 1], [], []>} : vector<16x32xbf16>, vector<32x32xbf16>, vector<16x32xf32> -> vector<16x32xf32>
    %1012 = vector.extract_strided_slice %1008 {offsets = [0, 0], sizes = [1, 32], strides = [1, 1]} : vector<1x96xf32> to vector<1x32xf32>
    %1013 = vector.broadcast %1012 : vector<1x32xf32> to vector<16x32xf32>
    %1014 = arith.addf %1011, %1013 : vector<16x32xf32>
    %1015 = vector.extract_strided_slice %1007 {offsets = [0, 32], sizes = [32, 64], strides = [1, 1]} : vector<32x96xbf16> to vector<32x64xbf16>
    %1016 = arith.truncf %446 : vector<16x32xf32> to vector<16x32xbf16>
    %cst_298 = arith.constant dense<0.000000e+00> : vector<16x64xf32>
    %1017 = tpu.matmul %1016, %1015, %cst_298 {dimension_numbers = #tpu.dot_dimension_numbers<[1], [0], [0], [1], [0, 0, 1, 1], [], []>} : vector<16x32xbf16>, vector<32x64xbf16>, vector<16x64xf32> -> vector<16x64xf32>
    %1018 = vector.extract_strided_slice %1008 {offsets = [0, 32], sizes = [1, 64], strides = [1, 1]} : vector<1x96xf32> to vector<1x64xf32>
    %1019 = vector.broadcast %1018 : vector<1x64xf32> to vector<16x64xf32>
    %1020 = arith.addf %1017, %1019 : vector<16x64xf32>
    %1021 = vector.extract_strided_slice %1020 {offsets = [0, 0], sizes = [16, 32], strides = [1, 1]} : vector<16x64xf32> to vector<16x32xf32>
    %1022 = vector.extract_strided_slice %1020 {offsets = [0, 32], sizes = [16, 32], strides = [1, 1]} : vector<16x64xf32> to vector<16x32xf32>
    %1023 = arith.truncf %1014 : vector<16x32xf32> to vector<16x32xbf16>
    %1024 = arith.truncf %1021 : vector<16x32xf32> to vector<16x32xbf16>
    %1025 = arith.truncf %1022 : vector<16x32xf32> to vector<16x32xbf16>
    %1026 = vector.extract_strided_slice %1023 {offsets = [0, 0], sizes = [8, 8], strides = [1, 1]} : vector<16x32xbf16> to vector<8x8xbf16>
    %1027 = vector.extract_strided_slice %1024 {offsets = [0, 0], sizes = [8, 8], strides = [1, 1]} : vector<16x32xbf16> to vector<8x8xbf16>
    %cst_299 = arith.constant dense<0.000000e+00> : vector<8x8xf32>
    %1028 = tpu.matmul %1026, %1027, %cst_299 {dimension_numbers = #tpu.dot_dimension_numbers<[1], [1], [0], [0], [0, 0, 1, 0], [], []>} : vector<8x8xbf16>, vector<8x8xbf16>, vector<8x8xf32> -> vector<8x8xf32>
    %cst_300 = arith.constant dense<0xFF800000> : vector<8xf32>
    %1029 = vector.multi_reduction <maximumf>, %1028, %cst_300 [1] : vector<8x8xf32> to vector<8xf32>
    %1030 = vector.shape_cast %1029 : vector<8xf32> to vector<8x1xf32>
    %1031 = vector.broadcast %1030 : vector<8x1xf32> to vector<8x8xf32>
    %1032 = arith.subf %1028, %1031 : vector<8x8xf32>
    %1033 = math.exp %1032 : vector<8x8xf32>
    %cst_301 = arith.constant dense<0.000000e+00> : vector<8xf32>
    %1034 = vector.multi_reduction <add>, %1033, %cst_301 [1] : vector<8x8xf32> to vector<8xf32>
    %1035 = vector.shape_cast %1034 : vector<8xf32> to vector<8x1xf32>
    %1036 = tpu.reciprocal %1035 {approx = true} : vector<8x1xf32> -> vector<8x1xf32>
    %1037 = vector.broadcast %1036 : vector<8x1xf32> to vector<8x8xf32>
    %1038 = arith.mulf %1033, %1037 : vector<8x8xf32>
    %1039 = arith.truncf %1038 : vector<8x8xf32> to vector<8x8xbf16>
    %1040 = vector.extract_strided_slice %1025 {offsets = [0, 0], sizes = [8, 8], strides = [1, 1]} : vector<16x32xbf16> to vector<8x8xbf16>
    %cst_302 = arith.constant dense<0.000000e+00> : vector<8x8xf32>
    %1041 = tpu.matmul %1039, %1040, %cst_302 {dimension_numbers = #tpu.dot_dimension_numbers<[1], [0], [0], [1], [0, 0, 1, 1], [], []>} : vector<8x8xbf16>, vector<8x8xbf16>, vector<8x8xf32> -> vector<8x8xf32>
    %1042 = vector.extract_strided_slice %1023 {offsets = [0, 8], sizes = [8, 8], strides = [1, 1]} : vector<16x32xbf16> to vector<8x8xbf16>
    %1043 = vector.extract_strided_slice %1024 {offsets = [0, 8], sizes = [8, 8], strides = [1, 1]} : vector<16x32xbf16> to vector<8x8xbf16>
    %cst_303 = arith.constant dense<0.000000e+00> : vector<8x8xf32>
    %1044 = tpu.matmul %1042, %1043, %cst_303 {dimension_numbers = #tpu.dot_dimension_numbers<[1], [1], [0], [0], [0, 0, 1, 0], [], []>} : vector<8x8xbf16>, vector<8x8xbf16>, vector<8x8xf32> -> vector<8x8xf32>
    %cst_304 = arith.constant dense<0xFF800000> : vector<8xf32>
    %1045 = vector.multi_reduction <maximumf>, %1044, %cst_304 [1] : vector<8x8xf32> to vector<8xf32>
    %1046 = vector.shape_cast %1045 : vector<8xf32> to vector<8x1xf32>
    %1047 = vector.broadcast %1046 : vector<8x1xf32> to vector<8x8xf32>
    %1048 = arith.subf %1044, %1047 : vector<8x8xf32>
    %1049 = math.exp %1048 : vector<8x8xf32>
    %cst_305 = arith.constant dense<0.000000e+00> : vector<8xf32>
    %1050 = vector.multi_reduction <add>, %1049, %cst_305 [1] : vector<8x8xf32> to vector<8xf32>
    %1051 = vector.shape_cast %1050 : vector<8xf32> to vector<8x1xf32>
    %1052 = tpu.reciprocal %1051 {approx = true} : vector<8x1xf32> -> vector<8x1xf32>
    %1053 = vector.broadcast %1052 : vector<8x1xf32> to vector<8x8xf32>
    %1054 = arith.mulf %1049, %1053 : vector<8x8xf32>
    %1055 = arith.truncf %1054 : vector<8x8xf32> to vector<8x8xbf16>
    %1056 = vector.extract_strided_slice %1025 {offsets = [0, 8], sizes = [8, 8], strides = [1, 1]} : vector<16x32xbf16> to vector<8x8xbf16>
    %cst_306 = arith.constant dense<0.000000e+00> : vector<8x8xf32>
    %1057 = tpu.matmul %1055, %1056, %cst_306 {dimension_numbers = #tpu.dot_dimension_numbers<[1], [0], [0], [1], [0, 0, 1, 1], [], []>} : vector<8x8xbf16>, vector<8x8xbf16>, vector<8x8xf32> -> vector<8x8xf32>
    %1058 = vector.extract_strided_slice %1023 {offsets = [0, 16], sizes = [8, 8], strides = [1, 1]} : vector<16x32xbf16> to vector<8x8xbf16>
    %1059 = vector.extract_strided_slice %1024 {offsets = [0, 16], sizes = [8, 8], strides = [1, 1]} : vector<16x32xbf16> to vector<8x8xbf16>
    %cst_307 = arith.constant dense<0.000000e+00> : vector<8x8xf32>
    %1060 = tpu.matmul %1058, %1059, %cst_307 {dimension_numbers = #tpu.dot_dimension_numbers<[1], [1], [0], [0], [0, 0, 1, 0], [], []>} : vector<8x8xbf16>, vector<8x8xbf16>, vector<8x8xf32> -> vector<8x8xf32>
    %cst_308 = arith.constant dense<0xFF800000> : vector<8xf32>
    %1061 = vector.multi_reduction <maximumf>, %1060, %cst_308 [1] : vector<8x8xf32> to vector<8xf32>
    %1062 = vector.shape_cast %1061 : vector<8xf32> to vector<8x1xf32>
    %1063 = vector.broadcast %1062 : vector<8x1xf32> to vector<8x8xf32>
    %1064 = arith.subf %1060, %1063 : vector<8x8xf32>
    %1065 = math.exp %1064 : vector<8x8xf32>
    %cst_309 = arith.constant dense<0.000000e+00> : vector<8xf32>
    %1066 = vector.multi_reduction <add>, %1065, %cst_309 [1] : vector<8x8xf32> to vector<8xf32>
    %1067 = vector.shape_cast %1066 : vector<8xf32> to vector<8x1xf32>
    %1068 = tpu.reciprocal %1067 {approx = true} : vector<8x1xf32> -> vector<8x1xf32>
    %1069 = vector.broadcast %1068 : vector<8x1xf32> to vector<8x8xf32>
    %1070 = arith.mulf %1065, %1069 : vector<8x8xf32>
    %1071 = arith.truncf %1070 : vector<8x8xf32> to vector<8x8xbf16>
    %1072 = vector.extract_strided_slice %1025 {offsets = [0, 16], sizes = [8, 8], strides = [1, 1]} : vector<16x32xbf16> to vector<8x8xbf16>
    %cst_310 = arith.constant dense<0.000000e+00> : vector<8x8xf32>
    %1073 = tpu.matmul %1071, %1072, %cst_310 {dimension_numbers = #tpu.dot_dimension_numbers<[1], [0], [0], [1], [0, 0, 1, 1], [], []>} : vector<8x8xbf16>, vector<8x8xbf16>, vector<8x8xf32> -> vector<8x8xf32>
    %1074 = vector.extract_strided_slice %1023 {offsets = [0, 24], sizes = [8, 8], strides = [1, 1]} : vector<16x32xbf16> to vector<8x8xbf16>
    %1075 = vector.extract_strided_slice %1024 {offsets = [0, 24], sizes = [8, 8], strides = [1, 1]} : vector<16x32xbf16> to vector<8x8xbf16>
    %cst_311 = arith.constant dense<0.000000e+00> : vector<8x8xf32>
    %1076 = tpu.matmul %1074, %1075, %cst_311 {dimension_numbers = #tpu.dot_dimension_numbers<[1], [1], [0], [0], [0, 0, 1, 0], [], []>} : vector<8x8xbf16>, vector<8x8xbf16>, vector<8x8xf32> -> vector<8x8xf32>
    %cst_312 = arith.constant dense<0xFF800000> : vector<8xf32>
    %1077 = vector.multi_reduction <maximumf>, %1076, %cst_312 [1] : vector<8x8xf32> to vector<8xf32>
    %1078 = vector.shape_cast %1077 : vector<8xf32> to vector<8x1xf32>
    %1079 = vector.broadcast %1078 : vector<8x1xf32> to vector<8x8xf32>
    %1080 = arith.subf %1076, %1079 : vector<8x8xf32>
    %1081 = math.exp %1080 : vector<8x8xf32>
    %cst_313 = arith.constant dense<0.000000e+00> : vector<8xf32>
    %1082 = vector.multi_reduction <add>, %1081, %cst_313 [1] : vector<8x8xf32> to vector<8xf32>
    %1083 = vector.shape_cast %1082 : vector<8xf32> to vector<8x1xf32>
    %1084 = tpu.reciprocal %1083 {approx = true} : vector<8x1xf32> -> vector<8x1xf32>
    %1085 = vector.broadcast %1084 : vector<8x1xf32> to vector<8x8xf32>
    %1086 = arith.mulf %1081, %1085 : vector<8x8xf32>
    %1087 = arith.truncf %1086 : vector<8x8xf32> to vector<8x8xbf16>
    %1088 = vector.extract_strided_slice %1025 {offsets = [0, 24], sizes = [8, 8], strides = [1, 1]} : vector<16x32xbf16> to vector<8x8xbf16>
    %cst_314 = arith.constant dense<0.000000e+00> : vector<8x8xf32>
    %1089 = tpu.matmul %1087, %1088, %cst_314 {dimension_numbers = #tpu.dot_dimension_numbers<[1], [0], [0], [1], [0, 0, 1, 1], [], []>} : vector<8x8xbf16>, vector<8x8xbf16>, vector<8x8xf32> -> vector<8x8xf32>
    %1090 = tpu.concatenate %1041, %1057, %1073, %1089 in 1 : vector<8x8xf32>, vector<8x8xf32>, vector<8x8xf32>, vector<8x8xf32> -> vector<8x32xf32>
    %1091 = vector.extract_strided_slice %1023 {offsets = [8, 0], sizes = [8, 8], strides = [1, 1]} : vector<16x32xbf16> to vector<8x8xbf16>
    %1092 = vector.extract_strided_slice %1024 {offsets = [8, 0], sizes = [8, 8], strides = [1, 1]} : vector<16x32xbf16> to vector<8x8xbf16>
    %cst_315 = arith.constant dense<0.000000e+00> : vector<8x8xf32>
    %1093 = tpu.matmul %1091, %1092, %cst_315 {dimension_numbers = #tpu.dot_dimension_numbers<[1], [1], [0], [0], [0, 0, 1, 0], [], []>} : vector<8x8xbf16>, vector<8x8xbf16>, vector<8x8xf32> -> vector<8x8xf32>
    %cst_316 = arith.constant dense<0xFF800000> : vector<8xf32>
    %1094 = vector.multi_reduction <maximumf>, %1093, %cst_316 [1] : vector<8x8xf32> to vector<8xf32>
    %1095 = vector.shape_cast %1094 : vector<8xf32> to vector<8x1xf32>
    %1096 = vector.broadcast %1095 : vector<8x1xf32> to vector<8x8xf32>
    %1097 = arith.subf %1093, %1096 : vector<8x8xf32>
    %1098 = math.exp %1097 : vector<8x8xf32>
    %cst_317 = arith.constant dense<0.000000e+00> : vector<8xf32>
    %1099 = vector.multi_reduction <add>, %1098, %cst_317 [1] : vector<8x8xf32> to vector<8xf32>
    %1100 = vector.shape_cast %1099 : vector<8xf32> to vector<8x1xf32>
    %1101 = tpu.reciprocal %1100 {approx = true} : vector<8x1xf32> -> vector<8x1xf32>
    %1102 = vector.broadcast %1101 : vector<8x1xf32> to vector<8x8xf32>
    %1103 = arith.mulf %1098, %1102 : vector<8x8xf32>
    %1104 = arith.truncf %1103 : vector<8x8xf32> to vector<8x8xbf16>
    %1105 = vector.extract_strided_slice %1025 {offsets = [8, 0], sizes = [8, 8], strides = [1, 1]} : vector<16x32xbf16> to vector<8x8xbf16>
    %cst_318 = arith.constant dense<0.000000e+00> : vector<8x8xf32>
    %1106 = tpu.matmul %1104, %1105, %cst_318 {dimension_numbers = #tpu.dot_dimension_numbers<[1], [0], [0], [1], [0, 0, 1, 1], [], []>} : vector<8x8xbf16>, vector<8x8xbf16>, vector<8x8xf32> -> vector<8x8xf32>
    %1107 = vector.extract_strided_slice %1023 {offsets = [8, 8], sizes = [8, 8], strides = [1, 1]} : vector<16x32xbf16> to vector<8x8xbf16>
    %1108 = vector.extract_strided_slice %1024 {offsets = [8, 8], sizes = [8, 8], strides = [1, 1]} : vector<16x32xbf16> to vector<8x8xbf16>
    %cst_319 = arith.constant dense<0.000000e+00> : vector<8x8xf32>
    %1109 = tpu.matmul %1107, %1108, %cst_319 {dimension_numbers = #tpu.dot_dimension_numbers<[1], [1], [0], [0], [0, 0, 1, 0], [], []>} : vector<8x8xbf16>, vector<8x8xbf16>, vector<8x8xf32> -> vector<8x8xf32>
    %cst_320 = arith.constant dense<0xFF800000> : vector<8xf32>
    %1110 = vector.multi_reduction <maximumf>, %1109, %cst_320 [1] : vector<8x8xf32> to vector<8xf32>
    %1111 = vector.shape_cast %1110 : vector<8xf32> to vector<8x1xf32>
    %1112 = vector.broadcast %1111 : vector<8x1xf32> to vector<8x8xf32>
    %1113 = arith.subf %1109, %1112 : vector<8x8xf32>
    %1114 = math.exp %1113 : vector<8x8xf32>
    %cst_321 = arith.constant dense<0.000000e+00> : vector<8xf32>
    %1115 = vector.multi_reduction <add>, %1114, %cst_321 [1] : vector<8x8xf32> to vector<8xf32>
    %1116 = vector.shape_cast %1115 : vector<8xf32> to vector<8x1xf32>
    %1117 = tpu.reciprocal %1116 {approx = true} : vector<8x1xf32> -> vector<8x1xf32>
    %1118 = vector.broadcast %1117 : vector<8x1xf32> to vector<8x8xf32>
    %1119 = arith.mulf %1114, %1118 : vector<8x8xf32>
    %1120 = arith.truncf %1119 : vector<8x8xf32> to vector<8x8xbf16>
    %1121 = vector.extract_strided_slice %1025 {offsets = [8, 8], sizes = [8, 8], strides = [1, 1]} : vector<16x32xbf16> to vector<8x8xbf16>
    %cst_322 = arith.constant dense<0.000000e+00> : vector<8x8xf32>
    %1122 = tpu.matmul %1120, %1121, %cst_322 {dimension_numbers = #tpu.dot_dimension_numbers<[1], [0], [0], [1], [0, 0, 1, 1], [], []>} : vector<8x8xbf16>, vector<8x8xbf16>, vector<8x8xf32> -> vector<8x8xf32>
    %1123 = vector.extract_strided_slice %1023 {offsets = [8, 16], sizes = [8, 8], strides = [1, 1]} : vector<16x32xbf16> to vector<8x8xbf16>
    %1124 = vector.extract_strided_slice %1024 {offsets = [8, 16], sizes = [8, 8], strides = [1, 1]} : vector<16x32xbf16> to vector<8x8xbf16>
    %cst_323 = arith.constant dense<0.000000e+00> : vector<8x8xf32>
    %1125 = tpu.matmul %1123, %1124, %cst_323 {dimension_numbers = #tpu.dot_dimension_numbers<[1], [1], [0], [0], [0, 0, 1, 0], [], []>} : vector<8x8xbf16>, vector<8x8xbf16>, vector<8x8xf32> -> vector<8x8xf32>
    %cst_324 = arith.constant dense<0xFF800000> : vector<8xf32>
    %1126 = vector.multi_reduction <maximumf>, %1125, %cst_324 [1] : vector<8x8xf32> to vector<8xf32>
    %1127 = vector.shape_cast %1126 : vector<8xf32> to vector<8x1xf32>
    %1128 = vector.broadcast %1127 : vector<8x1xf32> to vector<8x8xf32>
    %1129 = arith.subf %1125, %1128 : vector<8x8xf32>
    %1130 = math.exp %1129 : vector<8x8xf32>
    %cst_325 = arith.constant dense<0.000000e+00> : vector<8xf32>
    %1131 = vector.multi_reduction <add>, %1130, %cst_325 [1] : vector<8x8xf32> to vector<8xf32>
    %1132 = vector.shape_cast %1131 : vector<8xf32> to vector<8x1xf32>
    %1133 = tpu.reciprocal %1132 {approx = true} : vector<8x1xf32> -> vector<8x1xf32>
    %1134 = vector.broadcast %1133 : vector<8x1xf32> to vector<8x8xf32>
    %1135 = arith.mulf %1130, %1134 : vector<8x8xf32>
    %1136 = arith.truncf %1135 : vector<8x8xf32> to vector<8x8xbf16>
    %1137 = vector.extract_strided_slice %1025 {offsets = [8, 16], sizes = [8, 8], strides = [1, 1]} : vector<16x32xbf16> to vector<8x8xbf16>
    %cst_326 = arith.constant dense<0.000000e+00> : vector<8x8xf32>
    %1138 = tpu.matmul %1136, %1137, %cst_326 {dimension_numbers = #tpu.dot_dimension_numbers<[1], [0], [0], [1], [0, 0, 1, 1], [], []>} : vector<8x8xbf16>, vector<8x8xbf16>, vector<8x8xf32> -> vector<8x8xf32>
    %1139 = vector.extract_strided_slice %1023 {offsets = [8, 24], sizes = [8, 8], strides = [1, 1]} : vector<16x32xbf16> to vector<8x8xbf16>
    %1140 = vector.extract_strided_slice %1024 {offsets = [8, 24], sizes = [8, 8], strides = [1, 1]} : vector<16x32xbf16> to vector<8x8xbf16>
    %cst_327 = arith.constant dense<0.000000e+00> : vector<8x8xf32>
    %1141 = tpu.matmul %1139, %1140, %cst_327 {dimension_numbers = #tpu.dot_dimension_numbers<[1], [1], [0], [0], [0, 0, 1, 0], [], []>} : vector<8x8xbf16>, vector<8x8xbf16>, vector<8x8xf32> -> vector<8x8xf32>
    %cst_328 = arith.constant dense<0xFF800000> : vector<8xf32>
    %1142 = vector.multi_reduction <maximumf>, %1141, %cst_328 [1] : vector<8x8xf32> to vector<8xf32>
    %1143 = vector.shape_cast %1142 : vector<8xf32> to vector<8x1xf32>
    %1144 = vector.broadcast %1143 : vector<8x1xf32> to vector<8x8xf32>
    %1145 = arith.subf %1141, %1144 : vector<8x8xf32>
    %1146 = math.exp %1145 : vector<8x8xf32>
    %cst_329 = arith.constant dense<0.000000e+00> : vector<8xf32>
    %1147 = vector.multi_reduction <add>, %1146, %cst_329 [1] : vector<8x8xf32> to vector<8xf32>
    %1148 = vector.shape_cast %1147 : vector<8xf32> to vector<8x1xf32>
    %1149 = tpu.reciprocal %1148 {approx = true} : vector<8x1xf32> -> vector<8x1xf32>
    %1150 = vector.broadcast %1149 : vector<8x1xf32> to vector<8x8xf32>
    %1151 = arith.mulf %1146, %1150 : vector<8x8xf32>
    %1152 = arith.truncf %1151 : vector<8x8xf32> to vector<8x8xbf16>
    %1153 = vector.extract_strided_slice %1025 {offsets = [8, 24], sizes = [8, 8], strides = [1, 1]} : vector<16x32xbf16> to vector<8x8xbf16>
    %cst_330 = arith.constant dense<0.000000e+00> : vector<8x8xf32>
    %1154 = tpu.matmul %1152, %1153, %cst_330 {dimension_numbers = #tpu.dot_dimension_numbers<[1], [0], [0], [1], [0, 0, 1, 1], [], []>} : vector<8x8xbf16>, vector<8x8xbf16>, vector<8x8xf32> -> vector<8x8xf32>
    %1155 = tpu.concatenate %1106, %1122, %1138, %1154 in 1 : vector<8x8xf32>, vector<8x8xf32>, vector<8x8xf32>, vector<8x8xf32> -> vector<8x32xf32>
    %1156 = tpu.concatenate %1090, %1155 in 0 : vector<8x32xf32>, vector<8x32xf32> -> vector<16x32xf32>
    %c560 = arith.constant 560 : index
    %c0_331 = arith.constant 0 : index
    %1157 = vector.load %arg2[%c560, %c0_331] : memref<720x32xbf16, #tpu.memory_space<vmem>>, vector<32x32xbf16>
    %1158 = arith.truncf %1156 : vector<16x32xf32> to vector<16x32xbf16>
    %cst_332 = arith.constant dense<0.000000e+00> : vector<16x32xf32>
    %1159 = tpu.matmul %1158, %1157, %cst_332 {dimension_numbers = #tpu.dot_dimension_numbers<[1], [0], [0], [1], [0, 0, 1, 1], [], []>} : vector<16x32xbf16>, vector<32x32xbf16>, vector<16x32xf32> -> vector<16x32xf32>
    %c23 = arith.constant 23 : index
    %c0_333 = arith.constant 0 : index
    %1160 = vector.load %arg5[%c23, %c0_333] : memref<35x32xf32, #tpu.memory_space<vmem>>, vector<1x32xf32>
    %1161 = vector.broadcast %1160 : vector<1x32xf32> to vector<16x32xf32>
    %1162 = arith.addf %1159, %1161 : vector<16x32xf32>
    %1163 = arith.addf %1006, %1162 : vector<16x32xf32>
    %c27 = arith.constant 27 : index
    %c0_334 = arith.constant 0 : index
    %1164 = vector.load %arg5[%c27, %c0_334] : memref<35x32xf32, #tpu.memory_space<vmem>>, vector<1x32xf32>
    %c28 = arith.constant 28 : index
    %c0_335 = arith.constant 0 : index
    %1165 = vector.load %arg5[%c28, %c0_335] : memref<35x32xf32, #tpu.memory_space<vmem>>, vector<1x32xf32>
    %cst_336 = arith.constant dense<0.000000e+00> : vector<16xf32>
    %1166 = vector.multi_reduction <add>, %1163, %cst_336 [1] : vector<16x32xf32> to vector<16xf32>
    %1167 = vector.shape_cast %1166 : vector<16xf32> to vector<16x1xf32>
    %cst_337 = arith.constant 3.200000e+01 : f32
    %1168 = vector.broadcast %cst_337 : f32 to vector<16x1xf32>
    %1169 = arith.divf %1167, %1168 : vector<16x1xf32>
    %1170 = vector.broadcast %1169 : vector<16x1xf32> to vector<16x32xf32>
    %1171 = arith.subf %1163, %1170 : vector<16x32xf32>
    %1172 = arith.mulf %1171, %1171 : vector<16x32xf32>
    %cst_338 = arith.constant dense<0.000000e+00> : vector<16xf32>
    %1173 = vector.multi_reduction <add>, %1172, %cst_338 [1] : vector<16x32xf32> to vector<16xf32>
    %1174 = vector.shape_cast %1173 : vector<16xf32> to vector<16x1xf32>
    %cst_339 = arith.constant 3.200000e+01 : f32
    %1175 = vector.broadcast %cst_339 : f32 to vector<16x1xf32>
    %1176 = arith.divf %1174, %1175 : vector<16x1xf32>
    %cst_340 = arith.constant 9.99999974E-6 : f32
    %1177 = vector.broadcast %cst_340 : f32 to vector<16x1xf32>
    %1178 = arith.addf %1176, %1177 : vector<16x1xf32>
    %1179 = math.rsqrt %1178 : vector<16x1xf32>
    %1180 = vector.broadcast %1179 : vector<16x1xf32> to vector<16x32xf32>
    %1181 = arith.mulf %1171, %1180 : vector<16x32xf32>
    %1182 = vector.broadcast %1164 : vector<1x32xf32> to vector<16x32xf32>
    %1183 = arith.mulf %1181, %1182 : vector<16x32xf32>
    %1184 = vector.broadcast %1165 : vector<1x32xf32> to vector<16x32xf32>
    %1185 = arith.addf %1183, %1184 : vector<16x32xf32>
    %c96_341 = arith.constant 96 : index
    %c0_342 = arith.constant 0 : index
    %1186 = vector.load %arg4[%c96_341, %c0_342] : memref<128x128xbf16, #tpu.memory_space<vmem>>, vector<32x128xbf16>
    %1187 = arith.truncf %1185 : vector<16x32xf32> to vector<16x32xbf16>
    %cst_343 = arith.constant dense<0.000000e+00> : vector<16x128xf32>
    %1188 = tpu.matmul %1187, %1186, %cst_343 {dimension_numbers = #tpu.dot_dimension_numbers<[1], [0], [0], [1], [0, 0, 1, 1], [], []>} : vector<16x32xbf16>, vector<32x128xbf16>, vector<16x128xf32> -> vector<16x128xf32>
    %c3_344 = arith.constant 3 : index
    %c0_345 = arith.constant 0 : index
    %1189 = vector.load %arg7[%c3_344, %c0_345] : memref<4x128xf32, #tpu.memory_space<vmem>>, vector<1x128xf32>
    %1190 = vector.broadcast %1189 : vector<1x128xf32> to vector<16x128xf32>
    %1191 = arith.addf %1188, %1190 : vector<16x128xf32>
    %cst_346 = arith.constant 0.000000e+00 : f32
    %1192 = vector.broadcast %cst_346 : f32 to vector<16x128xf32>
    %1193 = arith.maximumf %1191, %1192 : vector<16x128xf32>
    %c592 = arith.constant 592 : index
    %c0_347 = arith.constant 0 : index
    %1194 = vector.load %arg2[%c592, %c0_347] : memref<720x32xbf16, #tpu.memory_space<vmem>>, vector<128x32xbf16>
    %1195 = arith.truncf %1193 : vector<16x128xf32> to vector<16x128xbf16>
    %cst_348 = arith.constant dense<0.000000e+00> : vector<16x32xf32>
    %1196 = tpu.matmul %1195, %1194, %cst_348 {dimension_numbers = #tpu.dot_dimension_numbers<[1], [0], [0], [1], [0, 0, 1, 1], [], []>} : vector<16x128xbf16>, vector<128x32xbf16>, vector<16x32xf32> -> vector<16x32xf32>
    %c24 = arith.constant 24 : index
    %c0_349 = arith.constant 0 : index
    %1197 = vector.load %arg5[%c24, %c0_349] : memref<35x32xf32, #tpu.memory_space<vmem>>, vector<1x32xf32>
    %1198 = vector.broadcast %1197 : vector<1x32xf32> to vector<16x32xf32>
    %1199 = arith.addf %1196, %1198 : vector<16x32xf32>
    %1200 = arith.addf %1185, %1199 : vector<16x32xf32>
    %c29 = arith.constant 29 : index
    %c0_350 = arith.constant 0 : index
    %1201 = vector.load %arg5[%c29, %c0_350] : memref<35x32xf32, #tpu.memory_space<vmem>>, vector<1x32xf32>
    %c30 = arith.constant 30 : index
    %c0_351 = arith.constant 0 : index
    %1202 = vector.load %arg5[%c30, %c0_351] : memref<35x32xf32, #tpu.memory_space<vmem>>, vector<1x32xf32>
    %cst_352 = arith.constant dense<0.000000e+00> : vector<16xf32>
    %1203 = vector.multi_reduction <add>, %1200, %cst_352 [1] : vector<16x32xf32> to vector<16xf32>
    %1204 = vector.shape_cast %1203 : vector<16xf32> to vector<16x1xf32>
    %cst_353 = arith.constant 3.200000e+01 : f32
    %1205 = vector.broadcast %cst_353 : f32 to vector<16x1xf32>
    %1206 = arith.divf %1204, %1205 : vector<16x1xf32>
    %1207 = vector.broadcast %1206 : vector<16x1xf32> to vector<16x32xf32>
    %1208 = arith.subf %1200, %1207 : vector<16x32xf32>
    %1209 = arith.mulf %1208, %1208 : vector<16x32xf32>
    %cst_354 = arith.constant dense<0.000000e+00> : vector<16xf32>
    %1210 = vector.multi_reduction <add>, %1209, %cst_354 [1] : vector<16x32xf32> to vector<16xf32>
    %1211 = vector.shape_cast %1210 : vector<16xf32> to vector<16x1xf32>
    %cst_355 = arith.constant 3.200000e+01 : f32
    %1212 = vector.broadcast %cst_355 : f32 to vector<16x1xf32>
    %1213 = arith.divf %1211, %1212 : vector<16x1xf32>
    %cst_356 = arith.constant 9.99999974E-6 : f32
    %1214 = vector.broadcast %cst_356 : f32 to vector<16x1xf32>
    %1215 = arith.addf %1213, %1214 : vector<16x1xf32>
    %1216 = math.rsqrt %1215 : vector<16x1xf32>
    %1217 = vector.broadcast %1216 : vector<16x1xf32> to vector<16x32xf32>
    %1218 = arith.mulf %1208, %1217 : vector<16x32xf32>
    %1219 = vector.broadcast %1201 : vector<1x32xf32> to vector<16x32xf32>
    %1220 = arith.mulf %1218, %1219 : vector<16x32xf32>
    %1221 = vector.broadcast %1202 : vector<1x32xf32> to vector<16x32xf32>
    %1222 = arith.addf %1220, %1221 : vector<16x32xf32>
    %c33 = arith.constant 33 : index
    %c0_357 = arith.constant 0 : index
    %1223 = vector.load %arg5[%c33, %c0_357] : memref<35x32xf32, #tpu.memory_space<vmem>>, vector<1x32xf32>
    %c34 = arith.constant 34 : index
    %c0_358 = arith.constant 0 : index
    %1224 = vector.load %arg5[%c34, %c0_358] : memref<35x32xf32, #tpu.memory_space<vmem>>, vector<1x32xf32>
    %cst_359 = arith.constant dense<0.000000e+00> : vector<16xf32>
    %1225 = vector.multi_reduction <add>, %1222, %cst_359 [1] : vector<16x32xf32> to vector<16xf32>
    %1226 = vector.shape_cast %1225 : vector<16xf32> to vector<16x1xf32>
    %cst_360 = arith.constant 3.200000e+01 : f32
    %1227 = vector.broadcast %cst_360 : f32 to vector<16x1xf32>
    %1228 = arith.divf %1226, %1227 : vector<16x1xf32>
    %1229 = vector.broadcast %1228 : vector<16x1xf32> to vector<16x32xf32>
    %1230 = arith.subf %1222, %1229 : vector<16x32xf32>
    %1231 = arith.mulf %1230, %1230 : vector<16x32xf32>
    %cst_361 = arith.constant dense<0.000000e+00> : vector<16xf32>
    %1232 = vector.multi_reduction <add>, %1231, %cst_361 [1] : vector<16x32xf32> to vector<16xf32>
    %1233 = vector.shape_cast %1232 : vector<16xf32> to vector<16x1xf32>
    %cst_362 = arith.constant 3.200000e+01 : f32
    %1234 = vector.broadcast %cst_362 : f32 to vector<16x1xf32>
    %1235 = arith.divf %1233, %1234 : vector<16x1xf32>
    %cst_363 = arith.constant 9.99999974E-6 : f32
    %1236 = vector.broadcast %cst_363 : f32 to vector<16x1xf32>
    %1237 = arith.addf %1235, %1236 : vector<16x1xf32>
    %1238 = math.rsqrt %1237 : vector<16x1xf32>
    %1239 = vector.broadcast %1238 : vector<16x1xf32> to vector<16x32xf32>
    %1240 = arith.mulf %1230, %1239 : vector<16x32xf32>
    %1241 = vector.broadcast %1223 : vector<1x32xf32> to vector<16x32xf32>
    %1242 = arith.mulf %1240, %1241 : vector<16x32xf32>
    %1243 = vector.broadcast %1224 : vector<1x32xf32> to vector<16x32xf32>
    %1244 = arith.addf %1242, %1243 : vector<16x32xf32>
    %c0_364 = arith.constant 0 : index
    %c0_365 = arith.constant 0 : index
    %1245 = vector.load %arg8[%c0_364, %c0_365] : memref<16x32xf32, #tpu.memory_space<vmem>>, vector<16x32xf32>
    tpu.vector_store %arg8[%c0_364, %c0_365], %1244 {strides = array<i32>} : memref<16x32xf32, #tpu.memory_space<vmem>>, vector<16x32xf32>,
    return
  }
  func.func @transform_0(%arg0: i32) -> (i32, i32) {
    %c0_i32 = arith.constant 0 : i32
    %c0_i32_0 = arith.constant 0 : i32
    return %arg0, %c0_i32 : i32, i32
  }
  func.func @transform_1(%arg0: i32) -> (i32, i32) {
    %c0_i32 = arith.constant 0 : i32
    %c0_i32_0 = arith.constant 0 : i32
    %c0_i32_1 = arith.constant 0 : i32
    return %c0_i32, %c0_i32_0 : i32, i32
  }
  func.func @transform_2(%arg0: i32) -> (i32, i32) {
    %c0_i32 = arith.constant 0 : i32
    %c0_i32_0 = arith.constant 0 : i32
    %c0_i32_1 = arith.constant 0 : i32
    return %c0_i32, %c0_i32_0 : i32, i32
  }
  func.func @transform_3(%arg0: i32) -> (i32, i32) {
    %c0_i32 = arith.constant 0 : i32
    %c0_i32_0 = arith.constant 0 : i32
    %c0_i32_1 = arith.constant 0 : i32
    return %c0_i32, %c0_i32_0 : i32, i32
  }
  func.func @transform_4(%arg0: i32) -> (i32, i32) {
    %c0_i32 = arith.constant 0 : i32
    %c0_i32_0 = arith.constant 0 : i32
    %c0_i32_1 = arith.constant 0 : i32
    return %c0_i32, %c0_i32_0 : i32, i32
  }
  func.func @transform_5(%arg0: i32) -> (i32, i32) {
    %c0_i32 = arith.constant 0 : i32
    %c0_i32_0 = arith.constant 0 : i32
    %c0_i32_1 = arith.constant 0 : i32
    return %c0_i32, %c0_i32_0 : i32, i32
  }
  func.func @transform_6(%arg0: i32) -> (i32, i32) {
    %c0_i32 = arith.constant 0 : i32
    %c0_i32_0 = arith.constant 0 : i32
    %c0_i32_1 = arith.constant 0 : i32
    return %c0_i32, %c0_i32_0 : i32, i32
  }
  func.func @transform_7(%arg0: i32) -> (i32, i32) {
    %c0_i32 = arith.constant 0 : i32
    %c0_i32_0 = arith.constant 0 : i32
    return %arg0, %c0_i32 : i32, i32
  }
}

</mosaic_0001>

<llo_original>
// kernel: simple_transformer_forward.1
$region0: #{simple_transformer_forward.1}
  #allocation0 [shape = 'u32[]', space=smem, size = 0x4, offset = 0x4, fixed_abs, tag = 'smem constant byte address 0x4 - core index']
  #allocation1 [shape = 'u32[144,128]{1,0:T(1,128)}', space=vmem, size = 0x12000, scoped, tag = 'internal scratch']
  %s0 = inlined_call_operand.vmem [shape: f32[16,16], index: 0, kind: input, shape index: {}]
  %s1 = inlined_call_operand.vmem [shape: bf16[720,32], index: 1, kind: input, shape index: {}]
  %s2 = inlined_call_operand.vmem [shape: bf16[192,96], index: 2, kind: input, shape index: {}]
  %s3 = inlined_call_operand.vmem [shape: bf16[128,128], index: 3, kind: input, shape index: {}]
  %s4 = inlined_call_operand.vmem [shape: f32[35,32], index: 4, kind: input, shape index: {}]
  %s5 = inlined_call_operand.vmem [shape: f32[6,96], index: 5, kind: input, shape index: {}]
  %s6 = inlined_call_operand.vmem [shape: f32[4,128], index: 6, kind: input, shape index: {}]
  %s7 = inlined_call_operand.vmem [shape: f32[16,32], index: 7, kind: output, shape index: {}]
  %s8 = sld [smem:[#allocation0]]
  $region38: #{simple_transformer_forward.1} parent=0
    _
  %s10 = ssub.s32 1, %s8
  %s11 = scalar_select 0, %s10, %s8
  // Predicated region
  $region2: #{simple_transformer_forward.1} parent=0 // pred_check
    _
  $region3: #{simple_transformer_forward.1} parent=0 // pred_check_branch
    %13 = sbr.rel (0) target = $region5
  $region4: #{simple_transformer_forward.1} parent=0 // pred_region
    _
  $region5: #{simple_transformer_forward.1} parent=0 // pred_fallthru
    _
  // Predicated region
  $region6: #{simple_transformer_forward.1} parent=0 // pred_check
    _
  $region7: #{simple_transformer_forward.1} parent=0 // pred_check_branch
    %15 = sbr.rel (0) target = $region9
  $region8: #{simple_transformer_forward.1} parent=0 // pred_region
    _
  $region9: #{simple_transformer_forward.1} parent=0 // pred_fallthru
    _
  // Predicated region
  $region10: #{simple_transformer_forward.1} parent=0 // pred_check
    _
  $region11: #{simple_transformer_forward.1} parent=0 // pred_check_branch
    %17 = sbr.rel (0) target = $region13
  $region12: #{simple_transformer_forward.1} parent=0 // pred_region
    _
  $region13: #{simple_transformer_forward.1} parent=0 // pred_fallthru
    _
  // Predicated region
  $region14: #{simple_transformer_forward.1} parent=0 // pred_check
    _
  $region15: #{simple_transformer_forward.1} parent=0 // pred_check_branch
    %19 = sbr.rel (0) target = $region17
  $region16: #{simple_transformer_forward.1} parent=0 // pred_region
    _
  $region17: #{simple_transformer_forward.1} parent=0 // pred_fallthru
    _
  // Predicated region
  $region18: #{simple_transformer_forward.1} parent=0 // pred_check
    _
  $region19: #{simple_transformer_forward.1} parent=0 // pred_check_branch
    %21 = sbr.rel (0) target = $region21
  $region20: #{simple_transformer_forward.1} parent=0 // pred_region
    _
  $region21: #{simple_transformer_forward.1} parent=0 // pred_fallthru
    _
  // Predicated region
  $region22: #{simple_transformer_forward.1} parent=0 // pred_check
    _
  $region23: #{simple_transformer_forward.1} parent=0 // pred_check_branch
    %23 = sbr.rel (0) target = $region25
  $region24: #{simple_transformer_forward.1} parent=0 // pred_region
    _
  $region25: #{simple_transformer_forward.1} parent=0 // pred_fallthru
    _
  // Predicated region
  $region26: #{simple_transformer_forward.1} parent=0 // pred_check
    _
  $region27: #{simple_transformer_forward.1} parent=0 // pred_check_branch
    %25 = sbr.rel (0) target = $region29
  $region28: #{simple_transformer_forward.1} parent=0 // pred_region
    _
  $region29: #{simple_transformer_forward.1} parent=0 // pred_fallthru
    _
  %v27 = vld [vmem:[%s0] sm:$0xff]
  %v28 = vld [vmem:[%s0 + $0x8] sm:$0xff]
  %v29 = vld [vmem:[%s1] sm:$0xf]
  %v30 = vld [vmem:[%s1 + $0x4] sm:$0xf]
  %v31 = vpack.c.bf16 %v28, %v27
  %v32 = vld [vmem:[%s4] sm:$0x1]
  %v33 = vlaneseq
  %v34 = vshrl.u32 %v33, 7
  %v35 = vsub.s32 0, %v34
  %v36 = vrot.slane %v32, %v35
  %v39 = vunpack.c.l.b16 %v29
  %v40 = vunpack.c.l.b16 %v30
  %v41 = vpack.c.b16 %v40, %v39
  %vm43 = vcmask 130048
  %v45 = vsel %vm43, %v31, 0
  %47 = vmatprep.subr.bf16.mxu0 0
  %48 = vmatpush1.bf16.msra.mxu0 %v41
  %49 = vmatprep.subr.bf16.mxu0 0
  %50 = vmatpush1.bf16.msra.mxu0 0
  %51 = vmatprep.subr.bf16.mxu0 0
  %52 = vmatpush1.bf16.msra.mxu0 0
  %53 = vmatprep.subr.bf16.mxu0 0
  %54 = vmatpush1.bf16.msra.mxu0 0
  %55 = vmatprep.subr.bf16.mxu0 0
  %56 = vmatpush1.bf16.msra.mxu0 0
  %57 = vmatprep.subr.bf16.mxu0 0
  %58 = vmatpush1.bf16.msra.mxu0 0
  %59 = vmatprep.subr.bf16.mxu0 0
  %60 = vmatpush1.bf16.msra.mxu0 0
  %61 = vmatprep.subr.bf16.mxu0 0
  %62 = vmatpush1.bf16.msra.mxu0 0
  %63 = vmatprep.subr.bf16.mxu0 0
  %64 = vmatpush1.bf16.msra.mxu0 0
  %65 = vmatprep.subr.bf16.mxu0 0
  %66 = vmatpush1.bf16.msra.mxu0 0
  %67 = vmatprep.subr.bf16.mxu0 0
  %68 = vmatpush1.bf16.msra.mxu0 0
  %69 = vmatprep.subr.bf16.mxu0 0
  %70 = vmatpush1.bf16.msra.mxu0 0
  %71 = vmatprep.subr.bf16.mxu0 0
  %72 = vmatpush1.bf16.msra.mxu0 0
  %73 = vmatprep.subr.bf16.mxu0 0
  %74 = vmatpush1.bf16.msra.mxu0 0
  %75 = vmatprep.subr.bf16.mxu0 0
  %76 = vmatpush1.bf16.msra.mxu0 0
  %77 = vmatprep.subr.bf16.mxu0 0
  %78 = vmatpush1.bf16.msra.mxu0 0
  %79 = vmatprep.mubr.bf16.mxu0 0
  %80 = vmatmul.mubr.bf16.gmra.mrb[0].mxu0 %v45
  %v81 = vpop.f32.mrb[0].mxu0
  %v82 = vadd.f32 %v36, %v81
  %v83 = vpop.f32.mrb[0].mxu0
  %v84 = vpop.f32.mrb[0].mxu0
  %v85 = vadd.f32 %v36, %v84
  %v86 = vpop.f32.mrb[0].mxu0
  %87 = vdwg.mxu0
  %v88 = vld [vmem:[%s2] sm:$0xf]
  %v89 = vld [vmem:[%s2 + $0x4] sm:$0xf]
  %v90 = vld [vmem:[%s2 + $0x8] sm:$0xf]
  %v91 = vld [vmem:[%s2 + $0xc] sm:$0xf]
  %v92 = vld [vmem:[%s5] sm:$0x1]
  %v93 = vpack.c.bf16 %v85, %v82
  %v94 = vlaneseq
  %v95 = vshrl.u32 %v94, 7
  %v96 = vsub.s32 0, %v95
  %v97 = vrot.slane %v92, %v96
  %v102 = vunpack.c.l.b16 %v88
  %v103 = vunpack.c.l.b16 %v89
  %v104 = vunpack.c.l.b16 %v90
  %v105 = vunpack.c.l.b16 %v91
  %v106 = vpack.c.b16 %v103, %v102
  %v107 = vpack.c.b16 %v105, %v104
  %vm110 = vcmask 261120
  %v112 = vsel %vm110, %v93, 0
  %114 = vmatprep.subr.bf16.mxu0 0
  %115 = vmatpush1.bf16.msra.mxu0 %v106
  %116 = vmatprep.subr.bf16.mxu0 0
  %117 = vmatpush1.bf16.msra.mxu0 %v107
  %118 = vmatprep.subr.bf16.mxu0 0
  %119 = vmatpush1.bf16.msra.mxu0 0
  %120 = vmatprep.subr.bf16.mxu0 0
  %121 = vmatpush1.bf16.msra.mxu0 0
  %122 = vmatprep.subr.bf16.mxu0 0
  %123 = vmatpush1.bf16.msra.mxu0 0
  %124 = vmatprep.subr.bf16.mxu0 0
  %125 = vmatpush1.bf16.msra.mxu0 0
  %126 = vmatprep.subr.bf16.mxu0 0
  %127 = vmatpush1.bf16.msra.mxu0 0
  %128 = vmatprep.subr.bf16.mxu0 0
  %129 = vmatpush1.bf16.msra.mxu0 0
  %130 = vmatprep.subr.bf16.mxu0 0
  %131 = vmatpush1.bf16.msra.mxu0 0
  %132 = vmatprep.subr.bf16.mxu0 0
  %133 = vmatpush1.bf16.msra.mxu0 0
  %134 = vmatprep.subr.bf16.mxu0 0
  %135 = vmatpush1.bf16.msra.mxu0 0
  %136 = vmatprep.subr.bf16.mxu0 0
  %137 = vmatpush1.bf16.msra.mxu0 0
  %138 = vmatprep.subr.bf16.mxu0 0
  %139 = vmatpush1.bf16.msra.mxu0 0
  %140 = vmatprep.subr.bf16.mxu0 0
  %141 = vmatpush1.bf16.msra.mxu0 0
  %142 = vmatprep.subr.bf16.mxu0 0
  %143 = vmatpush1.bf16.msra.mxu0 0
  %144 = vmatprep.subr.bf16.mxu0 0
  %145 = vmatpush1.bf16.msra.mxu0 0
  %146 = vmatprep.mubr.bf16.mxu0 0
  %147 = vmatmul.mubr.bf16.gmra.mrb[0].mxu0 %v112
  %v148 = vpop.f32.mrb[0].mxu0
  %v149 = vadd.f32 %v97, %v148
  %v150 = vpop.f32.mrb[0].mxu0
  %v151 = vpop.f32.mrb[0].mxu0
  %v152 = vadd.f32 %v97, %v151
  %v153 = vpop.f32.mrb[0].mxu0
  %154 = vdwg.mxu0
  %v155 = vpack.c.bf16 %v152, %v149
  %157 = vrot.lane.b32.xlu0 %v155, 96
  %v158 = vpop.permute.xlu0 %157
  %vm159 = vcmask 64512
  %v161 = vsel %vm159, %v155, 0
  %v164 = vsel %vm159, %v158, 0
  %166 = vmatprep.subr.bf16.mxu0 0
  %167 = vmatpush1.bf16.xpose.msra.mxu0 %v164
  %168 = vmatprep.subr.bf16.mxu0 0
  %169 = vmatpush1.bf16.xpose.msra.mxu0 0
  %170 = vmatprep.subr.bf16.mxu0 0
  %171 = vmatpush1.bf16.xpose.msra.mxu0 0
  %172 = vmatprep.subr.bf16.mxu0 0
  %173 = vmatpush1.bf16.xpose.msra.mxu0 0
  %174 = vmatprep.subr.bf16.mxu0 0
  %175 = vmatpush1.bf16.xpose.msra.mxu0 0
  %176 = vmatprep.subr.bf16.mxu0 0
  %177 = vmatpush1.bf16.xpose.msra.mxu0 0
  %178 = vmatprep.subr.bf16.mxu0 0
  %179 = vmatpush1.bf16.xpose.msra.mxu0 0
  %180 = vmatprep.subr.bf16.mxu0 0
  %181 = vmatpush1.bf16.xpose.msra.mxu0 0
  %182 = vmatprep.subr.bf16.mxu0 0
  %183 = vmatpush1.bf16.xpose.msra.mxu0 0
  %184 = vmatprep.subr.bf16.mxu0 0
  %185 = vmatpush1.bf16.xpose.msra.mxu0 0
  %186 = vmatprep.subr.bf16.mxu0 0
  %187 = vmatpush1.bf16.xpose.msra.mxu0 0
  %188 = vmatprep.subr.bf16.mxu0 0
  %189 = vmatpush1.bf16.xpose.msra.mxu0 0
  %190 = vmatprep.subr.bf16.mxu0 0
  %191 = vmatpush1.bf16.xpose.msra.mxu0 0
  %192 = vmatprep.subr.bf16.mxu0 0
  %193 = vmatpush1.bf16.xpose.msra.mxu0 0
  %194 = vmatprep.subr.bf16.mxu0 0
  %195 = vmatpush1.bf16.xpose.msra.mxu0 0
  %196 = vmatprep.subr.bf16.mxu0 0
  %197 = vmatpush1.bf16.xpose.msra.mxu0 0
  %198 = vmatprep.mubr.bf16.mxu0 0
  %199 = vmatmul.mubr.bf16.gmra.mrb[0].mxu0 %v161
  %v200 = vpop.f32.mrb[0].mxu0
  %v201 = vadd.f32 0.0, %v200
  %v202 = vpop.f32.mrb[0].mxu0
  %v203 = vpop.f32.mrb[0].mxu0
  %v204 = vpop.f32.mrb[0].mxu0
  %205 = vdwg.mxu0
  %v206 = vsel %vm159, %v201, -inf
  %207 = vmax.xlane.f32.xlu0 %v206
  %v208 = vpop.xlane.xlu0 %207
  %v209 = vsub.f32 %v201, %v208
  %v210 = vmul.f32 %v209, 1.442695
  %v211 = vpow.pop %v210
  %v212 = vsel %vm159, %v211, 0.0
  %213 = vadd.xlane.f32.xlu0 %v212
  %v214 = vpop.xlane.xlu0 %213
  %v215 = vrcp.pop %v214
  %v216 = vmul.f32 %v211, %v215
  %v217 = vpack.c.bf16 %v216, %v216
  %218 = vrot.lane.b32.xlu0 %v155, 64
  %v219 = vpop.permute.xlu0 %218
  %v221 = vsel %vm159, %v217, 0
  %vm223 = vcmask 1043456
  %v225 = vsel %vm223, %v219, 0
  %227 = vmatprep.subr.bf16.mxu0 0
  %228 = vmatpush1.bf16.msra.mxu0 %v225
  %229 = vmatprep.subr.bf16.mxu0 0
  %230 = vmatpush1.bf16.msra.mxu0 0
  %231 = vmatprep.subr.bf16.mxu0 0
  %232 = vmatpush1.bf16.msra.mxu0 0
  %233 = vmatprep.subr.bf16.mxu0 0
  %234 = vmatpush1.bf16.msra.mxu0 0
  %235 = vmatprep.subr.bf16.mxu0 0
  %236 = vmatpush1.bf16.msra.mxu0 0
  %237 = vmatprep.subr.bf16.mxu0 0
  %238 = vmatpush1.bf16.msra.mxu0 0
  %239 = vmatprep.subr.bf16.mxu0 0
  %240 = vmatpush1.bf16.msra.mxu0 0
  %241 = vmatprep.subr.bf16.mxu0 0
  %242 = vmatpush1.bf16.msra.mxu0 0
  %243 = vmatprep.subr.bf16.mxu0 0
  %244 = vmatpush1.bf16.msra.mxu0 0
  %245 = vmatprep.subr.bf16.mxu0 0
  %246 = vmatpush1.bf16.msra.mxu0 0
  %247 = vmatprep.subr.bf16.mxu0 0
  %248 = vmatpush1.bf16.msra.mxu0 0
  %249 = vmatprep.subr.bf16.mxu0 0
  %250 = vmatpush1.bf16.msra.mxu0 0
  %251 = vmatprep.subr.bf16.mxu0 0
  %252 = vmatpush1.bf16.msra.mxu0 0
  %253 = vmatprep.subr.bf16.mxu0 0
  %254 = vmatpush1.bf16.msra.mxu0 0
  %255 = vmatprep.subr.bf16.mxu0 0
  %256 = vmatpush1.bf16.msra.mxu0 0
  %257 = vmatprep.subr.bf16.mxu0 0
  %258 = vmatpush1.bf16.msra.mxu0 0
  %259 = vmatprep.mubr.bf16.mxu0 0
  %260 = vmatmul.mubr.bf16.gmra.mrb[0].mxu0 %v221
  %v261 = vpop.f32.mrb[0].mxu0
  %v262 = vadd.f32 0.0, %v261
  %v263 = vpop.f32.mrb[0].mxu0
  %v264 = vpop.f32.mrb[0].mxu0
  %v265 = vpop.f32.mrb[0].mxu0
  %266 = vdwg.mxu0
  %267 = vrot.lane.b32.xlu0 %v155, 120
  %v268 = vpop.permute.xlu0 %267
  %269 = vrot.lane.b32.xlu0 %v155, 88
  %v270 = vpop.permute.xlu0 %269
  %v272 = vsel %vm159, %v268, 0
  %v275 = vsel %vm159, %v270, 0
  %277 = vmatprep.subr.bf16.mxu0 0
  %278 = vmatpush1.bf16.xpose.msra.mxu0 %v275
  %279 = vmatprep.subr.bf16.mxu0 0
  %280 = vmatpush1.bf16.xpose.msra.mxu0 0
  %281 = vmatprep.subr.bf16.mxu0 0
  %282 = vmatpush1.bf16.xpose.msra.mxu0 0
  %283 = vmatprep.subr.bf16.mxu0 0
  %284 = vmatpush1.bf16.xpose.msra.mxu0 0
  %285 = vmatprep.subr.bf16.mxu0 0
  %286 = vmatpush1.bf16.xpose.msra.mxu0 0
  %287 = vmatprep.subr.bf16.mxu0 0
  %288 = vmatpush1.bf16.xpose.msra.mxu0 0
  %289 = vmatprep.subr.bf16.mxu0 0
  %290 = vmatpush1.bf16.xpose.msra.mxu0 0
  %291 = vmatprep.subr.bf16.mxu0 0
  %292 = vmatpush1.bf16.xpose.msra.mxu0 0
  %293 = vmatprep.subr.bf16.mxu0 0
  %294 = vmatpush1.bf16.xpose.msra.mxu0 0
  %295 = vmatprep.subr.bf16.mxu0 0
  %296 = vmatpush1.bf16.xpose.msra.mxu0 0
  %297 = vmatprep.subr.bf16.mxu0 0
  %298 = vmatpush1.bf16.xpose.msra.mxu0 0
  %299 = vmatprep.subr.bf16.mxu0 0
  %300 = vmatpush1.bf16.xpose.msra.mxu0 0
  %301 = vmatprep.subr.bf16.mxu0 0
  %302 = vmatpush1.bf16.xpose.msra.mxu0 0
  %303 = vmatprep.subr.bf16.mxu0 0
  %304 = vmatpush1.bf16.xpose.msra.mxu0 0
  %305 = vmatprep.subr.bf16.mxu0 0
  %306 = vmatpush1.bf16.xpose.msra.mxu0 0
  %307 = vmatprep.subr.bf16.mxu0 0
  %308 = vmatpush1.bf16.xpose.msra.mxu0 0
  %309 = vmatprep.mubr.bf16.mxu0 0
  %310 = vmatmul.mubr.bf16.gmra.mrb[0].mxu0 %v272
  %v311 = vpop.f32.mrb[0].mxu0
  %v312 = vadd.f32 0.0, %v311
  %v313 = vpop.f32.mrb[0].mxu0
  %v314 = vpop.f32.mrb[0].mxu0
  %v315 = vpop.f32.mrb[0].mxu0
  %316 = vdwg.mxu0
  %v317 = vsel %vm159, %v312, -inf
  %318 = vmax.xlane.f32.xlu0 %v317
  %v319 = vpop.xlane.xlu0 %318
  %v320 = vsub.f32 %v312, %v319
  %v321 = vmul.f32 %v320, 1.442695
  %v322 = vpow.pop %v321
  %v323 = vsel %vm159, %v322, 0.0
  %324 = vadd.xlane.f32.xlu0 %v323
  %v325 = vpop.xlane.xlu0 %324
  %v326 = vrcp.pop %v325
  %v327 = vmul.f32 %v322, %v326
  %v328 = vpack.c.bf16 %v327, %v327
  %329 = vrot.lane.b32.xlu0 %v155, 56
  %v330 = vpop.permute.xlu0 %329
  %v332 = vsel %vm159, %v328, 0
  %v335 = vsel %vm223, %v330, 0
  %337 = vmatprep.subr.bf16.mxu0 0
  %338 = vmatpush1.bf16.msra.mxu0 %v335
  %339 = vmatprep.subr.bf16.mxu0 0
  %340 = vmatpush1.bf16.msra.mxu0 0
  %341 = vmatprep.subr.bf16.mxu0 0
  %342 = vmatpush1.bf16.msra.mxu0 0
  %343 = vmatprep.subr.bf16.mxu0 0
  %344 = vmatpush1.bf16.msra.mxu0 0
  %345 = vmatprep.subr.bf16.mxu0 0
  %346 = vmatpush1.bf16.msra.mxu0 0
  %347 = vmatprep.subr.bf16.mxu0 0
  %348 = vmatpush1.bf16.msra.mxu0 0
  %349 = vmatprep.subr.bf16.mxu0 0
  %350 = vmatpush1.bf16.msra.mxu0 0
  %351 = vmatprep.subr.bf16.mxu0 0
  %352 = vmatpush1.bf16.msra.mxu0 0
  %353 = vmatprep.subr.bf16.mxu0 0
  %354 = vmatpush1.bf16.msra.mxu0 0
  %355 = vmatprep.subr.bf16.mxu0 0
  %356 = vmatpush1.bf16.msra.mxu0 0
  %357 = vmatprep.subr.bf16.mxu0 0
  %358 = vmatpush1.bf16.msra.mxu0 0
  %359 = vmatprep.subr.bf16.mxu0 0
  %360 = vmatpush1.bf16.msra.mxu0 0
  %361 = vmatprep.subr.bf16.mxu0 0
  %362 = vmatpush1.bf16.msra.mxu0 0
  %363 = vmatprep.subr.bf16.mxu0 0
  %364 = vmatpush1.bf16.msra.mxu0 0
  %365 = vmatprep.subr.bf16.mxu0 0
  %366 = vmatpush1.bf16.msra.mxu0 0
  %367 = vmatprep.subr.bf16.mxu0 0
  %368 = vmatpush1.bf16.msra.mxu0 0
  %369 = vmatprep.mubr.bf16.mxu0 0
  %370 = vmatmul.mubr.bf16.gmra.mrb[0].mxu0 %v332
  %v371 = vpop.f32.mrb[0].mxu0
  %v372 = vadd.f32 0.0, %v371
  %v373 = vpop.f32.mrb[0].mxu0
  %v374 = vpop.f32.mrb[0].mxu0
  %v375 = vpop.f32.mrb[0].mxu0
  %376 = vdwg.mxu0
  %377 = vrot.lane.b32.xlu0 %v155, 112
  %v378 = vpop.permute.xlu0 %377
  %379 = vrot.lane.b32.xlu0 %v155, 80
  %v380 = vpop.permute.xlu0 %379
  %v382 = vsel %vm159, %v378, 0
  %v385 = vsel %vm159, %v380, 0
  %387 = vmatprep.subr.bf16.mxu0 0
  %388 = vmatpush1.bf16.xpose.msra.mxu0 %v385
  %389 = vmatprep.subr.bf16.mxu0 0
  %390 = vmatpush1.bf16.xpose.msra.mxu0 0
  %391 = vmatprep.subr.bf16.mxu0 0
  %392 = vmatpush1.bf16.xpose.msra.mxu0 0
  %393 = vmatprep.subr.bf16.mxu0 0
  %394 = vmatpush1.bf16.xpose.msra.mxu0 0
  %395 = vmatprep.subr.bf16.mxu0 0
  %396 = vmatpush1.bf16.xpose.msra.mxu0 0
  %397 = vmatprep.subr.bf16.mxu0 0
  %398 = vmatpush1.bf16.xpose.msra.mxu0 0
  %399 = vmatprep.subr.bf16.mxu0 0
  %400 = vmatpush1.bf16.xpose.msra.mxu0 0
  %401 = vmatprep.subr.bf16.mxu0 0
  %402 = vmatpush1.bf16.xpose.msra.mxu0 0
  %403 = vmatprep.subr.bf16.mxu0 0
  %404 = vmatpush1.bf16.xpose.msra.mxu0 0
  %405 = vmatprep.subr.bf16.mxu0 0
  %406 = vmatpush1.bf16.xpose.msra.mxu0 0
  %407 = vmatprep.subr.bf16.mxu0 0
  %408 = vmatpush1.bf16.xpose.msra.mxu0 0
  %409 = vmatprep.subr.bf16.mxu0 0
  %410 = vmatpush1.bf16.xpose.msra.mxu0 0
  %411 = vmatprep.subr.bf16.mxu0 0
  %412 = vmatpush1.bf16.xpose.msra.mxu0 0
  %413 = vmatprep.subr.bf16.mxu0 0
  %414 = vmatpush1.bf16.xpose.msra.mxu0 0
  %415 = vmatprep.subr.bf16.mxu0 0
  %416 = vmatpush1.bf16.xpose.msra.mxu0 0
  %417 = vmatprep.subr.bf16.mxu0 0
  %418 = vmatpush1.bf16.xpose.msra.mxu0 0
  %419 = vmatprep.mubr.bf16.mxu0 0
  %420 = vmatmul.mubr.bf16.gmra.mrb[0].mxu0 %v382
  %v421 = vpop.f32.mrb[0].mxu0
  %v422 = vadd.f32 0.0, %v421
  %v423 = vpop.f32.mrb[0].mxu0
  %v424 = vpop.f32.mrb[0].mxu0
  %v425 = vpop.f32.mrb[0].mxu0
  %426 = vdwg.mxu0
  %v427 = vsel %vm159, %v422, -inf
  %428 = vmax.xlane.f32.xlu0 %v427
  %v429 = vpop.xlane.xlu0 %428
  %v430 = vsub.f32 %v422, %v429
  %v431 = vmul.f32 %v430, 1.442695
  %v432 = vpow.pop %v431
  %v433 = vsel %vm159, %v432, 0.0
  %434 = vadd.xlane.f32.xlu0 %v433
  %v435 = vpop.xlane.xlu0 %434
  %v436 = vrcp.pop %v435
  %v437 = vmul.f32 %v432, %v436
  %v438 = vpack.c.bf16 %v437, %v437
  %439 = vrot.lane.b32.xlu0 %v155, 48
  %v440 = vpop.permute.xlu0 %439
  %v442 = vsel %vm159, %v438, 0
  %v445 = vsel %vm223, %v440, 0
  %447 = vmatprep.subr.bf16.mxu0 0
  %448 = vmatpush1.bf16.msra.mxu0 %v445
  %449 = vmatprep.subr.bf16.mxu0 0
  %450 = vmatpush1.bf16.msra.mxu0 0
  %451 = vmatprep.subr.bf16.mxu0 0
  %452 = vmatpush1.bf16.msra.mxu0 0
  %453 = vmatprep.subr.bf16.mxu0 0
  %454 = vmatpush1.bf16.msra.mxu0 0
  %455 = vmatprep.subr.bf16.mxu0 0
  %456 = vmatpush1.bf16.msra.mxu0 0
  %457 = vmatprep.subr.bf16.mxu0 0
  %458 = vmatpush1.bf16.msra.mxu0 0
  %459 = vmatprep.subr.bf16.mxu0 0
  %460 = vmatpush1.bf16.msra.mxu0 0
  %461 = vmatprep.subr.bf16.mxu0 0
  %462 = vmatpush1.bf16.msra.mxu0 0
  %463 = vmatprep.subr.bf16.mxu0 0
  %464 = vmatpush1.bf16.msra.mxu0 0
  %465 = vmatprep.subr.bf16.mxu0 0
  %466 = vmatpush1.bf16.msra.mxu0 0
  %467 = vmatprep.subr.bf16.mxu0 0
  %468 = vmatpush1.bf16.msra.mxu0 0
  %469 = vmatprep.subr.bf16.mxu0 0
  %470 = vmatpush1.bf16.msra.mxu0 0
  %471 = vmatprep.subr.bf16.mxu0 0
  %472 = vmatpush1.bf16.msra.mxu0 0
  %473 = vmatprep.subr.bf16.mxu0 0
  %474 = vmatpush1.bf16.msra.mxu0 0
  %475 = vmatprep.subr.bf16.mxu0 0
  %476 = vmatpush1.bf16.msra.mxu0 0
  %477 = vmatprep.subr.bf16.mxu0 0
  %478 = vmatpush1.bf16.msra.mxu0 0
  %479 = vmatprep.mubr.bf16.mxu0 0
  %480 = vmatmul.mubr.bf16.gmra.mrb[0].mxu0 %v442
  %v481 = vpop.f32.mrb[0].mxu0
  %v482 = vadd.f32 0.0, %v481
  %v483 = vpop.f32.mrb[0].mxu0
  %v484 = vpop.f32.mrb[0].mxu0
  %v485 = vpop.f32.mrb[0].mxu0
  %486 = vdwg.mxu0
  %487 = vrot.lane.b32.xlu0 %v155, 104
  %v488 = vpop.permute.xlu0 %487
  %489 = vrot.lane.b32.xlu0 %v155, 72
  %v490 = vpop.permute.xlu0 %489
  %v492 = vsel %vm159, %v488, 0
  %v495 = vsel %vm159, %v490, 0
  %497 = vmatprep.subr.bf16.mxu0 0
  %498 = vmatpush1.bf16.xpose.msra.mxu0 %v495
  %499 = vmatprep.subr.bf16.mxu0 0
  %500 = vmatpush1.bf16.xpose.msra.mxu0 0
  %501 = vmatprep.subr.bf16.mxu0 0
  %502 = vmatpush1.bf16.xpose.msra.mxu0 0
  %503 = vmatprep.subr.bf16.mxu0 0
  %504 = vmatpush1.bf16.xpose.msra.mxu0 0
  %505 = vmatprep.subr.bf16.mxu0 0
  %506 = vmatpush1.bf16.xpose.msra.mxu0 0
  %507 = vmatprep.subr.bf16.mxu0 0
  %508 = vmatpush1.bf16.xpose.msra.mxu0 0
  %509 = vmatprep.subr.bf16.mxu0 0
  %510 = vmatpush1.bf16.xpose.msra.mxu0 0
  %511 = vmatprep.subr.bf16.mxu0 0
  %512 = vmatpush1.bf16.xpose.msra.mxu0 0
  %513 = vmatprep.subr.bf16.mxu0 0
  %514 = vmatpush1.bf16.xpose.msra.mxu0 0
  %515 = vmatprep.subr.bf16.mxu0 0
  %516 = vmatpush1.bf16.xpose.msra.mxu0 0
  %517 = vmatprep.subr.bf16.mxu0 0
  %518 = vmatpush1.bf16.xpose.msra.mxu0 0
  %519 = vmatprep.subr.bf16.mxu0 0
  %520 = vmatpush1.bf16.xpose.msra.mxu0 0
  %521 = vmatprep.subr.bf16.mxu0 0
  %522 = vmatpush1.bf16.xpose.msra.mxu0 0
  %523 = vmatprep.subr.bf16.mxu0 0
  %524 = vmatpush1.bf16.xpose.msra.mxu0 0
  %525 = vmatprep.subr.bf16.mxu0 0
  %526 = vmatpush1.bf16.xpose.msra.mxu0 0
  %527 = vmatprep.subr.bf16.mxu0 0
  %528 = vmatpush1.bf16.xpose.msra.mxu0 0
  %529 = vmatprep.mubr.bf16.mxu0 0
  %530 = vmatmul.mubr.bf16.gmra.mrb[0].mxu0 %v492
  %v531 = vpop.f32.mrb[0].mxu0
  %v532 = vadd.f32 0.0, %v531
  %v533 = vpop.f32.mrb[0].mxu0
  %v534 = vpop.f32.mrb[0].mxu0
  %v535 = vpop.f32.mrb[0].mxu0
  %536 = vdwg.mxu0
  %v537 = vsel %vm159, %v532, -inf
  %538 = vmax.xlane.f32.xlu0 %v537
  %v539 = vpop.xlane.xlu0 %538
  %v540 = vsub.f32 %v532, %v539
  %v541 = vmul.f32 %v540, 1.442695
  %v542 = vpow.pop %v541
  %v543 = vsel %vm159, %v542, 0.0
  %544 = vadd.xlane.f32.xlu0 %v543
  %v545 = vpop.xlane.xlu0 %544
  %v546 = vrcp.pop %v545
  %v547 = vmul.f32 %v542, %v546
  %v548 = vpack.c.bf16 %v547, %v547
  %549 = vrot.lane.b32.xlu0 %v155, 40
  %v550 = vpop.permute.xlu0 %549
  %v552 = vsel %vm159, %v548, 0
  %v555 = vsel %vm223, %v550, 0
  %557 = vmatprep.subr.bf16.mxu0 0
  %558 = vmatpush1.bf16.msra.mxu0 %v555
  %559 = vmatprep.subr.bf16.mxu0 0
  %560 = vmatpush1.bf16.msra.mxu0 0
  %561 = vmatprep.subr.bf16.mxu0 0
  %562 = vmatpush1.bf16.msra.mxu0 0
  %563 = vmatprep.subr.bf16.mxu0 0
  %564 = vmatpush1.bf16.msra.mxu0 0
  %565 = vmatprep.subr.bf16.mxu0 0
  %566 = vmatpush1.bf16.msra.mxu0 0
  %567 = vmatprep.subr.bf16.mxu0 0
  %568 = vmatpush1.bf16.msra.mxu0 0
  %569 = vmatprep.subr.bf16.mxu0 0
  %570 = vmatpush1.bf16.msra.mxu0 0
  %571 = vmatprep.subr.bf16.mxu0 0
  %572 = vmatpush1.bf16.msra.mxu0 0
  %573 = vmatprep.subr.bf16.mxu0 0
  %574 = vmatpush1.bf16.msra.mxu0 0
  %575 = vmatprep.subr.bf16.mxu0 0
  %576 = vmatpush1.bf16.msra.mxu0 0
  %577 = vmatprep.subr.bf16.mxu0 0
  %578 = vmatpush1.bf16.msra.mxu0 0
  %579 = vmatprep.subr.bf16.mxu0 0
  %580 = vmatpush1.bf16.msra.mxu0 0
  %581 = vmatprep.subr.bf16.mxu0 0
  %582 = vmatpush1.bf16.msra.mxu0 0
  %583 = vmatprep.subr.bf16.mxu0 0
  %584 = vmatpush1.bf16.msra.mxu0 0
  %585 = vmatprep.subr.bf16.mxu0 0
  %586 = vmatpush1.bf16.msra.mxu0 0
  %587 = vmatprep.subr.bf16.mxu0 0
  %588 = vmatpush1.bf16.msra.mxu0 0
  %589 = vmatprep.mubr.bf16.mxu0 0
  %590 = vmatmul.mubr.bf16.gmra.mrb[0].mxu0 %v552
  %v591 = vpop.f32.mrb[0].mxu0
  %v592 = vadd.f32 0.0, %v591
  %v593 = vpop.f32.mrb[0].mxu0
  %v594 = vpop.f32.mrb[0].mxu0
  %v595 = vpop.f32.mrb[0].mxu0
  %596 = vdwg.mxu0
  %598 = vrot.lane.b32.xlu0 %v372, 8
  %v599 = vpop.permute.xlu0 %598
  %602 = vrot.lane.b32.xlu0 %v482, 16
  %v603 = vpop.permute.xlu0 %602
  %606 = vrot.lane.b32.xlu0 %v592, 24
  %v607 = vpop.permute.xlu0 %606
  %v609 = vsel %vm159, %v262, %v599
  %v610 = vsel %vm43, %v609, %v603
  %vm611 = vcmask 195584
  %v612 = vsel %vm611, %v610, %v607
  %v613 = vrot.slane %v155, 4
  %614 = vrot.lane.b32.xlu0 %v613, 96
  %v615 = vpop.permute.xlu0 %614
  %v617 = vsel %vm159, %v613, 0
  %v620 = vsel %vm159, %v615, 0
  %622 = vmatprep.subr.bf16.mxu0 0
  %623 = vmatpush1.bf16.xpose.msra.mxu0 %v620
  %624 = vmatprep.subr.bf16.mxu0 0
  %625 = vmatpush1.bf16.xpose.msra.mxu0 0
  %626 = vmatprep.subr.bf16.mxu0 0
  %627 = vmatpush1.bf16.xpose.msra.mxu0 0
  %628 = vmatprep.subr.bf16.mxu0 0
  %629 = vmatpush1.bf16.xpose.msra.mxu0 0
  %630 = vmatprep.subr.bf16.mxu0 0
  %631 = vmatpush1.bf16.xpose.msra.mxu0 0
  %632 = vmatprep.subr.bf16.mxu0 0
  %633 = vmatpush1.bf16.xpose.msra.mxu0 0
  %634 = vmatprep.subr.bf16.mxu0 0
  %635 = vmatpush1.bf16.xpose.msra.mxu0 0
  %636 = vmatprep.subr.bf16.mxu0 0
  %637 = vmatpush1.bf16.xpose.msra.mxu0 0
  %638 = vmatprep.subr.bf16.mxu0 0
  %639 = vmatpush1.bf16.xpose.msra.mxu0 0
  %640 = vmatprep.subr.bf16.mxu0 0
  %641 = vmatpush1.bf16.xpose.msra.mxu0 0
  %642 = vmatprep.subr.bf16.mxu0 0
  %643 = vmatpush1.bf16.xpose.msra.mxu0 0
  %644 = vmatprep.subr.bf16.mxu0 0
  %645 = vmatpush1.bf16.xpose.msra.mxu0 0
  %646 = vmatprep.subr.bf16.mxu0 0
  %647 = vmatpush1.bf16.xpose.msra.mxu0 0
  %648 = vmatprep.subr.bf16.mxu0 0
  %649 = vmatpush1.bf16.xpose.msra.mxu0 0
  %650 = vmatprep.subr.bf16.mxu0 0
  %651 = vmatpush1.bf16.xpose.msra.mxu0 0
  %652 = vmatprep.subr.bf16.mxu0 0
  %653 = vmatpush1.bf16.xpose.msra.mxu0 0
  %654 = vmatprep.mubr.bf16.mxu0 0
  %655 = vmatmul.mubr.bf16.gmra.mrb[0].mxu0 %v617
  %v656 = vpop.f32.mrb[0].mxu0
  %v657 = vadd.f32 0.0, %v656
  %v658 = vpop.f32.mrb[0].mxu0
  %v659 = vpop.f32.mrb[0].mxu0
  %v660 = vpop.f32.mrb[0].mxu0
  %661 = vdwg.mxu0
  %v662 = vsel %vm159, %v657, -inf
  %663 = vmax.xlane.f32.xlu0 %v662
  %v664 = vpop.xlane.xlu0 %663
  %v665 = vsub.f32 %v657, %v664
  %v666 = vmul.f32 %v665, 1.442695
  %v667 = vpow.pop %v666
  %v668 = vsel %vm159, %v667, 0.0
  %669 = vadd.xlane.f32.xlu0 %v668
  %v670 = vpop.xlane.xlu0 %669
  %v671 = vrcp.pop %v670
  %v672 = vmul.f32 %v667, %v671
  %v673 = vpack.c.bf16 %v672, %v672
  %674 = vrot.lane.b32.xlu0 %v613, 64
  %v675 = vpop.permute.xlu0 %674
  %v677 = vsel %vm159, %v673, 0
  %v680 = vsel %vm223, %v675, 0
  %682 = vmatprep.subr.bf16.mxu0 0
  %683 = vmatpush1.bf16.msra.mxu0 %v680
  %684 = vmatprep.subr.bf16.mxu0 0
  %685 = vmatpush1.bf16.msra.mxu0 0
  %686 = vmatprep.subr.bf16.mxu0 0
  %687 = vmatpush1.bf16.msra.mxu0 0
  %688 = vmatprep.subr.bf16.mxu0 0
  %689 = vmatpush1.bf16.msra.mxu0 0
  %690 = vmatprep.subr.bf16.mxu0 0
  %691 = vmatpush1.bf16.msra.mxu0 0
  %692 = vmatprep.subr.bf16.mxu0 0
  %693 = vmatpush1.bf16.msra.mxu0 0
  %694 = vmatprep.subr.bf16.mxu0 0
  %695 = vmatpush1.bf16.msra.mxu0 0
  %696 = vmatprep.subr.bf16.mxu0 0
  %697 = vmatpush1.bf16.msra.mxu0 0
  %698 = vmatprep.subr.bf16.mxu0 0
  %699 = vmatpush1.bf16.msra.mxu0 0
  %700 = vmatprep.subr.bf16.mxu0 0
  %701 = vmatpush1.bf16.msra.mxu0 0
  %702 = vmatprep.subr.bf16.mxu0 0
  %703 = vmatpush1.bf16.msra.mxu0 0
  %704 = vmatprep.subr.bf16.mxu0 0
  %705 = vmatpush1.bf16.msra.mxu0 0
  %706 = vmatprep.subr.bf16.mxu0 0
  %707 = vmatpush1.bf16.msra.mxu0 0
  %708 = vmatprep.subr.bf16.mxu0 0
  %709 = vmatpush1.bf16.msra.mxu0 0
  %710 = vmatprep.subr.bf16.mxu0 0
  %711 = vmatpush1.bf16.msra.mxu0 0
  %712 = vmatprep.subr.bf16.mxu0 0
  %713 = vmatpush1.bf16.msra.mxu0 0
  %714 = vmatprep.mubr.bf16.mxu0 0
  %715 = vmatmul.mubr.bf16.gmra.mrb[0].mxu0 %v677
  %v716 = vpop.f32.mrb[0].mxu0
  %v717 = vadd.f32 0.0, %v716
  %v718 = vpop.f32.mrb[0].mxu0
  %v719 = vpop.f32.mrb[0].mxu0
  %v720 = vpop.f32.mrb[0].mxu0
  %721 = vdwg.mxu0
  %722 = vrot.lane.b32.xlu0 %v613, 120
  %v723 = vpop.permute.xlu0 %722
  %724 = vrot.lane.b32.xlu0 %v613, 88
  %v725 = vpop.permute.xlu0 %724
  %v727 = vsel %vm159, %v723, 0
  %v730 = vsel %vm159, %v725, 0
  %732 = vmatprep.subr.bf16.mxu0 0
  %733 = vmatpush1.bf16.xpose.msra.mxu0 %v730
  %734 = vmatprep.subr.bf16.mxu0 0
  %735 = vmatpush1.bf16.xpose.msra.mxu0 0
  %736 = vmatprep.subr.bf16.mxu0 0
  %737 = vmatpush1.bf16.xpose.msra.mxu0 0
  %738 = vmatprep.subr.bf16.mxu0 0
  %739 = vmatpush1.bf16.xpose.msra.mxu0 0
  %740 = vmatprep.subr.bf16.mxu0 0
  %741 = vmatpush1.bf16.xpose.msra.mxu0 0
  %742 = vmatprep.subr.bf16.mxu0 0
  %743 = vmatpush1.bf16.xpose.msra.mxu0 0
  %744 = vmatprep.subr.bf16.mxu0 0
  %745 = vmatpush1.bf16.xpose.msra.mxu0 0
  %746 = vmatprep.subr.bf16.mxu0 0
  %747 = vmatpush1.bf16.xpose.msra.mxu0 0
  %748 = vmatprep.subr.bf16.mxu0 0
  %749 = vmatpush1.bf16.xpose.msra.mxu0 0
  %750 = vmatprep.subr.bf16.mxu0 0
  %751 = vmatpush1.bf16.xpose.msra.mxu0 0
  %752 = vmatprep.subr.bf16.mxu0 0
  %753 = vmatpush1.bf16.xpose.msra.mxu0 0
  %754 = vmatprep.subr.bf16.mxu0 0
  %755 = vmatpush1.bf16.xpose.msra.mxu0 0
  %756 = vmatprep.subr.bf16.mxu0 0
  %757 = vmatpush1.bf16.xpose.msra.mxu0 0
  %758 = vmatprep.subr.bf16.mxu0 0
  %759 = vmatpush1.bf16.xpose.msra.mxu0 0
  %760 = vmatprep.subr.bf16.mxu0 0
  %761 = vmatpush1.bf16.xpose.msra.mxu0 0
  %762 = vmatprep.subr.bf16.mxu0 0
  %763 = vmatpush1.bf16.xpose.msra.mxu0 0
  %764 = vmatprep.mubr.bf16.mxu0 0
  %765 = vmatmul.mubr.bf16.gmra.mrb[0].mxu0 %v727
  %v766 = vpop.f32.mrb[0].mxu0
  %v767 = vadd.f32 0.0, %v766
  %v768 = vpop.f32.mrb[0].mxu0
  %v769 = vpop.f32.mrb[0].mxu0
  %v770 = vpop.f32.mrb[0].mxu0
  %771 = vdwg.mxu0
  %v772 = vsel %vm159, %v767, -inf
  %773 = vmax.xlane.f32.xlu0 %v772
  %v774 = vpop.xlane.xlu0 %773
  %v775 = vsub.f32 %v767, %v774
  %v776 = vmul.f32 %v775, 1.442695
  %v777 = vpow.pop %v776
  %v778 = vsel %vm159, %v777, 0.0
  %779 = vadd.xlane.f32.xlu0 %v778
  %v780 = vpop.xlane.xlu0 %779
  %v781 = vrcp.pop %v780
  %v782 = vmul.f32 %v777, %v781
  %v783 = vpack.c.bf16 %v782, %v782
  %784 = vrot.lane.b32.xlu0 %v613, 56
  %v785 = vpop.permute.xlu0 %784
  %v787 = vsel %vm159, %v783, 0
  %v790 = vsel %vm223, %v785, 0
  %792 = vmatprep.subr.bf16.mxu0 0
  %793 = vmatpush1.bf16.msra.mxu0 %v790
  %794 = vmatprep.subr.bf16.mxu0 0
  %795 = vmatpush1.bf16.msra.mxu0 0
  %796 = vmatprep.subr.bf16.mxu0 0
  %797 = vmatpush1.bf16.msra.mxu0 0
  %798 = vmatprep.subr.bf16.mxu0 0
  %799 = vmatpush1.bf16.msra.mxu0 0
  %800 = vmatprep.subr.bf16.mxu0 0
  %801 = vmatpush1.bf16.msra.mxu0 0
  %802 = vmatprep.subr.bf16.mxu0 0
  %803 = vmatpush1.bf16.msra.mxu0 0
  %804 = vmatprep.subr.bf16.mxu0 0
  %805 = vmatpush1.bf16.msra.mxu0 0
  %806 = vmatprep.subr.bf16.mxu0 0
  %807 = vmatpush1.bf16.msra.mxu0 0
  %808 = vmatprep.subr.bf16.mxu0 0
  %809 = vmatpush1.bf16.msra.mxu0 0
  %810 = vmatprep.subr.bf16.mxu0 0
  %811 = vmatpush1.bf16.msra.mxu0 0
  %812 = vmatprep.subr.bf16.mxu0 0
  %813 = vmatpush1.bf16.msra.mxu0 0
  %814 = vmatprep.subr.bf16.mxu0 0
  %815 = vmatpush1.bf16.msra.mxu0 0
  %816 = vmatprep.subr.bf16.mxu0 0
  %817 = vmatpush1.bf16.msra.mxu0 0
  %818 = vmatprep.subr.bf16.mxu0 0
  %819 = vmatpush1.bf16.msra.mxu0 0
  %820 = vmatprep.subr.bf16.mxu0 0
  %821 = vmatpush1.bf16.msra.mxu0 0
  %822 = vmatprep.subr.bf16.mxu0 0
  %823 = vmatpush1.bf16.msra.mxu0 0
  %824 = vmatprep.mubr.bf16.mxu0 0
  %825 = vmatmul.mubr.bf16.gmra.mrb[0].mxu0 %v787
  %v826 = vpop.f32.mrb[0].mxu0
  %v827 = vadd.f32 0.0, %v826
  %v828 = vpop.f32.mrb[0].mxu0
  %v829 = vpop.f32.mrb[0].mxu0
  %v830 = vpop.f32.mrb[0].mxu0
  %831 = vdwg.mxu0
  %832 = vrot.lane.b32.xlu0 %v613, 112
  %v833 = vpop.permute.xlu0 %832
  %834 = vrot.lane.b32.xlu0 %v613, 80
  %v835 = vpop.permute.xlu0 %834
  %v837 = vsel %vm159, %v833, 0
  %v840 = vsel %vm159, %v835, 0
  %842 = vmatprep.subr.bf16.mxu0 0
  %843 = vmatpush1.bf16.xpose.msra.mxu0 %v840
  %844 = vmatprep.subr.bf16.mxu0 0
  %845 = vmatpush1.bf16.xpose.msra.mxu0 0
  %846 = vmatprep.subr.bf16.mxu0 0
  %847 = vmatpush1.bf16.xpose.msra.mxu0 0
  %848 = vmatprep.subr.bf16.mxu0 0
  %849 = vmatpush1.bf16.xpose.msra.mxu0 0
  %850 = vmatprep.subr.bf16.mxu0 0
  %851 = vmatpush1.bf16.xpose.msra.mxu0 0
  %852 = vmatprep.subr.bf16.mxu0 0
  %853 = vmatpush1.bf16.xpose.msra.mxu0 0
  %854 = vmatprep.subr.bf16.mxu0 0
  %855 = vmatpush1.bf16.xpose.msra.mxu0 0
  %856 = vmatprep.subr.bf16.mxu0 0
  %857 = vmatpush1.bf16.xpose.msra.mxu0 0
  %858 = vmatprep.subr.bf16.mxu0 0
  %859 = vmatpush1.bf16.xpose.msra.mxu0 0
  %860 = vmatprep.subr.bf16.mxu0 0
  %861 = vmatpush1.bf16.xpose.msra.mxu0 0
  %862 = vmatprep.subr.bf16.mxu0 0
  %863 = vmatpush1.bf16.xpose.msra.mxu0 0
  %864 = vmatprep.subr.bf16.mxu0 0
  %865 = vmatpush1.bf16.xpose.msra.mxu0 0
  %866 = vmatprep.subr.bf16.mxu0 0
  %867 = vmatpush1.bf16.xpose.msra.mxu0 0
  %868 = vmatprep.subr.bf16.mxu0 0
  %869 = vmatpush1.bf16.xpose.msra.mxu0 0
  %870 = vmatprep.subr.bf16.mxu0 0
  %871 = vmatpush1.bf16.xpose.msra.mxu0 0
  %872 = vmatprep.subr.bf16.mxu0 0
  %873 = vmatpush1.bf16.xpose.msra.mxu0 0
  %874 = vmatprep.mubr.bf16.mxu0 0
  %875 = vmatmul.mubr.bf16.gmra.mrb[0].mxu0 %v837
  %v876 = vpop.f32.mrb[0].mxu0
  %v877 = vadd.f32 0.0, %v876
  %v878 = vpop.f32.mrb[0].mxu0
  %v879 = vpop.f32.mrb[0].mxu0
  %v880 = vpop.f32.mrb[0].mxu0
  %881 = vdwg.mxu0
  %v882 = vsel %vm159, %v877, -inf
  %883 = vmax.xlane.f32.xlu0 %v882
  %v884 = vpop.xlane.xlu0 %883
  %v885 = vsub.f32 %v877, %v884
  %v886 = vmul.f32 %v885, 1.442695
  %v887 = vpow.pop %v886
  %v888 = vsel %vm159, %v887, 0.0
  %889 = vadd.xlane.f32.xlu0 %v888
  %v890 = vpop.xlane.xlu0 %889
  %v891 = vrcp.pop %v890
  %v892 = vmul.f32 %v887, %v891
  %v893 = vpack.c.bf16 %v892, %v892
  %894 = vrot.lane.b32.xlu0 %v613, 48
  %v895 = vpop.permute.xlu0 %894
  %v897 = vsel %vm159, %v893, 0
  %v900 = vsel %vm223, %v895, 0
  %902 = vmatprep.subr.bf16.mxu0 0
  %903 = vmatpush1.bf16.msra.mxu0 %v900
  %904 = vmatprep.subr.bf16.mxu0 0
  %905 = vmatpush1.bf16.msra.mxu0 0
  %906 = vmatprep.subr.bf16.mxu0 0
  %907 = vmatpush1.bf16.msra.mxu0 0
  %908 = vmatprep.subr.bf16.mxu0 0
  %909 = vmatpush1.bf16.msra.mxu0 0
  %910 = vmatprep.subr.bf16.mxu0 0
  %911 = vmatpush1.bf16.msra.mxu0 0
  %912 = vmatprep.subr.bf16.mxu0 0
  %913 = vmatpush1.bf16.msra.mxu0 0
  %914 = vmatprep.subr.bf16.mxu0 0
  %915 = vmatpush1.bf16.msra.mxu0 0
  %916 = vmatprep.subr.bf16.mxu0 0
  %917 = vmatpush1.bf16.msra.mxu0 0
  %918 = vmatprep.subr.bf16.mxu0 0
  %919 = vmatpush1.bf16.msra.mxu0 0
  %920 = vmatprep.subr.bf16.mxu0 0
  %921 = vmatpush1.bf16.msra.mxu0 0
  %922 = vmatprep.subr.bf16.mxu0 0
  %923 = vmatpush1.bf16.msra.mxu0 0
  %924 = vmatprep.subr.bf16.mxu0 0
  %925 = vmatpush1.bf16.msra.mxu0 0
  %926 = vmatprep.subr.bf16.mxu0 0
  %927 = vmatpush1.bf16.msra.mxu0 0
  %928 = vmatprep.subr.bf16.mxu0 0
  %929 = vmatpush1.bf16.msra.mxu0 0
  %930 = vmatprep.subr.bf16.mxu0 0
  %931 = vmatpush1.bf16.msra.mxu0 0
  %932 = vmatprep.subr.bf16.mxu0 0
  %933 = vmatpush1.bf16.msra.mxu0 0
  %934 = vmatprep.mubr.bf16.mxu0 0
  %935 = vmatmul.mubr.bf16.gmra.mrb[0].mxu0 %v897
  %v936 = vpop.f32.mrb[0].mxu0
  %v937 = vadd.f32 0.0, %v936
  %v938 = vpop.f32.mrb[0].mxu0
  %v939 = vpop.f32.mrb[0].mxu0
  %v940 = vpop.f32.mrb[0].mxu0
  %941 = vdwg.mxu0
  %942 = vrot.lane.b32.xlu0 %v613, 104
  %v943 = vpop.permute.xlu0 %942
  %944 = vrot.lane.b32.xlu0 %v613, 72
  %v945 = vpop.permute.xlu0 %944
  %v947 = vsel %vm159, %v943, 0
  %v950 = vsel %vm159, %v945, 0
  %952 = vmatprep.subr.bf16.mxu0 0
  %953 = vmatpush1.bf16.xpose.msra.mxu0 %v950
  %954 = vmatprep.subr.bf16.mxu0 0
  %955 = vmatpush1.bf16.xpose.msra.mxu0 0
  %956 = vmatprep.subr.bf16.mxu0 0
  %957 = vmatpush1.bf16.xpose.msra.mxu0 0
  %958 = vmatprep.subr.bf16.mxu0 0
  %959 = vmatpush1.bf16.xpose.msra.mxu0 0
  %960 = vmatprep.subr.bf16.mxu0 0
  %961 = vmatpush1.bf16.xpose.msra.mxu0 0
  %962 = vmatprep.subr.bf16.mxu0 0
  %963 = vmatpush1.bf16.xpose.msra.mxu0 0
  %964 = vmatprep.subr.bf16.mxu0 0
  %965 = vmatpush1.bf16.xpose.msra.mxu0 0
  %966 = vmatprep.subr.bf16.mxu0 0
  %967 = vmatpush1.bf16.xpose.msra.mxu0 0
  %968 = vmatprep.subr.bf16.mxu0 0
  %969 = vmatpush1.bf16.xpose.msra.mxu0 0
  %970 = vmatprep.subr.bf16.mxu0 0
  %971 = vmatpush1.bf16.xpose.msra.mxu0 0
  %972 = vmatprep.subr.bf16.mxu0 0
  %973 = vmatpush1.bf16.xpose.msra.mxu0 0
  %974 = vmatprep.subr.bf16.mxu0 0
  %975 = vmatpush1.bf16.xpose.msra.mxu0 0
  %976 = vmatprep.subr.bf16.mxu0 0
  %977 = vmatpush1.bf16.xpose.msra.mxu0 0
  %978 = vmatprep.subr.bf16.mxu0 0
  %979 = vmatpush1.bf16.xpose.msra.mxu0 0
  %980 = vmatprep.subr.bf16.mxu0 0
  %981 = vmatpush1.bf16.xpose.msra.mxu0 0
  %982 = vmatprep.subr.bf16.mxu0 0
  %983 = vmatpush1.bf16.xpose.msra.mxu0 0
  %984 = vmatprep.mubr.bf16.mxu0 0
  %985 = vmatmul.mubr.bf16.gmra.mrb[0].mxu0 %v947
  %v986 = vpop.f32.mrb[0].mxu0
  %v987 = vadd.f32 0.0, %v986
  %v988 = vpop.f32.mrb[0].mxu0
  %v989 = vpop.f32.mrb[0].mxu0
  %v990 = vpop.f32.mrb[0].mxu0
  %991 = vdwg.mxu0
  %v992 = vsel %vm159, %v987, -inf
  %993 = vmax.xlane.f32.xlu0 %v992
  %v994 = vpop.xlane.xlu0 %993
  %v995 = vsub.f32 %v987, %v994
  %v996 = vmul.f32 %v995, 1.442695
  %v997 = vpow.pop %v996
  %v998 = vsel %vm159, %v997, 0.0
  %999 = vadd.xlane.f32.xlu0 %v998
  %v1000 = vpop.xlane.xlu0 %999
  %v1001 = vrcp.pop %v1000
  %v1002 = vmul.f32 %v997, %v1001
  %v1003 = vpack.c.bf16 %v1002, %v1002
  %1004 = vrot.lane.b32.xlu0 %v613, 40
  %v1005 = vpop.permute.xlu0 %1004
  %v1007 = vsel %vm159, %v1003, 0
  %v1010 = vsel %vm223, %v1005, 0
  %1012 = vmatprep.subr.bf16.mxu0 0
  %1013 = vmatpush1.bf16.msra.mxu0 %v1010
  %1014 = vmatprep.subr.bf16.mxu0 0
  %1015 = vmatpush1.bf16.msra.mxu0 0
  %1016 = vmatprep.subr.bf16.mxu0 0
  %1017 = vmatpush1.bf16.msra.mxu0 0
  %1018 = vmatprep.subr.bf16.mxu0 0
  %1019 = vmatpush1.bf16.msra.mxu0 0
  %1020 = vmatprep.subr.bf16.mxu0 0
  %1021 = vmatpush1.bf16.msra.mxu0 0
  %1022 = vmatprep.subr.bf16.mxu0 0
  %1023 = vmatpush1.bf16.msra.mxu0 0
  %1024 = vmatprep.subr.bf16.mxu0 0
  %1025 = vmatpush1.bf16.msra.mxu0 0
  %1026 = vmatprep.subr.bf16.mxu0 0
  %1027 = vmatpush1.bf16.msra.mxu0 0
  %1028 = vmatprep.subr.bf16.mxu0 0
  %1029 = vmatpush1.bf16.msra.mxu0 0
  %1030 = vmatprep.subr.bf16.mxu0 0
  %1031 = vmatpush1.bf16.msra.mxu0 0
  %1032 = vmatprep.subr.bf16.mxu0 0
  %1033 = vmatpush1.bf16.msra.mxu0 0
  %1034 = vmatprep.subr.bf16.mxu0 0
  %1035 = vmatpush1.bf16.msra.mxu0 0
  %1036 = vmatprep.subr.bf16.mxu0 0
  %1037 = vmatpush1.bf16.msra.mxu0 0
  %1038 = vmatprep.subr.bf16.mxu0 0
  %1039 = vmatpush1.bf16.msra.mxu0 0
  %1040 = vmatprep.subr.bf16.mxu0 0
  %1041 = vmatpush1.bf16.msra.mxu0 0
  %1042 = vmatprep.subr.bf16.mxu0 0
  %1043 = vmatpush1.bf16.msra.mxu0 0
  %1044 = vmatprep.mubr.bf16.mxu0 0
  %1045 = vmatmul.mubr.bf16.gmra.mrb[0].mxu0 %v1007
  %v1046 = vpop.f32.mrb[0].mxu0
  %v1047 = vadd.f32 0.0, %v1046
  %v1048 = vpop.f32.mrb[0].mxu0
  %v1049 = vpop.f32.mrb[0].mxu0
  %v1050 = vpop.f32.mrb[0].mxu0
  %1051 = vdwg.mxu0
  %1053 = vrot.lane.b32.xlu0 %v827, 8
  %v1054 = vpop.permute.xlu0 %1053
  %1057 = vrot.lane.b32.xlu0 %v937, 16
  %v1058 = vpop.permute.xlu0 %1057
  %1061 = vrot.lane.b32.xlu0 %v1047, 24
  %v1062 = vpop.permute.xlu0 %1061
  %v1064 = vsel %vm159, %v717, %v1054
  %v1065 = vsel %vm43, %v1064, %v1058
  %v1066 = vsel %vm611, %v1065, %v1062
  %v1067 = vld [vmem:[%s1 + $0x8] sm:$0xf]
  %v1068 = vld [vmem:[%s1 + $0xc] sm:$0xf]
  %v1069 = vld [vmem:[%s1 + $0x10] sm:$0xf]
  %v1070 = vld [vmem:[%s1 + $0x14] sm:$0xf]
  %v1071 = vpack.c.bf16 %v1066, %v612
  %v1072 = vld [vmem:[%s4 + $0x1] sm:$0x1]
  %v1073 = vlaneseq
  %v1074 = vshrl.u32 %v1073, 7
  %v1075 = vsub.s32 0, %v1074
  %v1076 = vrot.slane %v1072, %v1075
  %v1081 = vunpack.c.l.b16 %v1067
  %v1082 = vunpack.c.l.b16 %v1068
  %v1083 = vunpack.c.l.b16 %v1069
  %v1084 = vunpack.c.l.b16 %v1070
  %v1085 = vpack.c.b16 %v1082, %v1081
  %v1086 = vpack.c.b16 %v1084, %v1083
  %v1090 = vsel %vm110, %v1071, 0
  %1092 = vmatprep.subr.bf16.mxu0 0
  %1093 = vmatpush1.bf16.msra.mxu0 %v1085
  %1094 = vmatprep.subr.bf16.mxu0 0
  %1095 = vmatpush1.bf16.msra.mxu0 %v1086
  %1096 = vmatprep.subr.bf16.mxu0 0
  %1097 = vmatpush1.bf16.msra.mxu0 0
  %1098 = vmatprep.subr.bf16.mxu0 0
  %1099 = vmatpush1.bf16.msra.mxu0 0
  %1100 = vmatprep.subr.bf16.mxu0 0
  %1101 = vmatpush1.bf16.msra.mxu0 0
  %1102 = vmatprep.subr.bf16.mxu0 0
  %1103 = vmatpush1.bf16.msra.mxu0 0
  %1104 = vmatprep.subr.bf16.mxu0 0
  %1105 = vmatpush1.bf16.msra.mxu0 0
  %1106 = vmatprep.subr.bf16.mxu0 0
  %1107 = vmatpush1.bf16.msra.mxu0 0
  %1108 = vmatprep.subr.bf16.mxu0 0
  %1109 = vmatpush1.bf16.msra.mxu0 0
  %1110 = vmatprep.subr.bf16.mxu0 0
  %1111 = vmatpush1.bf16.msra.mxu0 0
  %1112 = vmatprep.subr.bf16.mxu0 0
  %1113 = vmatpush1.bf16.msra.mxu0 0
  %1114 = vmatprep.subr.bf16.mxu0 0
  %1115 = vmatpush1.bf16.msra.mxu0 0
  %1116 = vmatprep.subr.bf16.mxu0 0
  %1117 = vmatpush1.bf16.msra.mxu0 0
  %1118 = vmatprep.subr.bf16.mxu0 0
  %1119 = vmatpush1.bf16.msra.mxu0 0
  %1120 = vmatprep.subr.bf16.mxu0 0
  %1121 = vmatpush1.bf16.msra.mxu0 0
  %1122 = vmatprep.subr.bf16.mxu0 0
  %1123 = vmatpush1.bf16.msra.mxu0 0
  %1124 = vmatprep.mubr.bf16.mxu0 0
  %1125 = vmatmul.mubr.bf16.gmra.mrb[0].mxu0 %v1090
  %v1126 = vpop.f32.mrb[0].mxu0
  %v1127 = vadd.f32 %v1076, %v1126
  %v1128 = vpop.f32.mrb[0].mxu0
  %v1129 = vpop.f32.mrb[0].mxu0
  %v1130 = vadd.f32 %v1076, %v1129
  %v1131 = vpop.f32.mrb[0].mxu0
  %1132 = vdwg.mxu0
  %v1133 = vadd.f32 %v82, %v1127
  %v1134 = vadd.f32 %v85, %v1130
  %v1135 = vld [vmem:[%s4 + $0x3] sm:$0x1]
  %v1136 = vld [vmem:[%s4 + $0x4] sm:$0x1]
  %v1137 = vsel %vm110, %v1133, 0.0
  %1138 = vadd.xlane.f32.xlu0 %v1137
  %v1139 = vpop.xlane.xlu0 %1138
  %v1140 = vsel %vm110, %v1134, 0.0
  %1141 = vadd.xlane.f32.xlu0 %v1140
  %v1142 = vpop.xlane.xlu0 %1141
  %v1143 = vrcp.pop 32.0
  %v1144 = vmul.f32 %v1139, %v1143
  %v1145 = vmul.f32 %v1142, %v1143
  %v1146 = vsub.f32 %v1133, %v1144
  %v1147 = vsub.f32 %v1134, %v1145
  %v1148 = vmul.f32 %v1146, %v1146
  %v1149 = vmul.f32 %v1147, %v1147
  %v1150 = vsel %vm110, %v1148, 0.0
  %1151 = vadd.xlane.f32.xlu0 %v1150
  %v1152 = vpop.xlane.xlu0 %1151
  %v1153 = vsel %vm110, %v1149, 0.0
  %1154 = vadd.xlane.f32.xlu0 %v1153
  %v1155 = vpop.xlane.xlu0 %1154
  %v1156 = vmul.f32 %v1152, %v1143
  %v1157 = vmul.f32 %v1155, %v1143
  %v1158 = vadd.f32 %v1156, 1e-05
  %v1159 = vadd.f32 %v1157, 1e-05
  %v1160 = vrsqrt.pop %v1158
  %v1161 = vrsqrt.pop %v1159
  %v1162 = vmul.f32 %v1146, %v1160
  %v1163 = vmul.f32 %v1147, %v1161
  %v1164 = vlaneseq
  %v1165 = vshrl.u32 %v1164, 7
  %v1166 = vsub.s32 0, %v1165
  %v1167 = vrot.slane %v1135, %v1166
  %v1168 = vmul.f32 %v1162, %v1167
  %v1169 = vmul.f32 %v1163, %v1167
  %v1170 = vlaneseq
  %v1171 = vshrl.u32 %v1170, 7
  %v1172 = vsub.s32 0, %v1171
  %v1173 = vrot.slane %v1136, %v1172
  %v1174 = vadd.f32 %v1168, %v1173
  %v1175 = vadd.f32 %v1169, %v1173
  %v1176 = vld [vmem:[%s3] sm:$0xf]
  %v1177 = vld [vmem:[%s3 + $0x4] sm:$0xf]
  %v1178 = vld [vmem:[%s3 + $0x8] sm:$0xf]
  %v1179 = vld [vmem:[%s3 + $0xc] sm:$0xf]
  %v1180 = vpack.c.bf16 %v1175, %v1174
  %v1181 = vld [vmem:[%s6] sm:$0x1]
  %v1182 = vlaneseq
  %v1183 = vshrl.u32 %v1182, 7
  %v1184 = vsub.s32 0, %v1183
  %v1185 = vrot.slane %v1181, %v1184
  %v1190 = vunpack.c.l.b16 %v1176
  %v1191 = vunpack.c.l.b16 %v1177
  %v1192 = vunpack.c.l.b16 %v1178
  %v1193 = vunpack.c.l.b16 %v1179
  %v1194 = vpack.c.b16 %v1191, %v1190
  %v1195 = vpack.c.b16 %v1193, %v1192
  %v1199 = vsel %vm110, %v1180, 0
  %1201 = vmatprep.subr.bf16.mxu0 0
  %1202 = vmatpush1.bf16.msra.mxu0 %v1194
  %1203 = vmatprep.subr.bf16.mxu0 0
  %1204 = vmatpush1.bf16.msra.mxu0 %v1195
  %1205 = vmatprep.subr.bf16.mxu0 0
  %1206 = vmatpush1.bf16.msra.mxu0 0
  %1207 = vmatprep.subr.bf16.mxu0 0
  %1208 = vmatpush1.bf16.msra.mxu0 0
  %1209 = vmatprep.subr.bf16.mxu0 0
  %1210 = vmatpush1.bf16.msra.mxu0 0
  %1211 = vmatprep.subr.bf16.mxu0 0
  %1212 = vmatpush1.bf16.msra.mxu0 0
  %1213 = vmatprep.subr.bf16.mxu0 0
  %1214 = vmatpush1.bf16.msra.mxu0 0
  %1215 = vmatprep.subr.bf16.mxu0 0
  %1216 = vmatpush1.bf16.msra.mxu0 0
  %1217 = vmatprep.subr.bf16.mxu0 0
  %1218 = vmatpush1.bf16.msra.mxu0 0
  %1219 = vmatprep.subr.bf16.mxu0 0
  %1220 = vmatpush1.bf16.msra.mxu0 0
  %1221 = vmatprep.subr.bf16.mxu0 0
  %1222 = vmatpush1.bf16.msra.mxu0 0
  %1223 = vmatprep.subr.bf16.mxu0 0
  %1224 = vmatpush1.bf16.msra.mxu0 0
  %1225 = vmatprep.subr.bf16.mxu0 0
  %1226 = vmatpush1.bf16.msra.mxu0 0
  %1227 = vmatprep.subr.bf16.mxu0 0
  %1228 = vmatpush1.bf16.msra.mxu0 0
  %1229 = vmatprep.subr.bf16.mxu0 0
  %1230 = vmatpush1.bf16.msra.mxu0 0
  %1231 = vmatprep.subr.bf16.mxu0 0
  %1232 = vmatpush1.bf16.msra.mxu0 0
  %1233 = vmatprep.mubr.bf16.mxu0 0
  %1234 = vmatmul.mubr.bf16.gmra.mrb[0].mxu0 %v1199
  %v1235 = vpop.f32.mrb[0].mxu0
  %v1236 = vadd.f32 %v1185, %v1235
  %v1237 = vpop.f32.mrb[0].mxu0
  %v1238 = vpop.f32.mrb[0].mxu0
  %v1239 = vadd.f32 %v1185, %v1238
  %v1240 = vpop.f32.mrb[0].mxu0
  %1241 = vdwg.mxu0
  %v1242 = vmax.f32 %v1236, 0.0
  %v1243 = vmax.f32 %v1239, 0.0
  %v1244 = vld [vmem:[%s1 + $0x18] sm:$0xf]
  %v1245 = vld [vmem:[%s1 + $0x1c] sm:$0xf]
  %v1246 = vld [vmem:[%s1 + $0x20] sm:$0xf]
  %v1247 = vld [vmem:[%s1 + $0x24] sm:$0xf]
  %v1248 = vld [vmem:[%s1 + $0x28] sm:$0xf]
  %v1249 = vld [vmem:[%s1 + $0x2c] sm:$0xf]
  %v1250 = vld [vmem:[%s1 + $0x30] sm:$0xf]
  %v1251 = vld [vmem:[%s1 + $0x34] sm:$0xf]
  %v1252 = vld [vmem:[%s1 + $0x38] sm:$0xf]
  %v1253 = vld [vmem:[%s1 + $0x3c] sm:$0xf]
  %v1254 = vld [vmem:[%s1 + $0x40] sm:$0xf]
  %v1255 = vld [vmem:[%s1 + $0x44] sm:$0xf]
  %v1256 = vld [vmem:[%s1 + $0x48] sm:$0xf]
  %v1257 = vld [vmem:[%s1 + $0x4c] sm:$0xf]
  %v1258 = vld [vmem:[%s1 + $0x50] sm:$0xf]
  %v1259 = vld [vmem:[%s1 + $0x54] sm:$0xf]
  %v1260 = vpack.c.bf16 %v1243, %v1242
  %v1261 = vld [vmem:[%s4 + $0x2] sm:$0x1]
  %v1262 = vlaneseq
  %v1263 = vshrl.u32 %v1262, 7
  %v1264 = vsub.s32 0, %v1263
  %v1265 = vrot.slane %v1261, %v1264
  %v1282 = vunpack.c.l.b16 %v1244
  %v1283 = vunpack.c.l.b16 %v1245
  %v1284 = vunpack.c.l.b16 %v1246
  %v1285 = vunpack.c.l.b16 %v1247
  %v1286 = vunpack.c.l.b16 %v1248
  %v1287 = vunpack.c.l.b16 %v1249
  %v1288 = vunpack.c.l.b16 %v1250
  %v1289 = vunpack.c.l.b16 %v1251
  %v1290 = vunpack.c.l.b16 %v1252
  %v1291 = vunpack.c.l.b16 %v1253
  %v1292 = vunpack.c.l.b16 %v1254
  %v1293 = vunpack.c.l.b16 %v1255
  %v1294 = vunpack.c.l.b16 %v1256
  %v1295 = vunpack.c.l.b16 %v1257
  %v1296 = vunpack.c.l.b16 %v1258
  %v1297 = vunpack.c.l.b16 %v1259
  %v1298 = vpack.c.b16 %v1283, %v1282
  %v1299 = vpack.c.b16 %v1285, %v1284
  %v1300 = vpack.c.b16 %v1287, %v1286
  %v1301 = vpack.c.b16 %v1289, %v1288
  %v1302 = vpack.c.b16 %v1291, %v1290
  %v1303 = vpack.c.b16 %v1293, %v1292
  %v1304 = vpack.c.b16 %v1295, %v1294
  %v1305 = vpack.c.b16 %v1297, %v1296
  %1314 = vmatprep.subr.bf16.mxu0 0
  %1315 = vmatpush1.bf16.msra.mxu0 %v1298
  %1316 = vmatprep.subr.bf16.mxu0 0
  %1317 = vmatpush1.bf16.msra.mxu0 %v1299
  %1318 = vmatprep.subr.bf16.mxu0 0
  %1319 = vmatpush1.bf16.msra.mxu0 %v1300
  %1320 = vmatprep.subr.bf16.mxu0 0
  %1321 = vmatpush1.bf16.msra.mxu0 %v1301
  %1322 = vmatprep.subr.bf16.mxu0 0
  %1323 = vmatpush1.bf16.msra.mxu0 %v1302
  %1324 = vmatprep.subr.bf16.mxu0 0
  %1325 = vmatpush1.bf16.msra.mxu0 %v1303
  %1326 = vmatprep.subr.bf16.mxu0 0
  %1327 = vmatpush1.bf16.msra.mxu0 %v1304
  %1328 = vmatprep.subr.bf16.mxu0 0
  %1329 = vmatpush1.bf16.msra.mxu0 %v1305
  %1330 = vmatprep.subr.bf16.mxu0 0
  %1331 = vmatpush1.bf16.msra.mxu0 0
  %1332 = vmatprep.subr.bf16.mxu0 0
  %1333 = vmatpush1.bf16.msra.mxu0 0
  %1334 = vmatprep.subr.bf16.mxu0 0
  %1335 = vmatpush1.bf16.msra.mxu0 0
  %1336 = vmatprep.subr.bf16.mxu0 0
  %1337 = vmatpush1.bf16.msra.mxu0 0
  %1338 = vmatprep.subr.bf16.mxu0 0
  %1339 = vmatpush1.bf16.msra.mxu0 0
  %1340 = vmatprep.subr.bf16.mxu0 0
  %1341 = vmatpush1.bf16.msra.mxu0 0
  %1342 = vmatprep.subr.bf16.mxu0 0
  %1343 = vmatpush1.bf16.msra.mxu0 0
  %1344 = vmatprep.subr.bf16.mxu0 0
  %1345 = vmatpush1.bf16.msra.mxu0 0
  %1346 = vmatprep.mubr.bf16.mxu0 0
  %1347 = vmatmul.mubr.bf16.gmra.mrb[0].mxu0 %v1260
  %v1348 = vpop.f32.mrb[0].mxu0
  %v1349 = vadd.f32 %v1265, %v1348
  %v1350 = vpop.f32.mrb[0].mxu0
  %v1351 = vpop.f32.mrb[0].mxu0
  %v1352 = vadd.f32 %v1265, %v1351
  %v1353 = vpop.f32.mrb[0].mxu0
  %1354 = vdwg.mxu0
  %v1355 = vadd.f32 %v1174, %v1349
  %v1356 = vadd.f32 %v1175, %v1352
  %v1357 = vld [vmem:[%s4 + $0x5] sm:$0x1]
  %v1358 = vld [vmem:[%s4 + $0x6] sm:$0x1]
  %v1359 = vsel %vm110, %v1355, 0.0
  %1360 = vadd.xlane.f32.xlu0 %v1359
  %v1361 = vpop.xlane.xlu0 %1360
  %v1362 = vsel %vm110, %v1356, 0.0
  %1363 = vadd.xlane.f32.xlu0 %v1362
  %v1364 = vpop.xlane.xlu0 %1363
  %v1365 = vmul.f32 %v1361, %v1143
  %v1366 = vmul.f32 %v1364, %v1143
  %v1367 = vsub.f32 %v1355, %v1365
  %v1368 = vsub.f32 %v1356, %v1366
  %v1369 = vmul.f32 %v1367, %v1367
  %v1370 = vmul.f32 %v1368, %v1368
  %v1371 = vsel %vm110, %v1369, 0.0
  %1372 = vadd.xlane.f32.xlu0 %v1371
  %v1373 = vpop.xlane.xlu0 %1372
  %v1374 = vsel %vm110, %v1370, 0.0
  %1375 = vadd.xlane.f32.xlu0 %v1374
  %v1376 = vpop.xlane.xlu0 %1375
  %v1377 = vmul.f32 %v1373, %v1143
  %v1378 = vmul.f32 %v1376, %v1143
  %v1379 = vadd.f32 %v1377, 1e-05
  %v1380 = vadd.f32 %v1378, 1e-05
  %v1381 = vrsqrt.pop %v1379
  %v1382 = vrsqrt.pop %v1380
  %v1383 = vmul.f32 %v1367, %v1381
  %v1384 = vmul.f32 %v1368, %v1382
  %v1385 = vlaneseq
  %v1386 = vshrl.u32 %v1385, 7
  %v1387 = vsub.s32 0, %v1386
  %v1388 = vrot.slane %v1357, %v1387
  %v1389 = vmul.f32 %v1383, %v1388
  %v1390 = vmul.f32 %v1384, %v1388
  %v1391 = vlaneseq
  %v1392 = vshrl.u32 %v1391, 7
  %v1393 = vsub.s32 0, %v1392
  %v1394 = vrot.slane %v1358, %v1393
  %v1395 = vadd.f32 %v1389, %v1394
  %v1396 = vadd.f32 %v1390, %v1394
  %v1397 = vld [vmem:[%s2 + $0x10] sm:$0xf]
  %v1398 = vld [vmem:[%s2 + $0x14] sm:$0xf]
  %v1399 = vld [vmem:[%s2 + $0x18] sm:$0xf]
  %v1400 = vld [vmem:[%s2 + $0x1c] sm:$0xf]
  %v1401 = vld [vmem:[%s5 + $0x1] sm:$0x1]
  %v1402 = vpack.c.bf16 %v1396, %v1395
  %v1403 = vlaneseq
  %v1404 = vshrl.u32 %v1403, 7
  %v1405 = vsub.s32 0, %v1404
  %v1406 = vrot.slane %v1401, %v1405
  %v1411 = vunpack.c.l.b16 %v1397
  %v1412 = vunpack.c.l.b16 %v1398
  %v1413 = vunpack.c.l.b16 %v1399
  %v1414 = vunpack.c.l.b16 %v1400
  %v1415 = vpack.c.b16 %v1412, %v1411
  %v1416 = vpack.c.b16 %v1414, %v1413
  %v1420 = vsel %vm110, %v1402, 0
  %1422 = vmatprep.subr.bf16.mxu0 0
  %1423 = vmatpush1.bf16.msra.mxu0 %v1415
  %1424 = vmatprep.subr.bf16.mxu0 0
  %1425 = vmatpush1.bf16.msra.mxu0 %v1416
  %1426 = vmatprep.subr.bf16.mxu0 0
  %1427 = vmatpush1.bf16.msra.mxu0 0
  %1428 = vmatprep.subr.bf16.mxu0 0
  %1429 = vmatpush1.bf16.msra.mxu0 0
  %1430 = vmatprep.subr.bf16.mxu0 0
  %1431 = vmatpush1.bf16.msra.mxu0 0
  %1432 = vmatprep.subr.bf16.mxu0 0
  %1433 = vmatpush1.bf16.msra.mxu0 0
  %1434 = vmatprep.subr.bf16.mxu0 0
  %1435 = vmatpush1.bf16.msra.mxu0 0
  %1436 = vmatprep.subr.bf16.mxu0 0
  %1437 = vmatpush1.bf16.msra.mxu0 0
  %1438 = vmatprep.subr.bf16.mxu0 0
  %1439 = vmatpush1.bf16.msra.mxu0 0
  %1440 = vmatprep.subr.bf16.mxu0 0
  %1441 = vmatpush1.bf16.msra.mxu0 0
  %1442 = vmatprep.subr.bf16.mxu0 0
  %1443 = vmatpush1.bf16.msra.mxu0 0
  %1444 = vmatprep.subr.bf16.mxu0 0
  %1445 = vmatpush1.bf16.msra.mxu0 0
  %1446 = vmatprep.subr.bf16.mxu0 0
  %1447 = vmatpush1.bf16.msra.mxu0 0
  %1448 = vmatprep.subr.bf16.mxu0 0
  %1449 = vmatpush1.bf16.msra.mxu0 0
  %1450 = vmatprep.subr.bf16.mxu0 0
  %1451 = vmatpush1.bf16.msra.mxu0 0
  %1452 = vmatprep.subr.bf16.mxu0 0
  %1453 = vmatpush1.bf16.msra.mxu0 0
  %1454 = vmatprep.mubr.bf16.mxu0 0
  %1455 = vmatmul.mubr.bf16.gmra.mrb[0].mxu0 %v1420
  %v1456 = vpop.f32.mrb[0].mxu0
  %v1457 = vadd.f32 %v1406, %v1456
  %v1458 = vpop.f32.mrb[0].mxu0
  %v1459 = vpop.f32.mrb[0].mxu0
  %v1460 = vadd.f32 %v1406, %v1459
  %v1461 = vpop.f32.mrb[0].mxu0
  %1462 = vdwg.mxu0
  %v1463 = vpack.c.bf16 %v1460, %v1457
  %1465 = vrot.lane.b32.xlu0 %v1463, 96
  %v1466 = vpop.permute.xlu0 %1465
  %v1468 = vsel %vm159, %v1463, 0
  %v1471 = vsel %vm159, %v1466, 0
  %1473 = vmatprep.subr.bf16.mxu0 0
  %1474 = vmatpush1.bf16.xpose.msra.mxu0 %v1471
  %1475 = vmatprep.subr.bf16.mxu0 0
  %1476 = vmatpush1.bf16.xpose.msra.mxu0 0
  %1477 = vmatprep.subr.bf16.mxu0 0
  %1478 = vmatpush1.bf16.xpose.msra.mxu0 0
  %1479 = vmatprep.subr.bf16.mxu0 0
  %1480 = vmatpush1.bf16.xpose.msra.mxu0 0
  %1481 = vmatprep.subr.bf16.mxu0 0
  %1482 = vmatpush1.bf16.xpose.msra.mxu0 0
  %1483 = vmatprep.subr.bf16.mxu0 0
  %1484 = vmatpush1.bf16.xpose.msra.mxu0 0
  %1485 = vmatprep.subr.bf16.mxu0 0
  %1486 = vmatpush1.bf16.xpose.msra.mxu0 0
  %1487 = vmatprep.subr.bf16.mxu0 0
  %1488 = vmatpush1.bf16.xpose.msra.mxu0 0
  %1489 = vmatprep.subr.bf16.mxu0 0
  %1490 = vmatpush1.bf16.xpose.msra.mxu0 0
  %1491 = vmatprep.subr.bf16.mxu0 0
  %1492 = vmatpush1.bf16.xpose.msra.mxu0 0
  %1493 = vmatprep.subr.bf16.mxu0 0
  %1494 = vmatpush1.bf16.xpose.msra.mxu0 0
  %1495 = vmatprep.subr.bf16.mxu0 0
  %1496 = vmatpush1.bf16.xpose.msra.mxu0 0
  %1497 = vmatprep.subr.bf16.mxu0 0
  %1498 = vmatpush1.bf16.xpose.msra.mxu0 0
  %1499 = vmatprep.subr.bf16.mxu0 0
  %1500 = vmatpush1.bf16.xpose.msra.mxu0 0
  %1501 = vmatprep.subr.bf16.mxu0 0
  %1502 = vmatpush1.bf16.xpose.msra.mxu0 0
  %1503 = vmatprep.subr.bf16.mxu0 0
  %1504 = vmatpush1.bf16.xpose.msra.mxu0 0
  %1505 = vmatprep.mubr.bf16.mxu0 0
  %1506 = vmatmul.mubr.bf16.gmra.mrb[0].mxu0 %v1468
  %v1507 = vpop.f32.mrb[0].mxu0
  %v1508 = vadd.f32 0.0, %v1507
  %v1509 = vpop.f32.mrb[0].mxu0
  %v1510 = vpop.f32.mrb[0].mxu0
  %v1511 = vpop.f32.mrb[0].mxu0
  %1512 = vdwg.mxu0
  %v1513 = vsel %vm159, %v1508, -inf
  %1514 = vmax.xlane.f32.xlu0 %v1513
  %v1515 = vpop.xlane.xlu0 %1514
  %v1516 = vsub.f32 %v1508, %v1515
  %v1517 = vmul.f32 %v1516, 1.442695
  %v1518 = vpow.pop %v1517
  %v1519 = vsel %vm159, %v1518, 0.0
  %1520 = vadd.xlane.f32.xlu0 %v1519
  %v1521 = vpop.xlane.xlu0 %1520
  %v1522 = vrcp.pop %v1521
  %v1523 = vmul.f32 %v1518, %v1522
  %v1524 = vpack.c.bf16 %v1523, %v1523
  %1525 = vrot.lane.b32.xlu0 %v1463, 64
  %v1526 = vpop.permute.xlu0 %1525
  %v1528 = vsel %vm159, %v1524, 0
  %v1531 = vsel %vm223, %v1526, 0
  %1533 = vmatprep.subr.bf16.mxu0 0
  %1534 = vmatpush1.bf16.msra.mxu0 %v1531
  %1535 = vmatprep.subr.bf16.mxu0 0
  %1536 = vmatpush1.bf16.msra.mxu0 0
  %1537 = vmatprep.subr.bf16.mxu0 0
  %1538 = vmatpush1.bf16.msra.mxu0 0
  %1539 = vmatprep.subr.bf16.mxu0 0
  %1540 = vmatpush1.bf16.msra.mxu0 0
  %1541 = vmatprep.subr.bf16.mxu0 0
  %1542 = vmatpush1.bf16.msra.mxu0 0
  %1543 = vmatprep.subr.bf16.mxu0 0
  %1544 = vmatpush1.bf16.msra.mxu0 0
  %1545 = vmatprep.subr.bf16.mxu0 0
  %1546 = vmatpush1.bf16.msra.mxu0 0
  %1547 = vmatprep.subr.bf16.mxu0 0
  %1548 = vmatpush1.bf16.msra.mxu0 0
  %1549 = vmatprep.subr.bf16.mxu0 0
  %1550 = vmatpush1.bf16.msra.mxu0 0
  %1551 = vmatprep.subr.bf16.mxu0 0
  %1552 = vmatpush1.bf16.msra.mxu0 0
  %1553 = vmatprep.subr.bf16.mxu0 0
  %1554 = vmatpush1.bf16.msra.mxu0 0
  %1555 = vmatprep.subr.bf16.mxu0 0
  %1556 = vmatpush1.bf16.msra.mxu0 0
  %1557 = vmatprep.subr.bf16.mxu0 0
  %1558 = vmatpush1.bf16.msra.mxu0 0
  %1559 = vmatprep.subr.bf16.mxu0 0
  %1560 = vmatpush1.bf16.msra.mxu0 0
  %1561 = vmatprep.subr.bf16.mxu0 0
  %1562 = vmatpush1.bf16.msra.mxu0 0
  %1563 = vmatprep.subr.bf16.mxu0 0
  %1564 = vmatpush1.bf16.msra.mxu0 0
  %1565 = vmatprep.mubr.bf16.mxu0 0
  %1566 = vmatmul.mubr.bf16.gmra.mrb[0].mxu0 %v1528
  %v1567 = vpop.f32.mrb[0].mxu0
  %v1568 = vadd.f32 0.0, %v1567
  %v1569 = vpop.f32.mrb[0].mxu0
  %v1570 = vpop.f32.mrb[0].mxu0
  %v1571 = vpop.f32.mrb[0].mxu0
  %1572 = vdwg.mxu0
  %1573 = vrot.lane.b32.xlu0 %v1463, 120
  %v1574 = vpop.permute.xlu0 %1573
  %1575 = vrot.lane.b32.xlu0 %v1463, 88
  %v1576 = vpop.permute.xlu0 %1575
  %v1578 = vsel %vm159, %v1574, 0
  %v1581 = vsel %vm159, %v1576, 0
  %1583 = vmatprep.subr.bf16.mxu0 0
  %1584 = vmatpush1.bf16.xpose.msra.mxu0 %v1581
  %1585 = vmatprep.subr.bf16.mxu0 0
  %1586 = vmatpush1.bf16.xpose.msra.mxu0 0
  %1587 = vmatprep.subr.bf16.mxu0 0
  %1588 = vmatpush1.bf16.xpose.msra.mxu0 0
  %1589 = vmatprep.subr.bf16.mxu0 0
  %1590 = vmatpush1.bf16.xpose.msra.mxu0 0
  %1591 = vmatprep.subr.bf16.mxu0 0
  %1592 = vmatpush1.bf16.xpose.msra.mxu0 0
  %1593 = vmatprep.subr.bf16.mxu0 0
  %1594 = vmatpush1.bf16.xpose.msra.mxu0 0
  %1595 = vmatprep.subr.bf16.mxu0 0
  %1596 = vmatpush1.bf16.xpose.msra.mxu0 0
  %1597 = vmatprep.subr.bf16.mxu0 0
  %1598 = vmatpush1.bf16.xpose.msra.mxu0 0
  %1599 = vmatprep.subr.bf16.mxu0 0
  %1600 = vmatpush1.bf16.xpose.msra.mxu0 0
  %1601 = vmatprep.subr.bf16.mxu0 0
  %1602 = vmatpush1.bf16.xpose.msra.mxu0 0
  %1603 = vmatprep.subr.bf16.mxu0 0
  %1604 = vmatpush1.bf16.xpose.msra.mxu0 0
  %1605 = vmatprep.subr.bf16.mxu0 0
  %1606 = vmatpush1.bf16.xpose.msra.mxu0 0
  %1607 = vmatprep.subr.bf16.mxu0 0
  %1608 = vmatpush1.bf16.xpose.msra.mxu0 0
  %1609 = vmatprep.subr.bf16.mxu0 0
  %1610 = vmatpush1.bf16.xpose.msra.mxu0 0
  %1611 = vmatprep.subr.bf16.mxu0 0
  %1612 = vmatpush1.bf16.xpose.msra.mxu0 0
  %1613 = vmatprep.subr.bf16.mxu0 0
  %1614 = vmatpush1.bf16.xpose.msra.mxu0 0
  %1615 = vmatprep.mubr.bf16.mxu0 0
  %1616 = vmatmul.mubr.bf16.gmra.mrb[0].mxu0 %v1578
  %v1617 = vpop.f32.mrb[0].mxu0
  %v1618 = vadd.f32 0.0, %v1617
  %v1619 = vpop.f32.mrb[0].mxu0
  %v1620 = vpop.f32.mrb[0].mxu0
  %v1621 = vpop.f32.mrb[0].mxu0
  %1622 = vdwg.mxu0
  %v1623 = vsel %vm159, %v1618, -inf
  %1624 = vmax.xlane.f32.xlu0 %v1623
  %v1625 = vpop.xlane.xlu0 %1624
  %v1626 = vsub.f32 %v1618, %v1625
  %v1627 = vmul.f32 %v1626, 1.442695
  %v1628 = vpow.pop %v1627
  %v1629 = vsel %vm159, %v1628, 0.0
  %1630 = vadd.xlane.f32.xlu0 %v1629
  %v1631 = vpop.xlane.xlu0 %1630
  %v1632 = vrcp.pop %v1631
  %v1633 = vmul.f32 %v1628, %v1632
  %v1634 = vpack.c.bf16 %v1633, %v1633
  %1635 = vrot.lane.b32.xlu0 %v1463, 56
  %v1636 = vpop.permute.xlu0 %1635
  %v1638 = vsel %vm159, %v1634, 0
  %v1641 = vsel %vm223, %v1636, 0
  %1643 = vmatprep.subr.bf16.mxu0 0
  %1644 = vmatpush1.bf16.msra.mxu0 %v1641
  %1645 = vmatprep.subr.bf16.mxu0 0
  %1646 = vmatpush1.bf16.msra.mxu0 0
  %1647 = vmatprep.subr.bf16.mxu0 0
  %1648 = vmatpush1.bf16.msra.mxu0 0
  %1649 = vmatprep.subr.bf16.mxu0 0
  %1650 = vmatpush1.bf16.msra.mxu0 0
  %1651 = vmatprep.subr.bf16.mxu0 0
  %1652 = vmatpush1.bf16.msra.mxu0 0
  %1653 = vmatprep.subr.bf16.mxu0 0
  %1654 = vmatpush1.bf16.msra.mxu0 0
  %1655 = vmatprep.subr.bf16.mxu0 0
  %1656 = vmatpush1.bf16.msra.mxu0 0
  %1657 = vmatprep.subr.bf16.mxu0 0
  %1658 = vmatpush1.bf16.msra.mxu0 0
  %1659 = vmatprep.subr.bf16.mxu0 0
  %1660 = vmatpush1.bf16.msra.mxu0 0
  %1661 = vmatprep.subr.bf16.mxu0 0
  %1662 = vmatpush1.bf16.msra.mxu0 0
  %1663 = vmatprep.subr.bf16.mxu0 0
  %1664 = vmatpush1.bf16.msra.mxu0 0
  %1665 = vmatprep.subr.bf16.mxu0 0
  %1666 = vmatpush1.bf16.msra.mxu0 0
  %1667 = vmatprep.subr.bf16.mxu0 0
  %1668 = vmatpush1.bf16.msra.mxu0 0
  %1669 = vmatprep.subr.bf16.mxu0 0
  %1670 = vmatpush1.bf16.msra.mxu0 0
  %1671 = vmatprep.subr.bf16.mxu0 0
  %1672 = vmatpush1.bf16.msra.mxu0 0
  %1673 = vmatprep.subr.bf16.mxu0 0
  %1674 = vmatpush1.bf16.msra.mxu0 0
  %1675 = vmatprep.mubr.bf16.mxu0 0
  %1676 = vmatmul.mubr.bf16.gmra.mrb[0].mxu0 %v1638
  %v1677 = vpop.f32.mrb[0].mxu0
  %v1678 = vadd.f32 0.0, %v1677
  %v1679 = vpop.f32.mrb[0].mxu0
  %v1680 = vpop.f32.mrb[0].mxu0
  %v1681 = vpop.f32.mrb[0].mxu0
  %1682 = vdwg.mxu0
  %1683 = vrot.lane.b32.xlu0 %v1463, 112
  %v1684 = vpop.permute.xlu0 %1683
  %1685 = vrot.lane.b32.xlu0 %v1463, 80
  %v1686 = vpop.permute.xlu0 %1685
  %v1688 = vsel %vm159, %v1684, 0
  %v1691 = vsel %vm159, %v1686, 0
  %1693 = vmatprep.subr.bf16.mxu0 0
  %1694 = vmatpush1.bf16.xpose.msra.mxu0 %v1691
  %1695 = vmatprep.subr.bf16.mxu0 0
  %1696 = vmatpush1.bf16.xpose.msra.mxu0 0
  %1697 = vmatprep.subr.bf16.mxu0 0
  %1698 = vmatpush1.bf16.xpose.msra.mxu0 0
  %1699 = vmatprep.subr.bf16.mxu0 0
  %1700 = vmatpush1.bf16.xpose.msra.mxu0 0
  %1701 = vmatprep.subr.bf16.mxu0 0
  %1702 = vmatpush1.bf16.xpose.msra.mxu0 0
  %1703 = vmatprep.subr.bf16.mxu0 0
  %1704 = vmatpush1.bf16.xpose.msra.mxu0 0
  %1705 = vmatprep.subr.bf16.mxu0 0
  %1706 = vmatpush1.bf16.xpose.msra.mxu0 0
  %1707 = vmatprep.subr.bf16.mxu0 0
  %1708 = vmatpush1.bf16.xpose.msra.mxu0 0
  %1709 = vmatprep.subr.bf16.mxu0 0
  %1710 = vmatpush1.bf16.xpose.msra.mxu0 0
  %1711 = vmatprep.subr.bf16.mxu0 0
  %1712 = vmatpush1.bf16.xpose.msra.mxu0 0
  %1713 = vmatprep.subr.bf16.mxu0 0
  %1714 = vmatpush1.bf16.xpose.msra.mxu0 0
  %1715 = vmatprep.subr.bf16.mxu0 0
  %1716 = vmatpush1.bf16.xpose.msra.mxu0 0
  %1717 = vmatprep.subr.bf16.mxu0 0
  %1718 = vmatpush1.bf16.xpose.msra.mxu0 0
  %1719 = vmatprep.subr.bf16.mxu0 0
  %1720 = vmatpush1.bf16.xpose.msra.mxu0 0
  %1721 = vmatprep.subr.bf16.mxu0 0
  %1722 = vmatpush1.bf16.xpose.msra.mxu0 0
  %1723 = vmatprep.subr.bf16.mxu0 0
  %1724 = vmatpush1.bf16.xpose.msra.mxu0 0
  %1725 = vmatprep.mubr.bf16.mxu0 0
  %1726 = vmatmul.mubr.bf16.gmra.mrb[0].mxu0 %v1688
  %v1727 = vpop.f32.mrb[0].mxu0
  %v1728 = vadd.f32 0.0, %v1727
  %v1729 = vpop.f32.mrb[0].mxu0
  %v1730 = vpop.f32.mrb[0].mxu0
  %v1731 = vpop.f32.mrb[0].mxu0
  %1732 = vdwg.mxu0
  %v1733 = vsel %vm159, %v1728, -inf
  %1734 = vmax.xlane.f32.xlu0 %v1733
  %v1735 = vpop.xlane.xlu0 %1734
  %v1736 = vsub.f32 %v1728, %v1735
  %v1737 = vmul.f32 %v1736, 1.442695
  %v1738 = vpow.pop %v1737
  %v1739 = vsel %vm159, %v1738, 0.0
  %1740 = vadd.xlane.f32.xlu0 %v1739
  %v1741 = vpop.xlane.xlu0 %1740
  %v1742 = vrcp.pop %v1741
  %v1743 = vmul.f32 %v1738, %v1742
  %v1744 = vpack.c.bf16 %v1743, %v1743
  %1745 = vrot.lane.b32.xlu0 %v1463, 48
  %v1746 = vpop.permute.xlu0 %1745
  %v1748 = vsel %vm159, %v1744, 0
  %v1751 = vsel %vm223, %v1746, 0
  %1753 = vmatprep.subr.bf16.mxu0 0
  %1754 = vmatpush1.bf16.msra.mxu0 %v1751
  %1755 = vmatprep.subr.bf16.mxu0 0
  %1756 = vmatpush1.bf16.msra.mxu0 0
  %1757 = vmatprep.subr.bf16.mxu0 0
  %1758 = vmatpush1.bf16.msra.mxu0 0
  %1759 = vmatprep.subr.bf16.mxu0 0
  %1760 = vmatpush1.bf16.msra.mxu0 0
  %1761 = vmatprep.subr.bf16.mxu0 0
  %1762 = vmatpush1.bf16.msra.mxu0 0
  %1763 = vmatprep.subr.bf16.mxu0 0
  %1764 = vmatpush1.bf16.msra.mxu0 0
  %1765 = vmatprep.subr.bf16.mxu0 0
  %1766 = vmatpush1.bf16.msra.mxu0 0
  %1767 = vmatprep.subr.bf16.mxu0 0
  %1768 = vmatpush1.bf16.msra.mxu0 0
  %1769 = vmatprep.subr.bf16.mxu0 0
  %1770 = vmatpush1.bf16.msra.mxu0 0
  %1771 = vmatprep.subr.bf16.mxu0 0
  %1772 = vmatpush1.bf16.msra.mxu0 0
  %1773 = vmatprep.subr.bf16.mxu0 0
  %1774 = vmatpush1.bf16.msra.mxu0 0
  %1775 = vmatprep.subr.bf16.mxu0 0
  %1776 = vmatpush1.bf16.msra.mxu0 0
  %1777 = vmatprep.subr.bf16.mxu0 0
  %1778 = vmatpush1.bf16.msra.mxu0 0
  %1779 = vmatprep.subr.bf16.mxu0 0
  %1780 = vmatpush1.bf16.msra.mxu0 0
  %1781 = vmatprep.subr.bf16.mxu0 0
  %1782 = vmatpush1.bf16.msra.mxu0 0
  %1783 = vmatprep.subr.bf16.mxu0 0
  %1784 = vmatpush1.bf16.msra.mxu0 0
  %1785 = vmatprep.mubr.bf16.mxu0 0
  %1786 = vmatmul.mubr.bf16.gmra.mrb[0].mxu0 %v1748
  %v1787 = vpop.f32.mrb[0].mxu0
  %v1788 = vadd.f32 0.0, %v1787
  %v1789 = vpop.f32.mrb[0].mxu0
  %v1790 = vpop.f32.mrb[0].mxu0
  %v1791 = vpop.f32.mrb[0].mxu0
  %1792 = vdwg.mxu0
  %1793 = vrot.lane.b32.xlu0 %v1463, 104
  %v1794 = vpop.permute.xlu0 %1793
  %1795 = vrot.lane.b32.xlu0 %v1463, 72
  %v1796 = vpop.permute.xlu0 %1795
  %v1798 = vsel %vm159, %v1794, 0
  %v1801 = vsel %vm159, %v1796, 0
  %1803 = vmatprep.subr.bf16.mxu0 0
  %1804 = vmatpush1.bf16.xpose.msra.mxu0 %v1801
  %1805 = vmatprep.subr.bf16.mxu0 0
  %1806 = vmatpush1.bf16.xpose.msra.mxu0 0
  %1807 = vmatprep.subr.bf16.mxu0 0
  %1808 = vmatpush1.bf16.xpose.msra.mxu0 0
  %1809 = vmatprep.subr.bf16.mxu0 0
  %1810 = vmatpush1.bf16.xpose.msra.mxu0 0
  %1811 = vmatprep.subr.bf16.mxu0 0
  %1812 = vmatpush1.bf16.xpose.msra.mxu0 0
  %1813 = vmatprep.subr.bf16.mxu0 0
  %1814 = vmatpush1.bf16.xpose.msra.mxu0 0
  %1815 = vmatprep.subr.bf16.mxu0 0
  %1816 = vmatpush1.bf16.xpose.msra.mxu0 0
  %1817 = vmatprep.subr.bf16.mxu0 0
  %1818 = vmatpush1.bf16.xpose.msra.mxu0 0
  %1819 = vmatprep.subr.bf16.mxu0 0
  %1820 = vmatpush1.bf16.xpose.msra.mxu0 0
  %1821 = vmatprep.subr.bf16.mxu0 0
  %1822 = vmatpush1.bf16.xpose.msra.mxu0 0
  %1823 = vmatprep.subr.bf16.mxu0 0
  %1824 = vmatpush1.bf16.xpose.msra.mxu0 0
  %1825 = vmatprep.subr.bf16.mxu0 0
  %1826 = vmatpush1.bf16.xpose.msra.mxu0 0
  %1827 = vmatprep.subr.bf16.mxu0 0
  %1828 = vmatpush1.bf16.xpose.msra.mxu0 0
  %1829 = vmatprep.subr.bf16.mxu0 0
  %1830 = vmatpush1.bf16.xpose.msra.mxu0 0
  %1831 = vmatprep.subr.bf16.mxu0 0
  %1832 = vmatpush1.bf16.xpose.msra.mxu0 0
  %1833 = vmatprep.subr.bf16.mxu0 0
  %1834 = vmatpush1.bf16.xpose.msra.mxu0 0
  %1835 = vmatprep.mubr.bf16.mxu0 0
  %1836 = vmatmul.mubr.bf16.gmra.mrb[0].mxu0 %v1798
  %v1837 = vpop.f32.mrb[0].mxu0
  %v1838 = vadd.f32 0.0, %v1837
  %v1839 = vpop.f32.mrb[0].mxu0
  %v1840 = vpop.f32.mrb[0].mxu0
  %v1841 = vpop.f32.mrb[0].mxu0
  %1842 = vdwg.mxu0
  %v1843 = vsel %vm159, %v1838, -inf
  %1844 = vmax.xlane.f32.xlu0 %v1843
  %v1845 = vpop.xlane.xlu0 %1844
  %v1846 = vsub.f32 %v1838, %v1845
  %v1847 = vmul.f32 %v1846, 1.442695
  %v1848 = vpow.pop %v1847
  %v1849 = vsel %vm159, %v1848, 0.0
  %1850 = vadd.xlane.f32.xlu0 %v1849
  %v1851 = vpop.xlane.xlu0 %1850
  %v1852 = vrcp.pop %v1851
  %v1853 = vmul.f32 %v1848, %v1852
  %v1854 = vpack.c.bf16 %v1853, %v1853
  %1855 = vrot.lane.b32.xlu0 %v1463, 40
  %v1856 = vpop.permute.xlu0 %1855
  %v1858 = vsel %vm159, %v1854, 0
  %v1861 = vsel %vm223, %v1856, 0
  %1863 = vmatprep.subr.bf16.mxu0 0
  %1864 = vmatpush1.bf16.msra.mxu0 %v1861
  %1865 = vmatprep.subr.bf16.mxu0 0
  %1866 = vmatpush1.bf16.msra.mxu0 0
  %1867 = vmatprep.subr.bf16.mxu0 0
  %1868 = vmatpush1.bf16.msra.mxu0 0
  %1869 = vmatprep.subr.bf16.mxu0 0
  %1870 = vmatpush1.bf16.msra.mxu0 0
  %1871 = vmatprep.subr.bf16.mxu0 0
  %1872 = vmatpush1.bf16.msra.mxu0 0
  %1873 = vmatprep.subr.bf16.mxu0 0
  %1874 = vmatpush1.bf16.msra.mxu0 0
  %1875 = vmatprep.subr.bf16.mxu0 0
  %1876 = vmatpush1.bf16.msra.mxu0 0
  %1877 = vmatprep.subr.bf16.mxu0 0
  %1878 = vmatpush1.bf16.msra.mxu0 0
  %1879 = vmatprep.subr.bf16.mxu0 0
  %1880 = vmatpush1.bf16.msra.mxu0 0
  %1881 = vmatprep.subr.bf16.mxu0 0
  %1882 = vmatpush1.bf16.msra.mxu0 0
  %1883 = vmatprep.subr.bf16.mxu0 0
  %1884 = vmatpush1.bf16.msra.mxu0 0
  %1885 = vmatprep.subr.bf16.mxu0 0
  %1886 = vmatpush1.bf16.msra.mxu0 0
  %1887 = vmatprep.subr.bf16.mxu0 0
  %1888 = vmatpush1.bf16.msra.mxu0 0
  %1889 = vmatprep.subr.bf16.mxu0 0
  %1890 = vmatpush1.bf16.msra.mxu0 0
  %1891 = vmatprep.subr.bf16.mxu0 0
  %1892 = vmatpush1.bf16.msra.mxu0 0
  %1893 = vmatprep.subr.bf16.mxu0 0
  %1894 = vmatpush1.bf16.msra.mxu0 0
  %1895 = vmatprep.mubr.bf16.mxu0 0
  %1896 = vmatmul.mubr.bf16.gmra.mrb[0].mxu0 %v1858
  %v1897 = vpop.f32.mrb[0].mxu0
  %v1898 = vadd.f32 0.0, %v1897
  %v1899 = vpop.f32.mrb[0].mxu0
  %v1900 = vpop.f32.mrb[0].mxu0
  %v1901 = vpop.f32.mrb[0].mxu0
  %1902 = vdwg.mxu0
  %1904 = vrot.lane.b32.xlu0 %v1678, 8
  %v1905 = vpop.permute.xlu0 %1904
  %1908 = vrot.lane.b32.xlu0 %v1788, 16
  %v1909 = vpop.permute.xlu0 %1908
  %1912 = vrot.lane.b32.xlu0 %v1898, 24
  %v1913 = vpop.permute.xlu0 %1912
  %v1915 = vsel %vm159, %v1568, %v1905
  %v1916 = vsel %vm43, %v1915, %v1909
  %v1917 = vsel %vm611, %v1916, %v1913
  %v1918 = vrot.slane %v1463, 4
  %1919 = vrot.lane.b32.xlu0 %v1918, 96
  %v1920 = vpop.permute.xlu0 %1919
  %v1922 = vsel %vm159, %v1918, 0
  %v1925 = vsel %vm159, %v1920, 0
  %1927 = vmatprep.subr.bf16.mxu0 0
  %1928 = vmatpush1.bf16.xpose.msra.mxu0 %v1925
  %1929 = vmatprep.subr.bf16.mxu0 0
  %1930 = vmatpush1.bf16.xpose.msra.mxu0 0
  %1931 = vmatprep.subr.bf16.mxu0 0
  %1932 = vmatpush1.bf16.xpose.msra.mxu0 0
  %1933 = vmatprep.subr.bf16.mxu0 0
  %1934 = vmatpush1.bf16.xpose.msra.mxu0 0
  %1935 = vmatprep.subr.bf16.mxu0 0
  %1936 = vmatpush1.bf16.xpose.msra.mxu0 0
  %1937 = vmatprep.subr.bf16.mxu0 0
  %1938 = vmatpush1.bf16.xpose.msra.mxu0 0
  %1939 = vmatprep.subr.bf16.mxu0 0
  %1940 = vmatpush1.bf16.xpose.msra.mxu0 0
  %1941 = vmatprep.subr.bf16.mxu0 0
  %1942 = vmatpush1.bf16.xpose.msra.mxu0 0
  %1943 = vmatprep.subr.bf16.mxu0 0
  %1944 = vmatpush1.bf16.xpose.msra.mxu0 0
  %1945 = vmatprep.subr.bf16.mxu0 0
  %1946 = vmatpush1.bf16.xpose.msra.mxu0 0
  %1947 = vmatprep.subr.bf16.mxu0 0
  %1948 = vmatpush1.bf16.xpose.msra.mxu0 0
  %1949 = vmatprep.subr.bf16.mxu0 0
  %1950 = vmatpush1.bf16.xpose.msra.mxu0 0
  %1951 = vmatprep.subr.bf16.mxu0 0
  %1952 = vmatpush1.bf16.xpose.msra.mxu0 0
  %1953 = vmatprep.subr.bf16.mxu0 0
  %1954 = vmatpush1.bf16.xpose.msra.mxu0 0
  %1955 = vmatprep.subr.bf16.mxu0 0
  %1956 = vmatpush1.bf16.xpose.msra.mxu0 0
  %1957 = vmatprep.subr.bf16.mxu0 0
  %1958 = vmatpush1.bf16.xpose.msra.mxu0 0
  %1959 = vmatprep.mubr.bf16.mxu0 0
  %1960 = vmatmul.mubr.bf16.gmra.mrb[0].mxu0 %v1922
  %v1961 = vpop.f32.mrb[0].mxu0
  %v1962 = vadd.f32 0.0, %v1961
  %v1963 = vpop.f32.mrb[0].mxu0
  %v1964 = vpop.f32.mrb[0].mxu0
  %v1965 = vpop.f32.mrb[0].mxu0
  %1966 = vdwg.mxu0
  %v1967 = vsel %vm159, %v1962, -inf
  %1968 = vmax.xlane.f32.xlu0 %v1967
  %v1969 = vpop.xlane.xlu0 %1968
  %v1970 = vsub.f32 %v1962, %v1969
  %v1971 = vmul.f32 %v1970, 1.442695
  %v1972 = vpow.pop %v1971
  %v1973 = vsel %vm159, %v1972, 0.0
  %1974 = vadd.xlane.f32.xlu0 %v1973
  %v1975 = vpop.xlane.xlu0 %1974
  %v1976 = vrcp.pop %v1975
  %v1977 = vmul.f32 %v1972, %v1976
  %v1978 = vpack.c.bf16 %v1977, %v1977
  %1979 = vrot.lane.b32.xlu0 %v1918, 64
  %v1980 = vpop.permute.xlu0 %1979
  %v1982 = vsel %vm159, %v1978, 0
  %v1985 = vsel %vm223, %v1980, 0
  %1987 = vmatprep.subr.bf16.mxu0 0
  %1988 = vmatpush1.bf16.msra.mxu0 %v1985
  %1989 = vmatprep.subr.bf16.mxu0 0
  %1990 = vmatpush1.bf16.msra.mxu0 0
  %1991 = vmatprep.subr.bf16.mxu0 0
  %1992 = vmatpush1.bf16.msra.mxu0 0
  %1993 = vmatprep.subr.bf16.mxu0 0
  %1994 = vmatpush1.bf16.msra.mxu0 0
  %1995 = vmatprep.subr.bf16.mxu0 0
  %1996 = vmatpush1.bf16.msra.mxu0 0
  %1997 = vmatprep.subr.bf16.mxu0 0
  %1998 = vmatpush1.bf16.msra.mxu0 0
  %1999 = vmatprep.subr.bf16.mxu0 0
  %2000 = vmatpush1.bf16.msra.mxu0 0
  %2001 = vmatprep.subr.bf16.mxu0 0
  %2002 = vmatpush1.bf16.msra.mxu0 0
  %2003 = vmatprep.subr.bf16.mxu0 0
  %2004 = vmatpush1.bf16.msra.mxu0 0
  %2005 = vmatprep.subr.bf16.mxu0 0
  %2006 = vmatpush1.bf16.msra.mxu0 0
  %2007 = vmatprep.subr.bf16.mxu0 0
  %2008 = vmatpush1.bf16.msra.mxu0 0
  %2009 = vmatprep.subr.bf16.mxu0 0
  %2010 = vmatpush1.bf16.msra.mxu0 0
  %2011 = vmatprep.subr.bf16.mxu0 0
  %2012 = vmatpush1.bf16.msra.mxu0 0
  %2013 = vmatprep.subr.bf16.mxu0 0
  %2014 = vmatpush1.bf16.msra.mxu0 0
  %2015 = vmatprep.subr.bf16.mxu0 0
  %2016 = vmatpush1.bf16.msra.mxu0 0
  %2017 = vmatprep.subr.bf16.mxu0 0
  %2018 = vmatpush1.bf16.msra.mxu0 0
  %2019 = vmatprep.mubr.bf16.mxu0 0
  %2020 = vmatmul.mubr.bf16.gmra.mrb[0].mxu0 %v1982
  %v2021 = vpop.f32.mrb[0].mxu0
  %v2022 = vadd.f32 0.0, %v2021
  %v2023 = vpop.f32.mrb[0].mxu0
  %v2024 = vpop.f32.mrb[0].mxu0
  %v2025 = vpop.f32.mrb[0].mxu0
  %2026 = vdwg.mxu0
  %2027 = vrot.lane.b32.xlu0 %v1918, 120
  %v2028 = vpop.permute.xlu0 %2027
  %2029 = vrot.lane.b32.xlu0 %v1918, 88
  %v2030 = vpop.permute.xlu0 %2029
  %v2032 = vsel %vm159, %v2028, 0
  %v2035 = vsel %vm159, %v2030, 0
  %2037 = vmatprep.subr.bf16.mxu0 0
  %2038 = vmatpush1.bf16.xpose.msra.mxu0 %v2035
  %2039 = vmatprep.subr.bf16.mxu0 0
  %2040 = vmatpush1.bf16.xpose.msra.mxu0 0
  %2041 = vmatprep.subr.bf16.mxu0 0
  %2042 = vmatpush1.bf16.xpose.msra.mxu0 0
  %2043 = vmatprep.subr.bf16.mxu0 0
  %2044 = vmatpush1.bf16.xpose.msra.mxu0 0
  %2045 = vmatprep.subr.bf16.mxu0 0
  %2046 = vmatpush1.bf16.xpose.msra.mxu0 0
  %2047 = vmatprep.subr.bf16.mxu0 0
  %2048 = vmatpush1.bf16.xpose.msra.mxu0 0
  %2049 = vmatprep.subr.bf16.mxu0 0
  %2050 = vmatpush1.bf16.xpose.msra.mxu0 0
  %2051 = vmatprep.subr.bf16.mxu0 0
  %2052 = vmatpush1.bf16.xpose.msra.mxu0 0
  %2053 = vmatprep.subr.bf16.mxu0 0
  %2054 = vmatpush1.bf16.xpose.msra.mxu0 0
  %2055 = vmatprep.subr.bf16.mxu0 0
  %2056 = vmatpush1.bf16.xpose.msra.mxu0 0
  %2057 = vmatprep.subr.bf16.mxu0 0
  %2058 = vmatpush1.bf16.xpose.msra.mxu0 0
  %2059 = vmatprep.subr.bf16.mxu0 0
  %2060 = vmatpush1.bf16.xpose.msra.mxu0 0
  %2061 = vmatprep.subr.bf16.mxu0 0
  %2062 = vmatpush1.bf16.xpose.msra.mxu0 0
  %2063 = vmatprep.subr.bf16.mxu0 0
  %2064 = vmatpush1.bf16.xpose.msra.mxu0 0
  %2065 = vmatprep.subr.bf16.mxu0 0
  %2066 = vmatpush1.bf16.xpose.msra.mxu0 0
  %2067 = vmatprep.subr.bf16.mxu0 0
  %2068 = vmatpush1.bf16.xpose.msra.mxu0 0
  %2069 = vmatprep.mubr.bf16.mxu0 0
  %2070 = vmatmul.mubr.bf16.gmra.mrb[0].mxu0 %v2032
  %v2071 = vpop.f32.mrb[0].mxu0
  %v2072 = vadd.f32 0.0, %v2071
  %v2073 = vpop.f32.mrb[0].mxu0
  %v2074 = vpop.f32.mrb[0].mxu0
  %v2075 = vpop.f32.mrb[0].mxu0
  %2076 = vdwg.mxu0
  %v2077 = vsel %vm159, %v2072, -inf
  %2078 = vmax.xlane.f32.xlu0 %v2077
  %v2079 = vpop.xlane.xlu0 %2078
  %v2080 = vsub.f32 %v2072, %v2079
  %v2081 = vmul.f32 %v2080, 1.442695
  %v2082 = vpow.pop %v2081
  %v2083 = vsel %vm159, %v2082, 0.0
  %2084 = vadd.xlane.f32.xlu0 %v2083
  %v2085 = vpop.xlane.xlu0 %2084
  %v2086 = vrcp.pop %v2085
  %v2087 = vmul.f32 %v2082, %v2086
  %v2088 = vpack.c.bf16 %v2087, %v2087
  %2089 = vrot.lane.b32.xlu0 %v1918, 56
  %v2090 = vpop.permute.xlu0 %2089
  %v2092 = vsel %vm159, %v2088, 0
  %v2095 = vsel %vm223, %v2090, 0
  %2097 = vmatprep.subr.bf16.mxu0 0
  %2098 = vmatpush1.bf16.msra.mxu0 %v2095
  %2099 = vmatprep.subr.bf16.mxu0 0
  %2100 = vmatpush1.bf16.msra.mxu0 0
  %2101 = vmatprep.subr.bf16.mxu0 0
  %2102 = vmatpush1.bf16.msra.mxu0 0
  %2103 = vmatprep.subr.bf16.mxu0 0
  %2104 = vmatpush1.bf16.msra.mxu0 0
  %2105 = vmatprep.subr.bf16.mxu0 0
  %2106 = vmatpush1.bf16.msra.mxu0 0
  %2107 = vmatprep.subr.bf16.mxu0 0
  %2108 = vmatpush1.bf16.msra.mxu0 0
  %2109 = vmatprep.subr.bf16.mxu0 0
  %2110 = vmatpush1.bf16.msra.mxu0 0
  %2111 = vmatprep.subr.bf16.mxu0 0
  %2112 = vmatpush1.bf16.msra.mxu0 0
  %2113 = vmatprep.subr.bf16.mxu0 0
  %2114 = vmatpush1.bf16.msra.mxu0 0
  %2115 = vmatprep.subr.bf16.mxu0 0
  %2116 = vmatpush1.bf16.msra.mxu0 0
  %2117 = vmatprep.subr.bf16.mxu0 0
  %2118 = vmatpush1.bf16.msra.mxu0 0
  %2119 = vmatprep.subr.bf16.mxu0 0
  %2120 = vmatpush1.bf16.msra.mxu0 0
  %2121 = vmatprep.subr.bf16.mxu0 0
  %2122 = vmatpush1.bf16.msra.mxu0 0
  %2123 = vmatprep.subr.bf16.mxu0 0
  %2124 = vmatpush1.bf16.msra.mxu0 0
  %2125 = vmatprep.subr.bf16.mxu0 0
  %2126 = vmatpush1.bf16.msra.mxu0 0
  %2127 = vmatprep.subr.bf16.mxu0 0
  %2128 = vmatpush1.bf16.msra.mxu0 0
  %2129 = vmatprep.mubr.bf16.mxu0 0
  %2130 = vmatmul.mubr.bf16.gmra.mrb[0].mxu0 %v2092
  %v2131 = vpop.f32.mrb[0].mxu0
  %v2132 = vadd.f32 0.0, %v2131
  %v2133 = vpop.f32.mrb[0].mxu0
  %v2134 = vpop.f32.mrb[0].mxu0
  %v2135 = vpop.f32.mrb[0].mxu0
  %2136 = vdwg.mxu0
  %2137 = vrot.lane.b32.xlu0 %v1918, 112
  %v2138 = vpop.permute.xlu0 %2137
  %2139 = vrot.lane.b32.xlu0 %v1918, 80
  %v2140 = vpop.permute.xlu0 %2139
  %v2142 = vsel %vm159, %v2138, 0
  %v2145 = vsel %vm159, %v2140, 0
  %2147 = vmatprep.subr.bf16.mxu0 0
  %2148 = vmatpush1.bf16.xpose.msra.mxu0 %v2145
  %2149 = vmatprep.subr.bf16.mxu0 0
  %2150 = vmatpush1.bf16.xpose.msra.mxu0 0
  %2151 = vmatprep.subr.bf16.mxu0 0
  %2152 = vmatpush1.bf16.xpose.msra.mxu0 0
  %2153 = vmatprep.subr.bf16.mxu0 0
  %2154 = vmatpush1.bf16.xpose.msra.mxu0 0
  %2155 = vmatprep.subr.bf16.mxu0 0
  %2156 = vmatpush1.bf16.xpose.msra.mxu0 0
  %2157 = vmatprep.subr.bf16.mxu0 0
  %2158 = vmatpush1.bf16.xpose.msra.mxu0 0
  %2159 = vmatprep.subr.bf16.mxu0 0
  %2160 = vmatpush1.bf16.xpose.msra.mxu0 0
  %2161 = vmatprep.subr.bf16.mxu0 0
  %2162 = vmatpush1.bf16.xpose.msra.mxu0 0
  %2163 = vmatprep.subr.bf16.mxu0 0
  %2164 = vmatpush1.bf16.xpose.msra.mxu0 0
  %2165 = vmatprep.subr.bf16.mxu0 0
  %2166 = vmatpush1.bf16.xpose.msra.mxu0 0
  %2167 = vmatprep.subr.bf16.mxu0 0
  %2168 = vmatpush1.bf16.xpose.msra.mxu0 0
  %2169 = vmatprep.subr.bf16.mxu0 0
  %2170 = vmatpush1.bf16.xpose.msra.mxu0 0
  %2171 = vmatprep.subr.bf16.mxu0 0
  %2172 = vmatpush1.bf16.xpose.msra.mxu0 0
  %2173 = vmatprep.subr.bf16.mxu0 0
  %2174 = vmatpush1.bf16.xpose.msra.mxu0 0
  %2175 = vmatprep.subr.bf16.mxu0 0
  %2176 = vmatpush1.bf16.xpose.msra.mxu0 0
  %2177 = vmatprep.subr.bf16.mxu0 0
  %2178 = vmatpush1.bf16.xpose.msra.mxu0 0
  %2179 = vmatprep.mubr.bf16.mxu0 0
  %2180 = vmatmul.mubr.bf16.gmra.mrb[0].mxu0 %v2142
  %v2181 = vpop.f32.mrb[0].mxu0
  %v2182 = vadd.f32 0.0, %v2181
  %v2183 = vpop.f32.mrb[0].mxu0
  %v2184 = vpop.f32.mrb[0].mxu0
  %v2185 = vpop.f32.mrb[0].mxu0
  %2186 = vdwg.mxu0
  %v2187 = vsel %vm159, %v2182, -inf
  %2188 = vmax.xlane.f32.xlu0 %v2187
  %v2189 = vpop.xlane.xlu0 %2188
  %v2190 = vsub.f32 %v2182, %v2189
  %v2191 = vmul.f32 %v2190, 1.442695
  %v2192 = vpow.pop %v2191
  %v2193 = vsel %vm159, %v2192, 0.0
  %2194 = vadd.xlane.f32.xlu0 %v2193
  %v2195 = vpop.xlane.xlu0 %2194
  %v2196 = vrcp.pop %v2195
  %v2197 = vmul.f32 %v2192, %v2196
  %v2198 = vpack.c.bf16 %v2197, %v2197
  %2199 = vrot.lane.b32.xlu0 %v1918, 48
  %v2200 = vpop.permute.xlu0 %2199
  %v2202 = vsel %vm159, %v2198, 0
  %v2205 = vsel %vm223, %v2200, 0
  %2207 = vmatprep.subr.bf16.mxu0 0
  %2208 = vmatpush1.bf16.msra.mxu0 %v2205
  %2209 = vmatprep.subr.bf16.mxu0 0
  %2210 = vmatpush1.bf16.msra.mxu0 0
  %2211 = vmatprep.subr.bf16.mxu0 0
  %2212 = vmatpush1.bf16.msra.mxu0 0
  %2213 = vmatprep.subr.bf16.mxu0 0
  %2214 = vmatpush1.bf16.msra.mxu0 0
  %2215 = vmatprep.subr.bf16.mxu0 0
  %2216 = vmatpush1.bf16.msra.mxu0 0
  %2217 = vmatprep.subr.bf16.mxu0 0
  %2218 = vmatpush1.bf16.msra.mxu0 0
  %2219 = vmatprep.subr.bf16.mxu0 0
  %2220 = vmatpush1.bf16.msra.mxu0 0
  %2221 = vmatprep.subr.bf16.mxu0 0
  %2222 = vmatpush1.bf16.msra.mxu0 0
  %2223 = vmatprep.subr.bf16.mxu0 0
  %2224 = vmatpush1.bf16.msra.mxu0 0
  %2225 = vmatprep.subr.bf16.mxu0 0
  %2226 = vmatpush1.bf16.msra.mxu0 0
  %2227 = vmatprep.subr.bf16.mxu0 0
  %2228 = vmatpush1.bf16.msra.mxu0 0
  %2229 = vmatprep.subr.bf16.mxu0 0
  %2230 = vmatpush1.bf16.msra.mxu0 0
  %2231 = vmatprep.subr.bf16.mxu0 0
  %2232 = vmatpush1.bf16.msra.mxu0 0
  %2233 = vmatprep.subr.bf16.mxu0 0
  %2234 = vmatpush1.bf16.msra.mxu0 0
  %2235 = vmatprep.subr.bf16.mxu0 0
  %2236 = vmatpush1.bf16.msra.mxu0 0
  %2237 = vmatprep.subr.bf16.mxu0 0
  %2238 = vmatpush1.bf16.msra.mxu0 0
  %2239 = vmatprep.mubr.bf16.mxu0 0
  %2240 = vmatmul.mubr.bf16.gmra.mrb[0].mxu0 %v2202
  %v2241 = vpop.f32.mrb[0].mxu0
  %v2242 = vadd.f32 0.0, %v2241
  %v2243 = vpop.f32.mrb[0].mxu0
  %v2244 = vpop.f32.mrb[0].mxu0
  %v2245 = vpop.f32.mrb[0].mxu0
  %2246 = vdwg.mxu0
  %2247 = vrot.lane.b32.xlu0 %v1918, 104
  %v2248 = vpop.permute.xlu0 %2247
  %2249 = vrot.lane.b32.xlu0 %v1918, 72
  %v2250 = vpop.permute.xlu0 %2249
  %v2252 = vsel %vm159, %v2248, 0
  %v2255 = vsel %vm159, %v2250, 0
  %2257 = vmatprep.subr.bf16.mxu0 0
  %2258 = vmatpush1.bf16.xpose.msra.mxu0 %v2255
  %2259 = vmatprep.subr.bf16.mxu0 0
  %2260 = vmatpush1.bf16.xpose.msra.mxu0 0
  %2261 = vmatprep.subr.bf16.mxu0 0
  %2262 = vmatpush1.bf16.xpose.msra.mxu0 0
  %2263 = vmatprep.subr.bf16.mxu0 0
  %2264 = vmatpush1.bf16.xpose.msra.mxu0 0
  %2265 = vmatprep.subr.bf16.mxu0 0
  %2266 = vmatpush1.bf16.xpose.msra.mxu0 0
  %2267 = vmatprep.subr.bf16.mxu0 0
  %2268 = vmatpush1.bf16.xpose.msra.mxu0 0
  %2269 = vmatprep.subr.bf16.mxu0 0
  %2270 = vmatpush1.bf16.xpose.msra.mxu0 0
  %2271 = vmatprep.subr.bf16.mxu0 0
  %2272 = vmatpush1.bf16.xpose.msra.mxu0 0
  %2273 = vmatprep.subr.bf16.mxu0 0
  %2274 = vmatpush1.bf16.xpose.msra.mxu0 0
  %2275 = vmatprep.subr.bf16.mxu0 0
  %2276 = vmatpush1.bf16.xpose.msra.mxu0 0
  %2277 = vmatprep.subr.bf16.mxu0 0
  %2278 = vmatpush1.bf16.xpose.msra.mxu0 0
  %2279 = vmatprep.subr.bf16.mxu0 0
  %2280 = vmatpush1.bf16.xpose.msra.mxu0 0
  %2281 = vmatprep.subr.bf16.mxu0 0
  %2282 = vmatpush1.bf16.xpose.msra.mxu0 0
  %2283 = vmatprep.subr.bf16.mxu0 0
  %2284 = vmatpush1.bf16.xpose.msra.mxu0 0
  %2285 = vmatprep.subr.bf16.mxu0 0
  %2286 = vmatpush1.bf16.xpose.msra.mxu0 0
  %2287 = vmatprep.subr.bf16.mxu0 0
  %2288 = vmatpush1.bf16.xpose.msra.mxu0 0
  %2289 = vmatprep.mubr.bf16.mxu0 0
  %2290 = vmatmul.mubr.bf16.gmra.mrb[0].mxu0 %v2252
  %v2291 = vpop.f32.mrb[0].mxu0
  %v2292 = vadd.f32 0.0, %v2291
  %v2293 = vpop.f32.mrb[0].mxu0
  %v2294 = vpop.f32.mrb[0].mxu0
  %v2295 = vpop.f32.mrb[0].mxu0
  %2296 = vdwg.mxu0
  %v2297 = vsel %vm159, %v2292, -inf
  %2298 = vmax.xlane.f32.xlu0 %v2297
  %v2299 = vpop.xlane.xlu0 %2298
  %v2300 = vsub.f32 %v2292, %v2299
  %v2301 = vmul.f32 %v2300, 1.442695
  %v2302 = vpow.pop %v2301
  %v2303 = vsel %vm159, %v2302, 0.0
  %2304 = vadd.xlane.f32.xlu0 %v2303
  %v2305 = vpop.xlane.xlu0 %2304
  %v2306 = vrcp.pop %v2305
  %v2307 = vmul.f32 %v2302, %v2306
  %v2308 = vpack.c.bf16 %v2307, %v2307
  %2309 = vrot.lane.b32.xlu0 %v1918, 40
  %v2310 = vpop.permute.xlu0 %2309
  %v2312 = vsel %vm159, %v2308, 0
  %v2315 = vsel %vm223, %v2310, 0
  %2317 = vmatprep.subr.bf16.mxu0 0
  %2318 = vmatpush1.bf16.msra.mxu0 %v2315
  %2319 = vmatprep.subr.bf16.mxu0 0
  %2320 = vmatpush1.bf16.msra.mxu0 0
  %2321 = vmatprep.subr.bf16.mxu0 0
  %2322 = vmatpush1.bf16.msra.mxu0 0
  %2323 = vmatprep.subr.bf16.mxu0 0
  %2324 = vmatpush1.bf16.msra.mxu0 0
  %2325 = vmatprep.subr.bf16.mxu0 0
  %2326 = vmatpush1.bf16.msra.mxu0 0
  %2327 = vmatprep.subr.bf16.mxu0 0
  %2328 = vmatpush1.bf16.msra.mxu0 0
  %2329 = vmatprep.subr.bf16.mxu0 0
  %2330 = vmatpush1.bf16.msra.mxu0 0
  %2331 = vmatprep.subr.bf16.mxu0 0
  %2332 = vmatpush1.bf16.msra.mxu0 0
  %2333 = vmatprep.subr.bf16.mxu0 0
  %2334 = vmatpush1.bf16.msra.mxu0 0
  %2335 = vmatprep.subr.bf16.mxu0 0
  %2336 = vmatpush1.bf16.msra.mxu0 0
  %2337 = vmatprep.subr.bf16.mxu0 0
  %2338 = vmatpush1.bf16.msra.mxu0 0
  %2339 = vmatprep.subr.bf16.mxu0 0
  %2340 = vmatpush1.bf16.msra.mxu0 0
  %2341 = vmatprep.subr.bf16.mxu0 0
  %2342 = vmatpush1.bf16.msra.mxu0 0
  %2343 = vmatprep.subr.bf16.mxu0 0
  %2344 = vmatpush1.bf16.msra.mxu0 0
  %2345 = vmatprep.subr.bf16.mxu0 0
  %2346 = vmatpush1.bf16.msra.mxu0 0
  %2347 = vmatprep.subr.bf16.mxu0 0
  %2348 = vmatpush1.bf16.msra.mxu0 0
  %2349 = vmatprep.mubr.bf16.mxu0 0
  %2350 = vmatmul.mubr.bf16.gmra.mrb[0].mxu0 %v2312
  %v2351 = vpop.f32.mrb[0].mxu0
  %v2352 = vadd.f32 0.0, %v2351
  %v2353 = vpop.f32.mrb[0].mxu0
  %v2354 = vpop.f32.mrb[0].mxu0
  %v2355 = vpop.f32.mrb[0].mxu0
  %2356 = vdwg.mxu0
  %2358 = vrot.lane.b32.xlu0 %v2132, 8
  %v2359 = vpop.permute.xlu0 %2358
  %2362 = vrot.lane.b32.xlu0 %v2242, 16
  %v2363 = vpop.permute.xlu0 %2362
  %2366 = vrot.lane.b32.xlu0 %v2352, 24
  %v2367 = vpop.permute.xlu0 %2366
  %v2369 = vsel %vm159, %v2022, %v2359
  %v2370 = vsel %vm43, %v2369, %v2363
  %v2371 = vsel %vm611, %v2370, %v2367
  %v2372 = vld [vmem:[%s1 + $0x58] sm:$0xf]
  %v2373 = vld [vmem:[%s1 + $0x5c] sm:$0xf]
  %v2374 = vld [vmem:[%s1 + $0x60] sm:$0xf]
  %v2375 = vld [vmem:[%s1 + $0x64] sm:$0xf]
  %v2376 = vpack.c.bf16 %v2371, %v1917
  %v2377 = vld [vmem:[%s4 + $0x7] sm:$0x1]
  %v2378 = vlaneseq
  %v2379 = vshrl.u32 %v2378, 7
  %v2380 = vsub.s32 0, %v2379
  %v2381 = vrot.slane %v2377, %v2380
  %v2386 = vunpack.c.l.b16 %v2372
  %v2387 = vunpack.c.l.b16 %v2373
  %v2388 = vunpack.c.l.b16 %v2374
  %v2389 = vunpack.c.l.b16 %v2375
  %v2390 = vpack.c.b16 %v2387, %v2386
  %v2391 = vpack.c.b16 %v2389, %v2388
  %v2395 = vsel %vm110, %v2376, 0
  %2397 = vmatprep.subr.bf16.mxu0 0
  %2398 = vmatpush1.bf16.msra.mxu0 %v2390
  %2399 = vmatprep.subr.bf16.mxu0 0
  %2400 = vmatpush1.bf16.msra.mxu0 %v2391
  %2401 = vmatprep.subr.bf16.mxu0 0
  %2402 = vmatpush1.bf16.msra.mxu0 0
  %2403 = vmatprep.subr.bf16.mxu0 0
  %2404 = vmatpush1.bf16.msra.mxu0 0
  %2405 = vmatprep.subr.bf16.mxu0 0
  %2406 = vmatpush1.bf16.msra.mxu0 0
  %2407 = vmatprep.subr.bf16.mxu0 0
  %2408 = vmatpush1.bf16.msra.mxu0 0
  %2409 = vmatprep.subr.bf16.mxu0 0
  %2410 = vmatpush1.bf16.msra.mxu0 0
  %2411 = vmatprep.subr.bf16.mxu0 0
  %2412 = vmatpush1.bf16.msra.mxu0 0
  %2413 = vmatprep.subr.bf16.mxu0 0
  %2414 = vmatpush1.bf16.msra.mxu0 0
  %2415 = vmatprep.subr.bf16.mxu0 0
  %2416 = vmatpush1.bf16.msra.mxu0 0
  %2417 = vmatprep.subr.bf16.mxu0 0
  %2418 = vmatpush1.bf16.msra.mxu0 0
  %2419 = vmatprep.subr.bf16.mxu0 0
  %2420 = vmatpush1.bf16.msra.mxu0 0
  %2421 = vmatprep.subr.bf16.mxu0 0
  %2422 = vmatpush1.bf16.msra.mxu0 0
  %2423 = vmatprep.subr.bf16.mxu0 0
  %2424 = vmatpush1.bf16.msra.mxu0 0
  %2425 = vmatprep.subr.bf16.mxu0 0
  %2426 = vmatpush1.bf16.msra.mxu0 0
  %2427 = vmatprep.subr.bf16.mxu0 0
  %2428 = vmatpush1.bf16.msra.mxu0 0
  %2429 = vmatprep.mubr.bf16.mxu0 0
  %2430 = vmatmul.mubr.bf16.gmra.mrb[0].mxu0 %v2395
  %v2431 = vpop.f32.mrb[0].mxu0
  %v2432 = vadd.f32 %v2381, %v2431
  %v2433 = vpop.f32.mrb[0].mxu0
  %v2434 = vpop.f32.mrb[0].mxu0
  %v2435 = vadd.f32 %v2381, %v2434
  %v2436 = vpop.f32.mrb[0].mxu0
  %2437 = vdwg.mxu0
  %v2438 = vadd.f32 %v1395, %v2432
  %v2439 = vadd.f32 %v1396, %v2435
  %v2440 = vld [vmem:[%s4 + $0x9] sm:$0x1]
  %v2441 = vld [vmem:[%s4 + $0xa] sm:$0x1]
  %v2442 = vsel %vm110, %v2438, 0.0
  %2443 = vadd.xlane.f32.xlu0 %v2442
  %v2444 = vpop.xlane.xlu0 %2443
  %v2445 = vsel %vm110, %v2439, 0.0
  %2446 = vadd.xlane.f32.xlu0 %v2445
  %v2447 = vpop.xlane.xlu0 %2446
  %v2448 = vmul.f32 %v2444, %v1143
  %v2449 = vmul.f32 %v2447, %v1143
  %v2450 = vsub.f32 %v2438, %v2448
  %v2451 = vsub.f32 %v2439, %v2449
  %v2452 = vmul.f32 %v2450, %v2450
  %v2453 = vmul.f32 %v2451, %v2451
  %v2454 = vsel %vm110, %v2452, 0.0
  %2455 = vadd.xlane.f32.xlu0 %v2454
  %v2456 = vpop.xlane.xlu0 %2455
  %v2457 = vsel %vm110, %v2453, 0.0
  %2458 = vadd.xlane.f32.xlu0 %v2457
  %v2459 = vpop.xlane.xlu0 %2458
  %v2460 = vmul.f32 %v2456, %v1143
  %v2461 = vmul.f32 %v2459, %v1143
  %v2462 = vadd.f32 %v2460, 1e-05
  %v2463 = vadd.f32 %v2461, 1e-05
  %v2464 = vrsqrt.pop %v2462
  %v2465 = vrsqrt.pop %v2463
  %v2466 = vmul.f32 %v2450, %v2464
  %v2467 = vmul.f32 %v2451, %v2465
  %v2468 = vlaneseq
  %v2469 = vshrl.u32 %v2468, 7
  %v2470 = vsub.s32 0, %v2469
  %v2471 = vrot.slane %v2440, %v2470
  %v2472 = vmul.f32 %v2466, %v2471
  %v2473 = vmul.f32 %v2467, %v2471
  %v2474 = vlaneseq
  %v2475 = vshrl.u32 %v2474, 7
  %v2476 = vsub.s32 0, %v2475
  %v2477 = vrot.slane %v2441, %v2476
  %v2478 = vadd.f32 %v2472, %v2477
  %v2479 = vadd.f32 %v2473, %v2477
  %v2480 = vld [vmem:[%s3 + $0x10] sm:$0xf]
  %v2481 = vld [vmem:[%s3 + $0x14] sm:$0xf]
  %v2482 = vld [vmem:[%s3 + $0x18] sm:$0xf]
  %v2483 = vld [vmem:[%s3 + $0x1c] sm:$0xf]
  %v2484 = vpack.c.bf16 %v2479, %v2478
  %v2485 = vld [vmem:[%s6 + $0x1] sm:$0x1]
  %v2486 = vlaneseq
  %v2487 = vshrl.u32 %v2486, 7
  %v2488 = vsub.s32 0, %v2487
  %v2489 = vrot.slane %v2485, %v2488
  %v2494 = vunpack.c.l.b16 %v2480
  %v2495 = vunpack.c.l.b16 %v2481
  %v2496 = vunpack.c.l.b16 %v2482
  %v2497 = vunpack.c.l.b16 %v2483
  %v2498 = vpack.c.b16 %v2495, %v2494
  %v2499 = vpack.c.b16 %v2497, %v2496
  %v2503 = vsel %vm110, %v2484, 0
  %2505 = vmatprep.subr.bf16.mxu0 0
  %2506 = vmatpush1.bf16.msra.mxu0 %v2498
  %2507 = vmatprep.subr.bf16.mxu0 0
  %2508 = vmatpush1.bf16.msra.mxu0 %v2499
  %2509 = vmatprep.subr.bf16.mxu0 0
  %2510 = vmatpush1.bf16.msra.mxu0 0
  %2511 = vmatprep.subr.bf16.mxu0 0
  %2512 = vmatpush1.bf16.msra.mxu0 0
  %2513 = vmatprep.subr.bf16.mxu0 0
  %2514 = vmatpush1.bf16.msra.mxu0 0
  %2515 = vmatprep.subr.bf16.mxu0 0
  %2516 = vmatpush1.bf16.msra.mxu0 0
  %2517 = vmatprep.subr.bf16.mxu0 0
  %2518 = vmatpush1.bf16.msra.mxu0 0
  %2519 = vmatprep.subr.bf16.mxu0 0
  %2520 = vmatpush1.bf16.msra.mxu0 0
  %2521 = vmatprep.subr.bf16.mxu0 0
  %2522 = vmatpush1.bf16.msra.mxu0 0
  %2523 = vmatprep.subr.bf16.mxu0 0
  %2524 = vmatpush1.bf16.msra.mxu0 0
  %2525 = vmatprep.subr.bf16.mxu0 0
  %2526 = vmatpush1.bf16.msra.mxu0 0
  %2527 = vmatprep.subr.bf16.mxu0 0
  %2528 = vmatpush1.bf16.msra.mxu0 0
  %2529 = vmatprep.subr.bf16.mxu0 0
  %2530 = vmatpush1.bf16.msra.mxu0 0
  %2531 = vmatprep.subr.bf16.mxu0 0
  %2532 = vmatpush1.bf16.msra.mxu0 0
  %2533 = vmatprep.subr.bf16.mxu0 0
  %2534 = vmatpush1.bf16.msra.mxu0 0
  %2535 = vmatprep.subr.bf16.mxu0 0
  %2536 = vmatpush1.bf16.msra.mxu0 0
  %2537 = vmatprep.mubr.bf16.mxu0 0
  %2538 = vmatmul.mubr.bf16.gmra.mrb[0].mxu0 %v2503
  %v2539 = vpop.f32.mrb[0].mxu0
  %v2540 = vadd.f32 %v2489, %v2539
  %v2541 = vpop.f32.mrb[0].mxu0
  %v2542 = vpop.f32.mrb[0].mxu0
  %v2543 = vadd.f32 %v2489, %v2542
  %v2544 = vpop.f32.mrb[0].mxu0
  %2545 = vdwg.mxu0
  %v2546 = vmax.f32 %v2540, 0.0
  %v2547 = vmax.f32 %v2543, 0.0
  %v2548 = vld [vmem:[%s1 + $0x68] sm:$0xf]
  %v2549 = vld [vmem:[%s1 + $0x6c] sm:$0xf]
  %v2550 = vld [vmem:[%s1 + $0x70] sm:$0xf]
  %v2551 = vld [vmem:[%s1 + $0x74] sm:$0xf]
  %v2552 = vld [vmem:[%s1 + $0x78] sm:$0xf]
  %v2553 = vld [vmem:[%s1 + $0x7c] sm:$0xf]
  %v2554 = vld [vmem:[%s1 + $0x80] sm:$0xf]
  %v2555 = vld [vmem:[%s1 + $0x84] sm:$0xf]
  %v2556 = vld [vmem:[%s1 + $0x88] sm:$0xf]
  %v2557 = vld [vmem:[%s1 + $0x8c] sm:$0xf]
  %v2558 = vld [vmem:[%s1 + $0x90] sm:$0xf]
  %v2559 = vld [vmem:[%s1 + $0x94] sm:$0xf]
  %v2560 = vld [vmem:[%s1 + $0x98] sm:$0xf]
  %v2561 = vld [vmem:[%s1 + $0x9c] sm:$0xf]
  %v2562 = vld [vmem:[%s1 + $0xa0] sm:$0xf]
  %v2563 = vld [vmem:[%s1 + $0xa4] sm:$0xf]
  %v2564 = vpack.c.bf16 %v2547, %v2546
  %v2565 = vld [vmem:[%s4 + $0x8] sm:$0x1]
  %v2566 = vlaneseq
  %v2567 = vshrl.u32 %v2566, 7
  %v2568 = vsub.s32 0, %v2567
  %v2569 = vrot.slane %v2565, %v2568
  %v2586 = vunpack.c.l.b16 %v2548
  %v2587 = vunpack.c.l.b16 %v2549
  %v2588 = vunpack.c.l.b16 %v2550
  %v2589 = vunpack.c.l.b16 %v2551
  %v2590 = vunpack.c.l.b16 %v2552
  %v2591 = vunpack.c.l.b16 %v2553
  %v2592 = vunpack.c.l.b16 %v2554
  %v2593 = vunpack.c.l.b16 %v2555
  %v2594 = vunpack.c.l.b16 %v2556
  %v2595 = vunpack.c.l.b16 %v2557
  %v2596 = vunpack.c.l.b16 %v2558
  %v2597 = vunpack.c.l.b16 %v2559
  %v2598 = vunpack.c.l.b16 %v2560
  %v2599 = vunpack.c.l.b16 %v2561
  %v2600 = vunpack.c.l.b16 %v2562
  %v2601 = vunpack.c.l.b16 %v2563
  %v2602 = vpack.c.b16 %v2587, %v2586
  %v2603 = vpack.c.b16 %v2589, %v2588
  %v2604 = vpack.c.b16 %v2591, %v2590
  %v2605 = vpack.c.b16 %v2593, %v2592
  %v2606 = vpack.c.b16 %v2595, %v2594
  %v2607 = vpack.c.b16 %v2597, %v2596
  %v2608 = vpack.c.b16 %v2599, %v2598
  %v2609 = vpack.c.b16 %v2601, %v2600
  %2618 = vmatprep.subr.bf16.mxu0 0
  %2619 = vmatpush1.bf16.msra.mxu0 %v2602
  %2620 = vmatprep.subr.bf16.mxu0 0
  %2621 = vmatpush1.bf16.msra.mxu0 %v2603
  %2622 = vmatprep.subr.bf16.mxu0 0
  %2623 = vmatpush1.bf16.msra.mxu0 %v2604
  %2624 = vmatprep.subr.bf16.mxu0 0
  %2625 = vmatpush1.bf16.msra.mxu0 %v2605
  %2626 = vmatprep.subr.bf16.mxu0 0
  %2627 = vmatpush1.bf16.msra.mxu0 %v2606
  %2628 = vmatprep.subr.bf16.mxu0 0
  %2629 = vmatpush1.bf16.msra.mxu0 %v2607
  %2630 = vmatprep.subr.bf16.mxu0 0
  %2631 = vmatpush1.bf16.msra.mxu0 %v2608
  %2632 = vmatprep.subr.bf16.mxu0 0
  %2633 = vmatpush1.bf16.msra.mxu0 %v2609
  %2634 = vmatprep.subr.bf16.mxu0 0
  %2635 = vmatpush1.bf16.msra.mxu0 0
  %2636 = vmatprep.subr.bf16.mxu0 0
  %2637 = vmatpush1.bf16.msra.mxu0 0
  %2638 = vmatprep.subr.bf16.mxu0 0
  %2639 = vmatpush1.bf16.msra.mxu0 0
  %2640 = vmatprep.subr.bf16.mxu0 0
  %2641 = vmatpush1.bf16.msra.mxu0 0
  %2642 = vmatprep.subr.bf16.mxu0 0
  %2643 = vmatpush1.bf16.msra.mxu0 0
  %2644 = vmatprep.subr.bf16.mxu0 0
  %2645 = vmatpush1.bf16.msra.mxu0 0
  %2646 = vmatprep.subr.bf16.mxu0 0
  %2647 = vmatpush1.bf16.msra.mxu0 0
  %2648 = vmatprep.subr.bf16.mxu0 0
  %2649 = vmatpush1.bf16.msra.mxu0 0
  %2650 = vmatprep.mubr.bf16.mxu0 0
  %2651 = vmatmul.mubr.bf16.gmra.mrb[0].mxu0 %v2564
  %v2652 = vpop.f32.mrb[0].mxu0
  %v2653 = vadd.f32 %v2569, %v2652
  %v2654 = vpop.f32.mrb[0].mxu0
  %v2655 = vpop.f32.mrb[0].mxu0
  %v2656 = vadd.f32 %v2569, %v2655
  %v2657 = vpop.f32.mrb[0].mxu0
  %2658 = vdwg.mxu0
  %v2659 = vadd.f32 %v2478, %v2653
  %v2660 = vadd.f32 %v2479, %v2656
  %v2661 = vld [vmem:[%s4 + $0xb] sm:$0x1]
  %v2662 = vld [vmem:[%s4 + $0xc] sm:$0x1]
  %v2663 = vsel %vm110, %v2659, 0.0
  %2664 = vadd.xlane.f32.xlu0 %v2663
  %v2665 = vpop.xlane.xlu0 %2664
  %v2666 = vsel %vm110, %v2660, 0.0
  %2667 = vadd.xlane.f32.xlu0 %v2666
  %v2668 = vpop.xlane.xlu0 %2667
  %v2669 = vmul.f32 %v2665, %v1143
  %v2670 = vmul.f32 %v2668, %v1143
  %v2671 = vsub.f32 %v2659, %v2669
  %v2672 = vsub.f32 %v2660, %v2670
  %v2673 = vmul.f32 %v2671, %v2671
  %v2674 = vmul.f32 %v2672, %v2672
  %v2675 = vsel %vm110, %v2673, 0.0
  %2676 = vadd.xlane.f32.xlu0 %v2675
  %v2677 = vpop.xlane.xlu0 %2676
  %v2678 = vsel %vm110, %v2674, 0.0
  %2679 = vadd.xlane.f32.xlu0 %v2678
  %v2680 = vpop.xlane.xlu0 %2679
  %v2681 = vmul.f32 %v2677, %v1143
  %v2682 = vmul.f32 %v2680, %v1143
  %v2683 = vadd.f32 %v2681, 1e-05
  %v2684 = vadd.f32 %v2682, 1e-05
  %v2685 = vrsqrt.pop %v2683
  %v2686 = vrsqrt.pop %v2684
  %v2687 = vmul.f32 %v2671, %v2685
  %v2688 = vmul.f32 %v2672, %v2686
  %v2689 = vlaneseq
  %v2690 = vshrl.u32 %v2689, 7
  %v2691 = vsub.s32 0, %v2690
  %v2692 = vrot.slane %v2661, %v2691
  %v2693 = vmul.f32 %v2687, %v2692
  %v2694 = vmul.f32 %v2688, %v2692
  %v2695 = vlaneseq
  %v2696 = vshrl.u32 %v2695, 7
  %v2697 = vsub.s32 0, %v2696
  %v2698 = vrot.slane %v2662, %v2697
  %v2699 = vadd.f32 %v2693, %v2698
  %v2700 = vadd.f32 %v2694, %v2698
  %v2701 = vld [vmem:[%s4 + $0x1f] sm:$0x1]
  %v2702 = vld [vmem:[%s4 + $0x20] sm:$0x1]
  %v2703 = vsel %vm110, %v2699, 0.0
  %2704 = vadd.xlane.f32.xlu0 %v2703
  %v2705 = vpop.xlane.xlu0 %2704
  %v2706 = vsel %vm110, %v2700, 0.0
  %2707 = vadd.xlane.f32.xlu0 %v2706
  %v2708 = vpop.xlane.xlu0 %2707
  %v2709 = vmul.f32 %v2705, %v1143
  %v2710 = vmul.f32 %v2708, %v1143
  %v2711 = vsub.f32 %v2699, %v2709
  %v2712 = vsub.f32 %v2700, %v2710
  %v2713 = vmul.f32 %v2711, %v2711
  %v2714 = vmul.f32 %v2712, %v2712
  %v2715 = vsel %vm110, %v2713, 0.0
  %2716 = vadd.xlane.f32.xlu0 %v2715
  %v2717 = vpop.xlane.xlu0 %2716
  %v2718 = vsel %vm110, %v2714, 0.0
  %2719 = vadd.xlane.f32.xlu0 %v2718
  %v2720 = vpop.xlane.xlu0 %2719
  %v2721 = vmul.f32 %v2717, %v1143
  %v2722 = vmul.f32 %v2720, %v1143
  %v2723 = vadd.f32 %v2721, 1e-05
  %v2724 = vadd.f32 %v2722, 1e-05
  %v2725 = vrsqrt.pop %v2723
  %v2726 = vrsqrt.pop %v2724
  %v2727 = vmul.f32 %v2711, %v2725
  %v2728 = vmul.f32 %v2712, %v2726
  %v2729 = vlaneseq
  %v2730 = vshrl.u32 %v2729, 7
  %v2731 = vsub.s32 0, %v2730
  %v2732 = vrot.slane %v2701, %v2731
  %v2733 = vmul.f32 %v2727, %v2732
  %v2734 = vmul.f32 %v2728, %v2732
  %v2735 = vlaneseq
  %v2736 = vshrl.u32 %v2735, 7
  %v2737 = vsub.s32 0, %v2736
  %v2738 = vrot.slane %v2702, %v2737
  %v2739 = vadd.f32 %v2733, %v2738
  %v2740 = vadd.f32 %v2734, %v2738
  %v2741 = vld [vmem:[%s2 + $0x20] sm:$0xf]
  %v2742 = vld [vmem:[%s2 + $0x24] sm:$0xf]
  %v2743 = vld [vmem:[%s2 + $0x28] sm:$0xf]
  %v2744 = vld [vmem:[%s2 + $0x2c] sm:$0xf]
  %v2745 = vld [vmem:[%s5 + $0x2] sm:$0x1]
  %v2746 = vlaneseq
  %v2747 = vshrl.u32 %v2746, 7
  %v2748 = vsub.s32 0, %v2747
  %v2749 = vrot.slane %v2745, %v2748
  %v2754 = vunpack.c.l.b16 %v2741
  %v2755 = vunpack.c.l.b16 %v2742
  %v2756 = vunpack.c.l.b16 %v2743
  %v2757 = vunpack.c.l.b16 %v2744
  %v2758 = vpack.c.b16 %v2755, %v2754
  %v2759 = vpack.c.b16 %v2757, %v2756
  %2762 = vmatprep.subr.bf16.mxu0 0
  %2763 = vmatpush1.bf16.msra.mxu0 %v2758
  %2764 = vmatprep.subr.bf16.mxu0 0
  %2765 = vmatpush1.bf16.msra.mxu0 %v2759
  %2766 = vmatprep.subr.bf16.mxu0 0
  %2767 = vmatpush1.bf16.msra.mxu0 0
  %2768 = vmatprep.subr.bf16.mxu0 0
  %2769 = vmatpush1.bf16.msra.mxu0 0
  %2770 = vmatprep.subr.bf16.mxu0 0
  %2771 = vmatpush1.bf16.msra.mxu0 0
  %2772 = vmatprep.subr.bf16.mxu0 0
  %2773 = vmatpush1.bf16.msra.mxu0 0
  %2774 = vmatprep.subr.bf16.mxu0 0
  %2775 = vmatpush1.bf16.msra.mxu0 0
  %2776 = vmatprep.subr.bf16.mxu0 0
  %2777 = vmatpush1.bf16.msra.mxu0 0
  %2778 = vmatprep.subr.bf16.mxu0 0
  %2779 = vmatpush1.bf16.msra.mxu0 0
  %2780 = vmatprep.subr.bf16.mxu0 0
  %2781 = vmatpush1.bf16.msra.mxu0 0
  %2782 = vmatprep.subr.bf16.mxu0 0
  %2783 = vmatpush1.bf16.msra.mxu0 0
  %2784 = vmatprep.subr.bf16.mxu0 0
  %2785 = vmatpush1.bf16.msra.mxu0 0
  %2786 = vmatprep.subr.bf16.mxu0 0
  %2787 = vmatpush1.bf16.msra.mxu0 0
  %2788 = vmatprep.subr.bf16.mxu0 0
  %2789 = vmatpush1.bf16.msra.mxu0 0
  %2790 = vmatprep.subr.bf16.mxu0 0
  %2791 = vmatpush1.bf16.msra.mxu0 0
  %2792 = vmatprep.subr.bf16.mxu0 0
  %2793 = vmatpush1.bf16.msra.mxu0 0
  %2794 = vmatprep.mubr.bf16.mxu0 0
  %2795 = vmatmul.mubr.bf16.gmra.mrb[0].mxu0 %v112
  %v2796 = vpop.f32.mrb[0].mxu0
  %v2797 = vadd.f32 %v2749, %v2796
  %v2798 = vpop.f32.mrb[0].mxu0
  %v2799 = vpop.f32.mrb[0].mxu0
  %v2800 = vadd.f32 %v2749, %v2799
  %v2801 = vpop.f32.mrb[0].mxu0
  %2802 = vdwg.mxu0
  %v2803 = vpack.c.bf16 %v2800, %v2797
  %2805 = vrot.lane.b32.xlu0 %v2803, 96
  %v2806 = vpop.permute.xlu0 %2805
  %v2808 = vsel %vm159, %v2803, 0
  %v2811 = vsel %vm159, %v2806, 0
  %2813 = vmatprep.subr.bf16.mxu0 0
  %2814 = vmatpush1.bf16.xpose.msra.mxu0 %v2811
  %2815 = vmatprep.subr.bf16.mxu0 0
  %2816 = vmatpush1.bf16.xpose.msra.mxu0 0
  %2817 = vmatprep.subr.bf16.mxu0 0
  %2818 = vmatpush1.bf16.xpose.msra.mxu0 0
  %2819 = vmatprep.subr.bf16.mxu0 0
  %2820 = vmatpush1.bf16.xpose.msra.mxu0 0
  %2821 = vmatprep.subr.bf16.mxu0 0
  %2822 = vmatpush1.bf16.xpose.msra.mxu0 0
  %2823 = vmatprep.subr.bf16.mxu0 0
  %2824 = vmatpush1.bf16.xpose.msra.mxu0 0
  %2825 = vmatprep.subr.bf16.mxu0 0
  %2826 = vmatpush1.bf16.xpose.msra.mxu0 0
  %2827 = vmatprep.subr.bf16.mxu0 0
  %2828 = vmatpush1.bf16.xpose.msra.mxu0 0
  %2829 = vmatprep.subr.bf16.mxu0 0
  %2830 = vmatpush1.bf16.xpose.msra.mxu0 0
  %2831 = vmatprep.subr.bf16.mxu0 0
  %2832 = vmatpush1.bf16.xpose.msra.mxu0 0
  %2833 = vmatprep.subr.bf16.mxu0 0
  %2834 = vmatpush1.bf16.xpose.msra.mxu0 0
  %2835 = vmatprep.subr.bf16.mxu0 0
  %2836 = vmatpush1.bf16.xpose.msra.mxu0 0
  %2837 = vmatprep.subr.bf16.mxu0 0
  %2838 = vmatpush1.bf16.xpose.msra.mxu0 0
  %2839 = vmatprep.subr.bf16.mxu0 0
  %2840 = vmatpush1.bf16.xpose.msra.mxu0 0
  %2841 = vmatprep.subr.bf16.mxu0 0
  %2842 = vmatpush1.bf16.xpose.msra.mxu0 0
  %2843 = vmatprep.subr.bf16.mxu0 0
  %2844 = vmatpush1.bf16.xpose.msra.mxu0 0
  %2845 = vmatprep.mubr.bf16.mxu0 0
  %2846 = vmatmul.mubr.bf16.gmra.mrb[0].mxu0 %v2808
  %v2847 = vpop.f32.mrb[0].mxu0
  %v2848 = vadd.f32 0.0, %v2847
  %v2849 = vpop.f32.mrb[0].mxu0
  %v2850 = vpop.f32.mrb[0].mxu0
  %v2851 = vpop.f32.mrb[0].mxu0
  %2852 = vdwg.mxu0
  %v2853 = vsel %vm159, %v2848, -inf
  %2854 = vmax.xlane.f32.xlu0 %v2853
  %v2855 = vpop.xlane.xlu0 %2854
  %v2856 = vsub.f32 %v2848, %v2855
  %v2857 = vmul.f32 %v2856, 1.442695
  %v2858 = vpow.pop %v2857
  %v2859 = vsel %vm159, %v2858, 0.0
  %2860 = vadd.xlane.f32.xlu0 %v2859
  %v2861 = vpop.xlane.xlu0 %2860
  %v2862 = vrcp.pop %v2861
  %v2863 = vmul.f32 %v2858, %v2862
  %v2864 = vpack.c.bf16 %v2863, %v2863
  %2865 = vrot.lane.b32.xlu0 %v2803, 64
  %v2866 = vpop.permute.xlu0 %2865
  %v2868 = vsel %vm159, %v2864, 0
  %v2871 = vsel %vm223, %v2866, 0
  %2873 = vmatprep.subr.bf16.mxu0 0
  %2874 = vmatpush1.bf16.msra.mxu0 %v2871
  %2875 = vmatprep.subr.bf16.mxu0 0
  %2876 = vmatpush1.bf16.msra.mxu0 0
  %2877 = vmatprep.subr.bf16.mxu0 0
  %2878 = vmatpush1.bf16.msra.mxu0 0
  %2879 = vmatprep.subr.bf16.mxu0 0
  %2880 = vmatpush1.bf16.msra.mxu0 0
  %2881 = vmatprep.subr.bf16.mxu0 0
  %2882 = vmatpush1.bf16.msra.mxu0 0
  %2883 = vmatprep.subr.bf16.mxu0 0
  %2884 = vmatpush1.bf16.msra.mxu0 0
  %2885 = vmatprep.subr.bf16.mxu0 0
  %2886 = vmatpush1.bf16.msra.mxu0 0
  %2887 = vmatprep.subr.bf16.mxu0 0
  %2888 = vmatpush1.bf16.msra.mxu0 0
  %2889 = vmatprep.subr.bf16.mxu0 0
  %2890 = vmatpush1.bf16.msra.mxu0 0
  %2891 = vmatprep.subr.bf16.mxu0 0
  %2892 = vmatpush1.bf16.msra.mxu0 0
  %2893 = vmatprep.subr.bf16.mxu0 0
  %2894 = vmatpush1.bf16.msra.mxu0 0
  %2895 = vmatprep.subr.bf16.mxu0 0
  %2896 = vmatpush1.bf16.msra.mxu0 0
  %2897 = vmatprep.subr.bf16.mxu0 0
  %2898 = vmatpush1.bf16.msra.mxu0 0
  %2899 = vmatprep.subr.bf16.mxu0 0
  %2900 = vmatpush1.bf16.msra.mxu0 0
  %2901 = vmatprep.subr.bf16.mxu0 0
  %2902 = vmatpush1.bf16.msra.mxu0 0
  %2903 = vmatprep.subr.bf16.mxu0 0
  %2904 = vmatpush1.bf16.msra.mxu0 0
  %2905 = vmatprep.mubr.bf16.mxu0 0
  %2906 = vmatmul.mubr.bf16.gmra.mrb[0].mxu0 %v2868
  %v2907 = vpop.f32.mrb[0].mxu0
  %v2908 = vadd.f32 0.0, %v2907
  %v2909 = vpop.f32.mrb[0].mxu0
  %v2910 = vpop.f32.mrb[0].mxu0
  %v2911 = vpop.f32.mrb[0].mxu0
  %2912 = vdwg.mxu0
  %2913 = vrot.lane.b32.xlu0 %v2803, 120
  %v2914 = vpop.permute.xlu0 %2913
  %2915 = vrot.lane.b32.xlu0 %v2803, 88
  %v2916 = vpop.permute.xlu0 %2915
  %v2918 = vsel %vm159, %v2914, 0
  %v2921 = vsel %vm159, %v2916, 0
  %2923 = vmatprep.subr.bf16.mxu0 0
  %2924 = vmatpush1.bf16.xpose.msra.mxu0 %v2921
  %2925 = vmatprep.subr.bf16.mxu0 0
  %2926 = vmatpush1.bf16.xpose.msra.mxu0 0
  %2927 = vmatprep.subr.bf16.mxu0 0
  %2928 = vmatpush1.bf16.xpose.msra.mxu0 0
  %2929 = vmatprep.subr.bf16.mxu0 0
  %2930 = vmatpush1.bf16.xpose.msra.mxu0 0
  %2931 = vmatprep.subr.bf16.mxu0 0
  %2932 = vmatpush1.bf16.xpose.msra.mxu0 0
  %2933 = vmatprep.subr.bf16.mxu0 0
  %2934 = vmatpush1.bf16.xpose.msra.mxu0 0
  %2935 = vmatprep.subr.bf16.mxu0 0
  %2936 = vmatpush1.bf16.xpose.msra.mxu0 0
  %2937 = vmatprep.subr.bf16.mxu0 0
  %2938 = vmatpush1.bf16.xpose.msra.mxu0 0
  %2939 = vmatprep.subr.bf16.mxu0 0
  %2940 = vmatpush1.bf16.xpose.msra.mxu0 0
  %2941 = vmatprep.subr.bf16.mxu0 0
  %2942 = vmatpush1.bf16.xpose.msra.mxu0 0
  %2943 = vmatprep.subr.bf16.mxu0 0
  %2944 = vmatpush1.bf16.xpose.msra.mxu0 0
  %2945 = vmatprep.subr.bf16.mxu0 0
  %2946 = vmatpush1.bf16.xpose.msra.mxu0 0
  %2947 = vmatprep.subr.bf16.mxu0 0
  %2948 = vmatpush1.bf16.xpose.msra.mxu0 0
  %2949 = vmatprep.subr.bf16.mxu0 0
  %2950 = vmatpush1.bf16.xpose.msra.mxu0 0
  %2951 = vmatprep.subr.bf16.mxu0 0
  %2952 = vmatpush1.bf16.xpose.msra.mxu0 0
  %2953 = vmatprep.subr.bf16.mxu0 0
  %2954 = vmatpush1.bf16.xpose.msra.mxu0 0
  %2955 = vmatprep.mubr.bf16.mxu0 0
  %2956 = vmatmul.mubr.bf16.gmra.mrb[0].mxu0 %v2918
  %v2957 = vpop.f32.mrb[0].mxu0
  %v2958 = vadd.f32 0.0, %v2957
  %v2959 = vpop.f32.mrb[0].mxu0
  %v2960 = vpop.f32.mrb[0].mxu0
  %v2961 = vpop.f32.mrb[0].mxu0
  %2962 = vdwg.mxu0
  %v2963 = vsel %vm159, %v2958, -inf
  %2964 = vmax.xlane.f32.xlu0 %v2963
  %v2965 = vpop.xlane.xlu0 %2964
  %v2966 = vsub.f32 %v2958, %v2965
  %v2967 = vmul.f32 %v2966, 1.442695
  %v2968 = vpow.pop %v2967
  %v2969 = vsel %vm159, %v2968, 0.0
  %2970 = vadd.xlane.f32.xlu0 %v2969
  %v2971 = vpop.xlane.xlu0 %2970
  %v2972 = vrcp.pop %v2971
  %v2973 = vmul.f32 %v2968, %v2972
  %v2974 = vpack.c.bf16 %v2973, %v2973
  %2975 = vrot.lane.b32.xlu0 %v2803, 56
  %v2976 = vpop.permute.xlu0 %2975
  %v2978 = vsel %vm159, %v2974, 0
  %v2981 = vsel %vm223, %v2976, 0
  %2983 = vmatprep.subr.bf16.mxu0 0
  %2984 = vmatpush1.bf16.msra.mxu0 %v2981
  %2985 = vmatprep.subr.bf16.mxu0 0
  %2986 = vmatpush1.bf16.msra.mxu0 0
  %2987 = vmatprep.subr.bf16.mxu0 0
  %2988 = vmatpush1.bf16.msra.mxu0 0
  %2989 = vmatprep.subr.bf16.mxu0 0
  %2990 = vmatpush1.bf16.msra.mxu0 0
  %2991 = vmatprep.subr.bf16.mxu0 0
  %2992 = vmatpush1.bf16.msra.mxu0 0
  %2993 = vmatprep.subr.bf16.mxu0 0
  %2994 = vmatpush1.bf16.msra.mxu0 0
  %2995 = vmatprep.subr.bf16.mxu0 0
  %2996 = vmatpush1.bf16.msra.mxu0 0
  %2997 = vmatprep.subr.bf16.mxu0 0
  %2998 = vmatpush1.bf16.msra.mxu0 0
  %2999 = vmatprep.subr.bf16.mxu0 0
  %3000 = vmatpush1.bf16.msra.mxu0 0
  %3001 = vmatprep.subr.bf16.mxu0 0
  %3002 = vmatpush1.bf16.msra.mxu0 0
  %3003 = vmatprep.subr.bf16.mxu0 0
  %3004 = vmatpush1.bf16.msra.mxu0 0
  %3005 = vmatprep.subr.bf16.mxu0 0
  %3006 = vmatpush1.bf16.msra.mxu0 0
  %3007 = vmatprep.subr.bf16.mxu0 0
  %3008 = vmatpush1.bf16.msra.mxu0 0
  %3009 = vmatprep.subr.bf16.mxu0 0
  %3010 = vmatpush1.bf16.msra.mxu0 0
  %3011 = vmatprep.subr.bf16.mxu0 0
  %3012 = vmatpush1.bf16.msra.mxu0 0
  %3013 = vmatprep.subr.bf16.mxu0 0
  %3014 = vmatpush1.bf16.msra.mxu0 0
  %3015 = vmatprep.mubr.bf16.mxu0 0
  %3016 = vmatmul.mubr.bf16.gmra.mrb[0].mxu0 %v2978
  %v3017 = vpop.f32.mrb[0].mxu0
  %v3018 = vadd.f32 0.0, %v3017
  %v3019 = vpop.f32.mrb[0].mxu0
  %v3020 = vpop.f32.mrb[0].mxu0
  %v3021 = vpop.f32.mrb[0].mxu0
  %3022 = vdwg.mxu0
  %3023 = vrot.lane.b32.xlu0 %v2803, 112
  %v3024 = vpop.permute.xlu0 %3023
  %3025 = vrot.lane.b32.xlu0 %v2803, 80
  %v3026 = vpop.permute.xlu0 %3025
  %v3028 = vsel %vm159, %v3024, 0
  %v3031 = vsel %vm159, %v3026, 0
  %3033 = vmatprep.subr.bf16.mxu0 0
  %3034 = vmatpush1.bf16.xpose.msra.mxu0 %v3031
  %3035 = vmatprep.subr.bf16.mxu0 0
  %3036 = vmatpush1.bf16.xpose.msra.mxu0 0
  %3037 = vmatprep.subr.bf16.mxu0 0
  %3038 = vmatpush1.bf16.xpose.msra.mxu0 0
  %3039 = vmatprep.subr.bf16.mxu0 0
  %3040 = vmatpush1.bf16.xpose.msra.mxu0 0
  %3041 = vmatprep.subr.bf16.mxu0 0
  %3042 = vmatpush1.bf16.xpose.msra.mxu0 0
  %3043 = vmatprep.subr.bf16.mxu0 0
  %3044 = vmatpush1.bf16.xpose.msra.mxu0 0
  %3045 = vmatprep.subr.bf16.mxu0 0
  %3046 = vmatpush1.bf16.xpose.msra.mxu0 0
  %3047 = vmatprep.subr.bf16.mxu0 0
  %3048 = vmatpush1.bf16.xpose.msra.mxu0 0
  %3049 = vmatprep.subr.bf16.mxu0 0
  %3050 = vmatpush1.bf16.xpose.msra.mxu0 0
  %3051 = vmatprep.subr.bf16.mxu0 0
  %3052 = vmatpush1.bf16.xpose.msra.mxu0 0
  %3053 = vmatprep.subr.bf16.mxu0 0
  %3054 = vmatpush1.bf16.xpose.msra.mxu0 0
  %3055 = vmatprep.subr.bf16.mxu0 0
  %3056 = vmatpush1.bf16.xpose.msra.mxu0 0
  %3057 = vmatprep.subr.bf16.mxu0 0
  %3058 = vmatpush1.bf16.xpose.msra.mxu0 0
  %3059 = vmatprep.subr.bf16.mxu0 0
  %3060 = vmatpush1.bf16.xpose.msra.mxu0 0
  %3061 = vmatprep.subr.bf16.mxu0 0
  %3062 = vmatpush1.bf16.xpose.msra.mxu0 0
  %3063 = vmatprep.subr.bf16.mxu0 0
  %3064 = vmatpush1.bf16.xpose.msra.mxu0 0
  %3065 = vmatprep.mubr.bf16.mxu0 0
  %3066 = vmatmul.mubr.bf16.gmra.mrb[0].mxu0 %v3028
  %v3067 = vpop.f32.mrb[0].mxu0
  %v3068 = vadd.f32 0.0, %v3067
  %v3069 = vpop.f32.mrb[0].mxu0
  %v3070 = vpop.f32.mrb[0].mxu0
  %v3071 = vpop.f32.mrb[0].mxu0
  %3072 = vdwg.mxu0
  %v3073 = vsel %vm159, %v3068, -inf
  %3074 = vmax.xlane.f32.xlu0 %v3073
  %v3075 = vpop.xlane.xlu0 %3074
  %v3076 = vsub.f32 %v3068, %v3075
  %v3077 = vmul.f32 %v3076, 1.442695
  %v3078 = vpow.pop %v3077
  %v3079 = vsel %vm159, %v3078, 0.0
  %3080 = vadd.xlane.f32.xlu0 %v3079
  %v3081 = vpop.xlane.xlu0 %3080
  %v3082 = vrcp.pop %v3081
  %v3083 = vmul.f32 %v3078, %v3082
  %v3084 = vpack.c.bf16 %v3083, %v3083
  %3085 = vrot.lane.b32.xlu0 %v2803, 48
  %v3086 = vpop.permute.xlu0 %3085
  %v3088 = vsel %vm159, %v3084, 0
  %v3091 = vsel %vm223, %v3086, 0
  %3093 = vmatprep.subr.bf16.mxu0 0
  %3094 = vmatpush1.bf16.msra.mxu0 %v3091
  %3095 = vmatprep.subr.bf16.mxu0 0
  %3096 = vmatpush1.bf16.msra.mxu0 0
  %3097 = vmatprep.subr.bf16.mxu0 0
  %3098 = vmatpush1.bf16.msra.mxu0 0
  %3099 = vmatprep.subr.bf16.mxu0 0
  %3100 = vmatpush1.bf16.msra.mxu0 0
  %3101 = vmatprep.subr.bf16.mxu0 0
  %3102 = vmatpush1.bf16.msra.mxu0 0
  %3103 = vmatprep.subr.bf16.mxu0 0
  %3104 = vmatpush1.bf16.msra.mxu0 0
  %3105 = vmatprep.subr.bf16.mxu0 0
  %3106 = vmatpush1.bf16.msra.mxu0 0
  %3107 = vmatprep.subr.bf16.mxu0 0
  %3108 = vmatpush1.bf16.msra.mxu0 0
  %3109 = vmatprep.subr.bf16.mxu0 0
  %3110 = vmatpush1.bf16.msra.mxu0 0
  %3111 = vmatprep.subr.bf16.mxu0 0
  %3112 = vmatpush1.bf16.msra.mxu0 0
  %3113 = vmatprep.subr.bf16.mxu0 0
  %3114 = vmatpush1.bf16.msra.mxu0 0
  %3115 = vmatprep.subr.bf16.mxu0 0
  %3116 = vmatpush1.bf16.msra.mxu0 0
  %3117 = vmatprep.subr.bf16.mxu0 0
  %3118 = vmatpush1.bf16.msra.mxu0 0
  %3119 = vmatprep.subr.bf16.mxu0 0
  %3120 = vmatpush1.bf16.msra.mxu0 0
  %3121 = vmatprep.subr.bf16.mxu0 0
  %3122 = vmatpush1.bf16.msra.mxu0 0
  %3123 = vmatprep.subr.bf16.mxu0 0
  %3124 = vmatpush1.bf16.msra.mxu0 0
  %3125 = vmatprep.mubr.bf16.mxu0 0
  %3126 = vmatmul.mubr.bf16.gmra.mrb[0].mxu0 %v3088
  %v3127 = vpop.f32.mrb[0].mxu0
  %v3128 = vadd.f32 0.0, %v3127
  %v3129 = vpop.f32.mrb[0].mxu0
  %v3130 = vpop.f32.mrb[0].mxu0
  %v3131 = vpop.f32.mrb[0].mxu0
  %3132 = vdwg.mxu0
  %3133 = vrot.lane.b32.xlu0 %v2803, 104
  %v3134 = vpop.permute.xlu0 %3133
  %3135 = vrot.lane.b32.xlu0 %v2803, 72
  %v3136 = vpop.permute.xlu0 %3135
  %v3138 = vsel %vm159, %v3134, 0
  %v3141 = vsel %vm159, %v3136, 0
  %3143 = vmatprep.subr.bf16.mxu0 0
  %3144 = vmatpush1.bf16.xpose.msra.mxu0 %v3141
  %3145 = vmatprep.subr.bf16.mxu0 0
  %3146 = vmatpush1.bf16.xpose.msra.mxu0 0
  %3147 = vmatprep.subr.bf16.mxu0 0
  %3148 = vmatpush1.bf16.xpose.msra.mxu0 0
  %3149 = vmatprep.subr.bf16.mxu0 0
  %3150 = vmatpush1.bf16.xpose.msra.mxu0 0
  %3151 = vmatprep.subr.bf16.mxu0 0
  %3152 = vmatpush1.bf16.xpose.msra.mxu0 0
  %3153 = vmatprep.subr.bf16.mxu0 0
  %3154 = vmatpush1.bf16.xpose.msra.mxu0 0
  %3155 = vmatprep.subr.bf16.mxu0 0
  %3156 = vmatpush1.bf16.xpose.msra.mxu0 0
  %3157 = vmatprep.subr.bf16.mxu0 0
  %3158 = vmatpush1.bf16.xpose.msra.mxu0 0
  %3159 = vmatprep.subr.bf16.mxu0 0
  %3160 = vmatpush1.bf16.xpose.msra.mxu0 0
  %3161 = vmatprep.subr.bf16.mxu0 0
  %3162 = vmatpush1.bf16.xpose.msra.mxu0 0
  %3163 = vmatprep.subr.bf16.mxu0 0
  %3164 = vmatpush1.bf16.xpose.msra.mxu0 0
  %3165 = vmatprep.subr.bf16.mxu0 0
  %3166 = vmatpush1.bf16.xpose.msra.mxu0 0
  %3167 = vmatprep.subr.bf16.mxu0 0
  %3168 = vmatpush1.bf16.xpose.msra.mxu0 0
  %3169 = vmatprep.subr.bf16.mxu0 0
  %3170 = vmatpush1.bf16.xpose.msra.mxu0 0
  %3171 = vmatprep.subr.bf16.mxu0 0
  %3172 = vmatpush1.bf16.xpose.msra.mxu0 0
  %3173 = vmatprep.subr.bf16.mxu0 0
  %3174 = vmatpush1.bf16.xpose.msra.mxu0 0
  %3175 = vmatprep.mubr.bf16.mxu0 0
  %3176 = vmatmul.mubr.bf16.gmra.mrb[0].mxu0 %v3138
  %v3177 = vpop.f32.mrb[0].mxu0
  %v3178 = vadd.f32 0.0, %v3177
  %v3179 = vpop.f32.mrb[0].mxu0
  %v3180 = vpop.f32.mrb[0].mxu0
  %v3181 = vpop.f32.mrb[0].mxu0
  %3182 = vdwg.mxu0
  %v3183 = vsel %vm159, %v3178, -inf
  %3184 = vmax.xlane.f32.xlu0 %v3183
  %v3185 = vpop.xlane.xlu0 %3184
  %v3186 = vsub.f32 %v3178, %v3185
  %v3187 = vmul.f32 %v3186, 1.442695
  %v3188 = vpow.pop %v3187
  %v3189 = vsel %vm159, %v3188, 0.0
  %3190 = vadd.xlane.f32.xlu0 %v3189
  %v3191 = vpop.xlane.xlu0 %3190
  %v3192 = vrcp.pop %v3191
  %v3193 = vmul.f32 %v3188, %v3192
  %v3194 = vpack.c.bf16 %v3193, %v3193
  %3195 = vrot.lane.b32.xlu0 %v2803, 40
  %v3196 = vpop.permute.xlu0 %3195
  %v3198 = vsel %vm159, %v3194, 0
  %v3201 = vsel %vm223, %v3196, 0
  %3203 = vmatprep.subr.bf16.mxu0 0
  %3204 = vmatpush1.bf16.msra.mxu0 %v3201
  %3205 = vmatprep.subr.bf16.mxu0 0
  %3206 = vmatpush1.bf16.msra.mxu0 0
  %3207 = vmatprep.subr.bf16.mxu0 0
  %3208 = vmatpush1.bf16.msra.mxu0 0
  %3209 = vmatprep.subr.bf16.mxu0 0
  %3210 = vmatpush1.bf16.msra.mxu0 0
  %3211 = vmatprep.subr.bf16.mxu0 0
  %3212 = vmatpush1.bf16.msra.mxu0 0
  %3213 = vmatprep.subr.bf16.mxu0 0
  %3214 = vmatpush1.bf16.msra.mxu0 0
  %3215 = vmatprep.subr.bf16.mxu0 0
  %3216 = vmatpush1.bf16.msra.mxu0 0
  %3217 = vmatprep.subr.bf16.mxu0 0
  %3218 = vmatpush1.bf16.msra.mxu0 0
  %3219 = vmatprep.subr.bf16.mxu0 0
  %3220 = vmatpush1.bf16.msra.mxu0 0
  %3221 = vmatprep.subr.bf16.mxu0 0
  %3222 = vmatpush1.bf16.msra.mxu0 0
  %3223 = vmatprep.subr.bf16.mxu0 0
  %3224 = vmatpush1.bf16.msra.mxu0 0
  %3225 = vmatprep.subr.bf16.mxu0 0
  %3226 = vmatpush1.bf16.msra.mxu0 0
  %3227 = vmatprep.subr.bf16.mxu0 0
  %3228 = vmatpush1.bf16.msra.mxu0 0
  %3229 = vmatprep.subr.bf16.mxu0 0
  %3230 = vmatpush1.bf16.msra.mxu0 0
  %3231 = vmatprep.subr.bf16.mxu0 0
  %3232 = vmatpush1.bf16.msra.mxu0 0
  %3233 = vmatprep.subr.bf16.mxu0 0
  %3234 = vmatpush1.bf16.msra.mxu0 0
  %3235 = vmatprep.mubr.bf16.mxu0 0
  %3236 = vmatmul.mubr.bf16.gmra.mrb[0].mxu0 %v3198
  %v3237 = vpop.f32.mrb[0].mxu0
  %v3238 = vadd.f32 0.0, %v3237
  %v3239 = vpop.f32.mrb[0].mxu0
  %v3240 = vpop.f32.mrb[0].mxu0
  %v3241 = vpop.f32.mrb[0].mxu0
  %3242 = vdwg.mxu0
  %3244 = vrot.lane.b32.xlu0 %v3018, 8
  %v3245 = vpop.permute.xlu0 %3244
  %3248 = vrot.lane.b32.xlu0 %v3128, 16
  %v3249 = vpop.permute.xlu0 %3248
  %3252 = vrot.lane.b32.xlu0 %v3238, 24
  %v3253 = vpop.permute.xlu0 %3252
  %v3255 = vsel %vm159, %v2908, %v3245
  %v3256 = vsel %vm43, %v3255, %v3249
  %v3257 = vsel %vm611, %v3256, %v3253
  %v3258 = vrot.slane %v2803, 4
  %3259 = vrot.lane.b32.xlu0 %v3258, 96
  %v3260 = vpop.permute.xlu0 %3259
  %v3262 = vsel %vm159, %v3258, 0
  %v3265 = vsel %vm159, %v3260, 0
  %3267 = vmatprep.subr.bf16.mxu0 0
  %3268 = vmatpush1.bf16.xpose.msra.mxu0 %v3265
  %3269 = vmatprep.subr.bf16.mxu0 0
  %3270 = vmatpush1.bf16.xpose.msra.mxu0 0
  %3271 = vmatprep.subr.bf16.mxu0 0
  %3272 = vmatpush1.bf16.xpose.msra.mxu0 0
  %3273 = vmatprep.subr.bf16.mxu0 0
  %3274 = vmatpush1.bf16.xpose.msra.mxu0 0
  %3275 = vmatprep.subr.bf16.mxu0 0
  %3276 = vmatpush1.bf16.xpose.msra.mxu0 0
  %3277 = vmatprep.subr.bf16.mxu0 0
  %3278 = vmatpush1.bf16.xpose.msra.mxu0 0
  %3279 = vmatprep.subr.bf16.mxu0 0
  %3280 = vmatpush1.bf16.xpose.msra.mxu0 0
  %3281 = vmatprep.subr.bf16.mxu0 0
  %3282 = vmatpush1.bf16.xpose.msra.mxu0 0
  %3283 = vmatprep.subr.bf16.mxu0 0
  %3284 = vmatpush1.bf16.xpose.msra.mxu0 0
  %3285 = vmatprep.subr.bf16.mxu0 0
  %3286 = vmatpush1.bf16.xpose.msra.mxu0 0
  %3287 = vmatprep.subr.bf16.mxu0 0
  %3288 = vmatpush1.bf16.xpose.msra.mxu0 0
  %3289 = vmatprep.subr.bf16.mxu0 0
  %3290 = vmatpush1.bf16.xpose.msra.mxu0 0
  %3291 = vmatprep.subr.bf16.mxu0 0
  %3292 = vmatpush1.bf16.xpose.msra.mxu0 0
  %3293 = vmatprep.subr.bf16.mxu0 0
  %3294 = vmatpush1.bf16.xpose.msra.mxu0 0
  %3295 = vmatprep.subr.bf16.mxu0 0
  %3296 = vmatpush1.bf16.xpose.msra.mxu0 0
  %3297 = vmatprep.subr.bf16.mxu0 0
  %3298 = vmatpush1.bf16.xpose.msra.mxu0 0
  %3299 = vmatprep.mubr.bf16.mxu0 0
  %3300 = vmatmul.mubr.bf16.gmra.mrb[0].mxu0 %v3262
  %v3301 = vpop.f32.mrb[0].mxu0
  %v3302 = vadd.f32 0.0, %v3301
  %v3303 = vpop.f32.mrb[0].mxu0
  %v3304 = vpop.f32.mrb[0].mxu0
  %v3305 = vpop.f32.mrb[0].mxu0
  %3306 = vdwg.mxu0
  %v3307 = vsel %vm159, %v3302, -inf
  %3308 = vmax.xlane.f32.xlu0 %v3307
  %v3309 = vpop.xlane.xlu0 %3308
  %v3310 = vsub.f32 %v3302, %v3309
  %v3311 = vmul.f32 %v3310, 1.442695
  %v3312 = vpow.pop %v3311
  %v3313 = vsel %vm159, %v3312, 0.0
  %3314 = vadd.xlane.f32.xlu0 %v3313
  %v3315 = vpop.xlane.xlu0 %3314
  %v3316 = vrcp.pop %v3315
  %v3317 = vmul.f32 %v3312, %v3316
  %v3318 = vpack.c.bf16 %v3317, %v3317
  %3319 = vrot.lane.b32.xlu0 %v3258, 64
  %v3320 = vpop.permute.xlu0 %3319
  %v3322 = vsel %vm159, %v3318, 0
  %v3325 = vsel %vm223, %v3320, 0
  %3327 = vmatprep.subr.bf16.mxu0 0
  %3328 = vmatpush1.bf16.msra.mxu0 %v3325
  %3329 = vmatprep.subr.bf16.mxu0 0
  %3330 = vmatpush1.bf16.msra.mxu0 0
  %3331 = vmatprep.subr.bf16.mxu0 0
  %3332 = vmatpush1.bf16.msra.mxu0 0
  %3333 = vmatprep.subr.bf16.mxu0 0
  %3334 = vmatpush1.bf16.msra.mxu0 0
  %3335 = vmatprep.subr.bf16.mxu0 0
  %3336 = vmatpush1.bf16.msra.mxu0 0
  %3337 = vmatprep.subr.bf16.mxu0 0
  %3338 = vmatpush1.bf16.msra.mxu0 0
  %3339 = vmatprep.subr.bf16.mxu0 0
  %3340 = vmatpush1.bf16.msra.mxu0 0
  %3341 = vmatprep.subr.bf16.mxu0 0
  %3342 = vmatpush1.bf16.msra.mxu0 0
  %3343 = vmatprep.subr.bf16.mxu0 0
  %3344 = vmatpush1.bf16.msra.mxu0 0
  %3345 = vmatprep.subr.bf16.mxu0 0
  %3346 = vmatpush1.bf16.msra.mxu0 0
  %3347 = vmatprep.subr.bf16.mxu0 0
  %3348 = vmatpush1.bf16.msra.mxu0 0
  %3349 = vmatprep.subr.bf16.mxu0 0
  %3350 = vmatpush1.bf16.msra.mxu0 0
  %3351 = vmatprep.subr.bf16.mxu0 0
  %3352 = vmatpush1.bf16.msra.mxu0 0
  %3353 = vmatprep.subr.bf16.mxu0 0
  %3354 = vmatpush1.bf16.msra.mxu0 0
  %3355 = vmatprep.subr.bf16.mxu0 0
  %3356 = vmatpush1.bf16.msra.mxu0 0
  %3357 = vmatprep.subr.bf16.mxu0 0
  %3358 = vmatpush1.bf16.msra.mxu0 0
  %3359 = vmatprep.mubr.bf16.mxu0 0
  %3360 = vmatmul.mubr.bf16.gmra.mrb[0].mxu0 %v3322
  %v3361 = vpop.f32.mrb[0].mxu0
  %v3362 = vadd.f32 0.0, %v3361
  %v3363 = vpop.f32.mrb[0].mxu0
  %v3364 = vpop.f32.mrb[0].mxu0
  %v3365 = vpop.f32.mrb[0].mxu0
  %3366 = vdwg.mxu0
  %3367 = vrot.lane.b32.xlu0 %v3258, 120
  %v3368 = vpop.permute.xlu0 %3367
  %3369 = vrot.lane.b32.xlu0 %v3258, 88
  %v3370 = vpop.permute.xlu0 %3369
  %v3372 = vsel %vm159, %v3368, 0
  %v3375 = vsel %vm159, %v3370, 0
  %3377 = vmatprep.subr.bf16.mxu0 0
  %3378 = vmatpush1.bf16.xpose.msra.mxu0 %v3375
  %3379 = vmatprep.subr.bf16.mxu0 0
  %3380 = vmatpush1.bf16.xpose.msra.mxu0 0
  %3381 = vmatprep.subr.bf16.mxu0 0
  %3382 = vmatpush1.bf16.xpose.msra.mxu0 0
  %3383 = vmatprep.subr.bf16.mxu0 0
  %3384 = vmatpush1.bf16.xpose.msra.mxu0 0
  %3385 = vmatprep.subr.bf16.mxu0 0
  %3386 = vmatpush1.bf16.xpose.msra.mxu0 0
  %3387 = vmatprep.subr.bf16.mxu0 0
  %3388 = vmatpush1.bf16.xpose.msra.mxu0 0
  %3389 = vmatprep.subr.bf16.mxu0 0
  %3390 = vmatpush1.bf16.xpose.msra.mxu0 0
  %3391 = vmatprep.subr.bf16.mxu0 0
  %3392 = vmatpush1.bf16.xpose.msra.mxu0 0
  %3393 = vmatprep.subr.bf16.mxu0 0
  %3394 = vmatpush1.bf16.xpose.msra.mxu0 0
  %3395 = vmatprep.subr.bf16.mxu0 0
  %3396 = vmatpush1.bf16.xpose.msra.mxu0 0
  %3397 = vmatprep.subr.bf16.mxu0 0
  %3398 = vmatpush1.bf16.xpose.msra.mxu0 0
  %3399 = vmatprep.subr.bf16.mxu0 0
  %3400 = vmatpush1.bf16.xpose.msra.mxu0 0
  %3401 = vmatprep.subr.bf16.mxu0 0
  %3402 = vmatpush1.bf16.xpose.msra.mxu0 0
  %3403 = vmatprep.subr.bf16.mxu0 0
  %3404 = vmatpush1.bf16.xpose.msra.mxu0 0
  %3405 = vmatprep.subr.bf16.mxu0 0
  %3406 = vmatpush1.bf16.xpose.msra.mxu0 0
  %3407 = vmatprep.subr.bf16.mxu0 0
  %3408 = vmatpush1.bf16.xpose.msra.mxu0 0
  %3409 = vmatprep.mubr.bf16.mxu0 0
  %3410 = vmatmul.mubr.bf16.gmra.mrb[0].mxu0 %v3372
  %v3411 = vpop.f32.mrb[0].mxu0
  %v3412 = vadd.f32 0.0, %v3411
  %v3413 = vpop.f32.mrb[0].mxu0
  %v3414 = vpop.f32.mrb[0].mxu0
  %v3415 = vpop.f32.mrb[0].mxu0
  %3416 = vdwg.mxu0
  %v3417 = vsel %vm159, %v3412, -inf
  %3418 = vmax.xlane.f32.xlu0 %v3417
  %v3419 = vpop.xlane.xlu0 %3418
  %v3420 = vsub.f32 %v3412, %v3419
  %v3421 = vmul.f32 %v3420, 1.442695
  %v3422 = vpow.pop %v3421
  %v3423 = vsel %vm159, %v3422, 0.0
  %3424 = vadd.xlane.f32.xlu0 %v3423
  %v3425 = vpop.xlane.xlu0 %3424
  %v3426 = vrcp.pop %v3425
  %v3427 = vmul.f32 %v3422, %v3426
  %v3428 = vpack.c.bf16 %v3427, %v3427
  %3429 = vrot.lane.b32.xlu0 %v3258, 56
  %v3430 = vpop.permute.xlu0 %3429
  %v3432 = vsel %vm159, %v3428, 0
  %v3435 = vsel %vm223, %v3430, 0
  %3437 = vmatprep.subr.bf16.mxu0 0
  %3438 = vmatpush1.bf16.msra.mxu0 %v3435
  %3439 = vmatprep.subr.bf16.mxu0 0
  %3440 = vmatpush1.bf16.msra.mxu0 0
  %3441 = vmatprep.subr.bf16.mxu0 0
  %3442 = vmatpush1.bf16.msra.mxu0 0
  %3443 = vmatprep.subr.bf16.mxu0 0
  %3444 = vmatpush1.bf16.msra.mxu0 0
  %3445 = vmatprep.subr.bf16.mxu0 0
  %3446 = vmatpush1.bf16.msra.mxu0 0
  %3447 = vmatprep.subr.bf16.mxu0 0
  %3448 = vmatpush1.bf16.msra.mxu0 0
  %3449 = vmatprep.subr.bf16.mxu0 0
  %3450 = vmatpush1.bf16.msra.mxu0 0
  %3451 = vmatprep.subr.bf16.mxu0 0
  %3452 = vmatpush1.bf16.msra.mxu0 0
  %3453 = vmatprep.subr.bf16.mxu0 0
  %3454 = vmatpush1.bf16.msra.mxu0 0
  %3455 = vmatprep.subr.bf16.mxu0 0
  %3456 = vmatpush1.bf16.msra.mxu0 0
  %3457 = vmatprep.subr.bf16.mxu0 0
  %3458 = vmatpush1.bf16.msra.mxu0 0
  %3459 = vmatprep.subr.bf16.mxu0 0
  %3460 = vmatpush1.bf16.msra.mxu0 0
  %3461 = vmatprep.subr.bf16.mxu0 0
  %3462 = vmatpush1.bf16.msra.mxu0 0
  %3463 = vmatprep.subr.bf16.mxu0 0
  %3464 = vmatpush1.bf16.msra.mxu0 0
  %3465 = vmatprep.subr.bf16.mxu0 0
  %3466 = vmatpush1.bf16.msra.mxu0 0
  %3467 = vmatprep.subr.bf16.mxu0 0
  %3468 = vmatpush1.bf16.msra.mxu0 0
  %3469 = vmatprep.mubr.bf16.mxu0 0
  %3470 = vmatmul.mubr.bf16.gmra.mrb[0].mxu0 %v3432
  %v3471 = vpop.f32.mrb[0].mxu0
  %v3472 = vadd.f32 0.0, %v3471
  %v3473 = vpop.f32.mrb[0].mxu0
  %v3474 = vpop.f32.mrb[0].mxu0
  %v3475 = vpop.f32.mrb[0].mxu0
  %3476 = vdwg.mxu0
  %3477 = vrot.lane.b32.xlu0 %v3258, 112
  %v3478 = vpop.permute.xlu0 %3477
  %3479 = vrot.lane.b32.xlu0 %v3258, 80
  %v3480 = vpop.permute.xlu0 %3479
  %v3482 = vsel %vm159, %v3478, 0
  %v3485 = vsel %vm159, %v3480, 0
  %3487 = vmatprep.subr.bf16.mxu0 0
  %3488 = vmatpush1.bf16.xpose.msra.mxu0 %v3485
  %3489 = vmatprep.subr.bf16.mxu0 0
  %3490 = vmatpush1.bf16.xpose.msra.mxu0 0
  %3491 = vmatprep.subr.bf16.mxu0 0
  %3492 = vmatpush1.bf16.xpose.msra.mxu0 0
  %3493 = vmatprep.subr.bf16.mxu0 0
  %3494 = vmatpush1.bf16.xpose.msra.mxu0 0
  %3495 = vmatprep.subr.bf16.mxu0 0
  %3496 = vmatpush1.bf16.xpose.msra.mxu0 0
  %3497 = vmatprep.subr.bf16.mxu0 0
  %3498 = vmatpush1.bf16.xpose.msra.mxu0 0
  %3499 = vmatprep.subr.bf16.mxu0 0
  %3500 = vmatpush1.bf16.xpose.msra.mxu0 0
  %3501 = vmatprep.subr.bf16.mxu0 0
  %3502 = vmatpush1.bf16.xpose.msra.mxu0 0
  %3503 = vmatprep.subr.bf16.mxu0 0
  %3504 = vmatpush1.bf16.xpose.msra.mxu0 0
  %3505 = vmatprep.subr.bf16.mxu0 0
  %3506 = vmatpush1.bf16.xpose.msra.mxu0 0
  %3507 = vmatprep.subr.bf16.mxu0 0
  %3508 = vmatpush1.bf16.xpose.msra.mxu0 0
  %3509 = vmatprep.subr.bf16.mxu0 0
  %3510 = vmatpush1.bf16.xpose.msra.mxu0 0
  %3511 = vmatprep.subr.bf16.mxu0 0
  %3512 = vmatpush1.bf16.xpose.msra.mxu0 0
  %3513 = vmatprep.subr.bf16.mxu0 0
  %3514 = vmatpush1.bf16.xpose.msra.mxu0 0
  %3515 = vmatprep.subr.bf16.mxu0 0
  %3516 = vmatpush1.bf16.xpose.msra.mxu0 0
  %3517 = vmatprep.subr.bf16.mxu0 0
  %3518 = vmatpush1.bf16.xpose.msra.mxu0 0
  %3519 = vmatprep.mubr.bf16.mxu0 0
  %3520 = vmatmul.mubr.bf16.gmra.mrb[0].mxu0 %v3482
  %v3521 = vpop.f32.mrb[0].mxu0
  %v3522 = vadd.f32 0.0, %v3521
  %v3523 = vpop.f32.mrb[0].mxu0
  %v3524 = vpop.f32.mrb[0].mxu0
  %v3525 = vpop.f32.mrb[0].mxu0
  %3526 = vdwg.mxu0
  %v3527 = vsel %vm159, %v3522, -inf
  %3528 = vmax.xlane.f32.xlu0 %v3527
  %v3529 = vpop.xlane.xlu0 %3528
  %v3530 = vsub.f32 %v3522, %v3529
  %v3531 = vmul.f32 %v3530, 1.442695
  %v3532 = vpow.pop %v3531
  %v3533 = vsel %vm159, %v3532, 0.0
  %3534 = vadd.xlane.f32.xlu0 %v3533
  %v3535 = vpop.xlane.xlu0 %3534
  %v3536 = vrcp.pop %v3535
  %v3537 = vmul.f32 %v3532, %v3536
  %v3538 = vpack.c.bf16 %v3537, %v3537
  %3539 = vrot.lane.b32.xlu0 %v3258, 48
  %v3540 = vpop.permute.xlu0 %3539
  %v3542 = vsel %vm159, %v3538, 0
  %v3545 = vsel %vm223, %v3540, 0
  %3547 = vmatprep.subr.bf16.mxu0 0
  %3548 = vmatpush1.bf16.msra.mxu0 %v3545
  %3549 = vmatprep.subr.bf16.mxu0 0
  %3550 = vmatpush1.bf16.msra.mxu0 0
  %3551 = vmatprep.subr.bf16.mxu0 0
  %3552 = vmatpush1.bf16.msra.mxu0 0
  %3553 = vmatprep.subr.bf16.mxu0 0
  %3554 = vmatpush1.bf16.msra.mxu0 0
  %3555 = vmatprep.subr.bf16.mxu0 0
  %3556 = vmatpush1.bf16.msra.mxu0 0
  %3557 = vmatprep.subr.bf16.mxu0 0
  %3558 = vmatpush1.bf16.msra.mxu0 0
  %3559 = vmatprep.subr.bf16.mxu0 0
  %3560 = vmatpush1.bf16.msra.mxu0 0
  %3561 = vmatprep.subr.bf16.mxu0 0
  %3562 = vmatpush1.bf16.msra.mxu0 0
  %3563 = vmatprep.subr.bf16.mxu0 0
  %3564 = vmatpush1.bf16.msra.mxu0 0
  %3565 = vmatprep.subr.bf16.mxu0 0
  %3566 = vmatpush1.bf16.msra.mxu0 0
  %3567 = vmatprep.subr.bf16.mxu0 0
  %3568 = vmatpush1.bf16.msra.mxu0 0
  %3569 = vmatprep.subr.bf16.mxu0 0
  %3570 = vmatpush1.bf16.msra.mxu0 0
  %3571 = vmatprep.subr.bf16.mxu0 0
  %3572 = vmatpush1.bf16.msra.mxu0 0
  %3573 = vmatprep.subr.bf16.mxu0 0
  %3574 = vmatpush1.bf16.msra.mxu0 0
  %3575 = vmatprep.subr.bf16.mxu0 0
  %3576 = vmatpush1.bf16.msra.mxu0 0
  %3577 = vmatprep.subr.bf16.mxu0 0
  %3578 = vmatpush1.bf16.msra.mxu0 0
  %3579 = vmatprep.mubr.bf16.mxu0 0
  %3580 = vmatmul.mubr.bf16.gmra.mrb[0].mxu0 %v3542
  %v3581 = vpop.f32.mrb[0].mxu0
  %v3582 = vadd.f32 0.0, %v3581
  %v3583 = vpop.f32.mrb[0].mxu0
  %v3584 = vpop.f32.mrb[0].mxu0
  %v3585 = vpop.f32.mrb[0].mxu0
  %3586 = vdwg.mxu0
  %3587 = vrot.lane.b32.xlu0 %v3258, 104
  %v3588 = vpop.permute.xlu0 %3587
  %3589 = vrot.lane.b32.xlu0 %v3258, 72
  %v3590 = vpop.permute.xlu0 %3589
  %v3592 = vsel %vm159, %v3588, 0
  %v3595 = vsel %vm159, %v3590, 0
  %3597 = vmatprep.subr.bf16.mxu0 0
  %3598 = vmatpush1.bf16.xpose.msra.mxu0 %v3595
  %3599 = vmatprep.subr.bf16.mxu0 0
  %3600 = vmatpush1.bf16.xpose.msra.mxu0 0
  %3601 = vmatprep.subr.bf16.mxu0 0
  %3602 = vmatpush1.bf16.xpose.msra.mxu0 0
  %3603 = vmatprep.subr.bf16.mxu0 0
  %3604 = vmatpush1.bf16.xpose.msra.mxu0 0
  %3605 = vmatprep.subr.bf16.mxu0 0
  %3606 = vmatpush1.bf16.xpose.msra.mxu0 0
  %3607 = vmatprep.subr.bf16.mxu0 0
  %3608 = vmatpush1.bf16.xpose.msra.mxu0 0
  %3609 = vmatprep.subr.bf16.mxu0 0
  %3610 = vmatpush1.bf16.xpose.msra.mxu0 0
  %3611 = vmatprep.subr.bf16.mxu0 0
  %3612 = vmatpush1.bf16.xpose.msra.mxu0 0
  %3613 = vmatprep.subr.bf16.mxu0 0
  %3614 = vmatpush1.bf16.xpose.msra.mxu0 0
  %3615 = vmatprep.subr.bf16.mxu0 0
  %3616 = vmatpush1.bf16.xpose.msra.mxu0 0
  %3617 = vmatprep.subr.bf16.mxu0 0
  %3618 = vmatpush1.bf16.xpose.msra.mxu0 0
  %3619 = vmatprep.subr.bf16.mxu0 0
  %3620 = vmatpush1.bf16.xpose.msra.mxu0 0
  %3621 = vmatprep.subr.bf16.mxu0 0
  %3622 = vmatpush1.bf16.xpose.msra.mxu0 0
  %3623 = vmatprep.subr.bf16.mxu0 0
  %3624 = vmatpush1.bf16.xpose.msra.mxu0 0
  %3625 = vmatprep.subr.bf16.mxu0 0
  %3626 = vmatpush1.bf16.xpose.msra.mxu0 0
  %3627 = vmatprep.subr.bf16.mxu0 0
  %3628 = vmatpush1.bf16.xpose.msra.mxu0 0
  %3629 = vmatprep.mubr.bf16.mxu0 0
  %3630 = vmatmul.mubr.bf16.gmra.mrb[0].mxu0 %v3592
  %v3631 = vpop.f32.mrb[0].mxu0
  %v3632 = vadd.f32 0.0, %v3631
  %v3633 = vpop.f32.mrb[0].mxu0
  %v3634 = vpop.f32.mrb[0].mxu0
  %v3635 = vpop.f32.mrb[0].mxu0
  %3636 = vdwg.mxu0
  %v3637 = vsel %vm159, %v3632, -inf
  %3638 = vmax.xlane.f32.xlu0 %v3637
  %v3639 = vpop.xlane.xlu0 %3638
  %v3640 = vsub.f32 %v3632, %v3639
  %v3641 = vmul.f32 %v3640, 1.442695
  %v3642 = vpow.pop %v3641
  %v3643 = vsel %vm159, %v3642, 0.0
  %3644 = vadd.xlane.f32.xlu0 %v3643
  %v3645 = vpop.xlane.xlu0 %3644
  %v3646 = vrcp.pop %v3645
  %v3647 = vmul.f32 %v3642, %v3646
  %v3648 = vpack.c.bf16 %v3647, %v3647
  %3649 = vrot.lane.b32.xlu0 %v3258, 40
  %v3650 = vpop.permute.xlu0 %3649
  %v3652 = vsel %vm159, %v3648, 0
  %v3655 = vsel %vm223, %v3650, 0
  %3657 = vmatprep.subr.bf16.mxu0 0
  %3658 = vmatpush1.bf16.msra.mxu0 %v3655
  %3659 = vmatprep.subr.bf16.mxu0 0
  %3660 = vmatpush1.bf16.msra.mxu0 0
  %3661 = vmatprep.subr.bf16.mxu0 0
  %3662 = vmatpush1.bf16.msra.mxu0 0
  %3663 = vmatprep.subr.bf16.mxu0 0
  %3664 = vmatpush1.bf16.msra.mxu0 0
  %3665 = vmatprep.subr.bf16.mxu0 0
  %3666 = vmatpush1.bf16.msra.mxu0 0
  %3667 = vmatprep.subr.bf16.mxu0 0
  %3668 = vmatpush1.bf16.msra.mxu0 0
  %3669 = vmatprep.subr.bf16.mxu0 0
  %3670 = vmatpush1.bf16.msra.mxu0 0
  %3671 = vmatprep.subr.bf16.mxu0 0
  %3672 = vmatpush1.bf16.msra.mxu0 0
  %3673 = vmatprep.subr.bf16.mxu0 0
  %3674 = vmatpush1.bf16.msra.mxu0 0
  %3675 = vmatprep.subr.bf16.mxu0 0
  %3676 = vmatpush1.bf16.msra.mxu0 0
  %3677 = vmatprep.subr.bf16.mxu0 0
  %3678 = vmatpush1.bf16.msra.mxu0 0
  %3679 = vmatprep.subr.bf16.mxu0 0
  %3680 = vmatpush1.bf16.msra.mxu0 0
  %3681 = vmatprep.subr.bf16.mxu0 0
  %3682 = vmatpush1.bf16.msra.mxu0 0
  %3683 = vmatprep.subr.bf16.mxu0 0
  %3684 = vmatpush1.bf16.msra.mxu0 0
  %3685 = vmatprep.subr.bf16.mxu0 0
  %3686 = vmatpush1.bf16.msra.mxu0 0
  %3687 = vmatprep.subr.bf16.mxu0 0
  %3688 = vmatpush1.bf16.msra.mxu0 0
  %3689 = vmatprep.mubr.bf16.mxu0 0
  %3690 = vmatmul.mubr.bf16.gmra.mrb[0].mxu0 %v3652
  %v3691 = vpop.f32.mrb[0].mxu0
  %v3692 = vadd.f32 0.0, %v3691
  %v3693 = vpop.f32.mrb[0].mxu0
  %v3694 = vpop.f32.mrb[0].mxu0
  %v3695 = vpop.f32.mrb[0].mxu0
  %3696 = vdwg.mxu0
  %3698 = vrot.lane.b32.xlu0 %v3472, 8
  %v3699 = vpop.permute.xlu0 %3698
  %3702 = vrot.lane.b32.xlu0 %v3582, 16
  %v3703 = vpop.permute.xlu0 %3702
  %3706 = vrot.lane.b32.xlu0 %v3692, 24
  %v3707 = vpop.permute.xlu0 %3706
  %v3709 = vsel %vm159, %v3362, %v3699
  %v3710 = vsel %vm43, %v3709, %v3703
  %v3711 = vsel %vm611, %v3710, %v3707
  %v3712 = vld [vmem:[%s1 + $0xa8] sm:$0xf]
  %v3713 = vld [vmem:[%s1 + $0xac] sm:$0xf]
  %v3714 = vld [vmem:[%s1 + $0xb0] sm:$0xf]
  %v3715 = vld [vmem:[%s1 + $0xb4] sm:$0xf]
  %v3716 = vpack.c.bf16 %v3711, %v3257
  %v3717 = vld [vmem:[%s4 + $0xd] sm:$0x1]
  %v3718 = vlaneseq
  %v3719 = vshrl.u32 %v3718, 7
  %v3720 = vsub.s32 0, %v3719
  %v3721 = vrot.slane %v3717, %v3720
  %v3726 = vunpack.c.l.b16 %v3712
  %v3727 = vunpack.c.l.b16 %v3713
  %v3728 = vunpack.c.l.b16 %v3714
  %v3729 = vunpack.c.l.b16 %v3715
  %v3730 = vpack.c.b16 %v3727, %v3726
  %v3731 = vpack.c.b16 %v3729, %v3728
  %v3735 = vsel %vm110, %v3716, 0
  %3737 = vmatprep.subr.bf16.mxu0 0
  %3738 = vmatpush1.bf16.msra.mxu0 %v3730
  %3739 = vmatprep.subr.bf16.mxu0 0
  %3740 = vmatpush1.bf16.msra.mxu0 %v3731
  %3741 = vmatprep.subr.bf16.mxu0 0
  %3742 = vmatpush1.bf16.msra.mxu0 0
  %3743 = vmatprep.subr.bf16.mxu0 0
  %3744 = vmatpush1.bf16.msra.mxu0 0
  %3745 = vmatprep.subr.bf16.mxu0 0
  %3746 = vmatpush1.bf16.msra.mxu0 0
  %3747 = vmatprep.subr.bf16.mxu0 0
  %3748 = vmatpush1.bf16.msra.mxu0 0
  %3749 = vmatprep.subr.bf16.mxu0 0
  %3750 = vmatpush1.bf16.msra.mxu0 0
  %3751 = vmatprep.subr.bf16.mxu0 0
  %3752 = vmatpush1.bf16.msra.mxu0 0
  %3753 = vmatprep.subr.bf16.mxu0 0
  %3754 = vmatpush1.bf16.msra.mxu0 0
  %3755 = vmatprep.subr.bf16.mxu0 0
  %3756 = vmatpush1.bf16.msra.mxu0 0
  %3757 = vmatprep.subr.bf16.mxu0 0
  %3758 = vmatpush1.bf16.msra.mxu0 0
  %3759 = vmatprep.subr.bf16.mxu0 0
  %3760 = vmatpush1.bf16.msra.mxu0 0
  %3761 = vmatprep.subr.bf16.mxu0 0
  %3762 = vmatpush1.bf16.msra.mxu0 0
  %3763 = vmatprep.subr.bf16.mxu0 0
  %3764 = vmatpush1.bf16.msra.mxu0 0
  %3765 = vmatprep.subr.bf16.mxu0 0
  %3766 = vmatpush1.bf16.msra.mxu0 0
  %3767 = vmatprep.subr.bf16.mxu0 0
  %3768 = vmatpush1.bf16.msra.mxu0 0
  %3769 = vmatprep.mubr.bf16.mxu0 0
  %3770 = vmatmul.mubr.bf16.gmra.mrb[0].mxu0 %v3735
  %v3771 = vpop.f32.mrb[0].mxu0
  %v3772 = vadd.f32 %v3721, %v3771
  %v3773 = vpop.f32.mrb[0].mxu0
  %v3774 = vpop.f32.mrb[0].mxu0
  %v3775 = vadd.f32 %v3721, %v3774
  %v3776 = vpop.f32.mrb[0].mxu0
  %3777 = vdwg.mxu0
  %v3778 = vadd.f32 %v82, %v3772
  %v3779 = vadd.f32 %v85, %v3775
  %v3780 = vld [vmem:[%s4 + $0x10] sm:$0x1]
  %v3781 = vld [vmem:[%s4 + $0x11] sm:$0x1]
  %v3782 = vsel %vm110, %v3778, 0.0
  %3783 = vadd.xlane.f32.xlu0 %v3782
  %v3784 = vpop.xlane.xlu0 %3783
  %v3785 = vsel %vm110, %v3779, 0.0
  %3786 = vadd.xlane.f32.xlu0 %v3785
  %v3787 = vpop.xlane.xlu0 %3786
  %v3788 = vmul.f32 %v3784, %v1143
  %v3789 = vmul.f32 %v3787, %v1143
  %v3790 = vsub.f32 %v3778, %v3788
  %v3791 = vsub.f32 %v3779, %v3789
  %v3792 = vmul.f32 %v3790, %v3790
  %v3793 = vmul.f32 %v3791, %v3791
  %v3794 = vsel %vm110, %v3792, 0.0
  %3795 = vadd.xlane.f32.xlu0 %v3794
  %v3796 = vpop.xlane.xlu0 %3795
  %v3797 = vsel %vm110, %v3793, 0.0
  %3798 = vadd.xlane.f32.xlu0 %v3797
  %v3799 = vpop.xlane.xlu0 %3798
  %v3800 = vmul.f32 %v3796, %v1143
  %v3801 = vmul.f32 %v3799, %v1143
  %v3802 = vadd.f32 %v3800, 1e-05
  %v3803 = vadd.f32 %v3801, 1e-05
  %v3804 = vrsqrt.pop %v3802
  %v3805 = vrsqrt.pop %v3803
  %v3806 = vmul.f32 %v3790, %v3804
  %v3807 = vmul.f32 %v3791, %v3805
  %v3808 = vlaneseq
  %v3809 = vshrl.u32 %v3808, 7
  %v3810 = vsub.s32 0, %v3809
  %v3811 = vrot.slane %v3780, %v3810
  %v3812 = vmul.f32 %v3806, %v3811
  %v3813 = vmul.f32 %v3807, %v3811
  %v3814 = vlaneseq
  %v3815 = vshrl.u32 %v3814, 7
  %v3816 = vsub.s32 0, %v3815
  %v3817 = vrot.slane %v3781, %v3816
  %v3818 = vadd.f32 %v3812, %v3817
  %v3819 = vadd.f32 %v3813, %v3817
  %v3820 = vld [vmem:[%s2 + $0x30] sm:$0xf]
  %v3821 = vld [vmem:[%s2 + $0x34] sm:$0xf]
  %v3822 = vld [vmem:[%s2 + $0x38] sm:$0xf]
  %v3823 = vld [vmem:[%s2 + $0x3c] sm:$0xf]
  %v3824 = vld [vmem:[%s5 + $0x3] sm:$0x1]
  %v3825 = vpack.c.bf16 %v3819, %v3818
  %v3826 = vlaneseq
  %v3827 = vshrl.u32 %v3826, 7
  %v3828 = vsub.s32 0, %v3827
  %v3829 = vrot.slane %v3824, %v3828
  %v3834 = vunpack.c.l.b16 %v3820
  %v3835 = vunpack.c.l.b16 %v3821
  %v3836 = vunpack.c.l.b16 %v3822
  %v3837 = vunpack.c.l.b16 %v3823
  %v3838 = vpack.c.b16 %v3835, %v3834
  %v3839 = vpack.c.b16 %v3837, %v3836
  %v3843 = vsel %vm110, %v3825, 0
  %3845 = vmatprep.subr.bf16.mxu0 0
  %3846 = vmatpush1.bf16.msra.mxu0 %v3838
  %3847 = vmatprep.subr.bf16.mxu0 0
  %3848 = vmatpush1.bf16.msra.mxu0 %v3839
  %3849 = vmatprep.subr.bf16.mxu0 0
  %3850 = vmatpush1.bf16.msra.mxu0 0
  %3851 = vmatprep.subr.bf16.mxu0 0
  %3852 = vmatpush1.bf16.msra.mxu0 0
  %3853 = vmatprep.subr.bf16.mxu0 0
  %3854 = vmatpush1.bf16.msra.mxu0 0
  %3855 = vmatprep.subr.bf16.mxu0 0
  %3856 = vmatpush1.bf16.msra.mxu0 0
  %3857 = vmatprep.subr.bf16.mxu0 0
  %3858 = vmatpush1.bf16.msra.mxu0 0
  %3859 = vmatprep.subr.bf16.mxu0 0
  %3860 = vmatpush1.bf16.msra.mxu0 0
  %3861 = vmatprep.subr.bf16.mxu0 0
  %3862 = vmatpush1.bf16.msra.mxu0 0
  %3863 = vmatprep.subr.bf16.mxu0 0
  %3864 = vmatpush1.bf16.msra.mxu0 0
  %3865 = vmatprep.subr.bf16.mxu0 0
  %3866 = vmatpush1.bf16.msra.mxu0 0
  %3867 = vmatprep.subr.bf16.mxu0 0
  %3868 = vmatpush1.bf16.msra.mxu0 0
  %3869 = vmatprep.subr.bf16.mxu0 0
  %3870 = vmatpush1.bf16.msra.mxu0 0
  %3871 = vmatprep.subr.bf16.mxu0 0
  %3872 = vmatpush1.bf16.msra.mxu0 0
  %3873 = vmatprep.subr.bf16.mxu0 0
  %3874 = vmatpush1.bf16.msra.mxu0 0
  %3875 = vmatprep.subr.bf16.mxu0 0
  %3876 = vmatpush1.bf16.msra.mxu0 0
  %3877 = vmatprep.mubr.bf16.mxu0 0
  %3878 = vmatmul.mubr.bf16.gmra.mrb[0].mxu0 %v3843
  %v3879 = vpop.f32.mrb[0].mxu0
  %v3880 = vadd.f32 %v3829, %v3879
  %v3881 = vpop.f32.mrb[0].mxu0
  %v3882 = vpop.f32.mrb[0].mxu0
  %v3883 = vadd.f32 %v3829, %v3882
  %v3884 = vpop.f32.mrb[0].mxu0
  %3885 = vdwg.mxu0
  %v3886 = vpack.c.bf16 %v2740, %v2739
  %3887 = vrot.lane.b32.xlu0 %v3838, 96
  %v3888 = vpop.permute.xlu0 %3887
  %3889 = vrot.lane.b32.xlu0 %v3839, 96
  %v3890 = vpop.permute.xlu0 %3889
  %3894 = vrot.lane.b32.xlu0 %v3829, 96
  %v3895 = vpop.permute.xlu0 %3894
  %v3898 = vsel %vm110, %v3886, 0
  %3900 = vmatprep.subr.bf16.mxu0 0
  %3901 = vmatpush1.bf16.msra.mxu0 %v3888
  %3902 = vmatprep.subr.bf16.mxu0 0
  %3903 = vmatpush1.bf16.msra.mxu0 %v3890
  %3904 = vmatprep.subr.bf16.mxu0 0
  %3905 = vmatpush1.bf16.msra.mxu0 0
  %3906 = vmatprep.subr.bf16.mxu0 0
  %3907 = vmatpush1.bf16.msra.mxu0 0
  %3908 = vmatprep.subr.bf16.mxu0 0
  %3909 = vmatpush1.bf16.msra.mxu0 0
  %3910 = vmatprep.subr.bf16.mxu0 0
  %3911 = vmatpush1.bf16.msra.mxu0 0
  %3912 = vmatprep.subr.bf16.mxu0 0
  %3913 = vmatpush1.bf16.msra.mxu0 0
  %3914 = vmatprep.subr.bf16.mxu0 0
  %3915 = vmatpush1.bf16.msra.mxu0 0
  %3916 = vmatprep.subr.bf16.mxu0 0
  %3917 = vmatpush1.bf16.msra.mxu0 0
  %3918 = vmatprep.subr.bf16.mxu0 0
  %3919 = vmatpush1.bf16.msra.mxu0 0
  %3920 = vmatprep.subr.bf16.mxu0 0
  %3921 = vmatpush1.bf16.msra.mxu0 0
  %3922 = vmatprep.subr.bf16.mxu0 0
  %3923 = vmatpush1.bf16.msra.mxu0 0
  %3924 = vmatprep.subr.bf16.mxu0 0
  %3925 = vmatpush1.bf16.msra.mxu0 0
  %3926 = vmatprep.subr.bf16.mxu0 0
  %3927 = vmatpush1.bf16.msra.mxu0 0
  %3928 = vmatprep.subr.bf16.mxu0 0
  %3929 = vmatpush1.bf16.msra.mxu0 0
  %3930 = vmatprep.subr.bf16.mxu0 0
  %3931 = vmatpush1.bf16.msra.mxu0 0
  %3932 = vmatprep.mubr.bf16.mxu0 0
  %3933 = vmatmul.mubr.bf16.gmra.mrb[0].mxu0 %v3898
  %v3934 = vpop.f32.mrb[0].mxu0
  %v3935 = vadd.f32 %v3895, %v3934
  %v3936 = vpop.f32.mrb[0].mxu0
  %v3937 = vpop.f32.mrb[0].mxu0
  %v3938 = vadd.f32 %v3895, %v3937
  %v3939 = vpop.f32.mrb[0].mxu0
  %3940 = vdwg.mxu0
  %v3941 = vpack.c.bf16 %v3883, %v3880
  %v3942 = vpack.c.bf16 %v3938, %v3935
  %v3944 = vsel %vm159, %v3941, 0
  %v3947 = vsel %vm159, %v3942, 0
  %3949 = vmatprep.subr.bf16.mxu0 0
  %3950 = vmatpush1.bf16.xpose.msra.mxu0 %v3947
  %3951 = vmatprep.subr.bf16.mxu0 0
  %3952 = vmatpush1.bf16.xpose.msra.mxu0 0
  %3953 = vmatprep.subr.bf16.mxu0 0
  %3954 = vmatpush1.bf16.xpose.msra.mxu0 0
  %3955 = vmatprep.subr.bf16.mxu0 0
  %3956 = vmatpush1.bf16.xpose.msra.mxu0 0
  %3957 = vmatprep.subr.bf16.mxu0 0
  %3958 = vmatpush1.bf16.xpose.msra.mxu0 0
  %3959 = vmatprep.subr.bf16.mxu0 0
  %3960 = vmatpush1.bf16.xpose.msra.mxu0 0
  %3961 = vmatprep.subr.bf16.mxu0 0
  %3962 = vmatpush1.bf16.xpose.msra.mxu0 0
  %3963 = vmatprep.subr.bf16.mxu0 0
  %3964 = vmatpush1.bf16.xpose.msra.mxu0 0
  %3965 = vmatprep.subr.bf16.mxu0 0
  %3966 = vmatpush1.bf16.xpose.msra.mxu0 0
  %3967 = vmatprep.subr.bf16.mxu0 0
  %3968 = vmatpush1.bf16.xpose.msra.mxu0 0
  %3969 = vmatprep.subr.bf16.mxu0 0
  %3970 = vmatpush1.bf16.xpose.msra.mxu0 0
  %3971 = vmatprep.subr.bf16.mxu0 0
  %3972 = vmatpush1.bf16.xpose.msra.mxu0 0
  %3973 = vmatprep.subr.bf16.mxu0 0
  %3974 = vmatpush1.bf16.xpose.msra.mxu0 0
  %3975 = vmatprep.subr.bf16.mxu0 0
  %3976 = vmatpush1.bf16.xpose.msra.mxu0 0
  %3977 = vmatprep.subr.bf16.mxu0 0
  %3978 = vmatpush1.bf16.xpose.msra.mxu0 0
  %3979 = vmatprep.subr.bf16.mxu0 0
  %3980 = vmatpush1.bf16.xpose.msra.mxu0 0
  %3981 = vmatprep.mubr.bf16.mxu0 0
  %3982 = vmatmul.mubr.bf16.gmra.mrb[0].mxu0 %v3944
  %v3983 = vpop.f32.mrb[0].mxu0
  %v3984 = vadd.f32 0.0, %v3983
  %v3985 = vpop.f32.mrb[0].mxu0
  %v3986 = vpop.f32.mrb[0].mxu0
  %v3987 = vpop.f32.mrb[0].mxu0
  %3988 = vdwg.mxu0
  %v3989 = vsel %vm159, %v3984, -inf
  %3990 = vmax.xlane.f32.xlu0 %v3989
  %v3991 = vpop.xlane.xlu0 %3990
  %v3992 = vsub.f32 %v3984, %v3991
  %v3993 = vmul.f32 %v3992, 1.442695
  %v3994 = vpow.pop %v3993
  %v3995 = vsel %vm159, %v3994, 0.0
  %3996 = vadd.xlane.f32.xlu0 %v3995
  %v3997 = vpop.xlane.xlu0 %3996
  %v3998 = vrcp.pop %v3997
  %v3999 = vmul.f32 %v3994, %v3998
  %v4000 = vpack.c.bf16 %v3999, %v3999
  %4002 = vrot.lane.b32.xlu0 %v3942, 96
  %v4003 = vpop.permute.xlu0 %4002
  %v4005 = vsel %vm159, %v4000, 0
  %v4008 = vsel %vm223, %v4003, 0
  %4010 = vmatprep.subr.bf16.mxu0 0
  %4011 = vmatpush1.bf16.msra.mxu0 %v4008
  %4012 = vmatprep.subr.bf16.mxu0 0
  %4013 = vmatpush1.bf16.msra.mxu0 0
  %4014 = vmatprep.subr.bf16.mxu0 0
  %4015 = vmatpush1.bf16.msra.mxu0 0
  %4016 = vmatprep.subr.bf16.mxu0 0
  %4017 = vmatpush1.bf16.msra.mxu0 0
  %4018 = vmatprep.subr.bf16.mxu0 0
  %4019 = vmatpush1.bf16.msra.mxu0 0
  %4020 = vmatprep.subr.bf16.mxu0 0
  %4021 = vmatpush1.bf16.msra.mxu0 0
  %4022 = vmatprep.subr.bf16.mxu0 0
  %4023 = vmatpush1.bf16.msra.mxu0 0
  %4024 = vmatprep.subr.bf16.mxu0 0
  %4025 = vmatpush1.bf16.msra.mxu0 0
  %4026 = vmatprep.subr.bf16.mxu0 0
  %4027 = vmatpush1.bf16.msra.mxu0 0
  %4028 = vmatprep.subr.bf16.mxu0 0
  %4029 = vmatpush1.bf16.msra.mxu0 0
  %4030 = vmatprep.subr.bf16.mxu0 0
  %4031 = vmatpush1.bf16.msra.mxu0 0
  %4032 = vmatprep.subr.bf16.mxu0 0
  %4033 = vmatpush1.bf16.msra.mxu0 0
  %4034 = vmatprep.subr.bf16.mxu0 0
  %4035 = vmatpush1.bf16.msra.mxu0 0
  %4036 = vmatprep.subr.bf16.mxu0 0
  %4037 = vmatpush1.bf16.msra.mxu0 0
  %4038 = vmatprep.subr.bf16.mxu0 0
  %4039 = vmatpush1.bf16.msra.mxu0 0
  %4040 = vmatprep.subr.bf16.mxu0 0
  %4041 = vmatpush1.bf16.msra.mxu0 0
  %4042 = vmatprep.mubr.bf16.mxu0 0
  %4043 = vmatmul.mubr.bf16.gmra.mrb[0].mxu0 %v4005
  %v4044 = vpop.f32.mrb[0].mxu0
  %v4045 = vadd.f32 0.0, %v4044
  %v4046 = vpop.f32.mrb[0].mxu0
  %v4047 = vpop.f32.mrb[0].mxu0
  %v4048 = vpop.f32.mrb[0].mxu0
  %4049 = vdwg.mxu0
  %4051 = vrot.lane.b32.xlu0 %v3941, 120
  %v4052 = vpop.permute.xlu0 %4051
  %4053 = vrot.lane.b32.xlu0 %v3942, 120
  %v4054 = vpop.permute.xlu0 %4053
  %v4056 = vsel %vm159, %v4052, 0
  %v4059 = vsel %vm159, %v4054, 0
  %4061 = vmatprep.subr.bf16.mxu0 0
  %4062 = vmatpush1.bf16.xpose.msra.mxu0 %v4059
  %4063 = vmatprep.subr.bf16.mxu0 0
  %4064 = vmatpush1.bf16.xpose.msra.mxu0 0
  %4065 = vmatprep.subr.bf16.mxu0 0
  %4066 = vmatpush1.bf16.xpose.msra.mxu0 0
  %4067 = vmatprep.subr.bf16.mxu0 0
  %4068 = vmatpush1.bf16.xpose.msra.mxu0 0
  %4069 = vmatprep.subr.bf16.mxu0 0
  %4070 = vmatpush1.bf16.xpose.msra.mxu0 0
  %4071 = vmatprep.subr.bf16.mxu0 0
  %4072 = vmatpush1.bf16.xpose.msra.mxu0 0
  %4073 = vmatprep.subr.bf16.mxu0 0
  %4074 = vmatpush1.bf16.xpose.msra.mxu0 0
  %4075 = vmatprep.subr.bf16.mxu0 0
  %4076 = vmatpush1.bf16.xpose.msra.mxu0 0
  %4077 = vmatprep.subr.bf16.mxu0 0
  %4078 = vmatpush1.bf16.xpose.msra.mxu0 0
  %4079 = vmatprep.subr.bf16.mxu0 0
  %4080 = vmatpush1.bf16.xpose.msra.mxu0 0
  %4081 = vmatprep.subr.bf16.mxu0 0
  %4082 = vmatpush1.bf16.xpose.msra.mxu0 0
  %4083 = vmatprep.subr.bf16.mxu0 0
  %4084 = vmatpush1.bf16.xpose.msra.mxu0 0
  %4085 = vmatprep.subr.bf16.mxu0 0
  %4086 = vmatpush1.bf16.xpose.msra.mxu0 0
  %4087 = vmatprep.subr.bf16.mxu0 0
  %4088 = vmatpush1.bf16.xpose.msra.mxu0 0
  %4089 = vmatprep.subr.bf16.mxu0 0
  %4090 = vmatpush1.bf16.xpose.msra.mxu0 0
  %4091 = vmatprep.subr.bf16.mxu0 0
  %4092 = vmatpush1.bf16.xpose.msra.mxu0 0
  %4093 = vmatprep.mubr.bf16.mxu0 0
  %4094 = vmatmul.mubr.bf16.gmra.mrb[0].mxu0 %v4056
  %v4095 = vpop.f32.mrb[0].mxu0
  %v4096 = vadd.f32 0.0, %v4095
  %v4097 = vpop.f32.mrb[0].mxu0
  %v4098 = vpop.f32.mrb[0].mxu0
  %v4099 = vpop.f32.mrb[0].mxu0
  %4100 = vdwg.mxu0
  %v4101 = vsel %vm159, %v4096, -inf
  %4102 = vmax.xlane.f32.xlu0 %v4101
  %v4103 = vpop.xlane.xlu0 %4102
  %v4104 = vsub.f32 %v4096, %v4103
  %v4105 = vmul.f32 %v4104, 1.442695
  %v4106 = vpow.pop %v4105
  %v4107 = vsel %vm159, %v4106, 0.0
  %4108 = vadd.xlane.f32.xlu0 %v4107
  %v4109 = vpop.xlane.xlu0 %4108
  %v4110 = vrcp.pop %v4109
  %v4111 = vmul.f32 %v4106, %v4110
  %v4112 = vpack.c.bf16 %v4111, %v4111
  %4113 = vrot.lane.b32.xlu0 %v3942, 88
  %v4114 = vpop.permute.xlu0 %4113
  %v4116 = vsel %vm159, %v4112, 0
  %v4119 = vsel %vm223, %v4114, 0
  %4121 = vmatprep.subr.bf16.mxu0 0
  %4122 = vmatpush1.bf16.msra.mxu0 %v4119
  %4123 = vmatprep.subr.bf16.mxu0 0
  %4124 = vmatpush1.bf16.msra.mxu0 0
  %4125 = vmatprep.subr.bf16.mxu0 0
  %4126 = vmatpush1.bf16.msra.mxu0 0
  %4127 = vmatprep.subr.bf16.mxu0 0
  %4128 = vmatpush1.bf16.msra.mxu0 0
  %4129 = vmatprep.subr.bf16.mxu0 0
  %4130 = vmatpush1.bf16.msra.mxu0 0
  %4131 = vmatprep.subr.bf16.mxu0 0
  %4132 = vmatpush1.bf16.msra.mxu0 0
  %4133 = vmatprep.subr.bf16.mxu0 0
  %4134 = vmatpush1.bf16.msra.mxu0 0
  %4135 = vmatprep.subr.bf16.mxu0 0
  %4136 = vmatpush1.bf16.msra.mxu0 0
  %4137 = vmatprep.subr.bf16.mxu0 0
  %4138 = vmatpush1.bf16.msra.mxu0 0
  %4139 = vmatprep.subr.bf16.mxu0 0
  %4140 = vmatpush1.bf16.msra.mxu0 0
  %4141 = vmatprep.subr.bf16.mxu0 0
  %4142 = vmatpush1.bf16.msra.mxu0 0
  %4143 = vmatprep.subr.bf16.mxu0 0
  %4144 = vmatpush1.bf16.msra.mxu0 0
  %4145 = vmatprep.subr.bf16.mxu0 0
  %4146 = vmatpush1.bf16.msra.mxu0 0
  %4147 = vmatprep.subr.bf16.mxu0 0
  %4148 = vmatpush1.bf16.msra.mxu0 0
  %4149 = vmatprep.subr.bf16.mxu0 0
  %4150 = vmatpush1.bf16.msra.mxu0 0
  %4151 = vmatprep.subr.bf16.mxu0 0
  %4152 = vmatpush1.bf16.msra.mxu0 0
  %4153 = vmatprep.mubr.bf16.mxu0 0
  %4154 = vmatmul.mubr.bf16.gmra.mrb[0].mxu0 %v4116
  %v4155 = vpop.f32.mrb[0].mxu0
  %v4156 = vadd.f32 0.0, %v4155
  %v4157 = vpop.f32.mrb[0].mxu0
  %v4158 = vpop.f32.mrb[0].mxu0
  %v4159 = vpop.f32.mrb[0].mxu0
  %4160 = vdwg.mxu0
  %4161 = vrot.lane.b32.xlu0 %v3941, 112
  %v4162 = vpop.permute.xlu0 %4161
  %4163 = vrot.lane.b32.xlu0 %v3942, 112
  %v4164 = vpop.permute.xlu0 %4163
  %v4166 = vsel %vm159, %v4162, 0
  %v4169 = vsel %vm159, %v4164, 0
  %4171 = vmatprep.subr.bf16.mxu0 0
  %4172 = vmatpush1.bf16.xpose.msra.mxu0 %v4169
  %4173 = vmatprep.subr.bf16.mxu0 0
  %4174 = vmatpush1.bf16.xpose.msra.mxu0 0
  %4175 = vmatprep.subr.bf16.mxu0 0
  %4176 = vmatpush1.bf16.xpose.msra.mxu0 0
  %4177 = vmatprep.subr.bf16.mxu0 0
  %4178 = vmatpush1.bf16.xpose.msra.mxu0 0
  %4179 = vmatprep.subr.bf16.mxu0 0
  %4180 = vmatpush1.bf16.xpose.msra.mxu0 0
  %4181 = vmatprep.subr.bf16.mxu0 0
  %4182 = vmatpush1.bf16.xpose.msra.mxu0 0
  %4183 = vmatprep.subr.bf16.mxu0 0
  %4184 = vmatpush1.bf16.xpose.msra.mxu0 0
  %4185 = vmatprep.subr.bf16.mxu0 0
  %4186 = vmatpush1.bf16.xpose.msra.mxu0 0
  %4187 = vmatprep.subr.bf16.mxu0 0
  %4188 = vmatpush1.bf16.xpose.msra.mxu0 0
  %4189 = vmatprep.subr.bf16.mxu0 0
  %4190 = vmatpush1.bf16.xpose.msra.mxu0 0
  %4191 = vmatprep.subr.bf16.mxu0 0
  %4192 = vmatpush1.bf16.xpose.msra.mxu0 0
  %4193 = vmatprep.subr.bf16.mxu0 0
  %4194 = vmatpush1.bf16.xpose.msra.mxu0 0
  %4195 = vmatprep.subr.bf16.mxu0 0
  %4196 = vmatpush1.bf16.xpose.msra.mxu0 0
  %4197 = vmatprep.subr.bf16.mxu0 0
  %4198 = vmatpush1.bf16.xpose.msra.mxu0 0
  %4199 = vmatprep.subr.bf16.mxu0 0
  %4200 = vmatpush1.bf16.xpose.msra.mxu0 0
  %4201 = vmatprep.subr.bf16.mxu0 0
  %4202 = vmatpush1.bf16.xpose.msra.mxu0 0
  %4203 = vmatprep.mubr.bf16.mxu0 0
  %4204 = vmatmul.mubr.bf16.gmra.mrb[0].mxu0 %v4166
  %v4205 = vpop.f32.mrb[0].mxu0
  %v4206 = vadd.f32 0.0, %v4205
  %v4207 = vpop.f32.mrb[0].mxu0
  %v4208 = vpop.f32.mrb[0].mxu0
  %v4209 = vpop.f32.mrb[0].mxu0
  %4210 = vdwg.mxu0
  %v4211 = vsel %vm159, %v4206, -inf
  %4212 = vmax.xlane.f32.xlu0 %v4211
  %v4213 = vpop.xlane.xlu0 %4212
  %v4214 = vsub.f32 %v4206, %v4213
  %v4215 = vmul.f32 %v4214, 1.442695
  %v4216 = vpow.pop %v4215
  %v4217 = vsel %vm159, %v4216, 0.0
  %4218 = vadd.xlane.f32.xlu0 %v4217
  %v4219 = vpop.xlane.xlu0 %4218
  %v4220 = vrcp.pop %v4219
  %v4221 = vmul.f32 %v4216, %v4220
  %v4222 = vpack.c.bf16 %v4221, %v4221
  %4223 = vrot.lane.b32.xlu0 %v3942, 80
  %v4224 = vpop.permute.xlu0 %4223
  %v4226 = vsel %vm159, %v4222, 0
  %v4229 = vsel %vm223, %v4224, 0
  %4231 = vmatprep.subr.bf16.mxu0 0
  %4232 = vmatpush1.bf16.msra.mxu0 %v4229
  %4233 = vmatprep.subr.bf16.mxu0 0
  %4234 = vmatpush1.bf16.msra.mxu0 0
  %4235 = vmatprep.subr.bf16.mxu0 0
  %4236 = vmatpush1.bf16.msra.mxu0 0
  %4237 = vmatprep.subr.bf16.mxu0 0
  %4238 = vmatpush1.bf16.msra.mxu0 0
  %4239 = vmatprep.subr.bf16.mxu0 0
  %4240 = vmatpush1.bf16.msra.mxu0 0
  %4241 = vmatprep.subr.bf16.mxu0 0
  %4242 = vmatpush1.bf16.msra.mxu0 0
  %4243 = vmatprep.subr.bf16.mxu0 0
  %4244 = vmatpush1.bf16.msra.mxu0 0
  %4245 = vmatprep.subr.bf16.mxu0 0
  %4246 = vmatpush1.bf16.msra.mxu0 0
  %4247 = vmatprep.subr.bf16.mxu0 0
  %4248 = vmatpush1.bf16.msra.mxu0 0
  %4249 = vmatprep.subr.bf16.mxu0 0
  %4250 = vmatpush1.bf16.msra.mxu0 0
  %4251 = vmatprep.subr.bf16.mxu0 0
  %4252 = vmatpush1.bf16.msra.mxu0 0
  %4253 = vmatprep.subr.bf16.mxu0 0
  %4254 = vmatpush1.bf16.msra.mxu0 0
  %4255 = vmatprep.subr.bf16.mxu0 0
  %4256 = vmatpush1.bf16.msra.mxu0 0
  %4257 = vmatprep.subr.bf16.mxu0 0
  %4258 = vmatpush1.bf16.msra.mxu0 0
  %4259 = vmatprep.subr.bf16.mxu0 0
  %4260 = vmatpush1.bf16.msra.mxu0 0
  %4261 = vmatprep.subr.bf16.mxu0 0
  %4262 = vmatpush1.bf16.msra.mxu0 0
  %4263 = vmatprep.mubr.bf16.mxu0 0
  %4264 = vmatmul.mubr.bf16.gmra.mrb[0].mxu0 %v4226
  %v4265 = vpop.f32.mrb[0].mxu0
  %v4266 = vadd.f32 0.0, %v4265
  %v4267 = vpop.f32.mrb[0].mxu0
  %v4268 = vpop.f32.mrb[0].mxu0
  %v4269 = vpop.f32.mrb[0].mxu0
  %4270 = vdwg.mxu0
  %4271 = vrot.lane.b32.xlu0 %v3941, 104
  %v4272 = vpop.permute.xlu0 %4271
  %4273 = vrot.lane.b32.xlu0 %v3942, 104
  %v4274 = vpop.permute.xlu0 %4273
  %v4276 = vsel %vm159, %v4272, 0
  %v4279 = vsel %vm159, %v4274, 0
  %4281 = vmatprep.subr.bf16.mxu0 0
  %4282 = vmatpush1.bf16.xpose.msra.mxu0 %v4279
  %4283 = vmatprep.subr.bf16.mxu0 0
  %4284 = vmatpush1.bf16.xpose.msra.mxu0 0
  %4285 = vmatprep.subr.bf16.mxu0 0
  %4286 = vmatpush1.bf16.xpose.msra.mxu0 0
  %4287 = vmatprep.subr.bf16.mxu0 0
  %4288 = vmatpush1.bf16.xpose.msra.mxu0 0
  %4289 = vmatprep.subr.bf16.mxu0 0
  %4290 = vmatpush1.bf16.xpose.msra.mxu0 0
  %4291 = vmatprep.subr.bf16.mxu0 0
  %4292 = vmatpush1.bf16.xpose.msra.mxu0 0
  %4293 = vmatprep.subr.bf16.mxu0 0
  %4294 = vmatpush1.bf16.xpose.msra.mxu0 0
  %4295 = vmatprep.subr.bf16.mxu0 0
  %4296 = vmatpush1.bf16.xpose.msra.mxu0 0
  %4297 = vmatprep.subr.bf16.mxu0 0
  %4298 = vmatpush1.bf16.xpose.msra.mxu0 0
  %4299 = vmatprep.subr.bf16.mxu0 0
  %4300 = vmatpush1.bf16.xpose.msra.mxu0 0
  %4301 = vmatprep.subr.bf16.mxu0 0
  %4302 = vmatpush1.bf16.xpose.msra.mxu0 0
  %4303 = vmatprep.subr.bf16.mxu0 0
  %4304 = vmatpush1.bf16.xpose.msra.mxu0 0
  %4305 = vmatprep.subr.bf16.mxu0 0
  %4306 = vmatpush1.bf16.xpose.msra.mxu0 0
  %4307 = vmatprep.subr.bf16.mxu0 0
  %4308 = vmatpush1.bf16.xpose.msra.mxu0 0
  %4309 = vmatprep.subr.bf16.mxu0 0
  %4310 = vmatpush1.bf16.xpose.msra.mxu0 0
  %4311 = vmatprep.subr.bf16.mxu0 0
  %4312 = vmatpush1.bf16.xpose.msra.mxu0 0
  %4313 = vmatprep.mubr.bf16.mxu0 0
  %4314 = vmatmul.mubr.bf16.gmra.mrb[0].mxu0 %v4276
  %v4315 = vpop.f32.mrb[0].mxu0
  %v4316 = vadd.f32 0.0, %v4315
  %v4317 = vpop.f32.mrb[0].mxu0
  %v4318 = vpop.f32.mrb[0].mxu0
  %v4319 = vpop.f32.mrb[0].mxu0
  %4320 = vdwg.mxu0
  %v4321 = vsel %vm159, %v4316, -inf
  %4322 = vmax.xlane.f32.xlu0 %v4321
  %v4323 = vpop.xlane.xlu0 %4322
  %v4324 = vsub.f32 %v4316, %v4323
  %v4325 = vmul.f32 %v4324, 1.442695
  %v4326 = vpow.pop %v4325
  %v4327 = vsel %vm159, %v4326, 0.0
  %4328 = vadd.xlane.f32.xlu0 %v4327
  %v4329 = vpop.xlane.xlu0 %4328
  %v4330 = vrcp.pop %v4329
  %v4331 = vmul.f32 %v4326, %v4330
  %v4332 = vpack.c.bf16 %v4331, %v4331
  %4333 = vrot.lane.b32.xlu0 %v3942, 72
  %v4334 = vpop.permute.xlu0 %4333
  %v4336 = vsel %vm159, %v4332, 0
  %v4339 = vsel %vm223, %v4334, 0
  %4341 = vmatprep.subr.bf16.mxu0 0
  %4342 = vmatpush1.bf16.msra.mxu0 %v4339
  %4343 = vmatprep.subr.bf16.mxu0 0
  %4344 = vmatpush1.bf16.msra.mxu0 0
  %4345 = vmatprep.subr.bf16.mxu0 0
  %4346 = vmatpush1.bf16.msra.mxu0 0
  %4347 = vmatprep.subr.bf16.mxu0 0
  %4348 = vmatpush1.bf16.msra.mxu0 0
  %4349 = vmatprep.subr.bf16.mxu0 0
  %4350 = vmatpush1.bf16.msra.mxu0 0
  %4351 = vmatprep.subr.bf16.mxu0 0
  %4352 = vmatpush1.bf16.msra.mxu0 0
  %4353 = vmatprep.subr.bf16.mxu0 0
  %4354 = vmatpush1.bf16.msra.mxu0 0
  %4355 = vmatprep.subr.bf16.mxu0 0
  %4356 = vmatpush1.bf16.msra.mxu0 0
  %4357 = vmatprep.subr.bf16.mxu0 0
  %4358 = vmatpush1.bf16.msra.mxu0 0
  %4359 = vmatprep.subr.bf16.mxu0 0
  %4360 = vmatpush1.bf16.msra.mxu0 0
  %4361 = vmatprep.subr.bf16.mxu0 0
  %4362 = vmatpush1.bf16.msra.mxu0 0
  %4363 = vmatprep.subr.bf16.mxu0 0
  %4364 = vmatpush1.bf16.msra.mxu0 0
  %4365 = vmatprep.subr.bf16.mxu0 0
  %4366 = vmatpush1.bf16.msra.mxu0 0
  %4367 = vmatprep.subr.bf16.mxu0 0
  %4368 = vmatpush1.bf16.msra.mxu0 0
  %4369 = vmatprep.subr.bf16.mxu0 0
  %4370 = vmatpush1.bf16.msra.mxu0 0
  %4371 = vmatprep.subr.bf16.mxu0 0
  %4372 = vmatpush1.bf16.msra.mxu0 0
  %4373 = vmatprep.mubr.bf16.mxu0 0
  %4374 = vmatmul.mubr.bf16.gmra.mrb[0].mxu0 %v4336
  %v4375 = vpop.f32.mrb[0].mxu0
  %v4376 = vadd.f32 0.0, %v4375
  %v4377 = vpop.f32.mrb[0].mxu0
  %v4378 = vpop.f32.mrb[0].mxu0
  %v4379 = vpop.f32.mrb[0].mxu0
  %4380 = vdwg.mxu0
  %4382 = vrot.lane.b32.xlu0 %v4156, 8
  %v4383 = vpop.permute.xlu0 %4382
  %4386 = vrot.lane.b32.xlu0 %v4266, 16
  %v4387 = vpop.permute.xlu0 %4386
  %4390 = vrot.lane.b32.xlu0 %v4376, 24
  %v4391 = vpop.permute.xlu0 %4390
  %v4393 = vsel %vm159, %v4045, %v4383
  %v4394 = vsel %vm43, %v4393, %v4387
  %v4395 = vsel %vm611, %v4394, %v4391
  %v4396 = vrot.slane %v3941, 4
  %v4397 = vrot.slane %v3942, 4
  %v4399 = vsel %vm159, %v4396, 0
  %v4402 = vsel %vm159, %v4397, 0
  %4404 = vmatprep.subr.bf16.mxu0 0
  %4405 = vmatpush1.bf16.xpose.msra.mxu0 %v4402
  %4406 = vmatprep.subr.bf16.mxu0 0
  %4407 = vmatpush1.bf16.xpose.msra.mxu0 0
  %4408 = vmatprep.subr.bf16.mxu0 0
  %4409 = vmatpush1.bf16.xpose.msra.mxu0 0
  %4410 = vmatprep.subr.bf16.mxu0 0
  %4411 = vmatpush1.bf16.xpose.msra.mxu0 0
  %4412 = vmatprep.subr.bf16.mxu0 0
  %4413 = vmatpush1.bf16.xpose.msra.mxu0 0
  %4414 = vmatprep.subr.bf16.mxu0 0
  %4415 = vmatpush1.bf16.xpose.msra.mxu0 0
  %4416 = vmatprep.subr.bf16.mxu0 0
  %4417 = vmatpush1.bf16.xpose.msra.mxu0 0
  %4418 = vmatprep.subr.bf16.mxu0 0
  %4419 = vmatpush1.bf16.xpose.msra.mxu0 0
  %4420 = vmatprep.subr.bf16.mxu0 0
  %4421 = vmatpush1.bf16.xpose.msra.mxu0 0
  %4422 = vmatprep.subr.bf16.mxu0 0
  %4423 = vmatpush1.bf16.xpose.msra.mxu0 0
  %4424 = vmatprep.subr.bf16.mxu0 0
  %4425 = vmatpush1.bf16.xpose.msra.mxu0 0
  %4426 = vmatprep.subr.bf16.mxu0 0
  %4427 = vmatpush1.bf16.xpose.msra.mxu0 0
  %4428 = vmatprep.subr.bf16.mxu0 0
  %4429 = vmatpush1.bf16.xpose.msra.mxu0 0
  %4430 = vmatprep.subr.bf16.mxu0 0
  %4431 = vmatpush1.bf16.xpose.msra.mxu0 0
  %4432 = vmatprep.subr.bf16.mxu0 0
  %4433 = vmatpush1.bf16.xpose.msra.mxu0 0
  %4434 = vmatprep.subr.bf16.mxu0 0
  %4435 = vmatpush1.bf16.xpose.msra.mxu0 0
  %4436 = vmatprep.mubr.bf16.mxu0 0
  %4437 = vmatmul.mubr.bf16.gmra.mrb[0].mxu0 %v4399
  %v4438 = vpop.f32.mrb[0].mxu0
  %v4439 = vadd.f32 0.0, %v4438
  %v4440 = vpop.f32.mrb[0].mxu0
  %v4441 = vpop.f32.mrb[0].mxu0
  %v4442 = vpop.f32.mrb[0].mxu0
  %4443 = vdwg.mxu0
  %v4444 = vsel %vm159, %v4439, -inf
  %4445 = vmax.xlane.f32.xlu0 %v4444
  %v4446 = vpop.xlane.xlu0 %4445
  %v4447 = vsub.f32 %v4439, %v4446
  %v4448 = vmul.f32 %v4447, 1.442695
  %v4449 = vpow.pop %v4448
  %v4450 = vsel %vm159, %v4449, 0.0
  %4451 = vadd.xlane.f32.xlu0 %v4450
  %v4452 = vpop.xlane.xlu0 %4451
  %v4453 = vrcp.pop %v4452
  %v4454 = vmul.f32 %v4449, %v4453
  %v4455 = vpack.c.bf16 %v4454, %v4454
  %4456 = vrot.lane.b32.xlu0 %v4397, 96
  %v4457 = vpop.permute.xlu0 %4456
  %v4459 = vsel %vm159, %v4455, 0
  %v4462 = vsel %vm223, %v4457, 0
  %4464 = vmatprep.subr.bf16.mxu0 0
  %4465 = vmatpush1.bf16.msra.mxu0 %v4462
  %4466 = vmatprep.subr.bf16.mxu0 0
  %4467 = vmatpush1.bf16.msra.mxu0 0
  %4468 = vmatprep.subr.bf16.mxu0 0
  %4469 = vmatpush1.bf16.msra.mxu0 0
  %4470 = vmatprep.subr.bf16.mxu0 0
  %4471 = vmatpush1.bf16.msra.mxu0 0
  %4472 = vmatprep.subr.bf16.mxu0 0
  %4473 = vmatpush1.bf16.msra.mxu0 0
  %4474 = vmatprep.subr.bf16.mxu0 0
  %4475 = vmatpush1.bf16.msra.mxu0 0
  %4476 = vmatprep.subr.bf16.mxu0 0
  %4477 = vmatpush1.bf16.msra.mxu0 0
  %4478 = vmatprep.subr.bf16.mxu0 0
  %4479 = vmatpush1.bf16.msra.mxu0 0
  %4480 = vmatprep.subr.bf16.mxu0 0
  %4481 = vmatpush1.bf16.msra.mxu0 0
  %4482 = vmatprep.subr.bf16.mxu0 0
  %4483 = vmatpush1.bf16.msra.mxu0 0
  %4484 = vmatprep.subr.bf16.mxu0 0
  %4485 = vmatpush1.bf16.msra.mxu0 0
  %4486 = vmatprep.subr.bf16.mxu0 0
  %4487 = vmatpush1.bf16.msra.mxu0 0
  %4488 = vmatprep.subr.bf16.mxu0 0
  %4489 = vmatpush1.bf16.msra.mxu0 0
  %4490 = vmatprep.subr.bf16.mxu0 0
  %4491 = vmatpush1.bf16.msra.mxu0 0
  %4492 = vmatprep.subr.bf16.mxu0 0
  %4493 = vmatpush1.bf16.msra.mxu0 0
  %4494 = vmatprep.subr.bf16.mxu0 0
  %4495 = vmatpush1.bf16.msra.mxu0 0
  %4496 = vmatprep.mubr.bf16.mxu0 0
  %4497 = vmatmul.mubr.bf16.gmra.mrb[0].mxu0 %v4459
  %v4498 = vpop.f32.mrb[0].mxu0
  %v4499 = vadd.f32 0.0, %v4498
  %v4500 = vpop.f32.mrb[0].mxu0
  %v4501 = vpop.f32.mrb[0].mxu0
  %v4502 = vpop.f32.mrb[0].mxu0
  %4503 = vdwg.mxu0
  %4504 = vrot.lane.b32.xlu0 %v4396, 120
  %v4505 = vpop.permute.xlu0 %4504
  %4506 = vrot.lane.b32.xlu0 %v4397, 120
  %v4507 = vpop.permute.xlu0 %4506
  %v4509 = vsel %vm159, %v4505, 0
  %v4512 = vsel %vm159, %v4507, 0
  %4514 = vmatprep.subr.bf16.mxu0 0
  %4515 = vmatpush1.bf16.xpose.msra.mxu0 %v4512
  %4516 = vmatprep.subr.bf16.mxu0 0
  %4517 = vmatpush1.bf16.xpose.msra.mxu0 0
  %4518 = vmatprep.subr.bf16.mxu0 0
  %4519 = vmatpush1.bf16.xpose.msra.mxu0 0
  %4520 = vmatprep.subr.bf16.mxu0 0
  %4521 = vmatpush1.bf16.xpose.msra.mxu0 0
  %4522 = vmatprep.subr.bf16.mxu0 0
  %4523 = vmatpush1.bf16.xpose.msra.mxu0 0
  %4524 = vmatprep.subr.bf16.mxu0 0
  %4525 = vmatpush1.bf16.xpose.msra.mxu0 0
  %4526 = vmatprep.subr.bf16.mxu0 0
  %4527 = vmatpush1.bf16.xpose.msra.mxu0 0
  %4528 = vmatprep.subr.bf16.mxu0 0
  %4529 = vmatpush1.bf16.xpose.msra.mxu0 0
  %4530 = vmatprep.subr.bf16.mxu0 0
  %4531 = vmatpush1.bf16.xpose.msra.mxu0 0
  %4532 = vmatprep.subr.bf16.mxu0 0
  %4533 = vmatpush1.bf16.xpose.msra.mxu0 0
  %4534 = vmatprep.subr.bf16.mxu0 0
  %4535 = vmatpush1.bf16.xpose.msra.mxu0 0
  %4536 = vmatprep.subr.bf16.mxu0 0
  %4537 = vmatpush1.bf16.xpose.msra.mxu0 0
  %4538 = vmatprep.subr.bf16.mxu0 0
  %4539 = vmatpush1.bf16.xpose.msra.mxu0 0
  %4540 = vmatprep.subr.bf16.mxu0 0
  %4541 = vmatpush1.bf16.xpose.msra.mxu0 0
  %4542 = vmatprep.subr.bf16.mxu0 0
  %4543 = vmatpush1.bf16.xpose.msra.mxu0 0
  %4544 = vmatprep.subr.bf16.mxu0 0
  %4545 = vmatpush1.bf16.xpose.msra.mxu0 0
  %4546 = vmatprep.mubr.bf16.mxu0 0
  %4547 = vmatmul.mubr.bf16.gmra.mrb[0].mxu0 %v4509
  %v4548 = vpop.f32.mrb[0].mxu0
  %v4549 = vadd.f32 0.0, %v4548
  %v4550 = vpop.f32.mrb[0].mxu0
  %v4551 = vpop.f32.mrb[0].mxu0
  %v4552 = vpop.f32.mrb[0].mxu0
  %4553 = vdwg.mxu0
  %v4554 = vsel %vm159, %v4549, -inf
  %4555 = vmax.xlane.f32.xlu0 %v4554
  %v4556 = vpop.xlane.xlu0 %4555
  %v4557 = vsub.f32 %v4549, %v4556
  %v4558 = vmul.f32 %v4557, 1.442695
  %v4559 = vpow.pop %v4558
  %v4560 = vsel %vm159, %v4559, 0.0
  %4561 = vadd.xlane.f32.xlu0 %v4560
  %v4562 = vpop.xlane.xlu0 %4561
  %v4563 = vrcp.pop %v4562
  %v4564 = vmul.f32 %v4559, %v4563
  %v4565 = vpack.c.bf16 %v4564, %v4564
  %4566 = vrot.lane.b32.xlu0 %v4397, 88
  %v4567 = vpop.permute.xlu0 %4566
  %v4569 = vsel %vm159, %v4565, 0
  %v4572 = vsel %vm223, %v4567, 0
  %4574 = vmatprep.subr.bf16.mxu0 0
  %4575 = vmatpush1.bf16.msra.mxu0 %v4572
  %4576 = vmatprep.subr.bf16.mxu0 0
  %4577 = vmatpush1.bf16.msra.mxu0 0
  %4578 = vmatprep.subr.bf16.mxu0 0
  %4579 = vmatpush1.bf16.msra.mxu0 0
  %4580 = vmatprep.subr.bf16.mxu0 0
  %4581 = vmatpush1.bf16.msra.mxu0 0
  %4582 = vmatprep.subr.bf16.mxu0 0
  %4583 = vmatpush1.bf16.msra.mxu0 0
  %4584 = vmatprep.subr.bf16.mxu0 0
  %4585 = vmatpush1.bf16.msra.mxu0 0
  %4586 = vmatprep.subr.bf16.mxu0 0
  %4587 = vmatpush1.bf16.msra.mxu0 0
  %4588 = vmatprep.subr.bf16.mxu0 0
  %4589 = vmatpush1.bf16.msra.mxu0 0
  %4590 = vmatprep.subr.bf16.mxu0 0
  %4591 = vmatpush1.bf16.msra.mxu0 0
  %4592 = vmatprep.subr.bf16.mxu0 0
  %4593 = vmatpush1.bf16.msra.mxu0 0
  %4594 = vmatprep.subr.bf16.mxu0 0
  %4595 = vmatpush1.bf16.msra.mxu0 0
  %4596 = vmatprep.subr.bf16.mxu0 0
  %4597 = vmatpush1.bf16.msra.mxu0 0
  %4598 = vmatprep.subr.bf16.mxu0 0
  %4599 = vmatpush1.bf16.msra.mxu0 0
  %4600 = vmatprep.subr.bf16.mxu0 0
  %4601 = vmatpush1.bf16.msra.mxu0 0
  %4602 = vmatprep.subr.bf16.mxu0 0
  %4603 = vmatpush1.bf16.msra.mxu0 0
  %4604 = vmatprep.subr.bf16.mxu0 0
  %4605 = vmatpush1.bf16.msra.mxu0 0
  %4606 = vmatprep.mubr.bf16.mxu0 0
  %4607 = vmatmul.mubr.bf16.gmra.mrb[0].mxu0 %v4569
  %v4608 = vpop.f32.mrb[0].mxu0
  %v4609 = vadd.f32 0.0, %v4608
  %v4610 = vpop.f32.mrb[0].mxu0
  %v4611 = vpop.f32.mrb[0].mxu0
  %v4612 = vpop.f32.mrb[0].mxu0
  %4613 = vdwg.mxu0
  %4614 = vrot.lane.b32.xlu0 %v4396, 112
  %v4615 = vpop.permute.xlu0 %4614
  %4616 = vrot.lane.b32.xlu0 %v4397, 112
  %v4617 = vpop.permute.xlu0 %4616
  %v4619 = vsel %vm159, %v4615, 0
  %v4622 = vsel %vm159, %v4617, 0
  %4624 = vmatprep.subr.bf16.mxu0 0
  %4625 = vmatpush1.bf16.xpose.msra.mxu0 %v4622
  %4626 = vmatprep.subr.bf16.mxu0 0
  %4627 = vmatpush1.bf16.xpose.msra.mxu0 0
  %4628 = vmatprep.subr.bf16.mxu0 0
  %4629 = vmatpush1.bf16.xpose.msra.mxu0 0
  %4630 = vmatprep.subr.bf16.mxu0 0
  %4631 = vmatpush1.bf16.xpose.msra.mxu0 0
  %4632 = vmatprep.subr.bf16.mxu0 0
  %4633 = vmatpush1.bf16.xpose.msra.mxu0 0
  %4634 = vmatprep.subr.bf16.mxu0 0
  %4635 = vmatpush1.bf16.xpose.msra.mxu0 0
  %4636 = vmatprep.subr.bf16.mxu0 0
  %4637 = vmatpush1.bf16.xpose.msra.mxu0 0
  %4638 = vmatprep.subr.bf16.mxu0 0
  %4639 = vmatpush1.bf16.xpose.msra.mxu0 0
  %4640 = vmatprep.subr.bf16.mxu0 0
  %4641 = vmatpush1.bf16.xpose.msra.mxu0 0
  %4642 = vmatprep.subr.bf16.mxu0 0
  %4643 = vmatpush1.bf16.xpose.msra.mxu0 0
  %4644 = vmatprep.subr.bf16.mxu0 0
  %4645 = vmatpush1.bf16.xpose.msra.mxu0 0
  %4646 = vmatprep.subr.bf16.mxu0 0
  %4647 = vmatpush1.bf16.xpose.msra.mxu0 0
  %4648 = vmatprep.subr.bf16.mxu0 0
  %4649 = vmatpush1.bf16.xpose.msra.mxu0 0
  %4650 = vmatprep.subr.bf16.mxu0 0
  %4651 = vmatpush1.bf16.xpose.msra.mxu0 0
  %4652 = vmatprep.subr.bf16.mxu0 0
  %4653 = vmatpush1.bf16.xpose.msra.mxu0 0
  %4654 = vmatprep.subr.bf16.mxu0 0
  %4655 = vmatpush1.bf16.xpose.msra.mxu0 0
  %4656 = vmatprep.mubr.bf16.mxu0 0
  %4657 = vmatmul.mubr.bf16.gmra.mrb[0].mxu0 %v4619
  %v4658 = vpop.f32.mrb[0].mxu0
  %v4659 = vadd.f32 0.0, %v4658
  %v4660 = vpop.f32.mrb[0].mxu0
  %v4661 = vpop.f32.mrb[0].mxu0
  %v4662 = vpop.f32.mrb[0].mxu0
  %4663 = vdwg.mxu0
  %v4664 = vsel %vm159, %v4659, -inf
  %4665 = vmax.xlane.f32.xlu0 %v4664
  %v4666 = vpop.xlane.xlu0 %4665
  %v4667 = vsub.f32 %v4659, %v4666
  %v4668 = vmul.f32 %v4667, 1.442695
  %v4669 = vpow.pop %v4668
  %v4670 = vsel %vm159, %v4669, 0.0
  %4671 = vadd.xlane.f32.xlu0 %v4670
  %v4672 = vpop.xlane.xlu0 %4671
  %v4673 = vrcp.pop %v4672
  %v4674 = vmul.f32 %v4669, %v4673
  %v4675 = vpack.c.bf16 %v4674, %v4674
  %4676 = vrot.lane.b32.xlu0 %v4397, 80
  %v4677 = vpop.permute.xlu0 %4676
  %v4679 = vsel %vm159, %v4675, 0
  %v4682 = vsel %vm223, %v4677, 0
  %4684 = vmatprep.subr.bf16.mxu0 0
  %4685 = vmatpush1.bf16.msra.mxu0 %v4682
  %4686 = vmatprep.subr.bf16.mxu0 0
  %4687 = vmatpush1.bf16.msra.mxu0 0
  %4688 = vmatprep.subr.bf16.mxu0 0
  %4689 = vmatpush1.bf16.msra.mxu0 0
  %4690 = vmatprep.subr.bf16.mxu0 0
  %4691 = vmatpush1.bf16.msra.mxu0 0
  %4692 = vmatprep.subr.bf16.mxu0 0
  %4693 = vmatpush1.bf16.msra.mxu0 0
  %4694 = vmatprep.subr.bf16.mxu0 0
  %4695 = vmatpush1.bf16.msra.mxu0 0
  %4696 = vmatprep.subr.bf16.mxu0 0
  %4697 = vmatpush1.bf16.msra.mxu0 0
  %4698 = vmatprep.subr.bf16.mxu0 0
  %4699 = vmatpush1.bf16.msra.mxu0 0
  %4700 = vmatprep.subr.bf16.mxu0 0
  %4701 = vmatpush1.bf16.msra.mxu0 0
  %4702 = vmatprep.subr.bf16.mxu0 0
  %4703 = vmatpush1.bf16.msra.mxu0 0
  %4704 = vmatprep.subr.bf16.mxu0 0
  %4705 = vmatpush1.bf16.msra.mxu0 0
  %4706 = vmatprep.subr.bf16.mxu0 0
  %4707 = vmatpush1.bf16.msra.mxu0 0
  %4708 = vmatprep.subr.bf16.mxu0 0
  %4709 = vmatpush1.bf16.msra.mxu0 0
  %4710 = vmatprep.subr.bf16.mxu0 0
  %4711 = vmatpush1.bf16.msra.mxu0 0
  %4712 = vmatprep.subr.bf16.mxu0 0
  %4713 = vmatpush1.bf16.msra.mxu0 0
  %4714 = vmatprep.subr.bf16.mxu0 0
  %4715 = vmatpush1.bf16.msra.mxu0 0
  %4716 = vmatprep.mubr.bf16.mxu0 0
  %4717 = vmatmul.mubr.bf16.gmra.mrb[0].mxu0 %v4679
  %v4718 = vpop.f32.mrb[0].mxu0
  %v4719 = vadd.f32 0.0, %v4718
  %v4720 = vpop.f32.mrb[0].mxu0
  %v4721 = vpop.f32.mrb[0].mxu0
  %v4722 = vpop.f32.mrb[0].mxu0
  %4723 = vdwg.mxu0
  %4724 = vrot.lane.b32.xlu0 %v4396, 104
  %v4725 = vpop.permute.xlu0 %4724
  %4726 = vrot.lane.b32.xlu0 %v4397, 104
  %v4727 = vpop.permute.xlu0 %4726
  %v4729 = vsel %vm159, %v4725, 0
  %v4732 = vsel %vm159, %v4727, 0
  %4734 = vmatprep.subr.bf16.mxu0 0
  %4735 = vmatpush1.bf16.xpose.msra.mxu0 %v4732
  %4736 = vmatprep.subr.bf16.mxu0 0
  %4737 = vmatpush1.bf16.xpose.msra.mxu0 0
  %4738 = vmatprep.subr.bf16.mxu0 0
  %4739 = vmatpush1.bf16.xpose.msra.mxu0 0
  %4740 = vmatprep.subr.bf16.mxu0 0
  %4741 = vmatpush1.bf16.xpose.msra.mxu0 0
  %4742 = vmatprep.subr.bf16.mxu0 0
  %4743 = vmatpush1.bf16.xpose.msra.mxu0 0
  %4744 = vmatprep.subr.bf16.mxu0 0
  %4745 = vmatpush1.bf16.xpose.msra.mxu0 0
  %4746 = vmatprep.subr.bf16.mxu0 0
  %4747 = vmatpush1.bf16.xpose.msra.mxu0 0
  %4748 = vmatprep.subr.bf16.mxu0 0
  %4749 = vmatpush1.bf16.xpose.msra.mxu0 0
  %4750 = vmatprep.subr.bf16.mxu0 0
  %4751 = vmatpush1.bf16.xpose.msra.mxu0 0
  %4752 = vmatprep.subr.bf16.mxu0 0
  %4753 = vmatpush1.bf16.xpose.msra.mxu0 0
  %4754 = vmatprep.subr.bf16.mxu0 0
  %4755 = vmatpush1.bf16.xpose.msra.mxu0 0
  %4756 = vmatprep.subr.bf16.mxu0 0
  %4757 = vmatpush1.bf16.xpose.msra.mxu0 0
  %4758 = vmatprep.subr.bf16.mxu0 0
  %4759 = vmatpush1.bf16.xpose.msra.mxu0 0
  %4760 = vmatprep.subr.bf16.mxu0 0
  %4761 = vmatpush1.bf16.xpose.msra.mxu0 0
  %4762 = vmatprep.subr.bf16.mxu0 0
  %4763 = vmatpush1.bf16.xpose.msra.mxu0 0
  %4764 = vmatprep.subr.bf16.mxu0 0
  %4765 = vmatpush1.bf16.xpose.msra.mxu0 0
  %4766 = vmatprep.mubr.bf16.mxu0 0
  %4767 = vmatmul.mubr.bf16.gmra.mrb[0].mxu0 %v4729
  %v4768 = vpop.f32.mrb[0].mxu0
  %v4769 = vadd.f32 0.0, %v4768
  %v4770 = vpop.f32.mrb[0].mxu0
  %v4771 = vpop.f32.mrb[0].mxu0
  %v4772 = vpop.f32.mrb[0].mxu0
  %4773 = vdwg.mxu0
  %v4774 = vsel %vm159, %v4769, -inf
  %4775 = vmax.xlane.f32.xlu0 %v4774
  %v4776 = vpop.xlane.xlu0 %4775
  %v4777 = vsub.f32 %v4769, %v4776
  %v4778 = vmul.f32 %v4777, 1.442695
  %v4779 = vpow.pop %v4778
  %v4780 = vsel %vm159, %v4779, 0.0
  %4781 = vadd.xlane.f32.xlu0 %v4780
  %v4782 = vpop.xlane.xlu0 %4781
  %v4783 = vrcp.pop %v4782
  %v4784 = vmul.f32 %v4779, %v4783
  %v4785 = vpack.c.bf16 %v4784, %v4784
  %4786 = vrot.lane.b32.xlu0 %v4397, 72
  %v4787 = vpop.permute.xlu0 %4786
  %v4789 = vsel %vm159, %v4785, 0
  %v4792 = vsel %vm223, %v4787, 0
  %4794 = vmatprep.subr.bf16.mxu0 0
  %4795 = vmatpush1.bf16.msra.mxu0 %v4792
  %4796 = vmatprep.subr.bf16.mxu0 0
  %4797 = vmatpush1.bf16.msra.mxu0 0
  %4798 = vmatprep.subr.bf16.mxu0 0
  %4799 = vmatpush1.bf16.msra.mxu0 0
  %4800 = vmatprep.subr.bf16.mxu0 0
  %4801 = vmatpush1.bf16.msra.mxu0 0
  %4802 = vmatprep.subr.bf16.mxu0 0
  %4803 = vmatpush1.bf16.msra.mxu0 0
  %4804 = vmatprep.subr.bf16.mxu0 0
  %4805 = vmatpush1.bf16.msra.mxu0 0
  %4806 = vmatprep.subr.bf16.mxu0 0
  %4807 = vmatpush1.bf16.msra.mxu0 0
  %4808 = vmatprep.subr.bf16.mxu0 0
  %4809 = vmatpush1.bf16.msra.mxu0 0
  %4810 = vmatprep.subr.bf16.mxu0 0
  %4811 = vmatpush1.bf16.msra.mxu0 0
  %4812 = vmatprep.subr.bf16.mxu0 0
  %4813 = vmatpush1.bf16.msra.mxu0 0
  %4814 = vmatprep.subr.bf16.mxu0 0
  %4815 = vmatpush1.bf16.msra.mxu0 0
  %4816 = vmatprep.subr.bf16.mxu0 0
  %4817 = vmatpush1.bf16.msra.mxu0 0
  %4818 = vmatprep.subr.bf16.mxu0 0
  %4819 = vmatpush1.bf16.msra.mxu0 0
  %4820 = vmatprep.subr.bf16.mxu0 0
  %4821 = vmatpush1.bf16.msra.mxu0 0
  %4822 = vmatprep.subr.bf16.mxu0 0
  %4823 = vmatpush1.bf16.msra.mxu0 0
  %4824 = vmatprep.subr.bf16.mxu0 0
  %4825 = vmatpush1.bf16.msra.mxu0 0
  %4826 = vmatprep.mubr.bf16.mxu0 0
  %4827 = vmatmul.mubr.bf16.gmra.mrb[0].mxu0 %v4789
  %v4828 = vpop.f32.mrb[0].mxu0
  %v4829 = vadd.f32 0.0, %v4828
  %v4830 = vpop.f32.mrb[0].mxu0
  %v4831 = vpop.f32.mrb[0].mxu0
  %v4832 = vpop.f32.mrb[0].mxu0
  %4833 = vdwg.mxu0
  %4835 = vrot.lane.b32.xlu0 %v4609, 8
  %v4836 = vpop.permute.xlu0 %4835
  %4839 = vrot.lane.b32.xlu0 %v4719, 16
  %v4840 = vpop.permute.xlu0 %4839
  %4843 = vrot.lane.b32.xlu0 %v4829, 24
  %v4844 = vpop.permute.xlu0 %4843
  %v4846 = vsel %vm159, %v4499, %v4836
  %v4847 = vsel %vm43, %v4846, %v4840
  %v4848 = vsel %vm611, %v4847, %v4844
  %v4849 = vld [vmem:[%s1 + $0xb8] sm:$0xf]
  %v4850 = vld [vmem:[%s1 + $0xbc] sm:$0xf]
  %v4851 = vld [vmem:[%s1 + $0xc0] sm:$0xf]
  %v4852 = vld [vmem:[%s1 + $0xc4] sm:$0xf]
  %v4853 = vpack.c.bf16 %v4848, %v4395
  %v4854 = vld [vmem:[%s4 + $0xe] sm:$0x1]
  %v4855 = vlaneseq
  %v4856 = vshrl.u32 %v4855, 7
  %v4857 = vsub.s32 0, %v4856
  %v4858 = vrot.slane %v4854, %v4857
  %v4863 = vunpack.c.l.b16 %v4849
  %v4864 = vunpack.c.l.b16 %v4850
  %v4865 = vunpack.c.l.b16 %v4851
  %v4866 = vunpack.c.l.b16 %v4852
  %v4867 = vpack.c.b16 %v4864, %v4863
  %v4868 = vpack.c.b16 %v4866, %v4865
  %v4872 = vsel %vm110, %v4853, 0
  %4874 = vmatprep.subr.bf16.mxu0 0
  %4875 = vmatpush1.bf16.msra.mxu0 %v4867
  %4876 = vmatprep.subr.bf16.mxu0 0
  %4877 = vmatpush1.bf16.msra.mxu0 %v4868
  %4878 = vmatprep.subr.bf16.mxu0 0
  %4879 = vmatpush1.bf16.msra.mxu0 0
  %4880 = vmatprep.subr.bf16.mxu0 0
  %4881 = vmatpush1.bf16.msra.mxu0 0
  %4882 = vmatprep.subr.bf16.mxu0 0
  %4883 = vmatpush1.bf16.msra.mxu0 0
  %4884 = vmatprep.subr.bf16.mxu0 0
  %4885 = vmatpush1.bf16.msra.mxu0 0
  %4886 = vmatprep.subr.bf16.mxu0 0
  %4887 = vmatpush1.bf16.msra.mxu0 0
  %4888 = vmatprep.subr.bf16.mxu0 0
  %4889 = vmatpush1.bf16.msra.mxu0 0
  %4890 = vmatprep.subr.bf16.mxu0 0
  %4891 = vmatpush1.bf16.msra.mxu0 0
  %4892 = vmatprep.subr.bf16.mxu0 0
  %4893 = vmatpush1.bf16.msra.mxu0 0
  %4894 = vmatprep.subr.bf16.mxu0 0
  %4895 = vmatpush1.bf16.msra.mxu0 0
  %4896 = vmatprep.subr.bf16.mxu0 0
  %4897 = vmatpush1.bf16.msra.mxu0 0
  %4898 = vmatprep.subr.bf16.mxu0 0
  %4899 = vmatpush1.bf16.msra.mxu0 0
  %4900 = vmatprep.subr.bf16.mxu0 0
  %4901 = vmatpush1.bf16.msra.mxu0 0
  %4902 = vmatprep.subr.bf16.mxu0 0
  %4903 = vmatpush1.bf16.msra.mxu0 0
  %4904 = vmatprep.subr.bf16.mxu0 0
  %4905 = vmatpush1.bf16.msra.mxu0 0
  %4906 = vmatprep.mubr.bf16.mxu0 0
  %4907 = vmatmul.mubr.bf16.gmra.mrb[0].mxu0 %v4872
  %v4908 = vpop.f32.mrb[0].mxu0
  %v4909 = vadd.f32 %v4858, %v4908
  %v4910 = vpop.f32.mrb[0].mxu0
  %v4911 = vpop.f32.mrb[0].mxu0
  %v4912 = vadd.f32 %v4858, %v4911
  %v4913 = vpop.f32.mrb[0].mxu0
  %4914 = vdwg.mxu0
  %v4915 = vadd.f32 %v3818, %v4909
  %v4916 = vadd.f32 %v3819, %v4912
  %v4917 = vld [vmem:[%s4 + $0x12] sm:$0x1]
  %v4918 = vld [vmem:[%s4 + $0x13] sm:$0x1]
  %v4919 = vsel %vm110, %v4915, 0.0
  %4920 = vadd.xlane.f32.xlu0 %v4919
  %v4921 = vpop.xlane.xlu0 %4920
  %v4922 = vsel %vm110, %v4916, 0.0
  %4923 = vadd.xlane.f32.xlu0 %v4922
  %v4924 = vpop.xlane.xlu0 %4923
  %v4925 = vmul.f32 %v4921, %v1143
  %v4926 = vmul.f32 %v4924, %v1143
  %v4927 = vsub.f32 %v4915, %v4925
  %v4928 = vsub.f32 %v4916, %v4926
  %v4929 = vmul.f32 %v4927, %v4927
  %v4930 = vmul.f32 %v4928, %v4928
  %v4931 = vsel %vm110, %v4929, 0.0
  %4932 = vadd.xlane.f32.xlu0 %v4931
  %v4933 = vpop.xlane.xlu0 %4932
  %v4934 = vsel %vm110, %v4930, 0.0
  %4935 = vadd.xlane.f32.xlu0 %v4934
  %v4936 = vpop.xlane.xlu0 %4935
  %v4937 = vmul.f32 %v4933, %v1143
  %v4938 = vmul.f32 %v4936, %v1143
  %v4939 = vadd.f32 %v4937, 1e-05
  %v4940 = vadd.f32 %v4938, 1e-05
  %v4941 = vrsqrt.pop %v4939
  %v4942 = vrsqrt.pop %v4940
  %v4943 = vmul.f32 %v4927, %v4941
  %v4944 = vmul.f32 %v4928, %v4942
  %v4945 = vlaneseq
  %v4946 = vshrl.u32 %v4945, 7
  %v4947 = vsub.s32 0, %v4946
  %v4948 = vrot.slane %v4917, %v4947
  %v4949 = vmul.f32 %v4943, %v4948
  %v4950 = vmul.f32 %v4944, %v4948
  %v4951 = vlaneseq
  %v4952 = vshrl.u32 %v4951, 7
  %v4953 = vsub.s32 0, %v4952
  %v4954 = vrot.slane %v4918, %v4953
  %v4955 = vadd.f32 %v4949, %v4954
  %v4956 = vadd.f32 %v4950, %v4954
  %v4957 = vld [vmem:[%s3 + $0x20] sm:$0xf]
  %v4958 = vld [vmem:[%s3 + $0x24] sm:$0xf]
  %v4959 = vld [vmem:[%s3 + $0x28] sm:$0xf]
  %v4960 = vld [vmem:[%s3 + $0x2c] sm:$0xf]
  %v4961 = vpack.c.bf16 %v4956, %v4955
  %v4962 = vld [vmem:[%s6 + $0x2] sm:$0x1]
  %v4963 = vlaneseq
  %v4964 = vshrl.u32 %v4963, 7
  %v4965 = vsub.s32 0, %v4964
  %v4966 = vrot.slane %v4962, %v4965
  %v4971 = vunpack.c.l.b16 %v4957
  %v4972 = vunpack.c.l.b16 %v4958
  %v4973 = vunpack.c.l.b16 %v4959
  %v4974 = vunpack.c.l.b16 %v4960
  %v4975 = vpack.c.b16 %v4972, %v4971
  %v4976 = vpack.c.b16 %v4974, %v4973
  %v4980 = vsel %vm110, %v4961, 0
  %4982 = vmatprep.subr.bf16.mxu0 0
  %4983 = vmatpush1.bf16.msra.mxu0 %v4975
  %4984 = vmatprep.subr.bf16.mxu0 0
  %4985 = vmatpush1.bf16.msra.mxu0 %v4976
  %4986 = vmatprep.subr.bf16.mxu0 0
  %4987 = vmatpush1.bf16.msra.mxu0 0
  %4988 = vmatprep.subr.bf16.mxu0 0
  %4989 = vmatpush1.bf16.msra.mxu0 0
  %4990 = vmatprep.subr.bf16.mxu0 0
  %4991 = vmatpush1.bf16.msra.mxu0 0
  %4992 = vmatprep.subr.bf16.mxu0 0
  %4993 = vmatpush1.bf16.msra.mxu0 0
  %4994 = vmatprep.subr.bf16.mxu0 0
  %4995 = vmatpush1.bf16.msra.mxu0 0
  %4996 = vmatprep.subr.bf16.mxu0 0
  %4997 = vmatpush1.bf16.msra.mxu0 0
  %4998 = vmatprep.subr.bf16.mxu0 0
  %4999 = vmatpush1.bf16.msra.mxu0 0
  %5000 = vmatprep.subr.bf16.mxu0 0
  %5001 = vmatpush1.bf16.msra.mxu0 0
  %5002 = vmatprep.subr.bf16.mxu0 0
  %5003 = vmatpush1.bf16.msra.mxu0 0
  %5004 = vmatprep.subr.bf16.mxu0 0
  %5005 = vmatpush1.bf16.msra.mxu0 0
  %5006 = vmatprep.subr.bf16.mxu0 0
  %5007 = vmatpush1.bf16.msra.mxu0 0
  %5008 = vmatprep.subr.bf16.mxu0 0
  %5009 = vmatpush1.bf16.msra.mxu0 0
  %5010 = vmatprep.subr.bf16.mxu0 0
  %5011 = vmatpush1.bf16.msra.mxu0 0
  %5012 = vmatprep.subr.bf16.mxu0 0
  %5013 = vmatpush1.bf16.msra.mxu0 0
  %5014 = vmatprep.mubr.bf16.mxu0 0
  %5015 = vmatmul.mubr.bf16.gmra.mrb[0].mxu0 %v4980
  %v5016 = vpop.f32.mrb[0].mxu0
  %v5017 = vadd.f32 %v4966, %v5016
  %v5018 = vpop.f32.mrb[0].mxu0
  %v5019 = vpop.f32.mrb[0].mxu0
  %v5020 = vadd.f32 %v4966, %v5019
  %v5021 = vpop.f32.mrb[0].mxu0
  %5022 = vdwg.mxu0
  %v5023 = vmax.f32 %v5017, 0.0
  %v5024 = vmax.f32 %v5020, 0.0
  %v5025 = vld [vmem:[%s1 + $0xc8] sm:$0xf]
  %v5026 = vld [vmem:[%s1 + $0xcc] sm:$0xf]
  %v5027 = vld [vmem:[%s1 + $0xd0] sm:$0xf]
  %v5028 = vld [vmem:[%s1 + $0xd4] sm:$0xf]
  %v5029 = vld [vmem:[%s1 + $0xd8] sm:$0xf]
  %v5030 = vld [vmem:[%s1 + $0xdc] sm:$0xf]
  %v5031 = vld [vmem:[%s1 + $0xe0] sm:$0xf]
  %v5032 = vld [vmem:[%s1 + $0xe4] sm:$0xf]
  %v5033 = vld [vmem:[%s1 + $0xe8] sm:$0xf]
  %v5034 = vld [vmem:[%s1 + $0xec] sm:$0xf]
  %v5035 = vld [vmem:[%s1 + $0xf0] sm:$0xf]
  %v5036 = vld [vmem:[%s1 + $0xf4] sm:$0xf]
  %v5037 = vld [vmem:[%s1 + $0xf8] sm:$0xf]
  %v5038 = vld [vmem:[%s1 + $0xfc] sm:$0xf]
  %v5039 = vld [vmem:[%s1 + $0x100] sm:$0xf]
  %v5040 = vld [vmem:[%s1 + $0x104] sm:$0xf]
  %v5041 = vpack.c.bf16 %v5024, %v5023
  %v5042 = vld [vmem:[%s4 + $0xf] sm:$0x1]
  %v5043 = vlaneseq
  %v5044 = vshrl.u32 %v5043, 7
  %v5045 = vsub.s32 0, %v5044
  %v5046 = vrot.slane %v5042, %v5045
  %v5063 = vunpack.c.l.b16 %v5025
  %v5064 = vunpack.c.l.b16 %v5026
  %v5065 = vunpack.c.l.b16 %v5027
  %v5066 = vunpack.c.l.b16 %v5028
  %v5067 = vunpack.c.l.b16 %v5029
  %v5068 = vunpack.c.l.b16 %v5030
  %v5069 = vunpack.c.l.b16 %v5031
  %v5070 = vunpack.c.l.b16 %v5032
  %v5071 = vunpack.c.l.b16 %v5033
  %v5072 = vunpack.c.l.b16 %v5034
  %v5073 = vunpack.c.l.b16 %v5035
  %v5074 = vunpack.c.l.b16 %v5036
  %v5075 = vunpack.c.l.b16 %v5037
  %v5076 = vunpack.c.l.b16 %v5038
  %v5077 = vunpack.c.l.b16 %v5039
  %v5078 = vunpack.c.l.b16 %v5040
  %v5079 = vpack.c.b16 %v5064, %v5063
  %v5080 = vpack.c.b16 %v5066, %v5065
  %v5081 = vpack.c.b16 %v5068, %v5067
  %v5082 = vpack.c.b16 %v5070, %v5069
  %v5083 = vpack.c.b16 %v5072, %v5071
  %v5084 = vpack.c.b16 %v5074, %v5073
  %v5085 = vpack.c.b16 %v5076, %v5075
  %v5086 = vpack.c.b16 %v5078, %v5077
  %5095 = vmatprep.subr.bf16.mxu0 0
  %5096 = vmatpush1.bf16.msra.mxu0 %v5079
  %5097 = vmatprep.subr.bf16.mxu0 0
  %5098 = vmatpush1.bf16.msra.mxu0 %v5080
  %5099 = vmatprep.subr.bf16.mxu0 0
  %5100 = vmatpush1.bf16.msra.mxu0 %v5081
  %5101 = vmatprep.subr.bf16.mxu0 0
  %5102 = vmatpush1.bf16.msra.mxu0 %v5082
  %5103 = vmatprep.subr.bf16.mxu0 0
  %5104 = vmatpush1.bf16.msra.mxu0 %v5083
  %5105 = vmatprep.subr.bf16.mxu0 0
  %5106 = vmatpush1.bf16.msra.mxu0 %v5084
  %5107 = vmatprep.subr.bf16.mxu0 0
  %5108 = vmatpush1.bf16.msra.mxu0 %v5085
  %5109 = vmatprep.subr.bf16.mxu0 0
  %5110 = vmatpush1.bf16.msra.mxu0 %v5086
  %5111 = vmatprep.subr.bf16.mxu0 0
  %5112 = vmatpush1.bf16.msra.mxu0 0
  %5113 = vmatprep.subr.bf16.mxu0 0
  %5114 = vmatpush1.bf16.msra.mxu0 0
  %5115 = vmatprep.subr.bf16.mxu0 0
  %5116 = vmatpush1.bf16.msra.mxu0 0
  %5117 = vmatprep.subr.bf16.mxu0 0
  %5118 = vmatpush1.bf16.msra.mxu0 0
  %5119 = vmatprep.subr.bf16.mxu0 0
  %5120 = vmatpush1.bf16.msra.mxu0 0
  %5121 = vmatprep.subr.bf16.mxu0 0
  %5122 = vmatpush1.bf16.msra.mxu0 0
  %5123 = vmatprep.subr.bf16.mxu0 0
  %5124 = vmatpush1.bf16.msra.mxu0 0
  %5125 = vmatprep.subr.bf16.mxu0 0
  %5126 = vmatpush1.bf16.msra.mxu0 0
  %5127 = vmatprep.mubr.bf16.mxu0 0
  %5128 = vmatmul.mubr.bf16.gmra.mrb[0].mxu0 %v5041
  %v5129 = vpop.f32.mrb[0].mxu0
  %v5130 = vadd.f32 %v5046, %v5129
  %v5131 = vpop.f32.mrb[0].mxu0
  %v5132 = vpop.f32.mrb[0].mxu0
  %v5133 = vadd.f32 %v5046, %v5132
  %v5134 = vpop.f32.mrb[0].mxu0
  %5135 = vdwg.mxu0
  %v5136 = vadd.f32 %v4955, %v5130
  %v5137 = vadd.f32 %v4956, %v5133
  %v5138 = vld [vmem:[%s4 + $0x14] sm:$0x1]
  %v5139 = vld [vmem:[%s4 + $0x15] sm:$0x1]
  %v5140 = vsel %vm110, %v5136, 0.0
  %5141 = vadd.xlane.f32.xlu0 %v5140
  %v5142 = vpop.xlane.xlu0 %5141
  %v5143 = vsel %vm110, %v5137, 0.0
  %5144 = vadd.xlane.f32.xlu0 %v5143
  %v5145 = vpop.xlane.xlu0 %5144
  %v5146 = vmul.f32 %v5142, %v1143
  %v5147 = vmul.f32 %v5145, %v1143
  %v5148 = vsub.f32 %v5136, %v5146
  %v5149 = vsub.f32 %v5137, %v5147
  %v5150 = vmul.f32 %v5148, %v5148
  %v5151 = vmul.f32 %v5149, %v5149
  %v5152 = vsel %vm110, %v5150, 0.0
  %5153 = vadd.xlane.f32.xlu0 %v5152
  %v5154 = vpop.xlane.xlu0 %5153
  %v5155 = vsel %vm110, %v5151, 0.0
  %5156 = vadd.xlane.f32.xlu0 %v5155
  %v5157 = vpop.xlane.xlu0 %5156
  %v5158 = vmul.f32 %v5154, %v1143
  %v5159 = vmul.f32 %v5157, %v1143
  %v5160 = vadd.f32 %v5158, 1e-05
  %v5161 = vadd.f32 %v5159, 1e-05
  %v5162 = vrsqrt.pop %v5160
  %v5163 = vrsqrt.pop %v5161
  %v5164 = vmul.f32 %v5148, %v5162
  %v5165 = vmul.f32 %v5149, %v5163
  %v5166 = vlaneseq
  %v5167 = vshrl.u32 %v5166, 7
  %v5168 = vsub.s32 0, %v5167
  %v5169 = vrot.slane %v5138, %v5168
  %v5170 = vmul.f32 %v5164, %v5169
  %v5171 = vmul.f32 %v5165, %v5169
  %v5172 = vlaneseq
  %v5173 = vshrl.u32 %v5172, 7
  %v5174 = vsub.s32 0, %v5173
  %v5175 = vrot.slane %v5139, %v5174
  %v5176 = vadd.f32 %v5170, %v5175
  %v5177 = vadd.f32 %v5171, %v5175
  %v5178 = vld [vmem:[%s2 + $0x40] sm:$0xf]
  %v5179 = vld [vmem:[%s2 + $0x44] sm:$0xf]
  %v5180 = vld [vmem:[%s2 + $0x48] sm:$0xf]
  %v5181 = vld [vmem:[%s2 + $0x4c] sm:$0xf]
  %v5182 = vld [vmem:[%s5 + $0x4] sm:$0x1]
  %v5183 = vpack.c.bf16 %v5177, %v5176
  %v5184 = vlaneseq
  %v5185 = vshrl.u32 %v5184, 7
  %v5186 = vsub.s32 0, %v5185
  %v5187 = vrot.slane %v5182, %v5186
  %v5192 = vunpack.c.l.b16 %v5178
  %v5193 = vunpack.c.l.b16 %v5179
  %v5194 = vunpack.c.l.b16 %v5180
  %v5195 = vunpack.c.l.b16 %v5181
  %v5196 = vpack.c.b16 %v5193, %v5192
  %v5197 = vpack.c.b16 %v5195, %v5194
  %v5201 = vsel %vm110, %v5183, 0
  %5203 = vmatprep.subr.bf16.mxu0 0
  %5204 = vmatpush1.bf16.msra.mxu0 %v5196
  %5205 = vmatprep.subr.bf16.mxu0 0
  %5206 = vmatpush1.bf16.msra.mxu0 %v5197
  %5207 = vmatprep.subr.bf16.mxu0 0
  %5208 = vmatpush1.bf16.msra.mxu0 0
  %5209 = vmatprep.subr.bf16.mxu0 0
  %5210 = vmatpush1.bf16.msra.mxu0 0
  %5211 = vmatprep.subr.bf16.mxu0 0
  %5212 = vmatpush1.bf16.msra.mxu0 0
  %5213 = vmatprep.subr.bf16.mxu0 0
  %5214 = vmatpush1.bf16.msra.mxu0 0
  %5215 = vmatprep.subr.bf16.mxu0 0
  %5216 = vmatpush1.bf16.msra.mxu0 0
  %5217 = vmatprep.subr.bf16.mxu0 0
  %5218 = vmatpush1.bf16.msra.mxu0 0
  %5219 = vmatprep.subr.bf16.mxu0 0
  %5220 = vmatpush1.bf16.msra.mxu0 0
  %5221 = vmatprep.subr.bf16.mxu0 0
  %5222 = vmatpush1.bf16.msra.mxu0 0
  %5223 = vmatprep.subr.bf16.mxu0 0
  %5224 = vmatpush1.bf16.msra.mxu0 0
  %5225 = vmatprep.subr.bf16.mxu0 0
  %5226 = vmatpush1.bf16.msra.mxu0 0
  %5227 = vmatprep.subr.bf16.mxu0 0
  %5228 = vmatpush1.bf16.msra.mxu0 0
  %5229 = vmatprep.subr.bf16.mxu0 0
  %5230 = vmatpush1.bf16.msra.mxu0 0
  %5231 = vmatprep.subr.bf16.mxu0 0
  %5232 = vmatpush1.bf16.msra.mxu0 0
  %5233 = vmatprep.subr.bf16.mxu0 0
  %5234 = vmatpush1.bf16.msra.mxu0 0
  %5235 = vmatprep.mubr.bf16.mxu0 0
  %5236 = vmatmul.mubr.bf16.gmra.mrb[0].mxu0 %v5201
  %v5237 = vpop.f32.mrb[0].mxu0
  %v5238 = vadd.f32 %v5187, %v5237
  %v5239 = vpop.f32.mrb[0].mxu0
  %v5240 = vpop.f32.mrb[0].mxu0
  %v5241 = vadd.f32 %v5187, %v5240
  %v5242 = vpop.f32.mrb[0].mxu0
  %5243 = vdwg.mxu0
  %v5244 = vpack.c.bf16 %v5241, %v5238
  %5246 = vrot.lane.b32.xlu0 %v5244, 96
  %v5247 = vpop.permute.xlu0 %5246
  %v5249 = vsel %vm159, %v5244, 0
  %v5252 = vsel %vm159, %v5247, 0
  %5254 = vmatprep.subr.bf16.mxu0 0
  %5255 = vmatpush1.bf16.xpose.msra.mxu0 %v5252
  %5256 = vmatprep.subr.bf16.mxu0 0
  %5257 = vmatpush1.bf16.xpose.msra.mxu0 0
  %5258 = vmatprep.subr.bf16.mxu0 0
  %5259 = vmatpush1.bf16.xpose.msra.mxu0 0
  %5260 = vmatprep.subr.bf16.mxu0 0
  %5261 = vmatpush1.bf16.xpose.msra.mxu0 0
  %5262 = vmatprep.subr.bf16.mxu0 0
  %5263 = vmatpush1.bf16.xpose.msra.mxu0 0
  %5264 = vmatprep.subr.bf16.mxu0 0
  %5265 = vmatpush1.bf16.xpose.msra.mxu0 0
  %5266 = vmatprep.subr.bf16.mxu0 0
  %5267 = vmatpush1.bf16.xpose.msra.mxu0 0
  %5268 = vmatprep.subr.bf16.mxu0 0
  %5269 = vmatpush1.bf16.xpose.msra.mxu0 0
  %5270 = vmatprep.subr.bf16.mxu0 0
  %5271 = vmatpush1.bf16.xpose.msra.mxu0 0
  %5272 = vmatprep.subr.bf16.mxu0 0
  %5273 = vmatpush1.bf16.xpose.msra.mxu0 0
  %5274 = vmatprep.subr.bf16.mxu0 0
  %5275 = vmatpush1.bf16.xpose.msra.mxu0 0
  %5276 = vmatprep.subr.bf16.mxu0 0
  %5277 = vmatpush1.bf16.xpose.msra.mxu0 0
  %5278 = vmatprep.subr.bf16.mxu0 0
  %5279 = vmatpush1.bf16.xpose.msra.mxu0 0
  %5280 = vmatprep.subr.bf16.mxu0 0
  %5281 = vmatpush1.bf16.xpose.msra.mxu0 0
  %5282 = vmatprep.subr.bf16.mxu0 0
  %5283 = vmatpush1.bf16.xpose.msra.mxu0 0
  %5284 = vmatprep.subr.bf16.mxu0 0
  %5285 = vmatpush1.bf16.xpose.msra.mxu0 0
  %5286 = vmatprep.mubr.bf16.mxu0 0
  %5287 = vmatmul.mubr.bf16.gmra.mrb[0].mxu0 %v5249
  %v5288 = vpop.f32.mrb[0].mxu0
  %v5289 = vadd.f32 0.0, %v5288
  %v5290 = vpop.f32.mrb[0].mxu0
  %v5291 = vpop.f32.mrb[0].mxu0
  %v5292 = vpop.f32.mrb[0].mxu0
  %5293 = vdwg.mxu0
  %v5294 = vsel %vm159, %v5289, -inf
  %5295 = vmax.xlane.f32.xlu0 %v5294
  %v5296 = vpop.xlane.xlu0 %5295
  %v5297 = vsub.f32 %v5289, %v5296
  %v5298 = vmul.f32 %v5297, 1.442695
  %v5299 = vpow.pop %v5298
  %v5300 = vsel %vm159, %v5299, 0.0
  %5301 = vadd.xlane.f32.xlu0 %v5300
  %v5302 = vpop.xlane.xlu0 %5301
  %v5303 = vrcp.pop %v5302
  %v5304 = vmul.f32 %v5299, %v5303
  %v5305 = vpack.c.bf16 %v5304, %v5304
  %5306 = vrot.lane.b32.xlu0 %v5244, 64
  %v5307 = vpop.permute.xlu0 %5306
  %v5309 = vsel %vm159, %v5305, 0
  %v5312 = vsel %vm223, %v5307, 0
  %5314 = vmatprep.subr.bf16.mxu0 0
  %5315 = vmatpush1.bf16.msra.mxu0 %v5312
  %5316 = vmatprep.subr.bf16.mxu0 0
  %5317 = vmatpush1.bf16.msra.mxu0 0
  %5318 = vmatprep.subr.bf16.mxu0 0
  %5319 = vmatpush1.bf16.msra.mxu0 0
  %5320 = vmatprep.subr.bf16.mxu0 0
  %5321 = vmatpush1.bf16.msra.mxu0 0
  %5322 = vmatprep.subr.bf16.mxu0 0
  %5323 = vmatpush1.bf16.msra.mxu0 0
  %5324 = vmatprep.subr.bf16.mxu0 0
  %5325 = vmatpush1.bf16.msra.mxu0 0
  %5326 = vmatprep.subr.bf16.mxu0 0
  %5327 = vmatpush1.bf16.msra.mxu0 0
  %5328 = vmatprep.subr.bf16.mxu0 0
  %5329 = vmatpush1.bf16.msra.mxu0 0
  %5330 = vmatprep.subr.bf16.mxu0 0
  %5331 = vmatpush1.bf16.msra.mxu0 0
  %5332 = vmatprep.subr.bf16.mxu0 0
  %5333 = vmatpush1.bf16.msra.mxu0 0
  %5334 = vmatprep.subr.bf16.mxu0 0
  %5335 = vmatpush1.bf16.msra.mxu0 0
  %5336 = vmatprep.subr.bf16.mxu0 0
  %5337 = vmatpush1.bf16.msra.mxu0 0
  %5338 = vmatprep.subr.bf16.mxu0 0
  %5339 = vmatpush1.bf16.msra.mxu0 0
  %5340 = vmatprep.subr.bf16.mxu0 0
  %5341 = vmatpush1.bf16.msra.mxu0 0
  %5342 = vmatprep.subr.bf16.mxu0 0
  %5343 = vmatpush1.bf16.msra.mxu0 0
  %5344 = vmatprep.subr.bf16.mxu0 0
  %5345 = vmatpush1.bf16.msra.mxu0 0
  %5346 = vmatprep.mubr.bf16.mxu0 0
  %5347 = vmatmul.mubr.bf16.gmra.mrb[0].mxu0 %v5309
  %v5348 = vpop.f32.mrb[0].mxu0
  %v5349 = vadd.f32 0.0, %v5348
  %v5350 = vpop.f32.mrb[0].mxu0
  %v5351 = vpop.f32.mrb[0].mxu0
  %v5352 = vpop.f32.mrb[0].mxu0
  %5353 = vdwg.mxu0
  %5354 = vrot.lane.b32.xlu0 %v5244, 120
  %v5355 = vpop.permute.xlu0 %5354
  %5356 = vrot.lane.b32.xlu0 %v5244, 88
  %v5357 = vpop.permute.xlu0 %5356
  %v5359 = vsel %vm159, %v5355, 0
  %v5362 = vsel %vm159, %v5357, 0
  %5364 = vmatprep.subr.bf16.mxu0 0
  %5365 = vmatpush1.bf16.xpose.msra.mxu0 %v5362
  %5366 = vmatprep.subr.bf16.mxu0 0
  %5367 = vmatpush1.bf16.xpose.msra.mxu0 0
  %5368 = vmatprep.subr.bf16.mxu0 0
  %5369 = vmatpush1.bf16.xpose.msra.mxu0 0
  %5370 = vmatprep.subr.bf16.mxu0 0
  %5371 = vmatpush1.bf16.xpose.msra.mxu0 0
  %5372 = vmatprep.subr.bf16.mxu0 0
  %5373 = vmatpush1.bf16.xpose.msra.mxu0 0
  %5374 = vmatprep.subr.bf16.mxu0 0
  %5375 = vmatpush1.bf16.xpose.msra.mxu0 0
  %5376 = vmatprep.subr.bf16.mxu0 0
  %5377 = vmatpush1.bf16.xpose.msra.mxu0 0
  %5378 = vmatprep.subr.bf16.mxu0 0
  %5379 = vmatpush1.bf16.xpose.msra.mxu0 0
  %5380 = vmatprep.subr.bf16.mxu0 0
  %5381 = vmatpush1.bf16.xpose.msra.mxu0 0
  %5382 = vmatprep.subr.bf16.mxu0 0
  %5383 = vmatpush1.bf16.xpose.msra.mxu0 0
  %5384 = vmatprep.subr.bf16.mxu0 0
  %5385 = vmatpush1.bf16.xpose.msra.mxu0 0
  %5386 = vmatprep.subr.bf16.mxu0 0
  %5387 = vmatpush1.bf16.xpose.msra.mxu0 0
  %5388 = vmatprep.subr.bf16.mxu0 0
  %5389 = vmatpush1.bf16.xpose.msra.mxu0 0
  %5390 = vmatprep.subr.bf16.mxu0 0
  %5391 = vmatpush1.bf16.xpose.msra.mxu0 0
  %5392 = vmatprep.subr.bf16.mxu0 0
  %5393 = vmatpush1.bf16.xpose.msra.mxu0 0
  %5394 = vmatprep.subr.bf16.mxu0 0
  %5395 = vmatpush1.bf16.xpose.msra.mxu0 0
  %5396 = vmatprep.mubr.bf16.mxu0 0
  %5397 = vmatmul.mubr.bf16.gmra.mrb[0].mxu0 %v5359
  %v5398 = vpop.f32.mrb[0].mxu0
  %v5399 = vadd.f32 0.0, %v5398
  %v5400 = vpop.f32.mrb[0].mxu0
  %v5401 = vpop.f32.mrb[0].mxu0
  %v5402 = vpop.f32.mrb[0].mxu0
  %5403 = vdwg.mxu0
  %v5404 = vsel %vm159, %v5399, -inf
  %5405 = vmax.xlane.f32.xlu0 %v5404
  %v5406 = vpop.xlane.xlu0 %5405
  %v5407 = vsub.f32 %v5399, %v5406
  %v5408 = vmul.f32 %v5407, 1.442695
  %v5409 = vpow.pop %v5408
  %v5410 = vsel %vm159, %v5409, 0.0
  %5411 = vadd.xlane.f32.xlu0 %v5410
  %v5412 = vpop.xlane.xlu0 %5411
  %v5413 = vrcp.pop %v5412
  %v5414 = vmul.f32 %v5409, %v5413
  %v5415 = vpack.c.bf16 %v5414, %v5414
  %5416 = vrot.lane.b32.xlu0 %v5244, 56
  %v5417 = vpop.permute.xlu0 %5416
  %v5419 = vsel %vm159, %v5415, 0
  %v5422 = vsel %vm223, %v5417, 0
  %5424 = vmatprep.subr.bf16.mxu0 0
  %5425 = vmatpush1.bf16.msra.mxu0 %v5422
  %5426 = vmatprep.subr.bf16.mxu0 0
  %5427 = vmatpush1.bf16.msra.mxu0 0
  %5428 = vmatprep.subr.bf16.mxu0 0
  %5429 = vmatpush1.bf16.msra.mxu0 0
  %5430 = vmatprep.subr.bf16.mxu0 0
  %5431 = vmatpush1.bf16.msra.mxu0 0
  %5432 = vmatprep.subr.bf16.mxu0 0
  %5433 = vmatpush1.bf16.msra.mxu0 0
  %5434 = vmatprep.subr.bf16.mxu0 0
  %5435 = vmatpush1.bf16.msra.mxu0 0
  %5436 = vmatprep.subr.bf16.mxu0 0
  %5437 = vmatpush1.bf16.msra.mxu0 0
  %5438 = vmatprep.subr.bf16.mxu0 0
  %5439 = vmatpush1.bf16.msra.mxu0 0
  %5440 = vmatprep.subr.bf16.mxu0 0
  %5441 = vmatpush1.bf16.msra.mxu0 0
  %5442 = vmatprep.subr.bf16.mxu0 0
  %5443 = vmatpush1.bf16.msra.mxu0 0
  %5444 = vmatprep.subr.bf16.mxu0 0
  %5445 = vmatpush1.bf16.msra.mxu0 0
  %5446 = vmatprep.subr.bf16.mxu0 0
  %5447 = vmatpush1.bf16.msra.mxu0 0
  %5448 = vmatprep.subr.bf16.mxu0 0
  %5449 = vmatpush1.bf16.msra.mxu0 0
  %5450 = vmatprep.subr.bf16.mxu0 0
  %5451 = vmatpush1.bf16.msra.mxu0 0
  %5452 = vmatprep.subr.bf16.mxu0 0
  %5453 = vmatpush1.bf16.msra.mxu0 0
  %5454 = vmatprep.subr.bf16.mxu0 0
  %5455 = vmatpush1.bf16.msra.mxu0 0
  %5456 = vmatprep.mubr.bf16.mxu0 0
  %5457 = vmatmul.mubr.bf16.gmra.mrb[0].mxu0 %v5419
  %v5458 = vpop.f32.mrb[0].mxu0
  %v5459 = vadd.f32 0.0, %v5458
  %v5460 = vpop.f32.mrb[0].mxu0
  %v5461 = vpop.f32.mrb[0].mxu0
  %v5462 = vpop.f32.mrb[0].mxu0
  %5463 = vdwg.mxu0
  %5464 = vrot.lane.b32.xlu0 %v5244, 112
  %v5465 = vpop.permute.xlu0 %5464
  %5466 = vrot.lane.b32.xlu0 %v5244, 80
  %v5467 = vpop.permute.xlu0 %5466
  %v5469 = vsel %vm159, %v5465, 0
  %v5472 = vsel %vm159, %v5467, 0
  %5474 = vmatprep.subr.bf16.mxu0 0
  %5475 = vmatpush1.bf16.xpose.msra.mxu0 %v5472
  %5476 = vmatprep.subr.bf16.mxu0 0
  %5477 = vmatpush1.bf16.xpose.msra.mxu0 0
  %5478 = vmatprep.subr.bf16.mxu0 0
  %5479 = vmatpush1.bf16.xpose.msra.mxu0 0
  %5480 = vmatprep.subr.bf16.mxu0 0
  %5481 = vmatpush1.bf16.xpose.msra.mxu0 0
  %5482 = vmatprep.subr.bf16.mxu0 0
  %5483 = vmatpush1.bf16.xpose.msra.mxu0 0
  %5484 = vmatprep.subr.bf16.mxu0 0
  %5485 = vmatpush1.bf16.xpose.msra.mxu0 0
  %5486 = vmatprep.subr.bf16.mxu0 0
  %5487 = vmatpush1.bf16.xpose.msra.mxu0 0
  %5488 = vmatprep.subr.bf16.mxu0 0
  %5489 = vmatpush1.bf16.xpose.msra.mxu0 0
  %5490 = vmatprep.subr.bf16.mxu0 0
  %5491 = vmatpush1.bf16.xpose.msra.mxu0 0
  %5492 = vmatprep.subr.bf16.mxu0 0
  %5493 = vmatpush1.bf16.xpose.msra.mxu0 0
  %5494 = vmatprep.subr.bf16.mxu0 0
  %5495 = vmatpush1.bf16.xpose.msra.mxu0 0
  %5496 = vmatprep.subr.bf16.mxu0 0
  %5497 = vmatpush1.bf16.xpose.msra.mxu0 0
  %5498 = vmatprep.subr.bf16.mxu0 0
  %5499 = vmatpush1.bf16.xpose.msra.mxu0 0
  %5500 = vmatprep.subr.bf16.mxu0 0
  %5501 = vmatpush1.bf16.xpose.msra.mxu0 0
  %5502 = vmatprep.subr.bf16.mxu0 0
  %5503 = vmatpush1.bf16.xpose.msra.mxu0 0
  %5504 = vmatprep.subr.bf16.mxu0 0
  %5505 = vmatpush1.bf16.xpose.msra.mxu0 0
  %5506 = vmatprep.mubr.bf16.mxu0 0
  %5507 = vmatmul.mubr.bf16.gmra.mrb[0].mxu0 %v5469
  %v5508 = vpop.f32.mrb[0].mxu0
  %v5509 = vadd.f32 0.0, %v5508
  %v5510 = vpop.f32.mrb[0].mxu0
  %v5511 = vpop.f32.mrb[0].mxu0
  %v5512 = vpop.f32.mrb[0].mxu0
  %5513 = vdwg.mxu0
  %v5514 = vsel %vm159, %v5509, -inf
  %5515 = vmax.xlane.f32.xlu0 %v5514
  %v5516 = vpop.xlane.xlu0 %5515
  %v5517 = vsub.f32 %v5509, %v5516
  %v5518 = vmul.f32 %v5517, 1.442695
  %v5519 = vpow.pop %v5518
  %v5520 = vsel %vm159, %v5519, 0.0
  %5521 = vadd.xlane.f32.xlu0 %v5520
  %v5522 = vpop.xlane.xlu0 %5521
  %v5523 = vrcp.pop %v5522
  %v5524 = vmul.f32 %v5519, %v5523
  %v5525 = vpack.c.bf16 %v5524, %v5524
  %5526 = vrot.lane.b32.xlu0 %v5244, 48
  %v5527 = vpop.permute.xlu0 %5526
  %v5529 = vsel %vm159, %v5525, 0
  %v5532 = vsel %vm223, %v5527, 0
  %5534 = vmatprep.subr.bf16.mxu0 0
  %5535 = vmatpush1.bf16.msra.mxu0 %v5532
  %5536 = vmatprep.subr.bf16.mxu0 0
  %5537 = vmatpush1.bf16.msra.mxu0 0
  %5538 = vmatprep.subr.bf16.mxu0 0
  %5539 = vmatpush1.bf16.msra.mxu0 0
  %5540 = vmatprep.subr.bf16.mxu0 0
  %5541 = vmatpush1.bf16.msra.mxu0 0
  %5542 = vmatprep.subr.bf16.mxu0 0
  %5543 = vmatpush1.bf16.msra.mxu0 0
  %5544 = vmatprep.subr.bf16.mxu0 0
  %5545 = vmatpush1.bf16.msra.mxu0 0
  %5546 = vmatprep.subr.bf16.mxu0 0
  %5547 = vmatpush1.bf16.msra.mxu0 0
  %5548 = vmatprep.subr.bf16.mxu0 0
  %5549 = vmatpush1.bf16.msra.mxu0 0
  %5550 = vmatprep.subr.bf16.mxu0 0
  %5551 = vmatpush1.bf16.msra.mxu0 0
  %5552 = vmatprep.subr.bf16.mxu0 0
  %5553 = vmatpush1.bf16.msra.mxu0 0
  %5554 = vmatprep.subr.bf16.mxu0 0
  %5555 = vmatpush1.bf16.msra.mxu0 0
  %5556 = vmatprep.subr.bf16.mxu0 0
  %5557 = vmatpush1.bf16.msra.mxu0 0
  %5558 = vmatprep.subr.bf16.mxu0 0
  %5559 = vmatpush1.bf16.msra.mxu0 0
  %5560 = vmatprep.subr.bf16.mxu0 0
  %5561 = vmatpush1.bf16.msra.mxu0 0
  %5562 = vmatprep.subr.bf16.mxu0 0
  %5563 = vmatpush1.bf16.msra.mxu0 0
  %5564 = vmatprep.subr.bf16.mxu0 0
  %5565 = vmatpush1.bf16.msra.mxu0 0
  %5566 = vmatprep.mubr.bf16.mxu0 0
  %5567 = vmatmul.mubr.bf16.gmra.mrb[0].mxu0 %v5529
  %v5568 = vpop.f32.mrb[0].mxu0
  %v5569 = vadd.f32 0.0, %v5568
  %v5570 = vpop.f32.mrb[0].mxu0
  %v5571 = vpop.f32.mrb[0].mxu0
  %v5572 = vpop.f32.mrb[0].mxu0
  %5573 = vdwg.mxu0
  %5574 = vrot.lane.b32.xlu0 %v5244, 104
  %v5575 = vpop.permute.xlu0 %5574
  %5576 = vrot.lane.b32.xlu0 %v5244, 72
  %v5577 = vpop.permute.xlu0 %5576
  %v5579 = vsel %vm159, %v5575, 0
  %v5582 = vsel %vm159, %v5577, 0
  %5584 = vmatprep.subr.bf16.mxu0 0
  %5585 = vmatpush1.bf16.xpose.msra.mxu0 %v5582
  %5586 = vmatprep.subr.bf16.mxu0 0
  %5587 = vmatpush1.bf16.xpose.msra.mxu0 0
  %5588 = vmatprep.subr.bf16.mxu0 0
  %5589 = vmatpush1.bf16.xpose.msra.mxu0 0
  %5590 = vmatprep.subr.bf16.mxu0 0
  %5591 = vmatpush1.bf16.xpose.msra.mxu0 0
  %5592 = vmatprep.subr.bf16.mxu0 0
  %5593 = vmatpush1.bf16.xpose.msra.mxu0 0
  %5594 = vmatprep.subr.bf16.mxu0 0
  %5595 = vmatpush1.bf16.xpose.msra.mxu0 0
  %5596 = vmatprep.subr.bf16.mxu0 0
  %5597 = vmatpush1.bf16.xpose.msra.mxu0 0
  %5598 = vmatprep.subr.bf16.mxu0 0
  %5599 = vmatpush1.bf16.xpose.msra.mxu0 0
  %5600 = vmatprep.subr.bf16.mxu0 0
  %5601 = vmatpush1.bf16.xpose.msra.mxu0 0
  %5602 = vmatprep.subr.bf16.mxu0 0
  %5603 = vmatpush1.bf16.xpose.msra.mxu0 0
  %5604 = vmatprep.subr.bf16.mxu0 0
  %5605 = vmatpush1.bf16.xpose.msra.mxu0 0
  %5606 = vmatprep.subr.bf16.mxu0 0
  %5607 = vmatpush1.bf16.xpose.msra.mxu0 0
  %5608 = vmatprep.subr.bf16.mxu0 0
  %5609 = vmatpush1.bf16.xpose.msra.mxu0 0
  %5610 = vmatprep.subr.bf16.mxu0 0
  %5611 = vmatpush1.bf16.xpose.msra.mxu0 0
  %5612 = vmatprep.subr.bf16.mxu0 0
  %5613 = vmatpush1.bf16.xpose.msra.mxu0 0
  %5614 = vmatprep.subr.bf16.mxu0 0
  %5615 = vmatpush1.bf16.xpose.msra.mxu0 0
  %5616 = vmatprep.mubr.bf16.mxu0 0
  %5617 = vmatmul.mubr.bf16.gmra.mrb[0].mxu0 %v5579
  %v5618 = vpop.f32.mrb[0].mxu0
  %v5619 = vadd.f32 0.0, %v5618
  %v5620 = vpop.f32.mrb[0].mxu0
  %v5621 = vpop.f32.mrb[0].mxu0
  %v5622 = vpop.f32.mrb[0].mxu0
  %5623 = vdwg.mxu0
  %v5624 = vsel %vm159, %v5619, -inf
  %5625 = vmax.xlane.f32.xlu0 %v5624
  %v5626 = vpop.xlane.xlu0 %5625
  %v5627 = vsub.f32 %v5619, %v5626
  %v5628 = vmul.f32 %v5627, 1.442695
  %v5629 = vpow.pop %v5628
  %v5630 = vsel %vm159, %v5629, 0.0
  %5631 = vadd.xlane.f32.xlu0 %v5630
  %v5632 = vpop.xlane.xlu0 %5631
  %v5633 = vrcp.pop %v5632
  %v5634 = vmul.f32 %v5629, %v5633
  %v5635 = vpack.c.bf16 %v5634, %v5634
  %5636 = vrot.lane.b32.xlu0 %v5244, 40
  %v5637 = vpop.permute.xlu0 %5636
  %v5639 = vsel %vm159, %v5635, 0
  %v5642 = vsel %vm223, %v5637, 0
  %5644 = vmatprep.subr.bf16.mxu0 0
  %5645 = vmatpush1.bf16.msra.mxu0 %v5642
  %5646 = vmatprep.subr.bf16.mxu0 0
  %5647 = vmatpush1.bf16.msra.mxu0 0
  %5648 = vmatprep.subr.bf16.mxu0 0
  %5649 = vmatpush1.bf16.msra.mxu0 0
  %5650 = vmatprep.subr.bf16.mxu0 0
  %5651 = vmatpush1.bf16.msra.mxu0 0
  %5652 = vmatprep.subr.bf16.mxu0 0
  %5653 = vmatpush1.bf16.msra.mxu0 0
  %5654 = vmatprep.subr.bf16.mxu0 0
  %5655 = vmatpush1.bf16.msra.mxu0 0
  %5656 = vmatprep.subr.bf16.mxu0 0
  %5657 = vmatpush1.bf16.msra.mxu0 0
  %5658 = vmatprep.subr.bf16.mxu0 0
  %5659 = vmatpush1.bf16.msra.mxu0 0
  %5660 = vmatprep.subr.bf16.mxu0 0
  %5661 = vmatpush1.bf16.msra.mxu0 0
  %5662 = vmatprep.subr.bf16.mxu0 0
  %5663 = vmatpush1.bf16.msra.mxu0 0
  %5664 = vmatprep.subr.bf16.mxu0 0
  %5665 = vmatpush1.bf16.msra.mxu0 0
  %5666 = vmatprep.subr.bf16.mxu0 0
  %5667 = vmatpush1.bf16.msra.mxu0 0
  %5668 = vmatprep.subr.bf16.mxu0 0
  %5669 = vmatpush1.bf16.msra.mxu0 0
  %5670 = vmatprep.subr.bf16.mxu0 0
  %5671 = vmatpush1.bf16.msra.mxu0 0
  %5672 = vmatprep.subr.bf16.mxu0 0
  %5673 = vmatpush1.bf16.msra.mxu0 0
  %5674 = vmatprep.subr.bf16.mxu0 0
  %5675 = vmatpush1.bf16.msra.mxu0 0
  %5676 = vmatprep.mubr.bf16.mxu0 0
  %5677 = vmatmul.mubr.bf16.gmra.mrb[0].mxu0 %v5639
  %v5678 = vpop.f32.mrb[0].mxu0
  %v5679 = vadd.f32 0.0, %v5678
  %v5680 = vpop.f32.mrb[0].mxu0
  %v5681 = vpop.f32.mrb[0].mxu0
  %v5682 = vpop.f32.mrb[0].mxu0
  %5683 = vdwg.mxu0
  %5685 = vrot.lane.b32.xlu0 %v5459, 8
  %v5686 = vpop.permute.xlu0 %5685
  %5689 = vrot.lane.b32.xlu0 %v5569, 16
  %v5690 = vpop.permute.xlu0 %5689
  %5693 = vrot.lane.b32.xlu0 %v5679, 24
  %v5694 = vpop.permute.xlu0 %5693
  %v5696 = vsel %vm159, %v5349, %v5686
  %v5697 = vsel %vm43, %v5696, %v5690
  %v5698 = vsel %vm611, %v5697, %v5694
  %v5699 = vrot.slane %v5244, 4
  %5700 = vrot.lane.b32.xlu0 %v5699, 96
  %v5701 = vpop.permute.xlu0 %5700
  %v5703 = vsel %vm159, %v5699, 0
  %v5706 = vsel %vm159, %v5701, 0
  %5708 = vmatprep.subr.bf16.mxu0 0
  %5709 = vmatpush1.bf16.xpose.msra.mxu0 %v5706
  %5710 = vmatprep.subr.bf16.mxu0 0
  %5711 = vmatpush1.bf16.xpose.msra.mxu0 0
  %5712 = vmatprep.subr.bf16.mxu0 0
  %5713 = vmatpush1.bf16.xpose.msra.mxu0 0
  %5714 = vmatprep.subr.bf16.mxu0 0
  %5715 = vmatpush1.bf16.xpose.msra.mxu0 0
  %5716 = vmatprep.subr.bf16.mxu0 0
  %5717 = vmatpush1.bf16.xpose.msra.mxu0 0
  %5718 = vmatprep.subr.bf16.mxu0 0
  %5719 = vmatpush1.bf16.xpose.msra.mxu0 0
  %5720 = vmatprep.subr.bf16.mxu0 0
  %5721 = vmatpush1.bf16.xpose.msra.mxu0 0
  %5722 = vmatprep.subr.bf16.mxu0 0
  %5723 = vmatpush1.bf16.xpose.msra.mxu0 0
  %5724 = vmatprep.subr.bf16.mxu0 0
  %5725 = vmatpush1.bf16.xpose.msra.mxu0 0
  %5726 = vmatprep.subr.bf16.mxu0 0
  %5727 = vmatpush1.bf16.xpose.msra.mxu0 0
  %5728 = vmatprep.subr.bf16.mxu0 0
  %5729 = vmatpush1.bf16.xpose.msra.mxu0 0
  %5730 = vmatprep.subr.bf16.mxu0 0
  %5731 = vmatpush1.bf16.xpose.msra.mxu0 0
  %5732 = vmatprep.subr.bf16.mxu0 0
  %5733 = vmatpush1.bf16.xpose.msra.mxu0 0
  %5734 = vmatprep.subr.bf16.mxu0 0
  %5735 = vmatpush1.bf16.xpose.msra.mxu0 0
  %5736 = vmatprep.subr.bf16.mxu0 0
  %5737 = vmatpush1.bf16.xpose.msra.mxu0 0
  %5738 = vmatprep.subr.bf16.mxu0 0
  %5739 = vmatpush1.bf16.xpose.msra.mxu0 0
  %5740 = vmatprep.mubr.bf16.mxu0 0
  %5741 = vmatmul.mubr.bf16.gmra.mrb[0].mxu0 %v5703
  %v5742 = vpop.f32.mrb[0].mxu0
  %v5743 = vadd.f32 0.0, %v5742
  %v5744 = vpop.f32.mrb[0].mxu0
  %v5745 = vpop.f32.mrb[0].mxu0
  %v5746 = vpop.f32.mrb[0].mxu0
  %5747 = vdwg.mxu0
  %v5748 = vsel %vm159, %v5743, -inf
  %5749 = vmax.xlane.f32.xlu0 %v5748
  %v5750 = vpop.xlane.xlu0 %5749
  %v5751 = vsub.f32 %v5743, %v5750
  %v5752 = vmul.f32 %v5751, 1.442695
  %v5753 = vpow.pop %v5752
  %v5754 = vsel %vm159, %v5753, 0.0
  %5755 = vadd.xlane.f32.xlu0 %v5754
  %v5756 = vpop.xlane.xlu0 %5755
  %v5757 = vrcp.pop %v5756
  %v5758 = vmul.f32 %v5753, %v5757
  %v5759 = vpack.c.bf16 %v5758, %v5758
  %5760 = vrot.lane.b32.xlu0 %v5699, 64
  %v5761 = vpop.permute.xlu0 %5760
  %v5763 = vsel %vm159, %v5759, 0
  %v5766 = vsel %vm223, %v5761, 0
  %5768 = vmatprep.subr.bf16.mxu0 0
  %5769 = vmatpush1.bf16.msra.mxu0 %v5766
  %5770 = vmatprep.subr.bf16.mxu0 0
  %5771 = vmatpush1.bf16.msra.mxu0 0
  %5772 = vmatprep.subr.bf16.mxu0 0
  %5773 = vmatpush1.bf16.msra.mxu0 0
  %5774 = vmatprep.subr.bf16.mxu0 0
  %5775 = vmatpush1.bf16.msra.mxu0 0
  %5776 = vmatprep.subr.bf16.mxu0 0
  %5777 = vmatpush1.bf16.msra.mxu0 0
  %5778 = vmatprep.subr.bf16.mxu0 0
  %5779 = vmatpush1.bf16.msra.mxu0 0
  %5780 = vmatprep.subr.bf16.mxu0 0
  %5781 = vmatpush1.bf16.msra.mxu0 0
  %5782 = vmatprep.subr.bf16.mxu0 0
  %5783 = vmatpush1.bf16.msra.mxu0 0
  %5784 = vmatprep.subr.bf16.mxu0 0
  %5785 = vmatpush1.bf16.msra.mxu0 0
  %5786 = vmatprep.subr.bf16.mxu0 0
  %5787 = vmatpush1.bf16.msra.mxu0 0
  %5788 = vmatprep.subr.bf16.mxu0 0
  %5789 = vmatpush1.bf16.msra.mxu0 0
  %5790 = vmatprep.subr.bf16.mxu0 0
  %5791 = vmatpush1.bf16.msra.mxu0 0
  %5792 = vmatprep.subr.bf16.mxu0 0
  %5793 = vmatpush1.bf16.msra.mxu0 0
  %5794 = vmatprep.subr.bf16.mxu0 0
  %5795 = vmatpush1.bf16.msra.mxu0 0
  %5796 = vmatprep.subr.bf16.mxu0 0
  %5797 = vmatpush1.bf16.msra.mxu0 0
  %5798 = vmatprep.subr.bf16.mxu0 0
  %5799 = vmatpush1.bf16.msra.mxu0 0
  %5800 = vmatprep.mubr.bf16.mxu0 0
  %5801 = vmatmul.mubr.bf16.gmra.mrb[0].mxu0 %v5763
  %v5802 = vpop.f32.mrb[0].mxu0
  %v5803 = vadd.f32 0.0, %v5802
  %v5804 = vpop.f32.mrb[0].mxu0
  %v5805 = vpop.f32.mrb[0].mxu0
  %v5806 = vpop.f32.mrb[0].mxu0
  %5807 = vdwg.mxu0
  %5808 = vrot.lane.b32.xlu0 %v5699, 120
  %v5809 = vpop.permute.xlu0 %5808
  %5810 = vrot.lane.b32.xlu0 %v5699, 88
  %v5811 = vpop.permute.xlu0 %5810
  %v5813 = vsel %vm159, %v5809, 0
  %v5816 = vsel %vm159, %v5811, 0
  %5818 = vmatprep.subr.bf16.mxu0 0
  %5819 = vmatpush1.bf16.xpose.msra.mxu0 %v5816
  %5820 = vmatprep.subr.bf16.mxu0 0
  %5821 = vmatpush1.bf16.xpose.msra.mxu0 0
  %5822 = vmatprep.subr.bf16.mxu0 0
  %5823 = vmatpush1.bf16.xpose.msra.mxu0 0
  %5824 = vmatprep.subr.bf16.mxu0 0
  %5825 = vmatpush1.bf16.xpose.msra.mxu0 0
  %5826 = vmatprep.subr.bf16.mxu0 0
  %5827 = vmatpush1.bf16.xpose.msra.mxu0 0
  %5828 = vmatprep.subr.bf16.mxu0 0
  %5829 = vmatpush1.bf16.xpose.msra.mxu0 0
  %5830 = vmatprep.subr.bf16.mxu0 0
  %5831 = vmatpush1.bf16.xpose.msra.mxu0 0
  %5832 = vmatprep.subr.bf16.mxu0 0
  %5833 = vmatpush1.bf16.xpose.msra.mxu0 0
  %5834 = vmatprep.subr.bf16.mxu0 0
  %5835 = vmatpush1.bf16.xpose.msra.mxu0 0
  %5836 = vmatprep.subr.bf16.mxu0 0
  %5837 = vmatpush1.bf16.xpose.msra.mxu0 0
  %5838 = vmatprep.subr.bf16.mxu0 0
  %5839 = vmatpush1.bf16.xpose.msra.mxu0 0
  %5840 = vmatprep.subr.bf16.mxu0 0
  %5841 = vmatpush1.bf16.xpose.msra.mxu0 0
  %5842 = vmatprep.subr.bf16.mxu0 0
  %5843 = vmatpush1.bf16.xpose.msra.mxu0 0
  %5844 = vmatprep.subr.bf16.mxu0 0
  %5845 = vmatpush1.bf16.xpose.msra.mxu0 0
  %5846 = vmatprep.subr.bf16.mxu0 0
  %5847 = vmatpush1.bf16.xpose.msra.mxu0 0
  %5848 = vmatprep.subr.bf16.mxu0 0
  %5849 = vmatpush1.bf16.xpose.msra.mxu0 0
  %5850 = vmatprep.mubr.bf16.mxu0 0
  %5851 = vmatmul.mubr.bf16.gmra.mrb[0].mxu0 %v5813
  %v5852 = vpop.f32.mrb[0].mxu0
  %v5853 = vadd.f32 0.0, %v5852
  %v5854 = vpop.f32.mrb[0].mxu0
  %v5855 = vpop.f32.mrb[0].mxu0
  %v5856 = vpop.f32.mrb[0].mxu0
  %5857 = vdwg.mxu0
  %v5858 = vsel %vm159, %v5853, -inf
  %5859 = vmax.xlane.f32.xlu0 %v5858
  %v5860 = vpop.xlane.xlu0 %5859
  %v5861 = vsub.f32 %v5853, %v5860
  %v5862 = vmul.f32 %v5861, 1.442695
  %v5863 = vpow.pop %v5862
  %v5864 = vsel %vm159, %v5863, 0.0
  %5865 = vadd.xlane.f32.xlu0 %v5864
  %v5866 = vpop.xlane.xlu0 %5865
  %v5867 = vrcp.pop %v5866
  %v5868 = vmul.f32 %v5863, %v5867
  %v5869 = vpack.c.bf16 %v5868, %v5868
  %5870 = vrot.lane.b32.xlu0 %v5699, 56
  %v5871 = vpop.permute.xlu0 %5870
  %v5873 = vsel %vm159, %v5869, 0
  %v5876 = vsel %vm223, %v5871, 0
  %5878 = vmatprep.subr.bf16.mxu0 0
  %5879 = vmatpush1.bf16.msra.mxu0 %v5876
  %5880 = vmatprep.subr.bf16.mxu0 0
  %5881 = vmatpush1.bf16.msra.mxu0 0
  %5882 = vmatprep.subr.bf16.mxu0 0
  %5883 = vmatpush1.bf16.msra.mxu0 0
  %5884 = vmatprep.subr.bf16.mxu0 0
  %5885 = vmatpush1.bf16.msra.mxu0 0
  %5886 = vmatprep.subr.bf16.mxu0 0
  %5887 = vmatpush1.bf16.msra.mxu0 0
  %5888 = vmatprep.subr.bf16.mxu0 0
  %5889 = vmatpush1.bf16.msra.mxu0 0
  %5890 = vmatprep.subr.bf16.mxu0 0
  %5891 = vmatpush1.bf16.msra.mxu0 0
  %5892 = vmatprep.subr.bf16.mxu0 0
  %5893 = vmatpush1.bf16.msra.mxu0 0
  %5894 = vmatprep.subr.bf16.mxu0 0
  %5895 = vmatpush1.bf16.msra.mxu0 0
  %5896 = vmatprep.subr.bf16.mxu0 0
  %5897 = vmatpush1.bf16.msra.mxu0 0
  %5898 = vmatprep.subr.bf16.mxu0 0
  %5899 = vmatpush1.bf16.msra.mxu0 0
  %5900 = vmatprep.subr.bf16.mxu0 0
  %5901 = vmatpush1.bf16.msra.mxu0 0
  %5902 = vmatprep.subr.bf16.mxu0 0
  %5903 = vmatpush1.bf16.msra.mxu0 0
  %5904 = vmatprep.subr.bf16.mxu0 0
  %5905 = vmatpush1.bf16.msra.mxu0 0
  %5906 = vmatprep.subr.bf16.mxu0 0
  %5907 = vmatpush1.bf16.msra.mxu0 0
  %5908 = vmatprep.subr.bf16.mxu0 0
  %5909 = vmatpush1.bf16.msra.mxu0 0
  %5910 = vmatprep.mubr.bf16.mxu0 0
  %5911 = vmatmul.mubr.bf16.gmra.mrb[0].mxu0 %v5873
  %v5912 = vpop.f32.mrb[0].mxu0
  %v5913 = vadd.f32 0.0, %v5912
  %v5914 = vpop.f32.mrb[0].mxu0
  %v5915 = vpop.f32.mrb[0].mxu0
  %v5916 = vpop.f32.mrb[0].mxu0
  %5917 = vdwg.mxu0
  %5918 = vrot.lane.b32.xlu0 %v5699, 112
  %v5919 = vpop.permute.xlu0 %5918
  %5920 = vrot.lane.b32.xlu0 %v5699, 80
  %v5921 = vpop.permute.xlu0 %5920
  %v5923 = vsel %vm159, %v5919, 0
  %v5926 = vsel %vm159, %v5921, 0
  %5928 = vmatprep.subr.bf16.mxu0 0
  %5929 = vmatpush1.bf16.xpose.msra.mxu0 %v5926
  %5930 = vmatprep.subr.bf16.mxu0 0
  %5931 = vmatpush1.bf16.xpose.msra.mxu0 0
  %5932 = vmatprep.subr.bf16.mxu0 0
  %5933 = vmatpush1.bf16.xpose.msra.mxu0 0
  %5934 = vmatprep.subr.bf16.mxu0 0
  %5935 = vmatpush1.bf16.xpose.msra.mxu0 0
  %5936 = vmatprep.subr.bf16.mxu0 0
  %5937 = vmatpush1.bf16.xpose.msra.mxu0 0
  %5938 = vmatprep.subr.bf16.mxu0 0
  %5939 = vmatpush1.bf16.xpose.msra.mxu0 0
  %5940 = vmatprep.subr.bf16.mxu0 0
  %5941 = vmatpush1.bf16.xpose.msra.mxu0 0
  %5942 = vmatprep.subr.bf16.mxu0 0
  %5943 = vmatpush1.bf16.xpose.msra.mxu0 0
  %5944 = vmatprep.subr.bf16.mxu0 0
  %5945 = vmatpush1.bf16.xpose.msra.mxu0 0
  %5946 = vmatprep.subr.bf16.mxu0 0
  %5947 = vmatpush1.bf16.xpose.msra.mxu0 0
  %5948 = vmatprep.subr.bf16.mxu0 0
  %5949 = vmatpush1.bf16.xpose.msra.mxu0 0
  %5950 = vmatprep.subr.bf16.mxu0 0
  %5951 = vmatpush1.bf16.xpose.msra.mxu0 0
  %5952 = vmatprep.subr.bf16.mxu0 0
  %5953 = vmatpush1.bf16.xpose.msra.mxu0 0
  %5954 = vmatprep.subr.bf16.mxu0 0
  %5955 = vmatpush1.bf16.xpose.msra.mxu0 0
  %5956 = vmatprep.subr.bf16.mxu0 0
  %5957 = vmatpush1.bf16.xpose.msra.mxu0 0
  %5958 = vmatprep.subr.bf16.mxu0 0
  %5959 = vmatpush1.bf16.xpose.msra.mxu0 0
  %5960 = vmatprep.mubr.bf16.mxu0 0
  %5961 = vmatmul.mubr.bf16.gmra.mrb[0].mxu0 %v5923
  %v5962 = vpop.f32.mrb[0].mxu0
  %v5963 = vadd.f32 0.0, %v5962
  %v5964 = vpop.f32.mrb[0].mxu0
  %v5965 = vpop.f32.mrb[0].mxu0
  %v5966 = vpop.f32.mrb[0].mxu0
  %5967 = vdwg.mxu0
  %v5968 = vsel %vm159, %v5963, -inf
  %5969 = vmax.xlane.f32.xlu0 %v5968
  %v5970 = vpop.xlane.xlu0 %5969
  %v5971 = vsub.f32 %v5963, %v5970
  %v5972 = vmul.f32 %v5971, 1.442695
  %v5973 = vpow.pop %v5972
  %v5974 = vsel %vm159, %v5973, 0.0
  %5975 = vadd.xlane.f32.xlu0 %v5974
  %v5976 = vpop.xlane.xlu0 %5975
  %v5977 = vrcp.pop %v5976
  %v5978 = vmul.f32 %v5973, %v5977
  %v5979 = vpack.c.bf16 %v5978, %v5978
  %5980 = vrot.lane.b32.xlu0 %v5699, 48
  %v5981 = vpop.permute.xlu0 %5980
  %v5983 = vsel %vm159, %v5979, 0
  %v5986 = vsel %vm223, %v5981, 0
  %5988 = vmatprep.subr.bf16.mxu0 0
  %5989 = vmatpush1.bf16.msra.mxu0 %v5986
  %5990 = vmatprep.subr.bf16.mxu0 0
  %5991 = vmatpush1.bf16.msra.mxu0 0
  %5992 = vmatprep.subr.bf16.mxu0 0
  %5993 = vmatpush1.bf16.msra.mxu0 0
  %5994 = vmatprep.subr.bf16.mxu0 0
  %5995 = vmatpush1.bf16.msra.mxu0 0
  %5996 = vmatprep.subr.bf16.mxu0 0
  %5997 = vmatpush1.bf16.msra.mxu0 0
  %5998 = vmatprep.subr.bf16.mxu0 0
  %5999 = vmatpush1.bf16.msra.mxu0 0
  %6000 = vmatprep.subr.bf16.mxu0 0
  %6001 = vmatpush1.bf16.msra.mxu0 0
  %6002 = vmatprep.subr.bf16.mxu0 0
  %6003 = vmatpush1.bf16.msra.mxu0 0
  %6004 = vmatprep.subr.bf16.mxu0 0
  %6005 = vmatpush1.bf16.msra.mxu0 0
  %6006 = vmatprep.subr.bf16.mxu0 0
  %6007 = vmatpush1.bf16.msra.mxu0 0
  %6008 = vmatprep.subr.bf16.mxu0 0
  %6009 = vmatpush1.bf16.msra.mxu0 0
  %6010 = vmatprep.subr.bf16.mxu0 0
  %6011 = vmatpush1.bf16.msra.mxu0 0
  %6012 = vmatprep.subr.bf16.mxu0 0
  %6013 = vmatpush1.bf16.msra.mxu0 0
  %6014 = vmatprep.subr.bf16.mxu0 0
  %6015 = vmatpush1.bf16.msra.mxu0 0
  %6016 = vmatprep.subr.bf16.mxu0 0
  %6017 = vmatpush1.bf16.msra.mxu0 0
  %6018 = vmatprep.subr.bf16.mxu0 0
  %6019 = vmatpush1.bf16.msra.mxu0 0
  %6020 = vmatprep.mubr.bf16.mxu0 0
  %6021 = vmatmul.mubr.bf16.gmra.mrb[0].mxu0 %v5983
  %v6022 = vpop.f32.mrb[0].mxu0
  %v6023 = vadd.f32 0.0, %v6022
  %v6024 = vpop.f32.mrb[0].mxu0
  %v6025 = vpop.f32.mrb[0].mxu0
  %v6026 = vpop.f32.mrb[0].mxu0
  %6027 = vdwg.mxu0
  %6028 = vrot.lane.b32.xlu0 %v5699, 104
  %v6029 = vpop.permute.xlu0 %6028
  %6030 = vrot.lane.b32.xlu0 %v5699, 72
  %v6031 = vpop.permute.xlu0 %6030
  %v6033 = vsel %vm159, %v6029, 0
  %v6036 = vsel %vm159, %v6031, 0
  %6038 = vmatprep.subr.bf16.mxu0 0
  %6039 = vmatpush1.bf16.xpose.msra.mxu0 %v6036
  %6040 = vmatprep.subr.bf16.mxu0 0
  %6041 = vmatpush1.bf16.xpose.msra.mxu0 0
  %6042 = vmatprep.subr.bf16.mxu0 0
  %6043 = vmatpush1.bf16.xpose.msra.mxu0 0
  %6044 = vmatprep.subr.bf16.mxu0 0
  %6045 = vmatpush1.bf16.xpose.msra.mxu0 0
  %6046 = vmatprep.subr.bf16.mxu0 0
  %6047 = vmatpush1.bf16.xpose.msra.mxu0 0
  %6048 = vmatprep.subr.bf16.mxu0 0
  %6049 = vmatpush1.bf16.xpose.msra.mxu0 0
  %6050 = vmatprep.subr.bf16.mxu0 0
  %6051 = vmatpush1.bf16.xpose.msra.mxu0 0
  %6052 = vmatprep.subr.bf16.mxu0 0
  %6053 = vmatpush1.bf16.xpose.msra.mxu0 0
  %6054 = vmatprep.subr.bf16.mxu0 0
  %6055 = vmatpush1.bf16.xpose.msra.mxu0 0
  %6056 = vmatprep.subr.bf16.mxu0 0
  %6057 = vmatpush1.bf16.xpose.msra.mxu0 0
  %6058 = vmatprep.subr.bf16.mxu0 0
  %6059 = vmatpush1.bf16.xpose.msra.mxu0 0
  %6060 = vmatprep.subr.bf16.mxu0 0
  %6061 = vmatpush1.bf16.xpose.msra.mxu0 0
  %6062 = vmatprep.subr.bf16.mxu0 0
  %6063 = vmatpush1.bf16.xpose.msra.mxu0 0
  %6064 = vmatprep.subr.bf16.mxu0 0
  %6065 = vmatpush1.bf16.xpose.msra.mxu0 0
  %6066 = vmatprep.subr.bf16.mxu0 0
  %6067 = vmatpush1.bf16.xpose.msra.mxu0 0
  %6068 = vmatprep.subr.bf16.mxu0 0
  %6069 = vmatpush1.bf16.xpose.msra.mxu0 0
  %6070 = vmatprep.mubr.bf16.mxu0 0
  %6071 = vmatmul.mubr.bf16.gmra.mrb[0].mxu0 %v6033
  %v6072 = vpop.f32.mrb[0].mxu0
  %v6073 = vadd.f32 0.0, %v6072
  %v6074 = vpop.f32.mrb[0].mxu0
  %v6075 = vpop.f32.mrb[0].mxu0
  %v6076 = vpop.f32.mrb[0].mxu0
  %6077 = vdwg.mxu0
  %v6078 = vsel %vm159, %v6073, -inf
  %6079 = vmax.xlane.f32.xlu0 %v6078
  %v6080 = vpop.xlane.xlu0 %6079
  %v6081 = vsub.f32 %v6073, %v6080
  %v6082 = vmul.f32 %v6081, 1.442695
  %v6083 = vpow.pop %v6082
  %v6084 = vsel %vm159, %v6083, 0.0
  %6085 = vadd.xlane.f32.xlu0 %v6084
  %v6086 = vpop.xlane.xlu0 %6085
  %v6087 = vrcp.pop %v6086
  %v6088 = vmul.f32 %v6083, %v6087
  %v6089 = vpack.c.bf16 %v6088, %v6088
  %6090 = vrot.lane.b32.xlu0 %v5699, 40
  %v6091 = vpop.permute.xlu0 %6090
  %v6093 = vsel %vm159, %v6089, 0
  %v6096 = vsel %vm223, %v6091, 0
  %6098 = vmatprep.subr.bf16.mxu0 0
  %6099 = vmatpush1.bf16.msra.mxu0 %v6096
  %6100 = vmatprep.subr.bf16.mxu0 0
  %6101 = vmatpush1.bf16.msra.mxu0 0
  %6102 = vmatprep.subr.bf16.mxu0 0
  %6103 = vmatpush1.bf16.msra.mxu0 0
  %6104 = vmatprep.subr.bf16.mxu0 0
  %6105 = vmatpush1.bf16.msra.mxu0 0
  %6106 = vmatprep.subr.bf16.mxu0 0
  %6107 = vmatpush1.bf16.msra.mxu0 0
  %6108 = vmatprep.subr.bf16.mxu0 0
  %6109 = vmatpush1.bf16.msra.mxu0 0
  %6110 = vmatprep.subr.bf16.mxu0 0
  %6111 = vmatpush1.bf16.msra.mxu0 0
  %6112 = vmatprep.subr.bf16.mxu0 0
  %6113 = vmatpush1.bf16.msra.mxu0 0
  %6114 = vmatprep.subr.bf16.mxu0 0
  %6115 = vmatpush1.bf16.msra.mxu0 0
  %6116 = vmatprep.subr.bf16.mxu0 0
  %6117 = vmatpush1.bf16.msra.mxu0 0
  %6118 = vmatprep.subr.bf16.mxu0 0
  %6119 = vmatpush1.bf16.msra.mxu0 0
  %6120 = vmatprep.subr.bf16.mxu0 0
  %6121 = vmatpush1.bf16.msra.mxu0 0
  %6122 = vmatprep.subr.bf16.mxu0 0
  %6123 = vmatpush1.bf16.msra.mxu0 0
  %6124 = vmatprep.subr.bf16.mxu0 0
  %6125 = vmatpush1.bf16.msra.mxu0 0
  %6126 = vmatprep.subr.bf16.mxu0 0
  %6127 = vmatpush1.bf16.msra.mxu0 0
  %6128 = vmatprep.subr.bf16.mxu0 0
  %6129 = vmatpush1.bf16.msra.mxu0 0
  %6130 = vmatprep.mubr.bf16.mxu0 0
  %6131 = vmatmul.mubr.bf16.gmra.mrb[0].mxu0 %v6093
  %v6132 = vpop.f32.mrb[0].mxu0
  %v6133 = vadd.f32 0.0, %v6132
  %v6134 = vpop.f32.mrb[0].mxu0
  %v6135 = vpop.f32.mrb[0].mxu0
  %v6136 = vpop.f32.mrb[0].mxu0
  %6137 = vdwg.mxu0
  %6139 = vrot.lane.b32.xlu0 %v5913, 8
  %v6140 = vpop.permute.xlu0 %6139
  %6143 = vrot.lane.b32.xlu0 %v6023, 16
  %v6144 = vpop.permute.xlu0 %6143
  %6147 = vrot.lane.b32.xlu0 %v6133, 24
  %v6148 = vpop.permute.xlu0 %6147
  %v6150 = vsel %vm159, %v5803, %v6140
  %v6151 = vsel %vm43, %v6150, %v6144
  %v6152 = vsel %vm611, %v6151, %v6148
  %v6153 = vld [vmem:[%s1 + $0x108] sm:$0xf]
  %v6154 = vld [vmem:[%s1 + $0x10c] sm:$0xf]
  %v6155 = vld [vmem:[%s1 + $0x110] sm:$0xf]
  %v6156 = vld [vmem:[%s1 + $0x114] sm:$0xf]
  %v6157 = vpack.c.bf16 %v6152, %v5698
  %v6158 = vld [vmem:[%s4 + $0x16] sm:$0x1]
  %v6159 = vlaneseq
  %v6160 = vshrl.u32 %v6159, 7
  %v6161 = vsub.s32 0, %v6160
  %v6162 = vrot.slane %v6158, %v6161
  %v6167 = vunpack.c.l.b16 %v6153
  %v6168 = vunpack.c.l.b16 %v6154
  %v6169 = vunpack.c.l.b16 %v6155
  %v6170 = vunpack.c.l.b16 %v6156
  %v6171 = vpack.c.b16 %v6168, %v6167
  %v6172 = vpack.c.b16 %v6170, %v6169
  %v6176 = vsel %vm110, %v6157, 0
  %6178 = vmatprep.subr.bf16.mxu0 0
  %6179 = vmatpush1.bf16.msra.mxu0 %v6171
  %6180 = vmatprep.subr.bf16.mxu0 0
  %6181 = vmatpush1.bf16.msra.mxu0 %v6172
  %6182 = vmatprep.subr.bf16.mxu0 0
  %6183 = vmatpush1.bf16.msra.mxu0 0
  %6184 = vmatprep.subr.bf16.mxu0 0
  %6185 = vmatpush1.bf16.msra.mxu0 0
  %6186 = vmatprep.subr.bf16.mxu0 0
  %6187 = vmatpush1.bf16.msra.mxu0 0
  %6188 = vmatprep.subr.bf16.mxu0 0
  %6189 = vmatpush1.bf16.msra.mxu0 0
  %6190 = vmatprep.subr.bf16.mxu0 0
  %6191 = vmatpush1.bf16.msra.mxu0 0
  %6192 = vmatprep.subr.bf16.mxu0 0
  %6193 = vmatpush1.bf16.msra.mxu0 0
  %6194 = vmatprep.subr.bf16.mxu0 0
  %6195 = vmatpush1.bf16.msra.mxu0 0
  %6196 = vmatprep.subr.bf16.mxu0 0
  %6197 = vmatpush1.bf16.msra.mxu0 0
  %6198 = vmatprep.subr.bf16.mxu0 0
  %6199 = vmatpush1.bf16.msra.mxu0 0
  %6200 = vmatprep.subr.bf16.mxu0 0
  %6201 = vmatpush1.bf16.msra.mxu0 0
  %6202 = vmatprep.subr.bf16.mxu0 0
  %6203 = vmatpush1.bf16.msra.mxu0 0
  %6204 = vmatprep.subr.bf16.mxu0 0
  %6205 = vmatpush1.bf16.msra.mxu0 0
  %6206 = vmatprep.subr.bf16.mxu0 0
  %6207 = vmatpush1.bf16.msra.mxu0 0
  %6208 = vmatprep.subr.bf16.mxu0 0
  %6209 = vmatpush1.bf16.msra.mxu0 0
  %6210 = vmatprep.mubr.bf16.mxu0 0
  %6211 = vmatmul.mubr.bf16.gmra.mrb[0].mxu0 %v6176
  %v6212 = vpop.f32.mrb[0].mxu0
  %v6213 = vadd.f32 %v6162, %v6212
  %v6214 = vpop.f32.mrb[0].mxu0
  %v6215 = vpop.f32.mrb[0].mxu0
  %v6216 = vadd.f32 %v6162, %v6215
  %v6217 = vpop.f32.mrb[0].mxu0
  %6218 = vdwg.mxu0
  %v6219 = vadd.f32 %v5176, %v6213
  %v6220 = vadd.f32 %v5177, %v6216
  %v6221 = vld [vmem:[%s4 + $0x19] sm:$0x1]
  %v6222 = vld [vmem:[%s4 + $0x1a] sm:$0x1]
  %v6223 = vsel %vm110, %v6219, 0.0
  %6224 = vadd.xlane.f32.xlu0 %v6223
  %v6225 = vpop.xlane.xlu0 %6224
  %v6226 = vsel %vm110, %v6220, 0.0
  %6227 = vadd.xlane.f32.xlu0 %v6226
  %v6228 = vpop.xlane.xlu0 %6227
  %v6229 = vmul.f32 %v6225, %v1143
  %v6230 = vmul.f32 %v6228, %v1143
  %v6231 = vsub.f32 %v6219, %v6229
  %v6232 = vsub.f32 %v6220, %v6230
  %v6233 = vmul.f32 %v6231, %v6231
  %v6234 = vmul.f32 %v6232, %v6232
  %v6235 = vsel %vm110, %v6233, 0.0
  %6236 = vadd.xlane.f32.xlu0 %v6235
  %v6237 = vpop.xlane.xlu0 %6236
  %v6238 = vsel %vm110, %v6234, 0.0
  %6239 = vadd.xlane.f32.xlu0 %v6238
  %v6240 = vpop.xlane.xlu0 %6239
  %v6241 = vmul.f32 %v6237, %v1143
  %v6242 = vmul.f32 %v6240, %v1143
  %v6243 = vadd.f32 %v6241, 1e-05
  %v6244 = vadd.f32 %v6242, 1e-05
  %v6245 = vrsqrt.pop %v6243
  %v6246 = vrsqrt.pop %v6244
  %v6247 = vmul.f32 %v6231, %v6245
  %v6248 = vmul.f32 %v6232, %v6246
  %v6249 = vlaneseq
  %v6250 = vshrl.u32 %v6249, 7
  %v6251 = vsub.s32 0, %v6250
  %v6252 = vrot.slane %v6221, %v6251
  %v6253 = vmul.f32 %v6247, %v6252
  %v6254 = vmul.f32 %v6248, %v6252
  %v6255 = vlaneseq
  %v6256 = vshrl.u32 %v6255, 7
  %v6257 = vsub.s32 0, %v6256
  %v6258 = vrot.slane %v6222, %v6257
  %v6259 = vadd.f32 %v6253, %v6258
  %v6260 = vadd.f32 %v6254, %v6258
  %v6261 = vld [vmem:[%s2 + $0x50] sm:$0xf]
  %v6262 = vld [vmem:[%s2 + $0x54] sm:$0xf]
  %v6263 = vld [vmem:[%s2 + $0x58] sm:$0xf]
  %v6264 = vld [vmem:[%s2 + $0x5c] sm:$0xf]
  %v6265 = vld [vmem:[%s5 + $0x5] sm:$0x1]
  %v6266 = vpack.c.bf16 %v6260, %v6259
  %v6267 = vlaneseq
  %v6268 = vshrl.u32 %v6267, 7
  %v6269 = vsub.s32 0, %v6268
  %v6270 = vrot.slane %v6265, %v6269
  %v6275 = vunpack.c.l.b16 %v6261
  %v6276 = vunpack.c.l.b16 %v6262
  %v6277 = vunpack.c.l.b16 %v6263
  %v6278 = vunpack.c.l.b16 %v6264
  %v6279 = vpack.c.b16 %v6276, %v6275
  %v6280 = vpack.c.b16 %v6278, %v6277
  %v6284 = vsel %vm110, %v6266, 0
  %6286 = vmatprep.subr.bf16.mxu0 0
  %6287 = vmatpush1.bf16.msra.mxu0 %v6279
  %6288 = vmatprep.subr.bf16.mxu0 0
  %6289 = vmatpush1.bf16.msra.mxu0 %v6280
  %6290 = vmatprep.subr.bf16.mxu0 0
  %6291 = vmatpush1.bf16.msra.mxu0 0
  %6292 = vmatprep.subr.bf16.mxu0 0
  %6293 = vmatpush1.bf16.msra.mxu0 0
  %6294 = vmatprep.subr.bf16.mxu0 0
  %6295 = vmatpush1.bf16.msra.mxu0 0
  %6296 = vmatprep.subr.bf16.mxu0 0
  %6297 = vmatpush1.bf16.msra.mxu0 0
  %6298 = vmatprep.subr.bf16.mxu0 0
  %6299 = vmatpush1.bf16.msra.mxu0 0
  %6300 = vmatprep.subr.bf16.mxu0 0
  %6301 = vmatpush1.bf16.msra.mxu0 0
  %6302 = vmatprep.subr.bf16.mxu0 0
  %6303 = vmatpush1.bf16.msra.mxu0 0
  %6304 = vmatprep.subr.bf16.mxu0 0
  %6305 = vmatpush1.bf16.msra.mxu0 0
  %6306 = vmatprep.subr.bf16.mxu0 0
  %6307 = vmatpush1.bf16.msra.mxu0 0
  %6308 = vmatprep.subr.bf16.mxu0 0
  %6309 = vmatpush1.bf16.msra.mxu0 0
  %6310 = vmatprep.subr.bf16.mxu0 0
  %6311 = vmatpush1.bf16.msra.mxu0 0
  %6312 = vmatprep.subr.bf16.mxu0 0
  %6313 = vmatpush1.bf16.msra.mxu0 0
  %6314 = vmatprep.subr.bf16.mxu0 0
  %6315 = vmatpush1.bf16.msra.mxu0 0
  %6316 = vmatprep.subr.bf16.mxu0 0
  %6317 = vmatpush1.bf16.msra.mxu0 0
  %6318 = vmatprep.mubr.bf16.mxu0 0
  %6319 = vmatmul.mubr.bf16.gmra.mrb[0].mxu0 %v6284
  %v6320 = vpop.f32.mrb[0].mxu0
  %v6321 = vadd.f32 %v6270, %v6320
  %v6322 = vpop.f32.mrb[0].mxu0
  %v6323 = vpop.f32.mrb[0].mxu0
  %v6324 = vadd.f32 %v6270, %v6323
  %v6325 = vpop.f32.mrb[0].mxu0
  %6326 = vdwg.mxu0
  %6327 = vrot.lane.b32.xlu0 %v6279, 96
  %v6328 = vpop.permute.xlu0 %6327
  %6329 = vrot.lane.b32.xlu0 %v6280, 96
  %v6330 = vpop.permute.xlu0 %6329
  %6334 = vrot.lane.b32.xlu0 %v6270, 96
  %v6335 = vpop.permute.xlu0 %6334
  %6337 = vmatprep.subr.bf16.mxu0 0
  %6338 = vmatpush1.bf16.msra.mxu0 %v6328
  %6339 = vmatprep.subr.bf16.mxu0 0
  %6340 = vmatpush1.bf16.msra.mxu0 %v6330
  %6341 = vmatprep.subr.bf16.mxu0 0
  %6342 = vmatpush1.bf16.msra.mxu0 0
  %6343 = vmatprep.subr.bf16.mxu0 0
  %6344 = vmatpush1.bf16.msra.mxu0 0
  %6345 = vmatprep.subr.bf16.mxu0 0
  %6346 = vmatpush1.bf16.msra.mxu0 0
  %6347 = vmatprep.subr.bf16.mxu0 0
  %6348 = vmatpush1.bf16.msra.mxu0 0
  %6349 = vmatprep.subr.bf16.mxu0 0
  %6350 = vmatpush1.bf16.msra.mxu0 0
  %6351 = vmatprep.subr.bf16.mxu0 0
  %6352 = vmatpush1.bf16.msra.mxu0 0
  %6353 = vmatprep.subr.bf16.mxu0 0
  %6354 = vmatpush1.bf16.msra.mxu0 0
  %6355 = vmatprep.subr.bf16.mxu0 0
  %6356 = vmatpush1.bf16.msra.mxu0 0
  %6357 = vmatprep.subr.bf16.mxu0 0
  %6358 = vmatpush1.bf16.msra.mxu0 0
  %6359 = vmatprep.subr.bf16.mxu0 0
  %6360 = vmatpush1.bf16.msra.mxu0 0
  %6361 = vmatprep.subr.bf16.mxu0 0
  %6362 = vmatpush1.bf16.msra.mxu0 0
  %6363 = vmatprep.subr.bf16.mxu0 0
  %6364 = vmatpush1.bf16.msra.mxu0 0
  %6365 = vmatprep.subr.bf16.mxu0 0
  %6366 = vmatpush1.bf16.msra.mxu0 0
  %6367 = vmatprep.subr.bf16.mxu0 0
  %6368 = vmatpush1.bf16.msra.mxu0 0
  %6369 = vmatprep.mubr.bf16.mxu0 0
  %6370 = vmatmul.mubr.bf16.gmra.mrb[0].mxu0 %v3898
  %v6371 = vpop.f32.mrb[0].mxu0
  %v6372 = vadd.f32 %v6335, %v6371
  %v6373 = vpop.f32.mrb[0].mxu0
  %v6374 = vpop.f32.mrb[0].mxu0
  %v6375 = vadd.f32 %v6335, %v6374
  %v6376 = vpop.f32.mrb[0].mxu0
  %6377 = vdwg.mxu0
  %v6378 = vpack.c.bf16 %v6324, %v6321
  %v6379 = vpack.c.bf16 %v6375, %v6372
  %v6381 = vsel %vm159, %v6378, 0
  %v6384 = vsel %vm159, %v6379, 0
  %6386 = vmatprep.subr.bf16.mxu0 0
  %6387 = vmatpush1.bf16.xpose.msra.mxu0 %v6384
  %6388 = vmatprep.subr.bf16.mxu0 0
  %6389 = vmatpush1.bf16.xpose.msra.mxu0 0
  %6390 = vmatprep.subr.bf16.mxu0 0
  %6391 = vmatpush1.bf16.xpose.msra.mxu0 0
  %6392 = vmatprep.subr.bf16.mxu0 0
  %6393 = vmatpush1.bf16.xpose.msra.mxu0 0
  %6394 = vmatprep.subr.bf16.mxu0 0
  %6395 = vmatpush1.bf16.xpose.msra.mxu0 0
  %6396 = vmatprep.subr.bf16.mxu0 0
  %6397 = vmatpush1.bf16.xpose.msra.mxu0 0
  %6398 = vmatprep.subr.bf16.mxu0 0
  %6399 = vmatpush1.bf16.xpose.msra.mxu0 0
  %6400 = vmatprep.subr.bf16.mxu0 0
  %6401 = vmatpush1.bf16.xpose.msra.mxu0 0
  %6402 = vmatprep.subr.bf16.mxu0 0
  %6403 = vmatpush1.bf16.xpose.msra.mxu0 0
  %6404 = vmatprep.subr.bf16.mxu0 0
  %6405 = vmatpush1.bf16.xpose.msra.mxu0 0
  %6406 = vmatprep.subr.bf16.mxu0 0
  %6407 = vmatpush1.bf16.xpose.msra.mxu0 0
  %6408 = vmatprep.subr.bf16.mxu0 0
  %6409 = vmatpush1.bf16.xpose.msra.mxu0 0
  %6410 = vmatprep.subr.bf16.mxu0 0
  %6411 = vmatpush1.bf16.xpose.msra.mxu0 0
  %6412 = vmatprep.subr.bf16.mxu0 0
  %6413 = vmatpush1.bf16.xpose.msra.mxu0 0
  %6414 = vmatprep.subr.bf16.mxu0 0
  %6415 = vmatpush1.bf16.xpose.msra.mxu0 0
  %6416 = vmatprep.subr.bf16.mxu0 0
  %6417 = vmatpush1.bf16.xpose.msra.mxu0 0
  %6418 = vmatprep.mubr.bf16.mxu0 0
  %6419 = vmatmul.mubr.bf16.gmra.mrb[0].mxu0 %v6381
  %v6420 = vpop.f32.mrb[0].mxu0
  %v6421 = vadd.f32 0.0, %v6420
  %v6422 = vpop.f32.mrb[0].mxu0
  %v6423 = vpop.f32.mrb[0].mxu0
  %v6424 = vpop.f32.mrb[0].mxu0
  %6425 = vdwg.mxu0
  %v6426 = vsel %vm159, %v6421, -inf
  %6427 = vmax.xlane.f32.xlu0 %v6426
  %v6428 = vpop.xlane.xlu0 %6427
  %v6429 = vsub.f32 %v6421, %v6428
  %v6430 = vmul.f32 %v6429, 1.442695
  %v6431 = vpow.pop %v6430
  %v6432 = vsel %vm159, %v6431, 0.0
  %6433 = vadd.xlane.f32.xlu0 %v6432
  %v6434 = vpop.xlane.xlu0 %6433
  %v6435 = vrcp.pop %v6434
  %v6436 = vmul.f32 %v6431, %v6435
  %v6437 = vpack.c.bf16 %v6436, %v6436
  %6439 = vrot.lane.b32.xlu0 %v6379, 96
  %v6440 = vpop.permute.xlu0 %6439
  %v6442 = vsel %vm159, %v6437, 0
  %v6445 = vsel %vm223, %v6440, 0
  %6447 = vmatprep.subr.bf16.mxu0 0
  %6448 = vmatpush1.bf16.msra.mxu0 %v6445
  %6449 = vmatprep.subr.bf16.mxu0 0
  %6450 = vmatpush1.bf16.msra.mxu0 0
  %6451 = vmatprep.subr.bf16.mxu0 0
  %6452 = vmatpush1.bf16.msra.mxu0 0
  %6453 = vmatprep.subr.bf16.mxu0 0
  %6454 = vmatpush1.bf16.msra.mxu0 0
  %6455 = vmatprep.subr.bf16.mxu0 0
  %6456 = vmatpush1.bf16.msra.mxu0 0
  %6457 = vmatprep.subr.bf16.mxu0 0
  %6458 = vmatpush1.bf16.msra.mxu0 0
  %6459 = vmatprep.subr.bf16.mxu0 0
  %6460 = vmatpush1.bf16.msra.mxu0 0
  %6461 = vmatprep.subr.bf16.mxu0 0
  %6462 = vmatpush1.bf16.msra.mxu0 0
  %6463 = vmatprep.subr.bf16.mxu0 0
  %6464 = vmatpush1.bf16.msra.mxu0 0
  %6465 = vmatprep.subr.bf16.mxu0 0
  %6466 = vmatpush1.bf16.msra.mxu0 0
  %6467 = vmatprep.subr.bf16.mxu0 0
  %6468 = vmatpush1.bf16.msra.mxu0 0
  %6469 = vmatprep.subr.bf16.mxu0 0
  %6470 = vmatpush1.bf16.msra.mxu0 0
  %6471 = vmatprep.subr.bf16.mxu0 0
  %6472 = vmatpush1.bf16.msra.mxu0 0
  %6473 = vmatprep.subr.bf16.mxu0 0
  %6474 = vmatpush1.bf16.msra.mxu0 0
  %6475 = vmatprep.subr.bf16.mxu0 0
  %6476 = vmatpush1.bf16.msra.mxu0 0
  %6477 = vmatprep.subr.bf16.mxu0 0
  %6478 = vmatpush1.bf16.msra.mxu0 0
  %6479 = vmatprep.mubr.bf16.mxu0 0
  %6480 = vmatmul.mubr.bf16.gmra.mrb[0].mxu0 %v6442
  %v6481 = vpop.f32.mrb[0].mxu0
  %v6482 = vadd.f32 0.0, %v6481
  %v6483 = vpop.f32.mrb[0].mxu0
  %v6484 = vpop.f32.mrb[0].mxu0
  %v6485 = vpop.f32.mrb[0].mxu0
  %6486 = vdwg.mxu0
  %6488 = vrot.lane.b32.xlu0 %v6378, 120
  %v6489 = vpop.permute.xlu0 %6488
  %6490 = vrot.lane.b32.xlu0 %v6379, 120
  %v6491 = vpop.permute.xlu0 %6490
  %v6493 = vsel %vm159, %v6489, 0
  %v6496 = vsel %vm159, %v6491, 0
  %6498 = vmatprep.subr.bf16.mxu0 0
  %6499 = vmatpush1.bf16.xpose.msra.mxu0 %v6496
  %6500 = vmatprep.subr.bf16.mxu0 0
  %6501 = vmatpush1.bf16.xpose.msra.mxu0 0
  %6502 = vmatprep.subr.bf16.mxu0 0
  %6503 = vmatpush1.bf16.xpose.msra.mxu0 0
  %6504 = vmatprep.subr.bf16.mxu0 0
  %6505 = vmatpush1.bf16.xpose.msra.mxu0 0
  %6506 = vmatprep.subr.bf16.mxu0 0
  %6507 = vmatpush1.bf16.xpose.msra.mxu0 0
  %6508 = vmatprep.subr.bf16.mxu0 0
  %6509 = vmatpush1.bf16.xpose.msra.mxu0 0
  %6510 = vmatprep.subr.bf16.mxu0 0
  %6511 = vmatpush1.bf16.xpose.msra.mxu0 0
  %6512 = vmatprep.subr.bf16.mxu0 0
  %6513 = vmatpush1.bf16.xpose.msra.mxu0 0
  %6514 = vmatprep.subr.bf16.mxu0 0
  %6515 = vmatpush1.bf16.xpose.msra.mxu0 0
  %6516 = vmatprep.subr.bf16.mxu0 0
  %6517 = vmatpush1.bf16.xpose.msra.mxu0 0
  %6518 = vmatprep.subr.bf16.mxu0 0
  %6519 = vmatpush1.bf16.xpose.msra.mxu0 0
  %6520 = vmatprep.subr.bf16.mxu0 0
  %6521 = vmatpush1.bf16.xpose.msra.mxu0 0
  %6522 = vmatprep.subr.bf16.mxu0 0
  %6523 = vmatpush1.bf16.xpose.msra.mxu0 0
  %6524 = vmatprep.subr.bf16.mxu0 0
  %6525 = vmatpush1.bf16.xpose.msra.mxu0 0
  %6526 = vmatprep.subr.bf16.mxu0 0
  %6527 = vmatpush1.bf16.xpose.msra.mxu0 0
  %6528 = vmatprep.subr.bf16.mxu0 0
  %6529 = vmatpush1.bf16.xpose.msra.mxu0 0
  %6530 = vmatprep.mubr.bf16.mxu0 0
  %6531 = vmatmul.mubr.bf16.gmra.mrb[0].mxu0 %v6493
  %v6532 = vpop.f32.mrb[0].mxu0
  %v6533 = vadd.f32 0.0, %v6532
  %v6534 = vpop.f32.mrb[0].mxu0
  %v6535 = vpop.f32.mrb[0].mxu0
  %v6536 = vpop.f32.mrb[0].mxu0
  %6537 = vdwg.mxu0
  %v6538 = vsel %vm159, %v6533, -inf
  %6539 = vmax.xlane.f32.xlu0 %v6538
  %v6540 = vpop.xlane.xlu0 %6539
  %v6541 = vsub.f32 %v6533, %v6540
  %v6542 = vmul.f32 %v6541, 1.442695
  %v6543 = vpow.pop %v6542
  %v6544 = vsel %vm159, %v6543, 0.0
  %6545 = vadd.xlane.f32.xlu0 %v6544
  %v6546 = vpop.xlane.xlu0 %6545
  %v6547 = vrcp.pop %v6546
  %v6548 = vmul.f32 %v6543, %v6547
  %v6549 = vpack.c.bf16 %v6548, %v6548
  %6550 = vrot.lane.b32.xlu0 %v6379, 88
  %v6551 = vpop.permute.xlu0 %6550
  %v6553 = vsel %vm159, %v6549, 0
  %v6556 = vsel %vm223, %v6551, 0
  %6558 = vmatprep.subr.bf16.mxu0 0
  %6559 = vmatpush1.bf16.msra.mxu0 %v6556
  %6560 = vmatprep.subr.bf16.mxu0 0
  %6561 = vmatpush1.bf16.msra.mxu0 0
  %6562 = vmatprep.subr.bf16.mxu0 0
  %6563 = vmatpush1.bf16.msra.mxu0 0
  %6564 = vmatprep.subr.bf16.mxu0 0
  %6565 = vmatpush1.bf16.msra.mxu0 0
  %6566 = vmatprep.subr.bf16.mxu0 0
  %6567 = vmatpush1.bf16.msra.mxu0 0
  %6568 = vmatprep.subr.bf16.mxu0 0
  %6569 = vmatpush1.bf16.msra.mxu0 0
  %6570 = vmatprep.subr.bf16.mxu0 0
  %6571 = vmatpush1.bf16.msra.mxu0 0
  %6572 = vmatprep.subr.bf16.mxu0 0
  %6573 = vmatpush1.bf16.msra.mxu0 0
  %6574 = vmatprep.subr.bf16.mxu0 0
  %6575 = vmatpush1.bf16.msra.mxu0 0
  %6576 = vmatprep.subr.bf16.mxu0 0
  %6577 = vmatpush1.bf16.msra.mxu0 0
  %6578 = vmatprep.subr.bf16.mxu0 0
  %6579 = vmatpush1.bf16.msra.mxu0 0
  %6580 = vmatprep.subr.bf16.mxu0 0
  %6581 = vmatpush1.bf16.msra.mxu0 0
  %6582 = vmatprep.subr.bf16.mxu0 0
  %6583 = vmatpush1.bf16.msra.mxu0 0
  %6584 = vmatprep.subr.bf16.mxu0 0
  %6585 = vmatpush1.bf16.msra.mxu0 0
  %6586 = vmatprep.subr.bf16.mxu0 0
  %6587 = vmatpush1.bf16.msra.mxu0 0
  %6588 = vmatprep.subr.bf16.mxu0 0
  %6589 = vmatpush1.bf16.msra.mxu0 0
  %6590 = vmatprep.mubr.bf16.mxu0 0
  %6591 = vmatmul.mubr.bf16.gmra.mrb[0].mxu0 %v6553
  %v6592 = vpop.f32.mrb[0].mxu0
  %v6593 = vadd.f32 0.0, %v6592
  %v6594 = vpop.f32.mrb[0].mxu0
  %v6595 = vpop.f32.mrb[0].mxu0
  %v6596 = vpop.f32.mrb[0].mxu0
  %6597 = vdwg.mxu0
  %6598 = vrot.lane.b32.xlu0 %v6378, 112
  %v6599 = vpop.permute.xlu0 %6598
  %6600 = vrot.lane.b32.xlu0 %v6379, 112
  %v6601 = vpop.permute.xlu0 %6600
  %v6603 = vsel %vm159, %v6599, 0
  %v6606 = vsel %vm159, %v6601, 0
  %6608 = vmatprep.subr.bf16.mxu0 0
  %6609 = vmatpush1.bf16.xpose.msra.mxu0 %v6606
  %6610 = vmatprep.subr.bf16.mxu0 0
  %6611 = vmatpush1.bf16.xpose.msra.mxu0 0
  %6612 = vmatprep.subr.bf16.mxu0 0
  %6613 = vmatpush1.bf16.xpose.msra.mxu0 0
  %6614 = vmatprep.subr.bf16.mxu0 0
  %6615 = vmatpush1.bf16.xpose.msra.mxu0 0
  %6616 = vmatprep.subr.bf16.mxu0 0
  %6617 = vmatpush1.bf16.xpose.msra.mxu0 0
  %6618 = vmatprep.subr.bf16.mxu0 0
  %6619 = vmatpush1.bf16.xpose.msra.mxu0 0
  %6620 = vmatprep.subr.bf16.mxu0 0
  %6621 = vmatpush1.bf16.xpose.msra.mxu0 0
  %6622 = vmatprep.subr.bf16.mxu0 0
  %6623 = vmatpush1.bf16.xpose.msra.mxu0 0
  %6624 = vmatprep.subr.bf16.mxu0 0
  %6625 = vmatpush1.bf16.xpose.msra.mxu0 0
  %6626 = vmatprep.subr.bf16.mxu0 0
  %6627 = vmatpush1.bf16.xpose.msra.mxu0 0
  %6628 = vmatprep.subr.bf16.mxu0 0
  %6629 = vmatpush1.bf16.xpose.msra.mxu0 0
  %6630 = vmatprep.subr.bf16.mxu0 0
  %6631 = vmatpush1.bf16.xpose.msra.mxu0 0
  %6632 = vmatprep.subr.bf16.mxu0 0
  %6633 = vmatpush1.bf16.xpose.msra.mxu0 0
  %6634 = vmatprep.subr.bf16.mxu0 0
  %6635 = vmatpush1.bf16.xpose.msra.mxu0 0
  %6636 = vmatprep.subr.bf16.mxu0 0
  %6637 = vmatpush1.bf16.xpose.msra.mxu0 0
  %6638 = vmatprep.subr.bf16.mxu0 0
  %6639 = vmatpush1.bf16.xpose.msra.mxu0 0
  %6640 = vmatprep.mubr.bf16.mxu0 0
  %6641 = vmatmul.mubr.bf16.gmra.mrb[0].mxu0 %v6603
  %v6642 = vpop.f32.mrb[0].mxu0
  %v6643 = vadd.f32 0.0, %v6642
  %v6644 = vpop.f32.mrb[0].mxu0
  %v6645 = vpop.f32.mrb[0].mxu0
  %v6646 = vpop.f32.mrb[0].mxu0
  %6647 = vdwg.mxu0
  %v6648 = vsel %vm159, %v6643, -inf
  %6649 = vmax.xlane.f32.xlu0 %v6648
  %v6650 = vpop.xlane.xlu0 %6649
  %v6651 = vsub.f32 %v6643, %v6650
  %v6652 = vmul.f32 %v6651, 1.442695
  %v6653 = vpow.pop %v6652
  %v6654 = vsel %vm159, %v6653, 0.0
  %6655 = vadd.xlane.f32.xlu0 %v6654
  %v6656 = vpop.xlane.xlu0 %6655
  %v6657 = vrcp.pop %v6656
  %v6658 = vmul.f32 %v6653, %v6657
  %v6659 = vpack.c.bf16 %v6658, %v6658
  %6660 = vrot.lane.b32.xlu0 %v6379, 80
  %v6661 = vpop.permute.xlu0 %6660
  %v6663 = vsel %vm159, %v6659, 0
  %v6666 = vsel %vm223, %v6661, 0
  %6668 = vmatprep.subr.bf16.mxu0 0
  %6669 = vmatpush1.bf16.msra.mxu0 %v6666
  %6670 = vmatprep.subr.bf16.mxu0 0
  %6671 = vmatpush1.bf16.msra.mxu0 0
  %6672 = vmatprep.subr.bf16.mxu0 0
  %6673 = vmatpush1.bf16.msra.mxu0 0
  %6674 = vmatprep.subr.bf16.mxu0 0
  %6675 = vmatpush1.bf16.msra.mxu0 0
  %6676 = vmatprep.subr.bf16.mxu0 0
  %6677 = vmatpush1.bf16.msra.mxu0 0
  %6678 = vmatprep.subr.bf16.mxu0 0
  %6679 = vmatpush1.bf16.msra.mxu0 0
  %6680 = vmatprep.subr.bf16.mxu0 0
  %6681 = vmatpush1.bf16.msra.mxu0 0
  %6682 = vmatprep.subr.bf16.mxu0 0
  %6683 = vmatpush1.bf16.msra.mxu0 0
  %6684 = vmatprep.subr.bf16.mxu0 0
  %6685 = vmatpush1.bf16.msra.mxu0 0
  %6686 = vmatprep.subr.bf16.mxu0 0
  %6687 = vmatpush1.bf16.msra.mxu0 0
  %6688 = vmatprep.subr.bf16.mxu0 0
  %6689 = vmatpush1.bf16.msra.mxu0 0
  %6690 = vmatprep.subr.bf16.mxu0 0
  %6691 = vmatpush1.bf16.msra.mxu0 0
  %6692 = vmatprep.subr.bf16.mxu0 0
  %6693 = vmatpush1.bf16.msra.mxu0 0
  %6694 = vmatprep.subr.bf16.mxu0 0
  %6695 = vmatpush1.bf16.msra.mxu0 0
  %6696 = vmatprep.subr.bf16.mxu0 0
  %6697 = vmatpush1.bf16.msra.mxu0 0
  %6698 = vmatprep.subr.bf16.mxu0 0
  %6699 = vmatpush1.bf16.msra.mxu0 0
  %6700 = vmatprep.mubr.bf16.mxu0 0
  %6701 = vmatmul.mubr.bf16.gmra.mrb[0].mxu0 %v6663
  %v6702 = vpop.f32.mrb[0].mxu0
  %v6703 = vadd.f32 0.0, %v6702
  %v6704 = vpop.f32.mrb[0].mxu0
  %v6705 = vpop.f32.mrb[0].mxu0
  %v6706 = vpop.f32.mrb[0].mxu0
  %6707 = vdwg.mxu0
  %6708 = vrot.lane.b32.xlu0 %v6378, 104
  %v6709 = vpop.permute.xlu0 %6708
  %6710 = vrot.lane.b32.xlu0 %v6379, 104
  %v6711 = vpop.permute.xlu0 %6710
  %v6713 = vsel %vm159, %v6709, 0
  %v6716 = vsel %vm159, %v6711, 0
  %6718 = vmatprep.subr.bf16.mxu0 0
  %6719 = vmatpush1.bf16.xpose.msra.mxu0 %v6716
  %6720 = vmatprep.subr.bf16.mxu0 0
  %6721 = vmatpush1.bf16.xpose.msra.mxu0 0
  %6722 = vmatprep.subr.bf16.mxu0 0
  %6723 = vmatpush1.bf16.xpose.msra.mxu0 0
  %6724 = vmatprep.subr.bf16.mxu0 0
  %6725 = vmatpush1.bf16.xpose.msra.mxu0 0
  %6726 = vmatprep.subr.bf16.mxu0 0
  %6727 = vmatpush1.bf16.xpose.msra.mxu0 0
  %6728 = vmatprep.subr.bf16.mxu0 0
  %6729 = vmatpush1.bf16.xpose.msra.mxu0 0
  %6730 = vmatprep.subr.bf16.mxu0 0
  %6731 = vmatpush1.bf16.xpose.msra.mxu0 0
  %6732 = vmatprep.subr.bf16.mxu0 0
  %6733 = vmatpush1.bf16.xpose.msra.mxu0 0
  %6734 = vmatprep.subr.bf16.mxu0 0
  %6735 = vmatpush1.bf16.xpose.msra.mxu0 0
  %6736 = vmatprep.subr.bf16.mxu0 0
  %6737 = vmatpush1.bf16.xpose.msra.mxu0 0
  %6738 = vmatprep.subr.bf16.mxu0 0
  %6739 = vmatpush1.bf16.xpose.msra.mxu0 0
  %6740 = vmatprep.subr.bf16.mxu0 0
  %6741 = vmatpush1.bf16.xpose.msra.mxu0 0
  %6742 = vmatprep.subr.bf16.mxu0 0
  %6743 = vmatpush1.bf16.xpose.msra.mxu0 0
  %6744 = vmatprep.subr.bf16.mxu0 0
  %6745 = vmatpush1.bf16.xpose.msra.mxu0 0
  %6746 = vmatprep.subr.bf16.mxu0 0
  %6747 = vmatpush1.bf16.xpose.msra.mxu0 0
  %6748 = vmatprep.subr.bf16.mxu0 0
  %6749 = vmatpush1.bf16.xpose.msra.mxu0 0
  %6750 = vmatprep.mubr.bf16.mxu0 0
  %6751 = vmatmul.mubr.bf16.gmra.mrb[0].mxu0 %v6713
  %v6752 = vpop.f32.mrb[0].mxu0
  %v6753 = vadd.f32 0.0, %v6752
  %v6754 = vpop.f32.mrb[0].mxu0
  %v6755 = vpop.f32.mrb[0].mxu0
  %v6756 = vpop.f32.mrb[0].mxu0
  %6757 = vdwg.mxu0
  %v6758 = vsel %vm159, %v6753, -inf
  %6759 = vmax.xlane.f32.xlu0 %v6758
  %v6760 = vpop.xlane.xlu0 %6759
  %v6761 = vsub.f32 %v6753, %v6760
  %v6762 = vmul.f32 %v6761, 1.442695
  %v6763 = vpow.pop %v6762
  %v6764 = vsel %vm159, %v6763, 0.0
  %6765 = vadd.xlane.f32.xlu0 %v6764
  %v6766 = vpop.xlane.xlu0 %6765
  %v6767 = vrcp.pop %v6766
  %v6768 = vmul.f32 %v6763, %v6767
  %v6769 = vpack.c.bf16 %v6768, %v6768
  %6770 = vrot.lane.b32.xlu0 %v6379, 72
  %v6771 = vpop.permute.xlu0 %6770
  %v6773 = vsel %vm159, %v6769, 0
  %v6776 = vsel %vm223, %v6771, 0
  %6778 = vmatprep.subr.bf16.mxu0 0
  %6779 = vmatpush1.bf16.msra.mxu0 %v6776
  %6780 = vmatprep.subr.bf16.mxu0 0
  %6781 = vmatpush1.bf16.msra.mxu0 0
  %6782 = vmatprep.subr.bf16.mxu0 0
  %6783 = vmatpush1.bf16.msra.mxu0 0
  %6784 = vmatprep.subr.bf16.mxu0 0
  %6785 = vmatpush1.bf16.msra.mxu0 0
  %6786 = vmatprep.subr.bf16.mxu0 0
  %6787 = vmatpush1.bf16.msra.mxu0 0
  %6788 = vmatprep.subr.bf16.mxu0 0
  %6789 = vmatpush1.bf16.msra.mxu0 0
  %6790 = vmatprep.subr.bf16.mxu0 0
  %6791 = vmatpush1.bf16.msra.mxu0 0
  %6792 = vmatprep.subr.bf16.mxu0 0
  %6793 = vmatpush1.bf16.msra.mxu0 0
  %6794 = vmatprep.subr.bf16.mxu0 0
  %6795 = vmatpush1.bf16.msra.mxu0 0
  %6796 = vmatprep.subr.bf16.mxu0 0
  %6797 = vmatpush1.bf16.msra.mxu0 0
  %6798 = vmatprep.subr.bf16.mxu0 0
  %6799 = vmatpush1.bf16.msra.mxu0 0
  %6800 = vmatprep.subr.bf16.mxu0 0
  %6801 = vmatpush1.bf16.msra.mxu0 0
  %6802 = vmatprep.subr.bf16.mxu0 0
  %6803 = vmatpush1.bf16.msra.mxu0 0
  %6804 = vmatprep.subr.bf16.mxu0 0
  %6805 = vmatpush1.bf16.msra.mxu0 0
  %6806 = vmatprep.subr.bf16.mxu0 0
  %6807 = vmatpush1.bf16.msra.mxu0 0
  %6808 = vmatprep.subr.bf16.mxu0 0
  %6809 = vmatpush1.bf16.msra.mxu0 0
  %6810 = vmatprep.mubr.bf16.mxu0 0
  %6811 = vmatmul.mubr.bf16.gmra.mrb[0].mxu0 %v6773
  %v6812 = vpop.f32.mrb[0].mxu0
  %v6813 = vadd.f32 0.0, %v6812
  %v6814 = vpop.f32.mrb[0].mxu0
  %v6815 = vpop.f32.mrb[0].mxu0
  %v6816 = vpop.f32.mrb[0].mxu0
  %6817 = vdwg.mxu0
  %6819 = vrot.lane.b32.xlu0 %v6593, 8
  %v6820 = vpop.permute.xlu0 %6819
  %6823 = vrot.lane.b32.xlu0 %v6703, 16
  %v6824 = vpop.permute.xlu0 %6823
  %6827 = vrot.lane.b32.xlu0 %v6813, 24
  %v6828 = vpop.permute.xlu0 %6827
  %v6830 = vsel %vm159, %v6482, %v6820
  %v6831 = vsel %vm43, %v6830, %v6824
  %v6832 = vsel %vm611, %v6831, %v6828
  %v6833 = vrot.slane %v6378, 4
  %v6834 = vrot.slane %v6379, 4
  %v6836 = vsel %vm159, %v6833, 0
  %v6839 = vsel %vm159, %v6834, 0
  %6841 = vmatprep.subr.bf16.mxu0 0
  %6842 = vmatpush1.bf16.xpose.msra.mxu0 %v6839
  %6843 = vmatprep.subr.bf16.mxu0 0
  %6844 = vmatpush1.bf16.xpose.msra.mxu0 0
  %6845 = vmatprep.subr.bf16.mxu0 0
  %6846 = vmatpush1.bf16.xpose.msra.mxu0 0
  %6847 = vmatprep.subr.bf16.mxu0 0
  %6848 = vmatpush1.bf16.xpose.msra.mxu0 0
  %6849 = vmatprep.subr.bf16.mxu0 0
  %6850 = vmatpush1.bf16.xpose.msra.mxu0 0
  %6851 = vmatprep.subr.bf16.mxu0 0
  %6852 = vmatpush1.bf16.xpose.msra.mxu0 0
  %6853 = vmatprep.subr.bf16.mxu0 0
  %6854 = vmatpush1.bf16.xpose.msra.mxu0 0
  %6855 = vmatprep.subr.bf16.mxu0 0
  %6856 = vmatpush1.bf16.xpose.msra.mxu0 0
  %6857 = vmatprep.subr.bf16.mxu0 0
  %6858 = vmatpush1.bf16.xpose.msra.mxu0 0
  %6859 = vmatprep.subr.bf16.mxu0 0
  %6860 = vmatpush1.bf16.xpose.msra.mxu0 0
  %6861 = vmatprep.subr.bf16.mxu0 0
  %6862 = vmatpush1.bf16.xpose.msra.mxu0 0
  %6863 = vmatprep.subr.bf16.mxu0 0
  %6864 = vmatpush1.bf16.xpose.msra.mxu0 0
  %6865 = vmatprep.subr.bf16.mxu0 0
  %6866 = vmatpush1.bf16.xpose.msra.mxu0 0
  %6867 = vmatprep.subr.bf16.mxu0 0
  %6868 = vmatpush1.bf16.xpose.msra.mxu0 0
  %6869 = vmatprep.subr.bf16.mxu0 0
  %6870 = vmatpush1.bf16.xpose.msra.mxu0 0
  %6871 = vmatprep.subr.bf16.mxu0 0
  %6872 = vmatpush1.bf16.xpose.msra.mxu0 0
  %6873 = vmatprep.mubr.bf16.mxu0 0
  %6874 = vmatmul.mubr.bf16.gmra.mrb[0].mxu0 %v6836
  %v6875 = vpop.f32.mrb[0].mxu0
  %v6876 = vadd.f32 0.0, %v6875
  %v6877 = vpop.f32.mrb[0].mxu0
  %v6878 = vpop.f32.mrb[0].mxu0
  %v6879 = vpop.f32.mrb[0].mxu0
  %6880 = vdwg.mxu0
  %v6881 = vsel %vm159, %v6876, -inf
  %6882 = vmax.xlane.f32.xlu0 %v6881
  %v6883 = vpop.xlane.xlu0 %6882
  %v6884 = vsub.f32 %v6876, %v6883
  %v6885 = vmul.f32 %v6884, 1.442695
  %v6886 = vpow.pop %v6885
  %v6887 = vsel %vm159, %v6886, 0.0
  %6888 = vadd.xlane.f32.xlu0 %v6887
  %v6889 = vpop.xlane.xlu0 %6888
  %v6890 = vrcp.pop %v6889
  %v6891 = vmul.f32 %v6886, %v6890
  %v6892 = vpack.c.bf16 %v6891, %v6891
  %6893 = vrot.lane.b32.xlu0 %v6834, 96
  %v6894 = vpop.permute.xlu0 %6893
  %v6896 = vsel %vm159, %v6892, 0
  %v6899 = vsel %vm223, %v6894, 0
  %6901 = vmatprep.subr.bf16.mxu0 0
  %6902 = vmatpush1.bf16.msra.mxu0 %v6899
  %6903 = vmatprep.subr.bf16.mxu0 0
  %6904 = vmatpush1.bf16.msra.mxu0 0
  %6905 = vmatprep.subr.bf16.mxu0 0
  %6906 = vmatpush1.bf16.msra.mxu0 0
  %6907 = vmatprep.subr.bf16.mxu0 0
  %6908 = vmatpush1.bf16.msra.mxu0 0
  %6909 = vmatprep.subr.bf16.mxu0 0
  %6910 = vmatpush1.bf16.msra.mxu0 0
  %6911 = vmatprep.subr.bf16.mxu0 0
  %6912 = vmatpush1.bf16.msra.mxu0 0
  %6913 = vmatprep.subr.bf16.mxu0 0
  %6914 = vmatpush1.bf16.msra.mxu0 0
  %6915 = vmatprep.subr.bf16.mxu0 0
  %6916 = vmatpush1.bf16.msra.mxu0 0
  %6917 = vmatprep.subr.bf16.mxu0 0
  %6918 = vmatpush1.bf16.msra.mxu0 0
  %6919 = vmatprep.subr.bf16.mxu0 0
  %6920 = vmatpush1.bf16.msra.mxu0 0
  %6921 = vmatprep.subr.bf16.mxu0 0
  %6922 = vmatpush1.bf16.msra.mxu0 0
  %6923 = vmatprep.subr.bf16.mxu0 0
  %6924 = vmatpush1.bf16.msra.mxu0 0
  %6925 = vmatprep.subr.bf16.mxu0 0
  %6926 = vmatpush1.bf16.msra.mxu0 0
  %6927 = vmatprep.subr.bf16.mxu0 0
  %6928 = vmatpush1.bf16.msra.mxu0 0
  %6929 = vmatprep.subr.bf16.mxu0 0
  %6930 = vmatpush1.bf16.msra.mxu0 0
  %6931 = vmatprep.subr.bf16.mxu0 0
  %6932 = vmatpush1.bf16.msra.mxu0 0
  %6933 = vmatprep.mubr.bf16.mxu0 0
  %6934 = vmatmul.mubr.bf16.gmra.mrb[0].mxu0 %v6896
  %v6935 = vpop.f32.mrb[0].mxu0
  %v6936 = vadd.f32 0.0, %v6935
  %v6937 = vpop.f32.mrb[0].mxu0
  %v6938 = vpop.f32.mrb[0].mxu0
  %v6939 = vpop.f32.mrb[0].mxu0
  %6940 = vdwg.mxu0
  %6941 = vrot.lane.b32.xlu0 %v6833, 120
  %v6942 = vpop.permute.xlu0 %6941
  %6943 = vrot.lane.b32.xlu0 %v6834, 120
  %v6944 = vpop.permute.xlu0 %6943
  %v6946 = vsel %vm159, %v6942, 0
  %v6949 = vsel %vm159, %v6944, 0
  %6951 = vmatprep.subr.bf16.mxu0 0
  %6952 = vmatpush1.bf16.xpose.msra.mxu0 %v6949
  %6953 = vmatprep.subr.bf16.mxu0 0
  %6954 = vmatpush1.bf16.xpose.msra.mxu0 0
  %6955 = vmatprep.subr.bf16.mxu0 0
  %6956 = vmatpush1.bf16.xpose.msra.mxu0 0
  %6957 = vmatprep.subr.bf16.mxu0 0
  %6958 = vmatpush1.bf16.xpose.msra.mxu0 0
  %6959 = vmatprep.subr.bf16.mxu0 0
  %6960 = vmatpush1.bf16.xpose.msra.mxu0 0
  %6961 = vmatprep.subr.bf16.mxu0 0
  %6962 = vmatpush1.bf16.xpose.msra.mxu0 0
  %6963 = vmatprep.subr.bf16.mxu0 0
  %6964 = vmatpush1.bf16.xpose.msra.mxu0 0
  %6965 = vmatprep.subr.bf16.mxu0 0
  %6966 = vmatpush1.bf16.xpose.msra.mxu0 0
  %6967 = vmatprep.subr.bf16.mxu0 0
  %6968 = vmatpush1.bf16.xpose.msra.mxu0 0
  %6969 = vmatprep.subr.bf16.mxu0 0
  %6970 = vmatpush1.bf16.xpose.msra.mxu0 0
  %6971 = vmatprep.subr.bf16.mxu0 0
  %6972 = vmatpush1.bf16.xpose.msra.mxu0 0
  %6973 = vmatprep.subr.bf16.mxu0 0
  %6974 = vmatpush1.bf16.xpose.msra.mxu0 0
  %6975 = vmatprep.subr.bf16.mxu0 0
  %6976 = vmatpush1.bf16.xpose.msra.mxu0 0
  %6977 = vmatprep.subr.bf16.mxu0 0
  %6978 = vmatpush1.bf16.xpose.msra.mxu0 0
  %6979 = vmatprep.subr.bf16.mxu0 0
  %6980 = vmatpush1.bf16.xpose.msra.mxu0 0
  %6981 = vmatprep.subr.bf16.mxu0 0
  %6982 = vmatpush1.bf16.xpose.msra.mxu0 0
  %6983 = vmatprep.mubr.bf16.mxu0 0
  %6984 = vmatmul.mubr.bf16.gmra.mrb[0].mxu0 %v6946
  %v6985 = vpop.f32.mrb[0].mxu0
  %v6986 = vadd.f32 0.0, %v6985
  %v6987 = vpop.f32.mrb[0].mxu0
  %v6988 = vpop.f32.mrb[0].mxu0
  %v6989 = vpop.f32.mrb[0].mxu0
  %6990 = vdwg.mxu0
  %v6991 = vsel %vm159, %v6986, -inf
  %6992 = vmax.xlane.f32.xlu0 %v6991
  %v6993 = vpop.xlane.xlu0 %6992
  %v6994 = vsub.f32 %v6986, %v6993
  %v6995 = vmul.f32 %v6994, 1.442695
  %v6996 = vpow.pop %v6995
  %v6997 = vsel %vm159, %v6996, 0.0
  %6998 = vadd.xlane.f32.xlu0 %v6997
  %v6999 = vpop.xlane.xlu0 %6998
  %v7000 = vrcp.pop %v6999
  %v7001 = vmul.f32 %v6996, %v7000
  %v7002 = vpack.c.bf16 %v7001, %v7001
  %7003 = vrot.lane.b32.xlu0 %v6834, 88
  %v7004 = vpop.permute.xlu0 %7003
  %v7006 = vsel %vm159, %v7002, 0
  %v7009 = vsel %vm223, %v7004, 0
  %7011 = vmatprep.subr.bf16.mxu0 0
  %7012 = vmatpush1.bf16.msra.mxu0 %v7009
  %7013 = vmatprep.subr.bf16.mxu0 0
  %7014 = vmatpush1.bf16.msra.mxu0 0
  %7015 = vmatprep.subr.bf16.mxu0 0
  %7016 = vmatpush1.bf16.msra.mxu0 0
  %7017 = vmatprep.subr.bf16.mxu0 0
  %7018 = vmatpush1.bf16.msra.mxu0 0
  %7019 = vmatprep.subr.bf16.mxu0 0
  %7020 = vmatpush1.bf16.msra.mxu0 0
  %7021 = vmatprep.subr.bf16.mxu0 0
  %7022 = vmatpush1.bf16.msra.mxu0 0
  %7023 = vmatprep.subr.bf16.mxu0 0
  %7024 = vmatpush1.bf16.msra.mxu0 0
  %7025 = vmatprep.subr.bf16.mxu0 0
  %7026 = vmatpush1.bf16.msra.mxu0 0
  %7027 = vmatprep.subr.bf16.mxu0 0
  %7028 = vmatpush1.bf16.msra.mxu0 0
  %7029 = vmatprep.subr.bf16.mxu0 0
  %7030 = vmatpush1.bf16.msra.mxu0 0
  %7031 = vmatprep.subr.bf16.mxu0 0
  %7032 = vmatpush1.bf16.msra.mxu0 0
  %7033 = vmatprep.subr.bf16.mxu0 0
  %7034 = vmatpush1.bf16.msra.mxu0 0
  %7035 = vmatprep.subr.bf16.mxu0 0
  %7036 = vmatpush1.bf16.msra.mxu0 0
  %7037 = vmatprep.subr.bf16.mxu0 0
  %7038 = vmatpush1.bf16.msra.mxu0 0
  %7039 = vmatprep.subr.bf16.mxu0 0
  %7040 = vmatpush1.bf16.msra.mxu0 0
  %7041 = vmatprep.subr.bf16.mxu0 0
  %7042 = vmatpush1.bf16.msra.mxu0 0
  %7043 = vmatprep.mubr.bf16.mxu0 0
  %7044 = vmatmul.mubr.bf16.gmra.mrb[0].mxu0 %v7006
  %v7045 = vpop.f32.mrb[0].mxu0
  %v7046 = vadd.f32 0.0, %v7045
  %v7047 = vpop.f32.mrb[0].mxu0
  %v7048 = vpop.f32.mrb[0].mxu0
  %v7049 = vpop.f32.mrb[0].mxu0
  %7050 = vdwg.mxu0
  %7051 = vrot.lane.b32.xlu0 %v6833, 112
  %v7052 = vpop.permute.xlu0 %7051
  %7053 = vrot.lane.b32.xlu0 %v6834, 112
  %v7054 = vpop.permute.xlu0 %7053
  %v7056 = vsel %vm159, %v7052, 0
  %v7059 = vsel %vm159, %v7054, 0
  %7061 = vmatprep.subr.bf16.mxu0 0
  %7062 = vmatpush1.bf16.xpose.msra.mxu0 %v7059
  %7063 = vmatprep.subr.bf16.mxu0 0
  %7064 = vmatpush1.bf16.xpose.msra.mxu0 0
  %7065 = vmatprep.subr.bf16.mxu0 0
  %7066 = vmatpush1.bf16.xpose.msra.mxu0 0
  %7067 = vmatprep.subr.bf16.mxu0 0
  %7068 = vmatpush1.bf16.xpose.msra.mxu0 0
  %7069 = vmatprep.subr.bf16.mxu0 0
  %7070 = vmatpush1.bf16.xpose.msra.mxu0 0
  %7071 = vmatprep.subr.bf16.mxu0 0
  %7072 = vmatpush1.bf16.xpose.msra.mxu0 0
  %7073 = vmatprep.subr.bf16.mxu0 0
  %7074 = vmatpush1.bf16.xpose.msra.mxu0 0
  %7075 = vmatprep.subr.bf16.mxu0 0
  %7076 = vmatpush1.bf16.xpose.msra.mxu0 0
  %7077 = vmatprep.subr.bf16.mxu0 0
  %7078 = vmatpush1.bf16.xpose.msra.mxu0 0
  %7079 = vmatprep.subr.bf16.mxu0 0
  %7080 = vmatpush1.bf16.xpose.msra.mxu0 0
  %7081 = vmatprep.subr.bf16.mxu0 0
  %7082 = vmatpush1.bf16.xpose.msra.mxu0 0
  %7083 = vmatprep.subr.bf16.mxu0 0
  %7084 = vmatpush1.bf16.xpose.msra.mxu0 0
  %7085 = vmatprep.subr.bf16.mxu0 0
  %7086 = vmatpush1.bf16.xpose.msra.mxu0 0
  %7087 = vmatprep.subr.bf16.mxu0 0
  %7088 = vmatpush1.bf16.xpose.msra.mxu0 0
  %7089 = vmatprep.subr.bf16.mxu0 0
  %7090 = vmatpush1.bf16.xpose.msra.mxu0 0
  %7091 = vmatprep.subr.bf16.mxu0 0
  %7092 = vmatpush1.bf16.xpose.msra.mxu0 0
  %7093 = vmatprep.mubr.bf16.mxu0 0
  %7094 = vmatmul.mubr.bf16.gmra.mrb[0].mxu0 %v7056
  %v7095 = vpop.f32.mrb[0].mxu0
  %v7096 = vadd.f32 0.0, %v7095
  %v7097 = vpop.f32.mrb[0].mxu0
  %v7098 = vpop.f32.mrb[0].mxu0
  %v7099 = vpop.f32.mrb[0].mxu0
  %7100 = vdwg.mxu0
  %v7101 = vsel %vm159, %v7096, -inf
  %7102 = vmax.xlane.f32.xlu0 %v7101
  %v7103 = vpop.xlane.xlu0 %7102
  %v7104 = vsub.f32 %v7096, %v7103
  %v7105 = vmul.f32 %v7104, 1.442695
  %v7106 = vpow.pop %v7105
  %v7107 = vsel %vm159, %v7106, 0.0
  %7108 = vadd.xlane.f32.xlu0 %v7107
  %v7109 = vpop.xlane.xlu0 %7108
  %v7110 = vrcp.pop %v7109
  %v7111 = vmul.f32 %v7106, %v7110
  %v7112 = vpack.c.bf16 %v7111, %v7111
  %7113 = vrot.lane.b32.xlu0 %v6834, 80
  %v7114 = vpop.permute.xlu0 %7113
  %v7116 = vsel %vm159, %v7112, 0
  %v7119 = vsel %vm223, %v7114, 0
  %7121 = vmatprep.subr.bf16.mxu0 0
  %7122 = vmatpush1.bf16.msra.mxu0 %v7119
  %7123 = vmatprep.subr.bf16.mxu0 0
  %7124 = vmatpush1.bf16.msra.mxu0 0
  %7125 = vmatprep.subr.bf16.mxu0 0
  %7126 = vmatpush1.bf16.msra.mxu0 0
  %7127 = vmatprep.subr.bf16.mxu0 0
  %7128 = vmatpush1.bf16.msra.mxu0 0
  %7129 = vmatprep.subr.bf16.mxu0 0
  %7130 = vmatpush1.bf16.msra.mxu0 0
  %7131 = vmatprep.subr.bf16.mxu0 0
  %7132 = vmatpush1.bf16.msra.mxu0 0
  %7133 = vmatprep.subr.bf16.mxu0 0
  %7134 = vmatpush1.bf16.msra.mxu0 0
  %7135 = vmatprep.subr.bf16.mxu0 0
  %7136 = vmatpush1.bf16.msra.mxu0 0
  %7137 = vmatprep.subr.bf16.mxu0 0
  %7138 = vmatpush1.bf16.msra.mxu0 0
  %7139 = vmatprep.subr.bf16.mxu0 0
  %7140 = vmatpush1.bf16.msra.mxu0 0
  %7141 = vmatprep.subr.bf16.mxu0 0
  %7142 = vmatpush1.bf16.msra.mxu0 0
  %7143 = vmatprep.subr.bf16.mxu0 0
  %7144 = vmatpush1.bf16.msra.mxu0 0
  %7145 = vmatprep.subr.bf16.mxu0 0
  %7146 = vmatpush1.bf16.msra.mxu0 0
  %7147 = vmatprep.subr.bf16.mxu0 0
  %7148 = vmatpush1.bf16.msra.mxu0 0
  %7149 = vmatprep.subr.bf16.mxu0 0
  %7150 = vmatpush1.bf16.msra.mxu0 0
  %7151 = vmatprep.subr.bf16.mxu0 0
  %7152 = vmatpush1.bf16.msra.mxu0 0
  %7153 = vmatprep.mubr.bf16.mxu0 0
  %7154 = vmatmul.mubr.bf16.gmra.mrb[0].mxu0 %v7116
  %v7155 = vpop.f32.mrb[0].mxu0
  %v7156 = vadd.f32 0.0, %v7155
  %v7157 = vpop.f32.mrb[0].mxu0
  %v7158 = vpop.f32.mrb[0].mxu0
  %v7159 = vpop.f32.mrb[0].mxu0
  %7160 = vdwg.mxu0
  %7161 = vrot.lane.b32.xlu0 %v6833, 104
  %v7162 = vpop.permute.xlu0 %7161
  %7163 = vrot.lane.b32.xlu0 %v6834, 104
  %v7164 = vpop.permute.xlu0 %7163
  %v7166 = vsel %vm159, %v7162, 0
  %v7169 = vsel %vm159, %v7164, 0
  %7171 = vmatprep.subr.bf16.mxu0 0
  %7172 = vmatpush1.bf16.xpose.msra.mxu0 %v7169
  %7173 = vmatprep.subr.bf16.mxu0 0
  %7174 = vmatpush1.bf16.xpose.msra.mxu0 0
  %7175 = vmatprep.subr.bf16.mxu0 0
  %7176 = vmatpush1.bf16.xpose.msra.mxu0 0
  %7177 = vmatprep.subr.bf16.mxu0 0
  %7178 = vmatpush1.bf16.xpose.msra.mxu0 0
  %7179 = vmatprep.subr.bf16.mxu0 0
  %7180 = vmatpush1.bf16.xpose.msra.mxu0 0
  %7181 = vmatprep.subr.bf16.mxu0 0
  %7182 = vmatpush1.bf16.xpose.msra.mxu0 0
  %7183 = vmatprep.subr.bf16.mxu0 0
  %7184 = vmatpush1.bf16.xpose.msra.mxu0 0
  %7185 = vmatprep.subr.bf16.mxu0 0
  %7186 = vmatpush1.bf16.xpose.msra.mxu0 0
  %7187 = vmatprep.subr.bf16.mxu0 0
  %7188 = vmatpush1.bf16.xpose.msra.mxu0 0
  %7189 = vmatprep.subr.bf16.mxu0 0
  %7190 = vmatpush1.bf16.xpose.msra.mxu0 0
  %7191 = vmatprep.subr.bf16.mxu0 0
  %7192 = vmatpush1.bf16.xpose.msra.mxu0 0
  %7193 = vmatprep.subr.bf16.mxu0 0
  %7194 = vmatpush1.bf16.xpose.msra.mxu0 0
  %7195 = vmatprep.subr.bf16.mxu0 0
  %7196 = vmatpush1.bf16.xpose.msra.mxu0 0
  %7197 = vmatprep.subr.bf16.mxu0 0
  %7198 = vmatpush1.bf16.xpose.msra.mxu0 0
  %7199 = vmatprep.subr.bf16.mxu0 0
  %7200 = vmatpush1.bf16.xpose.msra.mxu0 0
  %7201 = vmatprep.subr.bf16.mxu0 0
  %7202 = vmatpush1.bf16.xpose.msra.mxu0 0
  %7203 = vmatprep.mubr.bf16.mxu0 0
  %7204 = vmatmul.mubr.bf16.gmra.mrb[0].mxu0 %v7166
  %v7205 = vpop.f32.mrb[0].mxu0
  %v7206 = vadd.f32 0.0, %v7205
  %v7207 = vpop.f32.mrb[0].mxu0
  %v7208 = vpop.f32.mrb[0].mxu0
  %v7209 = vpop.f32.mrb[0].mxu0
  %7210 = vdwg.mxu0
  %v7211 = vsel %vm159, %v7206, -inf
  %7212 = vmax.xlane.f32.xlu0 %v7211
  %v7213 = vpop.xlane.xlu0 %7212
  %v7214 = vsub.f32 %v7206, %v7213
  %v7215 = vmul.f32 %v7214, 1.442695
  %v7216 = vpow.pop %v7215
  %v7217 = vsel %vm159, %v7216, 0.0
  %7218 = vadd.xlane.f32.xlu0 %v7217
  %v7219 = vpop.xlane.xlu0 %7218
  %v7220 = vrcp.pop %v7219
  %v7221 = vmul.f32 %v7216, %v7220
  %v7222 = vpack.c.bf16 %v7221, %v7221
  %7223 = vrot.lane.b32.xlu0 %v6834, 72
  %v7224 = vpop.permute.xlu0 %7223
  %v7226 = vsel %vm159, %v7222, 0
  %v7229 = vsel %vm223, %v7224, 0
  %7231 = vmatprep.subr.bf16.mxu0 0
  %7232 = vmatpush1.bf16.msra.mxu0 %v7229
  %7233 = vmatprep.subr.bf16.mxu0 0
  %7234 = vmatpush1.bf16.msra.mxu0 0
  %7235 = vmatprep.subr.bf16.mxu0 0
  %7236 = vmatpush1.bf16.msra.mxu0 0
  %7237 = vmatprep.subr.bf16.mxu0 0
  %7238 = vmatpush1.bf16.msra.mxu0 0
  %7239 = vmatprep.subr.bf16.mxu0 0
  %7240 = vmatpush1.bf16.msra.mxu0 0
  %7241 = vmatprep.subr.bf16.mxu0 0
  %7242 = vmatpush1.bf16.msra.mxu0 0
  %7243 = vmatprep.subr.bf16.mxu0 0
  %7244 = vmatpush1.bf16.msra.mxu0 0
  %7245 = vmatprep.subr.bf16.mxu0 0
  %7246 = vmatpush1.bf16.msra.mxu0 0
  %7247 = vmatprep.subr.bf16.mxu0 0
  %7248 = vmatpush1.bf16.msra.mxu0 0
  %7249 = vmatprep.subr.bf16.mxu0 0
  %7250 = vmatpush1.bf16.msra.mxu0 0
  %7251 = vmatprep.subr.bf16.mxu0 0
  %7252 = vmatpush1.bf16.msra.mxu0 0
  %7253 = vmatprep.subr.bf16.mxu0 0
  %7254 = vmatpush1.bf16.msra.mxu0 0
  %7255 = vmatprep.subr.bf16.mxu0 0
  %7256 = vmatpush1.bf16.msra.mxu0 0
  %7257 = vmatprep.subr.bf16.mxu0 0
  %7258 = vmatpush1.bf16.msra.mxu0 0
  %7259 = vmatprep.subr.bf16.mxu0 0
  %7260 = vmatpush1.bf16.msra.mxu0 0
  %7261 = vmatprep.subr.bf16.mxu0 0
  %7262 = vmatpush1.bf16.msra.mxu0 0
  %7263 = vmatprep.mubr.bf16.mxu0 0
  %7264 = vmatmul.mubr.bf16.gmra.mrb[0].mxu0 %v7226
  %v7265 = vpop.f32.mrb[0].mxu0
  %v7266 = vadd.f32 0.0, %v7265
  %v7267 = vpop.f32.mrb[0].mxu0
  %v7268 = vpop.f32.mrb[0].mxu0
  %v7269 = vpop.f32.mrb[0].mxu0
  %7270 = vdwg.mxu0
  %7272 = vrot.lane.b32.xlu0 %v7046, 8
  %v7273 = vpop.permute.xlu0 %7272
  %7276 = vrot.lane.b32.xlu0 %v7156, 16
  %v7277 = vpop.permute.xlu0 %7276
  %7280 = vrot.lane.b32.xlu0 %v7266, 24
  %v7281 = vpop.permute.xlu0 %7280
  %v7283 = vsel %vm159, %v6936, %v7273
  %v7284 = vsel %vm43, %v7283, %v7277
  %v7285 = vsel %vm611, %v7284, %v7281
  %v7286 = vld [vmem:[%s1 + $0x118] sm:$0xf]
  %v7287 = vld [vmem:[%s1 + $0x11c] sm:$0xf]
  %v7288 = vld [vmem:[%s1 + $0x120] sm:$0xf]
  %v7289 = vld [vmem:[%s1 + $0x124] sm:$0xf]
  %v7290 = vpack.c.bf16 %v7285, %v6832
  %v7291 = vld [vmem:[%s4 + $0x17] sm:$0x1]
  %v7292 = vlaneseq
  %v7293 = vshrl.u32 %v7292, 7
  %v7294 = vsub.s32 0, %v7293
  %v7295 = vrot.slane %v7291, %v7294
  %v7300 = vunpack.c.l.b16 %v7286
  %v7301 = vunpack.c.l.b16 %v7287
  %v7302 = vunpack.c.l.b16 %v7288
  %v7303 = vunpack.c.l.b16 %v7289
  %v7304 = vpack.c.b16 %v7301, %v7300
  %v7305 = vpack.c.b16 %v7303, %v7302
  %v7309 = vsel %vm110, %v7290, 0
  %7311 = vmatprep.subr.bf16.mxu0 0
  %7312 = vmatpush1.bf16.msra.mxu0 %v7304
  %7313 = vmatprep.subr.bf16.mxu0 0
  %7314 = vmatpush1.bf16.msra.mxu0 %v7305
  %7315 = vmatprep.subr.bf16.mxu0 0
  %7316 = vmatpush1.bf16.msra.mxu0 0
  %7317 = vmatprep.subr.bf16.mxu0 0
  %7318 = vmatpush1.bf16.msra.mxu0 0
  %7319 = vmatprep.subr.bf16.mxu0 0
  %7320 = vmatpush1.bf16.msra.mxu0 0
  %7321 = vmatprep.subr.bf16.mxu0 0
  %7322 = vmatpush1.bf16.msra.mxu0 0
  %7323 = vmatprep.subr.bf16.mxu0 0
  %7324 = vmatpush1.bf16.msra.mxu0 0
  %7325 = vmatprep.subr.bf16.mxu0 0
  %7326 = vmatpush1.bf16.msra.mxu0 0
  %7327 = vmatprep.subr.bf16.mxu0 0
  %7328 = vmatpush1.bf16.msra.mxu0 0
  %7329 = vmatprep.subr.bf16.mxu0 0
  %7330 = vmatpush1.bf16.msra.mxu0 0
  %7331 = vmatprep.subr.bf16.mxu0 0
  %7332 = vmatpush1.bf16.msra.mxu0 0
  %7333 = vmatprep.subr.bf16.mxu0 0
  %7334 = vmatpush1.bf16.msra.mxu0 0
  %7335 = vmatprep.subr.bf16.mxu0 0
  %7336 = vmatpush1.bf16.msra.mxu0 0
  %7337 = vmatprep.subr.bf16.mxu0 0
  %7338 = vmatpush1.bf16.msra.mxu0 0
  %7339 = vmatprep.subr.bf16.mxu0 0
  %7340 = vmatpush1.bf16.msra.mxu0 0
  %7341 = vmatprep.subr.bf16.mxu0 0
  %7342 = vmatpush1.bf16.msra.mxu0 0
  %7343 = vmatprep.mubr.bf16.mxu0 0
  %7344 = vmatmul.mubr.bf16.gmra.mrb[0].mxu0 %v7309
  %v7345 = vpop.f32.mrb[0].mxu0
  %v7346 = vadd.f32 %v7295, %v7345
  %v7347 = vpop.f32.mrb[0].mxu0
  %v7348 = vpop.f32.mrb[0].mxu0
  %v7349 = vadd.f32 %v7295, %v7348
  %v7350 = vpop.f32.mrb[0].mxu0
  %7351 = vdwg.mxu0
  %v7352 = vadd.f32 %v6259, %v7346
  %v7353 = vadd.f32 %v6260, %v7349
  %v7354 = vld [vmem:[%s4 + $0x1b] sm:$0x1]
  %v7355 = vld [vmem:[%s4 + $0x1c] sm:$0x1]
  %v7356 = vsel %vm110, %v7352, 0.0
  %7357 = vadd.xlane.f32.xlu0 %v7356
  %v7358 = vpop.xlane.xlu0 %7357
  %v7359 = vsel %vm110, %v7353, 0.0
  %7360 = vadd.xlane.f32.xlu0 %v7359
  %v7361 = vpop.xlane.xlu0 %7360
  %v7362 = vmul.f32 %v7358, %v1143
  %v7363 = vmul.f32 %v7361, %v1143
  %v7364 = vsub.f32 %v7352, %v7362
  %v7365 = vsub.f32 %v7353, %v7363
  %v7366 = vmul.f32 %v7364, %v7364
  %v7367 = vmul.f32 %v7365, %v7365
  %v7368 = vsel %vm110, %v7366, 0.0
  %7369 = vadd.xlane.f32.xlu0 %v7368
  %v7370 = vpop.xlane.xlu0 %7369
  %v7371 = vsel %vm110, %v7367, 0.0
  %7372 = vadd.xlane.f32.xlu0 %v7371
  %v7373 = vpop.xlane.xlu0 %7372
  %v7374 = vmul.f32 %v7370, %v1143
  %v7375 = vmul.f32 %v7373, %v1143
  %v7376 = vadd.f32 %v7374, 1e-05
  %v7377 = vadd.f32 %v7375, 1e-05
  %v7378 = vrsqrt.pop %v7376
  %v7379 = vrsqrt.pop %v7377
  %v7380 = vmul.f32 %v7364, %v7378
  %v7381 = vmul.f32 %v7365, %v7379
  %v7382 = vlaneseq
  %v7383 = vshrl.u32 %v7382, 7
  %v7384 = vsub.s32 0, %v7383
  %v7385 = vrot.slane %v7354, %v7384
  %v7386 = vmul.f32 %v7380, %v7385
  %v7387 = vmul.f32 %v7381, %v7385
  %v7388 = vlaneseq
  %v7389 = vshrl.u32 %v7388, 7
  %v7390 = vsub.s32 0, %v7389
  %v7391 = vrot.slane %v7355, %v7390
  %v7392 = vadd.f32 %v7386, %v7391
  %v7393 = vadd.f32 %v7387, %v7391
  %v7394 = vld [vmem:[%s3 + $0x30] sm:$0xf]
  %v7395 = vld [vmem:[%s3 + $0x34] sm:$0xf]
  %v7396 = vld [vmem:[%s3 + $0x38] sm:$0xf]
  %v7397 = vld [vmem:[%s3 + $0x3c] sm:$0xf]
  %v7398 = vpack.c.bf16 %v7393, %v7392
  %v7399 = vld [vmem:[%s6 + $0x3] sm:$0x1]
  %v7400 = vlaneseq
  %v7401 = vshrl.u32 %v7400, 7
  %v7402 = vsub.s32 0, %v7401
  %v7403 = vrot.slane %v7399, %v7402
  %v7408 = vunpack.c.l.b16 %v7394
  %v7409 = vunpack.c.l.b16 %v7395
  %v7410 = vunpack.c.l.b16 %v7396
  %v7411 = vunpack.c.l.b16 %v7397
  %v7412 = vpack.c.b16 %v7409, %v7408
  %v7413 = vpack.c.b16 %v7411, %v7410
  %v7417 = vsel %vm110, %v7398, 0
  %7419 = vmatprep.subr.bf16.mxu0 0
  %7420 = vmatpush1.bf16.msra.mxu0 %v7412
  %7421 = vmatprep.subr.bf16.mxu0 0
  %7422 = vmatpush1.bf16.msra.mxu0 %v7413
  %7423 = vmatprep.subr.bf16.mxu0 0
  %7424 = vmatpush1.bf16.msra.mxu0 0
  %7425 = vmatprep.subr.bf16.mxu0 0
  %7426 = vmatpush1.bf16.msra.mxu0 0
  %7427 = vmatprep.subr.bf16.mxu0 0
  %7428 = vmatpush1.bf16.msra.mxu0 0
  %7429 = vmatprep.subr.bf16.mxu0 0
  %7430 = vmatpush1.bf16.msra.mxu0 0
  %7431 = vmatprep.subr.bf16.mxu0 0
  %7432 = vmatpush1.bf16.msra.mxu0 0
  %7433 = vmatprep.subr.bf16.mxu0 0
  %7434 = vmatpush1.bf16.msra.mxu0 0
  %7435 = vmatprep.subr.bf16.mxu0 0
  %7436 = vmatpush1.bf16.msra.mxu0 0
  %7437 = vmatprep.subr.bf16.mxu0 0
  %7438 = vmatpush1.bf16.msra.mxu0 0
  %7439 = vmatprep.subr.bf16.mxu0 0
  %7440 = vmatpush1.bf16.msra.mxu0 0
  %7441 = vmatprep.subr.bf16.mxu0 0
  %7442 = vmatpush1.bf16.msra.mxu0 0
  %7443 = vmatprep.subr.bf16.mxu0 0
  %7444 = vmatpush1.bf16.msra.mxu0 0
  %7445 = vmatprep.subr.bf16.mxu0 0
  %7446 = vmatpush1.bf16.msra.mxu0 0
  %7447 = vmatprep.subr.bf16.mxu0 0
  %7448 = vmatpush1.bf16.msra.mxu0 0
  %7449 = vmatprep.subr.bf16.mxu0 0
  %7450 = vmatpush1.bf16.msra.mxu0 0
  %7451 = vmatprep.mubr.bf16.mxu0 0
  %7452 = vmatmul.mubr.bf16.gmra.mrb[0].mxu0 %v7417
  %v7453 = vpop.f32.mrb[0].mxu0
  %v7454 = vadd.f32 %v7403, %v7453
  %v7455 = vpop.f32.mrb[0].mxu0
  %v7456 = vpop.f32.mrb[0].mxu0
  %v7457 = vadd.f32 %v7403, %v7456
  %v7458 = vpop.f32.mrb[0].mxu0
  %7459 = vdwg.mxu0
  %v7460 = vmax.f32 %v7454, 0.0
  %v7461 = vmax.f32 %v7457, 0.0
  %v7462 = vld [vmem:[%s1 + $0x128] sm:$0xf]
  %v7463 = vld [vmem:[%s1 + $0x12c] sm:$0xf]
  %v7464 = vld [vmem:[%s1 + $0x130] sm:$0xf]
  %v7465 = vld [vmem:[%s1 + $0x134] sm:$0xf]
  %v7466 = vld [vmem:[%s1 + $0x138] sm:$0xf]
  %v7467 = vld [vmem:[%s1 + $0x13c] sm:$0xf]
  %v7468 = vld [vmem:[%s1 + $0x140] sm:$0xf]
  %v7469 = vld [vmem:[%s1 + $0x144] sm:$0xf]
  %v7470 = vld [vmem:[%s1 + $0x148] sm:$0xf]
  %v7471 = vld [vmem:[%s1 + $0x14c] sm:$0xf]
  %v7472 = vld [vmem:[%s1 + $0x150] sm:$0xf]
  %v7473 = vld [vmem:[%s1 + $0x154] sm:$0xf]
  %v7474 = vld [vmem:[%s1 + $0x158] sm:$0xf]
  %v7475 = vld [vmem:[%s1 + $0x15c] sm:$0xf]
  %v7476 = vld [vmem:[%s1 + $0x160] sm:$0xf]
  %v7477 = vld [vmem:[%s1 + $0x164] sm:$0xf]
  %v7478 = vpack.c.bf16 %v7461, %v7460
  %v7479 = vld [vmem:[%s4 + $0x18] sm:$0x1]
  %v7480 = vlaneseq
  %v7481 = vshrl.u32 %v7480, 7
  %v7482 = vsub.s32 0, %v7481
  %v7483 = vrot.slane %v7479, %v7482
  %v7500 = vunpack.c.l.b16 %v7462
  %v7501 = vunpack.c.l.b16 %v7463
  %v7502 = vunpack.c.l.b16 %v7464
  %v7503 = vunpack.c.l.b16 %v7465
  %v7504 = vunpack.c.l.b16 %v7466
  %v7505 = vunpack.c.l.b16 %v7467
  %v7506 = vunpack.c.l.b16 %v7468
  %v7507 = vunpack.c.l.b16 %v7469
  %v7508 = vunpack.c.l.b16 %v7470
  %v7509 = vunpack.c.l.b16 %v7471
  %v7510 = vunpack.c.l.b16 %v7472
  %v7511 = vunpack.c.l.b16 %v7473
  %v7512 = vunpack.c.l.b16 %v7474
  %v7513 = vunpack.c.l.b16 %v7475
  %v7514 = vunpack.c.l.b16 %v7476
  %v7515 = vunpack.c.l.b16 %v7477
  %v7516 = vpack.c.b16 %v7501, %v7500
  %v7517 = vpack.c.b16 %v7503, %v7502
  %v7518 = vpack.c.b16 %v7505, %v7504
  %v7519 = vpack.c.b16 %v7507, %v7506
  %v7520 = vpack.c.b16 %v7509, %v7508
  %v7521 = vpack.c.b16 %v7511, %v7510
  %v7522 = vpack.c.b16 %v7513, %v7512
  %v7523 = vpack.c.b16 %v7515, %v7514
  %7532 = vmatprep.subr.bf16.mxu0 0
  %7533 = vmatpush1.bf16.msra.mxu0 %v7516
  %7534 = vmatprep.subr.bf16.mxu0 0
  %7535 = vmatpush1.bf16.msra.mxu0 %v7517
  %7536 = vmatprep.subr.bf16.mxu0 0
  %7537 = vmatpush1.bf16.msra.mxu0 %v7518
  %7538 = vmatprep.subr.bf16.mxu0 0
  %7539 = vmatpush1.bf16.msra.mxu0 %v7519
  %7540 = vmatprep.subr.bf16.mxu0 0
  %7541 = vmatpush1.bf16.msra.mxu0 %v7520
  %7542 = vmatprep.subr.bf16.mxu0 0
  %7543 = vmatpush1.bf16.msra.mxu0 %v7521
  %7544 = vmatprep.subr.bf16.mxu0 0
  %7545 = vmatpush1.bf16.msra.mxu0 %v7522
  %7546 = vmatprep.subr.bf16.mxu0 0
  %7547 = vmatpush1.bf16.msra.mxu0 %v7523
  %7548 = vmatprep.subr.bf16.mxu0 0
  %7549 = vmatpush1.bf16.msra.mxu0 0
  %7550 = vmatprep.subr.bf16.mxu0 0
  %7551 = vmatpush1.bf16.msra.mxu0 0
  %7552 = vmatprep.subr.bf16.mxu0 0
  %7553 = vmatpush1.bf16.msra.mxu0 0
  %7554 = vmatprep.subr.bf16.mxu0 0
  %7555 = vmatpush1.bf16.msra.mxu0 0
  %7556 = vmatprep.subr.bf16.mxu0 0
  %7557 = vmatpush1.bf16.msra.mxu0 0
  %7558 = vmatprep.subr.bf16.mxu0 0
  %7559 = vmatpush1.bf16.msra.mxu0 0
  %7560 = vmatprep.subr.bf16.mxu0 0
  %7561 = vmatpush1.bf16.msra.mxu0 0
  %7562 = vmatprep.subr.bf16.mxu0 0
  %7563 = vmatpush1.bf16.msra.mxu0 0
  %7564 = vmatprep.mubr.bf16.mxu0 0
  %7565 = vmatmul.mubr.bf16.gmra.mrb[0].mxu0 %v7478
  %v7566 = vpop.f32.mrb[0].mxu0
  %v7567 = vadd.f32 %v7483, %v7566
  %v7568 = vpop.f32.mrb[0].mxu0
  %v7569 = vpop.f32.mrb[0].mxu0
  %v7570 = vadd.f32 %v7483, %v7569
  %v7571 = vpop.f32.mrb[0].mxu0
  %7572 = vdwg.mxu0
  %v7573 = vadd.f32 %v7392, %v7567
  %v7574 = vadd.f32 %v7393, %v7570
  %v7575 = vld [vmem:[%s4 + $0x1d] sm:$0x1]
  %v7576 = vld [vmem:[%s4 + $0x1e] sm:$0x1]
  %v7577 = vsel %vm110, %v7573, 0.0
  %7578 = vadd.xlane.f32.xlu0 %v7577
  %v7579 = vpop.xlane.xlu0 %7578
  %v7580 = vsel %vm110, %v7574, 0.0
  %7581 = vadd.xlane.f32.xlu0 %v7580
  %v7582 = vpop.xlane.xlu0 %7581
  %v7583 = vmul.f32 %v7579, %v1143
  %v7584 = vmul.f32 %v7582, %v1143
  %v7585 = vsub.f32 %v7573, %v7583
  %v7586 = vsub.f32 %v7574, %v7584
  %v7587 = vmul.f32 %v7585, %v7585
  %v7588 = vmul.f32 %v7586, %v7586
  %v7589 = vsel %vm110, %v7587, 0.0
  %7590 = vadd.xlane.f32.xlu0 %v7589
  %v7591 = vpop.xlane.xlu0 %7590
  %v7592 = vsel %vm110, %v7588, 0.0
  %7593 = vadd.xlane.f32.xlu0 %v7592
  %v7594 = vpop.xlane.xlu0 %7593
  %v7595 = vmul.f32 %v7591, %v1143
  %v7596 = vmul.f32 %v7594, %v1143
  %v7597 = vadd.f32 %v7595, 1e-05
  %v7598 = vadd.f32 %v7596, 1e-05
  %v7599 = vrsqrt.pop %v7597
  %v7600 = vrsqrt.pop %v7598
  %v7601 = vmul.f32 %v7585, %v7599
  %v7602 = vmul.f32 %v7586, %v7600
  %v7603 = vlaneseq
  %v7604 = vshrl.u32 %v7603, 7
  %v7605 = vsub.s32 0, %v7604
  %v7606 = vrot.slane %v7575, %v7605
  %v7607 = vmul.f32 %v7601, %v7606
  %v7608 = vmul.f32 %v7602, %v7606
  %v7609 = vlaneseq
  %v7610 = vshrl.u32 %v7609, 7
  %v7611 = vsub.s32 0, %v7610
  %v7612 = vrot.slane %v7576, %v7611
  %v7613 = vadd.f32 %v7607, %v7612
  %v7614 = vadd.f32 %v7608, %v7612
  %v7615 = vld [vmem:[%s4 + $0x21] sm:$0x1]
  %v7616 = vld [vmem:[%s4 + $0x22] sm:$0x1]
  %v7617 = vsel %vm110, %v7613, 0.0
  %7618 = vadd.xlane.f32.xlu0 %v7617
  %v7619 = vpop.xlane.xlu0 %7618
  %v7620 = vsel %vm110, %v7614, 0.0
  %7621 = vadd.xlane.f32.xlu0 %v7620
  %v7622 = vpop.xlane.xlu0 %7621
  %v7623 = vmul.f32 %v7619, %v1143
  %v7624 = vmul.f32 %v7622, %v1143
  %v7625 = vsub.f32 %v7613, %v7623
  %v7626 = vsub.f32 %v7614, %v7624
  %v7627 = vmul.f32 %v7625, %v7625
  %v7628 = vmul.f32 %v7626, %v7626
  %v7629 = vsel %vm110, %v7627, 0.0
  %7630 = vadd.xlane.f32.xlu0 %v7629
  %v7631 = vpop.xlane.xlu0 %7630
  %v7632 = vsel %vm110, %v7628, 0.0
  %7633 = vadd.xlane.f32.xlu0 %v7632
  %v7634 = vpop.xlane.xlu0 %7633
  %v7635 = vmul.f32 %v7631, %v1143
  %v7636 = vmul.f32 %v7634, %v1143
  %v7637 = vadd.f32 %v7635, 1e-05
  %v7638 = vadd.f32 %v7636, 1e-05
  %v7639 = vrsqrt.pop %v7637
  %v7640 = vrsqrt.pop %v7638
  %v7641 = vmul.f32 %v7625, %v7639
  %v7642 = vmul.f32 %v7626, %v7640
  %v7643 = vlaneseq
  %v7644 = vshrl.u32 %v7643, 7
  %v7645 = vsub.s32 0, %v7644
  %v7646 = vrot.slane %v7615, %v7645
  %v7647 = vmul.f32 %v7641, %v7646
  %v7648 = vmul.f32 %v7642, %v7646
  %v7649 = vlaneseq
  %v7650 = vshrl.u32 %v7649, 7
  %v7651 = vsub.s32 0, %v7650
  %v7652 = vrot.slane %v7616, %v7651
  %v7653 = vadd.f32 %v7647, %v7652
  %v7654 = vadd.f32 %v7648, %v7652
  %7655 = vst.msk [vmem:[%s7] sm:$0xff] %vm110, %v7653
  %7656 = vst.msk [vmem:[%s7 + $0x8] sm:$0xff] %vm110, %v7654
  // Predicated region
  $region30: #{simple_transformer_forward.1} parent=0 // pred_check
    _
  $region31: #{simple_transformer_forward.1} parent=0 // pred_check_branch
    %7658 = sbr.rel (0) target = $region33
  $region32: #{simple_transformer_forward.1} parent=0 // pred_region
    _
  $region33: #{simple_transformer_forward.1} parent=0 // pred_fallthru
    _
  // Predicated region
  $region34: #{simple_transformer_forward.1} parent=0 // pred_check
    _
  $region35: #{simple_transformer_forward.1} parent=0 // pred_check_branch
    %7660 = sbr.rel (0) target = $region37
  $region36: #{simple_transformer_forward.1} parent=0 // pred_region
    _
  $region37: #{simple_transformer_forward.1} parent=0 // pred_fallthru
    _

</llo_original>
